<compile_context>
chip_gen: v6e
topology: v6e:2x2x1
jax: 0.10.0
libtpu: 0.0.40
codegen_flags: <defaults>
</compile_context>

<pallas_src>
import jax
import jax.numpy as jnp
import numpy as np
from jax.experimental import pallas as pl
from jax.experimental.pallas import tpu as pltpu

# ----- model hyper-parameters (from the PyTorch module) -----
NUM_EMBEDDINGS = 128
CONTEXT_LENGTH = 16
NUM_HEADS = 8
NUM_LAYERS = 8
HEAD_SIZE = NUM_EMBEDDINGS // NUM_HEADS      # 16
FF_INNER = 4 * NUM_EMBEDDINGS                # 512
VOCAB_SIZE = 65                              # synthetic vocab (chars of `text` undefined here)
VOCAB_PAD = 128                              # lane-dense padded head width
LN_EPS = 1e-5
NEG_INF = -1e30


def make_layer_kernel(batch: int, seq: int):
    """One transformer block per grid step; residual stream lives in the output ref."""
    E = NUM_EMBEDDINGS

    def kernel(x_ref,                        # (B*T, E) embeddings (f32)
               ln1g_ref, ln1b_ref,           # (1, 1, E)
               wqkv_ref,                     # (1, E, 3E) bf16  [Wq | Wk | Wv]
               wp_ref, bp_ref,               # (1, E, E) bf16, (1, 1, E)
               ln2g_ref, ln2b_ref,           # (1, 1, E)
               w1_ref, b1_ref,               # (1, E, 4E) bf16, (1, 1, 4E)
               w2_ref, b2_ref,               # (1, 4E, E) bf16, (1, 1, E)
               xout_ref,                     # (B*T, E) output / residual carry (f32)
               qkv_scr,                      # VMEM (B*T, 3E) f32
               attn_scr):                    # VMEM (B*T, E)  f32 (concat of head outputs)
        layer = pl.program_id(0)

        @pl.when(layer == 0)
        def _():
            xout_ref[...] = x_ref[...]

        x = xout_ref[...]                    # (B*T, E)

        def layer_norm(v, g, b):
            mu = jnp.mean(v, axis=-1, keepdims=True)
            var = jnp.mean((v - mu) ** 2, axis=-1, keepdims=True)
            return (v - mu) * jax.lax.rsqrt(var + LN_EPS) * g + b

        # ---- multi-head causal self-attention (pre-LN) ----
        xn = layer_norm(x, ln1g_ref[0], ln1b_ref[0])

        # fused QKV: one wide MXU push, staged to VMEM scratch for per-head reads
        qkv_scr[...] = jnp.dot(xn, wqkv_ref[0].astype(jnp.float32),
                               preferred_element_type=jnp.float32)      # (B*T, 3E)

        row = jax.lax.broadcasted_iota(jnp.int32, (seq, seq), 0)
        col = jax.lax.broadcasted_iota(jnp.int32, (seq, seq), 1)
        causal = row >= col
        scale = 1.0 / (HEAD_SIZE ** 0.5)

        for b in range(batch):               # static unrolled (tiny B)
            rows = pl.ds(b * seq, seq)
            for h in range(NUM_HEADS):       # static unrolled loop over heads
                lo = h * HEAD_SIZE
                q = qkv_scr[rows, pl.ds(lo, HEAD_SIZE)]                  # (T, hs)
                k = qkv_scr[rows, pl.ds(E + lo, HEAD_SIZE)]
                v = qkv_scr[rows, pl.ds(2 * E + lo, HEAD_SIZE)]
                s = jnp.dot(q, k.T, preferred_element_type=jnp.float32) * scale
                s = jnp.where(causal, s, NEG_INF)
                s = s - jnp.max(s, axis=-1, keepdims=True)
                p = jnp.exp(s)
                p = p * pl.reciprocal(jnp.sum(p, axis=-1, keepdims=True), approx=True)
                attn_scr[rows, pl.ds(lo, HEAD_SIZE)] = jnp.dot(
                    p, v, preferred_element_type=jnp.float32)            # (T, hs)

        # concat-of-heads (already laid out in attn_scr) -> single projection matmul
        attn = jnp.dot(attn_scr[...], wp_ref[0].astype(jnp.float32),
                       preferred_element_type=jnp.float32) + bp_ref[0]
        x = x + attn                         # residual 1 (dropout = identity at inference)

        # ---- feed-forward (pre-LN) ----
        xn2 = layer_norm(x, ln2g_ref[0], ln2b_ref[0])
        h1 = jnp.maximum(
            jnp.dot(xn2, w1_ref[0].astype(jnp.float32),
                    preferred_element_type=jnp.float32) + b1_ref[0], 0.0)
        h2 = jnp.dot(h1, w2_ref[0].astype(jnp.float32),
                     preferred_element_type=jnp.float32) + b2_ref[0]
        xout_ref[...] = x + h2               # residual 2, carried to next layer

    return kernel


def head_kernel(x_ref, lnfg_ref, lnfb_ref, wout_ref, bout_ref, logits_ref):
    """Final LayerNorm + output head; vocab dim pre-padded to 128 lanes."""
    x = x_ref[...]
    mu = jnp.mean(x, axis=-1, keepdims=True)
    var = jnp.mean((x - mu) ** 2, axis=-1, keepdims=True)
    xf = (x - mu) * jax.lax.rsqrt(var + LN_EPS) * lnfg_ref[...] + lnfb_ref[...]
    logits_ref[...] = jnp.dot(xf, wout_ref[...].astype(jnp.float32),
                              preferred_element_type=jnp.float32) + bout_ref[...]


def transformer_forward(ids, p):
    """ids: (B, T) int32 token ids; returns logits (B, T, VOCAB_SIZE) float32."""
    B, T = ids.shape
    E, F, L = NUM_EMBEDDINGS, FF_INNER, NUM_LAYERS
    BT = B * T

    # Embedding gathers are glue, done in plain JAX (no dense hot-path compute here).
    tok = jnp.take(p["tok_emb"], ids, axis=0)            # (B, T, E)
    pos = p["pos_emb"][:T]                               # (T, E)
    x = (tok + pos[None]).astype(jnp.float32).reshape(BT, E)

    def stacked(shape):
        nd = len(shape)
        return pl.BlockSpec((1,) + shape, lambda l, _nd=nd: (l,) + (0,) * _nd)

    layer_call = pl.pallas_call(
        make_layer_kernel(B, T),
        out_shape=jax.ShapeDtypeStruct((BT, E), jnp.float32),
        grid_spec=pltpu.PrefetchScalarGridSpec(
            num_scalar_prefetch=0,
            grid=(L,),                                   # layers only; batch folded into block
            in_specs=[
                pl.BlockSpec((BT, E), lambda l: (0, 0)),       # embeddings (constant block)
                stacked((1, E)), stacked((1, E)),              # ln1 gamma/beta
                stacked((E, 3 * E)),                           # fused Wqkv (bf16)
                stacked((E, E)), stacked((1, E)),              # Wproj (bf16), bproj
                stacked((1, E)), stacked((1, E)),              # ln2 gamma/beta
                stacked((E, F)), stacked((1, F)),              # W1 (bf16), b1
                stacked((F, E)), stacked((1, E)),              # W2 (bf16), b2
            ],
            out_specs=pl.BlockSpec((BT, E), lambda l: (0, 0)), # residual stream, VMEM-resident
            scratch_shapes=[pltpu.VMEM((BT, 3 * E), jnp.float32),
                            pltpu.VMEM((BT, E), jnp.float32)]),
        compiler_params=pltpu.CompilerParams(
            dimension_semantics=("arbitrary",)),         # sequential: residual carry across layers
    )
    x_final = layer_call(
        x,
        p["ln1_g"], p["ln1_b"], p["wqkv"], p["wp"], p["bp"],
        p["ln2_g"], p["ln2_b"], p["w1"], p["b1"], p["w2"], p["b2"])

    head_call = pl.pallas_call(
        head_kernel,
        out_shape=jax.ShapeDtypeStruct((BT, VOCAB_PAD), jnp.float32),
    )
    logits_pad = head_call(x_final, p["lnf_g"], p["lnf_b"], p["wout"], p["bout"])
    return logits_pad.reshape(B, T, VOCAB_PAD)[:, :, :VOCAB_SIZE]


def reference_forward(ids, p):
    """Pure-JAX reference replicating the PyTorch forward (eval mode), f32 math,
    using the same (bf16-stored) weights upcast to f32."""
    B, T = ids.shape
    E, HS = NUM_EMBEDDINGS, HEAD_SIZE
    x = p["tok_emb"][ids] + p["pos_emb"][:T][None]

    def ln(v, g, b):
        mu = v.mean(-1, keepdims=True)
        var = ((v - mu) ** 2).mean(-1, keepdims=True)
        return (v - mu) / jnp.sqrt(var + LN_EPS) * g + b

    mask = jnp.tril(jnp.ones((T, T), dtype=bool))
    for l in range(NUM_LAYERS):
        wqkv = p["wqkv"][l].astype(jnp.float32)
        wp = p["wp"][l].astype(jnp.float32)
        w1 = p["w1"][l].astype(jnp.float32)
        w2 = p["w2"][l].astype(jnp.float32)

        xn = ln(x, p["ln1_g"][l, 0], p["ln1_b"][l, 0])
        qkv = xn @ wqkv
        q, k, v = qkv[..., :E], qkv[..., E:2 * E], qkv[..., 2 * E:]
        heads = []
        for h in range(NUM_HEADS):
            sl = slice(h * HS, (h + 1) * HS)
            s = (q[..., sl] @ jnp.swapaxes(k[..., sl], -1, -2)) / HS ** 0.5
            s = jnp.where(mask, s, -jnp.inf)
            w = jax.nn.softmax(s, axis=-1)
            heads.append(w @ v[..., sl])
        attn = jnp.concatenate(heads, -1) @ wp + p["bp"][l, 0]
        x = x + attn
        xn2 = ln(x, p["ln2_g"][l, 0], p["ln2_b"][l, 0])
        ff = jnp.maximum(xn2 @ w1 + p["b1"][l, 0], 0.0) @ w2 + p["b2"][l, 0]
        x = x + ff
    xf = ln(x, p["lnf_g"][0], p["lnf_b"][0])
    wout = p["wout"][:, :VOCAB_SIZE].astype(jnp.float32)
    bout = p["bout"][0, :VOCAB_SIZE]
    return xf @ wout + bout


def init_params(key):
    E, V, L, F = NUM_EMBEDDINGS, VOCAB_SIZE, NUM_LAYERS, FF_INNER
    ks = jax.random.split(key, 16)

    def nrm(k, shape, scale=0.02):
        return scale * jax.random.normal(k, shape, dtype=jnp.float32)

    wq = nrm(ks[2], (L, E, E))
    wk = nrm(ks[3], (L, E, E))
    wv = nrm(ks[4], (L, E, E))
    wqkv = jnp.concatenate([wq, wk, wv], axis=-1)              # (L, E, 3E)

    wout = nrm(ks[11], (E, V))
    bout = nrm(ks[12], (1, V), 0.01)
    wout_pad = jnp.zeros((E, VOCAB_PAD), jnp.float32).at[:, :V].set(wout)
    bout_pad = jnp.zeros((1, VOCAB_PAD), jnp.float32).at[:, :V].set(bout)

    return {
        "tok_emb": nrm(ks[0], (V, E), 1.0),
        "pos_emb": nrm(ks[1], (CONTEXT_LENGTH, E), 1.0),
        "ln1_g": jnp.ones((L, 1, E), jnp.float32),
        "ln1_b": jnp.zeros((L, 1, E), jnp.float32),
        "wqkv": wqkv.astype(jnp.bfloat16),                     # bf16 in HBM, f32 math in-kernel
        "wp": nrm(ks[5], (L, E, E)).astype(jnp.bfloat16),
        "bp": nrm(ks[6], (L, 1, E), 0.01),
        "ln2_g": jnp.ones((L, 1, E), jnp.float32),
        "ln2_b": jnp.zeros((L, 1, E), jnp.float32),
        "w1": nrm(ks[7], (L, E, F)).astype(jnp.bfloat16),
        "b1": nrm(ks[8], (L, 1, F), 0.01),
        "w2": nrm(ks[9], (L, F, E)).astype(jnp.bfloat16),
        "b2": nrm(ks[10], (L, 1, E), 0.01),
        "lnf_g": jnp.ones((1, E), jnp.float32),
        "lnf_b": jnp.zeros((1, E), jnp.float32),
        "wout": wout_pad.astype(jnp.bfloat16),                 # lane-dense padded head
        "bout": bout_pad,
    }


if __name__ == "__main__":
    key = jax.random.PRNGKey(0)
    pkey, ikey = jax.random.split(key)
    params = init_params(pkey)

    B, T = 2, CONTEXT_LENGTH
    ids = jax.random.randint(ikey, (B, T), 0, VOCAB_SIZE, dtype=jnp.int32)

    logits = jax.block_until_ready(transformer_forward(ids, params))
    ref = jax.block_until_ready(reference_forward(ids, params))

    # tolerance slightly above f32 round-off to accommodate the approximate (EUP)
    # softmax reciprocal; real bugs produce O(1) discrepancies.
    np.testing.assert_allclose(np.asarray(logits), np.asarray(ref), atol=5e-3, rtol=5e-3)

    print("KERNEL_OK")
</pallas_src>

<mosaic_0001>
module attributes {stable_mosaic.version = 11 : i64} {
  func.func @kernel(%arg0: i32, %arg1: memref<32x128xf32, #tpu.memory_space<vmem>>, %arg2: memref<1x1x128xf32, #tpu.memory_space<vmem>>, %arg3: memref<1x1x128xf32, #tpu.memory_space<vmem>>, %arg4: memref<1x128x384xbf16, #tpu.memory_space<vmem>>, %arg5: memref<1x128x128xbf16, #tpu.memory_space<vmem>>, %arg6: memref<1x1x128xf32, #tpu.memory_space<vmem>>, %arg7: memref<1x1x128xf32, #tpu.memory_space<vmem>>, %arg8: memref<1x1x128xf32, #tpu.memory_space<vmem>>, %arg9: memref<1x128x512xbf16, #tpu.memory_space<vmem>>, %arg10: memref<1x1x512xf32, #tpu.memory_space<vmem>>, %arg11: memref<1x512x128xbf16, #tpu.memory_space<vmem>>, %arg12: memref<1x1x128xf32, #tpu.memory_space<vmem>>, %arg13: memref<32x128xf32, #tpu.memory_space<vmem>>, %arg14: memref<32x384xf32, #tpu.memory_space<vmem>>, %arg15: memref<32x128xf32, #tpu.memory_space<vmem>>) attributes {dimension_semantics = [#tpu.dimension_semantics<arbitrary>], iteration_bounds = array<i64: 8>, scalar_prefetch = 0 : i64, scratch_operands = 2 : i64, tpu.core_type = #tpu.core_type<tc>, window_params = [{pipeline_mode = #tpu.pipeline_mode<synchronous>, transform_indices = @transform_0, window_bounds = array<i64: 32, 128>}, {transform_indices = @transform_1, window_bounds = array<i64: 1, 1, 128>}, {transform_indices = @transform_2, window_bounds = array<i64: 1, 1, 128>}, {transform_indices = @transform_3, window_bounds = array<i64: 1, 128, 384>}, {transform_indices = @transform_4, window_bounds = array<i64: 1, 128, 128>}, {transform_indices = @transform_5, window_bounds = array<i64: 1, 1, 128>}, {transform_indices = @transform_6, window_bounds = array<i64: 1, 1, 128>}, {transform_indices = @transform_7, window_bounds = array<i64: 1, 1, 128>}, {transform_indices = @transform_8, window_bounds = array<i64: 1, 128, 512>}, {transform_indices = @transform_9, window_bounds = array<i64: 1, 1, 512>}, {transform_indices = @transform_10, window_bounds = array<i64: 1, 512, 128>}, {transform_indices = @transform_11, window_bounds = array<i64: 1, 1, 128>}, {pipeline_mode = #tpu.pipeline_mode<synchronous>, transform_indices = @transform_12, window_bounds = array<i64: 32, 128>}]} {
    %c0_i32 = arith.constant 0 : i32
    %0 = arith.cmpi eq, %arg0, %c0_i32 : i32
    %1 = arith.extui %0 : i1 to i32
    %c0_i32_0 = arith.constant 0 : i32
    %2 = arith.cmpi ne, %1, %c0_i32_0 : i32
    scf.if %2 {
      %c0_256 = arith.constant 0 : index
      %c0_257 = arith.constant 0 : index
      %430 = vector.load %arg1[%c0_256, %c0_257] : memref<32x128xf32, #tpu.memory_space<vmem>>, vector<32x128xf32>
      %c0_258 = arith.constant 0 : index
      %c0_259 = arith.constant 0 : index
      %431 = vector.load %arg13[%c0_258, %c0_259] : memref<32x128xf32, #tpu.memory_space<vmem>>, vector<32x128xf32>
      tpu.vector_store %arg13[%c0_258, %c0_259], %430 {strides = array<i32>} : memref<32x128xf32, #tpu.memory_space<vmem>>, vector<32x128xf32>,
    } else {
    }
    %c0 = arith.constant 0 : index
    %c0_1 = arith.constant 0 : index
    %3 = vector.load %arg13[%c0, %c0_1] : memref<32x128xf32, #tpu.memory_space<vmem>>, vector<32x128xf32>
    %c0_2 = arith.constant 0 : index
    %c0_3 = arith.constant 0 : index
    %c0_4 = arith.constant 0 : index
    %4 = vector.load %arg2[%c0_2, %c0_3, %c0_4] : memref<1x1x128xf32, #tpu.memory_space<vmem>>, vector<1x1x128xf32>
    %5 = vector.shape_cast %4 : vector<1x1x128xf32> to vector<1x128xf32>
    %c0_5 = arith.constant 0 : index
    %c0_6 = arith.constant 0 : index
    %c0_7 = arith.constant 0 : index
    %6 = vector.load %arg3[%c0_5, %c0_6, %c0_7] : memref<1x1x128xf32, #tpu.memory_space<vmem>>, vector<1x1x128xf32>
    %7 = vector.shape_cast %6 : vector<1x1x128xf32> to vector<1x128xf32>
    %cst = arith.constant dense<0.000000e+00> : vector<32xf32>
    %8 = vector.multi_reduction <add>, %3, %cst [1] : vector<32x128xf32> to vector<32xf32>
    %9 = vector.shape_cast %8 : vector<32xf32> to vector<32x1xf32>
    %cst_8 = arith.constant 1.280000e+02 : f32
    %10 = vector.broadcast %cst_8 : f32 to vector<32x1xf32>
    %11 = arith.divf %9, %10 : vector<32x1xf32>
    %12 = vector.broadcast %11 : vector<32x1xf32> to vector<32x128xf32>
    %13 = arith.subf %3, %12 : vector<32x128xf32>
    %14 = arith.mulf %13, %13 : vector<32x128xf32>
    %cst_9 = arith.constant dense<0.000000e+00> : vector<32xf32>
    %15 = vector.multi_reduction <add>, %14, %cst_9 [1] : vector<32x128xf32> to vector<32xf32>
    %16 = vector.shape_cast %15 : vector<32xf32> to vector<32x1xf32>
    %cst_10 = arith.constant 1.280000e+02 : f32
    %17 = vector.broadcast %cst_10 : f32 to vector<32x1xf32>
    %18 = arith.divf %16, %17 : vector<32x1xf32>
    %19 = vector.broadcast %11 : vector<32x1xf32> to vector<32x128xf32>
    %20 = arith.subf %3, %19 : vector<32x128xf32>
    %cst_11 = arith.constant 9.99999974E-6 : f32
    %21 = vector.broadcast %cst_11 : f32 to vector<32x1xf32>
    %22 = arith.addf %18, %21 : vector<32x1xf32>
    %23 = math.rsqrt %22 : vector<32x1xf32>
    %24 = vector.broadcast %23 : vector<32x1xf32> to vector<32x128xf32>
    %25 = arith.mulf %20, %24 : vector<32x128xf32>
    %26 = vector.broadcast %5 : vector<1x128xf32> to vector<32x128xf32>
    %27 = arith.mulf %25, %26 : vector<32x128xf32>
    %28 = vector.broadcast %7 : vector<1x128xf32> to vector<32x128xf32>
    %29 = arith.addf %27, %28 : vector<32x128xf32>
    %c0_12 = arith.constant 0 : index
    %c0_13 = arith.constant 0 : index
    %c0_14 = arith.constant 0 : index
    %30 = vector.load %arg4[%c0_12, %c0_13, %c0_14] : memref<1x128x384xbf16, #tpu.memory_space<vmem>>, vector<1x128x384xbf16>
    %31 = vector.shape_cast %30 : vector<1x128x384xbf16> to vector<128x384xbf16>
    %32 = arith.extf %31 : vector<128x384xbf16> to vector<128x384xf32>
    %cst_15 = arith.constant dense<0.000000e+00> : vector<32x384xf32>
    %33 = tpu.matmul %29, %32, %cst_15 {dimension_numbers = #tpu.dot_dimension_numbers<[1], [0], [0], [1], [0, 0, 1, 1], [], []>} : vector<32x128xf32>, vector<128x384xf32>, vector<32x384xf32> -> vector<32x384xf32>
    %c0_16 = arith.constant 0 : index
    %c0_17 = arith.constant 0 : index
    %34 = vector.load %arg14[%c0_16, %c0_17] : memref<32x384xf32, #tpu.memory_space<vmem>>, vector<32x384xf32>
    tpu.vector_store %arg14[%c0_16, %c0_17], %33 {strides = array<i32>} : memref<32x384xf32, #tpu.memory_space<vmem>>, vector<32x384xf32>,
    %35 = tpu.iota {dimensions = array<i32: 0>} : vector<16x16xi32>
    %36 = tpu.iota {dimensions = array<i32: 1>} : vector<16x16xi32>
    %37 = arith.cmpi sge, %35, %36 : vector<16x16xi32>
    %c0_18 = arith.constant 0 : index
    %c0_19 = arith.constant 0 : index
    %38 = vector.load %arg14[%c0_18, %c0_19] : memref<32x384xf32, #tpu.memory_space<vmem>>, vector<16x16xf32>
    %c0_20 = arith.constant 0 : index
    %c128 = arith.constant 128 : index
    %39 = vector.load %arg14[%c0_20, %c128] : memref<32x384xf32, #tpu.memory_space<vmem>>, vector<16x16xf32>
    %c0_21 = arith.constant 0 : index
    %c256 = arith.constant 256 : index
    %40 = vector.load %arg14[%c0_21, %c256] : memref<32x384xf32, #tpu.memory_space<vmem>>, vector<16x16xf32>
    %41 = tpu.transpose %39, [1, 0] : vector<16x16xf32> -> vector<16x16xf32>
    %cst_22 = arith.constant dense<0.000000e+00> : vector<16x16xf32>
    %42 = tpu.matmul %38, %41, %cst_22 {dimension_numbers = #tpu.dot_dimension_numbers<[1], [0], [0], [1], [0, 0, 1, 1], [], []>} : vector<16x16xf32>, vector<16x16xf32>, vector<16x16xf32> -> vector<16x16xf32>
    %cst_23 = arith.constant 2.500000e-01 : f32
    %43 = vector.broadcast %cst_23 : f32 to vector<16x16xf32>
    %44 = arith.mulf %42, %43 : vector<16x16xf32>
    %cst_24 = arith.constant -1.000000e+30 : f32
    %45 = vector.broadcast %cst_24 : f32 to vector<16x16xf32>
    %46 = arith.select %37, %44, %45 : vector<16x16xi1>, vector<16x16xf32>
    %cst_25 = arith.constant dense<0xFF800000> : vector<16xf32>
    %47 = vector.multi_reduction <maximumf>, %46, %cst_25 [1] : vector<16x16xf32> to vector<16xf32>
    %48 = vector.shape_cast %47 : vector<16xf32> to vector<16x1xf32>
    %49 = vector.broadcast %48 : vector<16x1xf32> to vector<16x16xf32>
    %50 = arith.subf %46, %49 : vector<16x16xf32>
    %51 = math.exp %50 : vector<16x16xf32>
    %cst_26 = arith.constant dense<0.000000e+00> : vector<16xf32>
    %52 = vector.multi_reduction <add>, %51, %cst_26 [1] : vector<16x16xf32> to vector<16xf32>
    %53 = vector.shape_cast %52 : vector<16xf32> to vector<16x1xf32>
    %54 = tpu.reciprocal %53 {approx = true} : vector<16x1xf32> -> vector<16x1xf32>
    %55 = vector.broadcast %54 : vector<16x1xf32> to vector<16x16xf32>
    %56 = arith.mulf %51, %55 : vector<16x16xf32>
    %cst_27 = arith.constant dense<0.000000e+00> : vector<16x16xf32>
    %57 = tpu.matmul %56, %40, %cst_27 {dimension_numbers = #tpu.dot_dimension_numbers<[1], [0], [0], [1], [0, 0, 1, 1], [], []>} : vector<16x16xf32>, vector<16x16xf32>, vector<16x16xf32> -> vector<16x16xf32>
    %c0_28 = arith.constant 0 : index
    %c0_29 = arith.constant 0 : index
    %58 = vector.load %arg15[%c0_28, %c0_29] : memref<32x128xf32, #tpu.memory_space<vmem>>, vector<16x16xf32>
    tpu.vector_store %arg15[%c0_28, %c0_29], %57 {strides = array<i32>} : memref<32x128xf32, #tpu.memory_space<vmem>>, vector<16x16xf32>,
    %c0_30 = arith.constant 0 : index
    %c16 = arith.constant 16 : index
    %59 = vector.load %arg14[%c0_30, %c16] : memref<32x384xf32, #tpu.memory_space<vmem>>, vector<16x16xf32>
    %c0_31 = arith.constant 0 : index
    %c144 = arith.constant 144 : index
    %60 = vector.load %arg14[%c0_31, %c144] : memref<32x384xf32, #tpu.memory_space<vmem>>, vector<16x16xf32>
    %c0_32 = arith.constant 0 : index
    %c272 = arith.constant 272 : index
    %61 = vector.load %arg14[%c0_32, %c272] : memref<32x384xf32, #tpu.memory_space<vmem>>, vector<16x16xf32>
    %62 = tpu.transpose %60, [1, 0] : vector<16x16xf32> -> vector<16x16xf32>
    %cst_33 = arith.constant dense<0.000000e+00> : vector<16x16xf32>
    %63 = tpu.matmul %59, %62, %cst_33 {dimension_numbers = #tpu.dot_dimension_numbers<[1], [0], [0], [1], [0, 0, 1, 1], [], []>} : vector<16x16xf32>, vector<16x16xf32>, vector<16x16xf32> -> vector<16x16xf32>
    %cst_34 = arith.constant 2.500000e-01 : f32
    %64 = vector.broadcast %cst_34 : f32 to vector<16x16xf32>
    %65 = arith.mulf %63, %64 : vector<16x16xf32>
    %cst_35 = arith.constant -1.000000e+30 : f32
    %66 = vector.broadcast %cst_35 : f32 to vector<16x16xf32>
    %67 = arith.select %37, %65, %66 : vector<16x16xi1>, vector<16x16xf32>
    %cst_36 = arith.constant dense<0xFF800000> : vector<16xf32>
    %68 = vector.multi_reduction <maximumf>, %67, %cst_36 [1] : vector<16x16xf32> to vector<16xf32>
    %69 = vector.shape_cast %68 : vector<16xf32> to vector<16x1xf32>
    %70 = vector.broadcast %69 : vector<16x1xf32> to vector<16x16xf32>
    %71 = arith.subf %67, %70 : vector<16x16xf32>
    %72 = math.exp %71 : vector<16x16xf32>
    %cst_37 = arith.constant dense<0.000000e+00> : vector<16xf32>
    %73 = vector.multi_reduction <add>, %72, %cst_37 [1] : vector<16x16xf32> to vector<16xf32>
    %74 = vector.shape_cast %73 : vector<16xf32> to vector<16x1xf32>
    %75 = tpu.reciprocal %74 {approx = true} : vector<16x1xf32> -> vector<16x1xf32>
    %76 = vector.broadcast %75 : vector<16x1xf32> to vector<16x16xf32>
    %77 = arith.mulf %72, %76 : vector<16x16xf32>
    %cst_38 = arith.constant dense<0.000000e+00> : vector<16x16xf32>
    %78 = tpu.matmul %77, %61, %cst_38 {dimension_numbers = #tpu.dot_dimension_numbers<[1], [0], [0], [1], [0, 0, 1, 1], [], []>} : vector<16x16xf32>, vector<16x16xf32>, vector<16x16xf32> -> vector<16x16xf32>
    %c0_39 = arith.constant 0 : index
    %c16_40 = arith.constant 16 : index
    %79 = vector.load %arg15[%c0_39, %c16_40] : memref<32x128xf32, #tpu.memory_space<vmem>>, vector<16x16xf32>
    tpu.vector_store %arg15[%c0_39, %c16_40], %78 {strides = array<i32>} : memref<32x128xf32, #tpu.memory_space<vmem>>, vector<16x16xf32>,
    %c0_41 = arith.constant 0 : index
    %c32 = arith.constant 32 : index
    %80 = vector.load %arg14[%c0_41, %c32] : memref<32x384xf32, #tpu.memory_space<vmem>>, vector<16x16xf32>
    %c0_42 = arith.constant 0 : index
    %c160 = arith.constant 160 : index
    %81 = vector.load %arg14[%c0_42, %c160] : memref<32x384xf32, #tpu.memory_space<vmem>>, vector<16x16xf32>
    %c0_43 = arith.constant 0 : index
    %c288 = arith.constant 288 : index
    %82 = vector.load %arg14[%c0_43, %c288] : memref<32x384xf32, #tpu.memory_space<vmem>>, vector<16x16xf32>
    %83 = tpu.transpose %81, [1, 0] : vector<16x16xf32> -> vector<16x16xf32>
    %cst_44 = arith.constant dense<0.000000e+00> : vector<16x16xf32>
    %84 = tpu.matmul %80, %83, %cst_44 {dimension_numbers = #tpu.dot_dimension_numbers<[1], [0], [0], [1], [0, 0, 1, 1], [], []>} : vector<16x16xf32>, vector<16x16xf32>, vector<16x16xf32> -> vector<16x16xf32>
    %cst_45 = arith.constant 2.500000e-01 : f32
    %85 = vector.broadcast %cst_45 : f32 to vector<16x16xf32>
    %86 = arith.mulf %84, %85 : vector<16x16xf32>
    %cst_46 = arith.constant -1.000000e+30 : f32
    %87 = vector.broadcast %cst_46 : f32 to vector<16x16xf32>
    %88 = arith.select %37, %86, %87 : vector<16x16xi1>, vector<16x16xf32>
    %cst_47 = arith.constant dense<0xFF800000> : vector<16xf32>
    %89 = vector.multi_reduction <maximumf>, %88, %cst_47 [1] : vector<16x16xf32> to vector<16xf32>
    %90 = vector.shape_cast %89 : vector<16xf32> to vector<16x1xf32>
    %91 = vector.broadcast %90 : vector<16x1xf32> to vector<16x16xf32>
    %92 = arith.subf %88, %91 : vector<16x16xf32>
    %93 = math.exp %92 : vector<16x16xf32>
    %cst_48 = arith.constant dense<0.000000e+00> : vector<16xf32>
    %94 = vector.multi_reduction <add>, %93, %cst_48 [1] : vector<16x16xf32> to vector<16xf32>
    %95 = vector.shape_cast %94 : vector<16xf32> to vector<16x1xf32>
    %96 = tpu.reciprocal %95 {approx = true} : vector<16x1xf32> -> vector<16x1xf32>
    %97 = vector.broadcast %96 : vector<16x1xf32> to vector<16x16xf32>
    %98 = arith.mulf %93, %97 : vector<16x16xf32>
    %cst_49 = arith.constant dense<0.000000e+00> : vector<16x16xf32>
    %99 = tpu.matmul %98, %82, %cst_49 {dimension_numbers = #tpu.dot_dimension_numbers<[1], [0], [0], [1], [0, 0, 1, 1], [], []>} : vector<16x16xf32>, vector<16x16xf32>, vector<16x16xf32> -> vector<16x16xf32>
    %c0_50 = arith.constant 0 : index
    %c32_51 = arith.constant 32 : index
    %100 = vector.load %arg15[%c0_50, %c32_51] : memref<32x128xf32, #tpu.memory_space<vmem>>, vector<16x16xf32>
    tpu.vector_store %arg15[%c0_50, %c32_51], %99 {strides = array<i32>} : memref<32x128xf32, #tpu.memory_space<vmem>>, vector<16x16xf32>,
    %c0_52 = arith.constant 0 : index
    %c48 = arith.constant 48 : index
    %101 = vector.load %arg14[%c0_52, %c48] : memref<32x384xf32, #tpu.memory_space<vmem>>, vector<16x16xf32>
    %c0_53 = arith.constant 0 : index
    %c176 = arith.constant 176 : index
    %102 = vector.load %arg14[%c0_53, %c176] : memref<32x384xf32, #tpu.memory_space<vmem>>, vector<16x16xf32>
    %c0_54 = arith.constant 0 : index
    %c304 = arith.constant 304 : index
    %103 = vector.load %arg14[%c0_54, %c304] : memref<32x384xf32, #tpu.memory_space<vmem>>, vector<16x16xf32>
    %104 = tpu.transpose %102, [1, 0] : vector<16x16xf32> -> vector<16x16xf32>
    %cst_55 = arith.constant dense<0.000000e+00> : vector<16x16xf32>
    %105 = tpu.matmul %101, %104, %cst_55 {dimension_numbers = #tpu.dot_dimension_numbers<[1], [0], [0], [1], [0, 0, 1, 1], [], []>} : vector<16x16xf32>, vector<16x16xf32>, vector<16x16xf32> -> vector<16x16xf32>
    %cst_56 = arith.constant 2.500000e-01 : f32
    %106 = vector.broadcast %cst_56 : f32 to vector<16x16xf32>
    %107 = arith.mulf %105, %106 : vector<16x16xf32>
    %cst_57 = arith.constant -1.000000e+30 : f32
    %108 = vector.broadcast %cst_57 : f32 to vector<16x16xf32>
    %109 = arith.select %37, %107, %108 : vector<16x16xi1>, vector<16x16xf32>
    %cst_58 = arith.constant dense<0xFF800000> : vector<16xf32>
    %110 = vector.multi_reduction <maximumf>, %109, %cst_58 [1] : vector<16x16xf32> to vector<16xf32>
    %111 = vector.shape_cast %110 : vector<16xf32> to vector<16x1xf32>
    %112 = vector.broadcast %111 : vector<16x1xf32> to vector<16x16xf32>
    %113 = arith.subf %109, %112 : vector<16x16xf32>
    %114 = math.exp %113 : vector<16x16xf32>
    %cst_59 = arith.constant dense<0.000000e+00> : vector<16xf32>
    %115 = vector.multi_reduction <add>, %114, %cst_59 [1] : vector<16x16xf32> to vector<16xf32>
    %116 = vector.shape_cast %115 : vector<16xf32> to vector<16x1xf32>
    %117 = tpu.reciprocal %116 {approx = true} : vector<16x1xf32> -> vector<16x1xf32>
    %118 = vector.broadcast %117 : vector<16x1xf32> to vector<16x16xf32>
    %119 = arith.mulf %114, %118 : vector<16x16xf32>
    %cst_60 = arith.constant dense<0.000000e+00> : vector<16x16xf32>
    %120 = tpu.matmul %119, %103, %cst_60 {dimension_numbers = #tpu.dot_dimension_numbers<[1], [0], [0], [1], [0, 0, 1, 1], [], []>} : vector<16x16xf32>, vector<16x16xf32>, vector<16x16xf32> -> vector<16x16xf32>
    %c0_61 = arith.constant 0 : index
    %c48_62 = arith.constant 48 : index
    %121 = vector.load %arg15[%c0_61, %c48_62] : memref<32x128xf32, #tpu.memory_space<vmem>>, vector<16x16xf32>
    tpu.vector_store %arg15[%c0_61, %c48_62], %120 {strides = array<i32>} : memref<32x128xf32, #tpu.memory_space<vmem>>, vector<16x16xf32>,
    %c0_63 = arith.constant 0 : index
    %c64 = arith.constant 64 : index
    %122 = vector.load %arg14[%c0_63, %c64] : memref<32x384xf32, #tpu.memory_space<vmem>>, vector<16x16xf32>
    %c0_64 = arith.constant 0 : index
    %c192 = arith.constant 192 : index
    %123 = vector.load %arg14[%c0_64, %c192] : memref<32x384xf32, #tpu.memory_space<vmem>>, vector<16x16xf32>
    %c0_65 = arith.constant 0 : index
    %c320 = arith.constant 320 : index
    %124 = vector.load %arg14[%c0_65, %c320] : memref<32x384xf32, #tpu.memory_space<vmem>>, vector<16x16xf32>
    %125 = tpu.transpose %123, [1, 0] : vector<16x16xf32> -> vector<16x16xf32>
    %cst_66 = arith.constant dense<0.000000e+00> : vector<16x16xf32>
    %126 = tpu.matmul %122, %125, %cst_66 {dimension_numbers = #tpu.dot_dimension_numbers<[1], [0], [0], [1], [0, 0, 1, 1], [], []>} : vector<16x16xf32>, vector<16x16xf32>, vector<16x16xf32> -> vector<16x16xf32>
    %cst_67 = arith.constant 2.500000e-01 : f32
    %127 = vector.broadcast %cst_67 : f32 to vector<16x16xf32>
    %128 = arith.mulf %126, %127 : vector<16x16xf32>
    %cst_68 = arith.constant -1.000000e+30 : f32
    %129 = vector.broadcast %cst_68 : f32 to vector<16x16xf32>
    %130 = arith.select %37, %128, %129 : vector<16x16xi1>, vector<16x16xf32>
    %cst_69 = arith.constant dense<0xFF800000> : vector<16xf32>
    %131 = vector.multi_reduction <maximumf>, %130, %cst_69 [1] : vector<16x16xf32> to vector<16xf32>
    %132 = vector.shape_cast %131 : vector<16xf32> to vector<16x1xf32>
    %133 = vector.broadcast %132 : vector<16x1xf32> to vector<16x16xf32>
    %134 = arith.subf %130, %133 : vector<16x16xf32>
    %135 = math.exp %134 : vector<16x16xf32>
    %cst_70 = arith.constant dense<0.000000e+00> : vector<16xf32>
    %136 = vector.multi_reduction <add>, %135, %cst_70 [1] : vector<16x16xf32> to vector<16xf32>
    %137 = vector.shape_cast %136 : vector<16xf32> to vector<16x1xf32>
    %138 = tpu.reciprocal %137 {approx = true} : vector<16x1xf32> -> vector<16x1xf32>
    %139 = vector.broadcast %138 : vector<16x1xf32> to vector<16x16xf32>
    %140 = arith.mulf %135, %139 : vector<16x16xf32>
    %cst_71 = arith.constant dense<0.000000e+00> : vector<16x16xf32>
    %141 = tpu.matmul %140, %124, %cst_71 {dimension_numbers = #tpu.dot_dimension_numbers<[1], [0], [0], [1], [0, 0, 1, 1], [], []>} : vector<16x16xf32>, vector<16x16xf32>, vector<16x16xf32> -> vector<16x16xf32>
    %c0_72 = arith.constant 0 : index
    %c64_73 = arith.constant 64 : index
    %142 = vector.load %arg15[%c0_72, %c64_73] : memref<32x128xf32, #tpu.memory_space<vmem>>, vector<16x16xf32>
    tpu.vector_store %arg15[%c0_72, %c64_73], %141 {strides = array<i32>} : memref<32x128xf32, #tpu.memory_space<vmem>>, vector<16x16xf32>,
    %c0_74 = arith.constant 0 : index
    %c80 = arith.constant 80 : index
    %143 = vector.load %arg14[%c0_74, %c80] : memref<32x384xf32, #tpu.memory_space<vmem>>, vector<16x16xf32>
    %c0_75 = arith.constant 0 : index
    %c208 = arith.constant 208 : index
    %144 = vector.load %arg14[%c0_75, %c208] : memref<32x384xf32, #tpu.memory_space<vmem>>, vector<16x16xf32>
    %c0_76 = arith.constant 0 : index
    %c336 = arith.constant 336 : index
    %145 = vector.load %arg14[%c0_76, %c336] : memref<32x384xf32, #tpu.memory_space<vmem>>, vector<16x16xf32>
    %146 = tpu.transpose %144, [1, 0] : vector<16x16xf32> -> vector<16x16xf32>
    %cst_77 = arith.constant dense<0.000000e+00> : vector<16x16xf32>
    %147 = tpu.matmul %143, %146, %cst_77 {dimension_numbers = #tpu.dot_dimension_numbers<[1], [0], [0], [1], [0, 0, 1, 1], [], []>} : vector<16x16xf32>, vector<16x16xf32>, vector<16x16xf32> -> vector<16x16xf32>
    %cst_78 = arith.constant 2.500000e-01 : f32
    %148 = vector.broadcast %cst_78 : f32 to vector<16x16xf32>
    %149 = arith.mulf %147, %148 : vector<16x16xf32>
    %cst_79 = arith.constant -1.000000e+30 : f32
    %150 = vector.broadcast %cst_79 : f32 to vector<16x16xf32>
    %151 = arith.select %37, %149, %150 : vector<16x16xi1>, vector<16x16xf32>
    %cst_80 = arith.constant dense<0xFF800000> : vector<16xf32>
    %152 = vector.multi_reduction <maximumf>, %151, %cst_80 [1] : vector<16x16xf32> to vector<16xf32>
    %153 = vector.shape_cast %152 : vector<16xf32> to vector<16x1xf32>
    %154 = vector.broadcast %153 : vector<16x1xf32> to vector<16x16xf32>
    %155 = arith.subf %151, %154 : vector<16x16xf32>
    %156 = math.exp %155 : vector<16x16xf32>
    %cst_81 = arith.constant dense<0.000000e+00> : vector<16xf32>
    %157 = vector.multi_reduction <add>, %156, %cst_81 [1] : vector<16x16xf32> to vector<16xf32>
    %158 = vector.shape_cast %157 : vector<16xf32> to vector<16x1xf32>
    %159 = tpu.reciprocal %158 {approx = true} : vector<16x1xf32> -> vector<16x1xf32>
    %160 = vector.broadcast %159 : vector<16x1xf32> to vector<16x16xf32>
    %161 = arith.mulf %156, %160 : vector<16x16xf32>
    %cst_82 = arith.constant dense<0.000000e+00> : vector<16x16xf32>
    %162 = tpu.matmul %161, %145, %cst_82 {dimension_numbers = #tpu.dot_dimension_numbers<[1], [0], [0], [1], [0, 0, 1, 1], [], []>} : vector<16x16xf32>, vector<16x16xf32>, vector<16x16xf32> -> vector<16x16xf32>
    %c0_83 = arith.constant 0 : index
    %c80_84 = arith.constant 80 : index
    %163 = vector.load %arg15[%c0_83, %c80_84] : memref<32x128xf32, #tpu.memory_space<vmem>>, vector<16x16xf32>
    tpu.vector_store %arg15[%c0_83, %c80_84], %162 {strides = array<i32>} : memref<32x128xf32, #tpu.memory_space<vmem>>, vector<16x16xf32>,
    %c0_85 = arith.constant 0 : index
    %c96 = arith.constant 96 : index
    %164 = vector.load %arg14[%c0_85, %c96] : memref<32x384xf32, #tpu.memory_space<vmem>>, vector<16x16xf32>
    %c0_86 = arith.constant 0 : index
    %c224 = arith.constant 224 : index
    %165 = vector.load %arg14[%c0_86, %c224] : memref<32x384xf32, #tpu.memory_space<vmem>>, vector<16x16xf32>
    %c0_87 = arith.constant 0 : index
    %c352 = arith.constant 352 : index
    %166 = vector.load %arg14[%c0_87, %c352] : memref<32x384xf32, #tpu.memory_space<vmem>>, vector<16x16xf32>
    %167 = tpu.transpose %165, [1, 0] : vector<16x16xf32> -> vector<16x16xf32>
    %cst_88 = arith.constant dense<0.000000e+00> : vector<16x16xf32>
    %168 = tpu.matmul %164, %167, %cst_88 {dimension_numbers = #tpu.dot_dimension_numbers<[1], [0], [0], [1], [0, 0, 1, 1], [], []>} : vector<16x16xf32>, vector<16x16xf32>, vector<16x16xf32> -> vector<16x16xf32>
    %cst_89 = arith.constant 2.500000e-01 : f32
    %169 = vector.broadcast %cst_89 : f32 to vector<16x16xf32>
    %170 = arith.mulf %168, %169 : vector<16x16xf32>
    %cst_90 = arith.constant -1.000000e+30 : f32
    %171 = vector.broadcast %cst_90 : f32 to vector<16x16xf32>
    %172 = arith.select %37, %170, %171 : vector<16x16xi1>, vector<16x16xf32>
    %cst_91 = arith.constant dense<0xFF800000> : vector<16xf32>
    %173 = vector.multi_reduction <maximumf>, %172, %cst_91 [1] : vector<16x16xf32> to vector<16xf32>
    %174 = vector.shape_cast %173 : vector<16xf32> to vector<16x1xf32>
    %175 = vector.broadcast %174 : vector<16x1xf32> to vector<16x16xf32>
    %176 = arith.subf %172, %175 : vector<16x16xf32>
    %177 = math.exp %176 : vector<16x16xf32>
    %cst_92 = arith.constant dense<0.000000e+00> : vector<16xf32>
    %178 = vector.multi_reduction <add>, %177, %cst_92 [1] : vector<16x16xf32> to vector<16xf32>
    %179 = vector.shape_cast %178 : vector<16xf32> to vector<16x1xf32>
    %180 = tpu.reciprocal %179 {approx = true} : vector<16x1xf32> -> vector<16x1xf32>
    %181 = vector.broadcast %180 : vector<16x1xf32> to vector<16x16xf32>
    %182 = arith.mulf %177, %181 : vector<16x16xf32>
    %cst_93 = arith.constant dense<0.000000e+00> : vector<16x16xf32>
    %183 = tpu.matmul %182, %166, %cst_93 {dimension_numbers = #tpu.dot_dimension_numbers<[1], [0], [0], [1], [0, 0, 1, 1], [], []>} : vector<16x16xf32>, vector<16x16xf32>, vector<16x16xf32> -> vector<16x16xf32>
    %c0_94 = arith.constant 0 : index
    %c96_95 = arith.constant 96 : index
    %184 = vector.load %arg15[%c0_94, %c96_95] : memref<32x128xf32, #tpu.memory_space<vmem>>, vector<16x16xf32>
    tpu.vector_store %arg15[%c0_94, %c96_95], %183 {strides = array<i32>} : memref<32x128xf32, #tpu.memory_space<vmem>>, vector<16x16xf32>,
    %c0_96 = arith.constant 0 : index
    %c112 = arith.constant 112 : index
    %185 = vector.load %arg14[%c0_96, %c112] : memref<32x384xf32, #tpu.memory_space<vmem>>, vector<16x16xf32>
    %c0_97 = arith.constant 0 : index
    %c240 = arith.constant 240 : index
    %186 = vector.load %arg14[%c0_97, %c240] : memref<32x384xf32, #tpu.memory_space<vmem>>, vector<16x16xf32>
    %c0_98 = arith.constant 0 : index
    %c368 = arith.constant 368 : index
    %187 = vector.load %arg14[%c0_98, %c368] : memref<32x384xf32, #tpu.memory_space<vmem>>, vector<16x16xf32>
    %188 = tpu.transpose %186, [1, 0] : vector<16x16xf32> -> vector<16x16xf32>
    %cst_99 = arith.constant dense<0.000000e+00> : vector<16x16xf32>
    %189 = tpu.matmul %185, %188, %cst_99 {dimension_numbers = #tpu.dot_dimension_numbers<[1], [0], [0], [1], [0, 0, 1, 1], [], []>} : vector<16x16xf32>, vector<16x16xf32>, vector<16x16xf32> -> vector<16x16xf32>
    %cst_100 = arith.constant 2.500000e-01 : f32
    %190 = vector.broadcast %cst_100 : f32 to vector<16x16xf32>
    %191 = arith.mulf %189, %190 : vector<16x16xf32>
    %cst_101 = arith.constant -1.000000e+30 : f32
    %192 = vector.broadcast %cst_101 : f32 to vector<16x16xf32>
    %193 = arith.select %37, %191, %192 : vector<16x16xi1>, vector<16x16xf32>
    %cst_102 = arith.constant dense<0xFF800000> : vector<16xf32>
    %194 = vector.multi_reduction <maximumf>, %193, %cst_102 [1] : vector<16x16xf32> to vector<16xf32>
    %195 = vector.shape_cast %194 : vector<16xf32> to vector<16x1xf32>
    %196 = vector.broadcast %195 : vector<16x1xf32> to vector<16x16xf32>
    %197 = arith.subf %193, %196 : vector<16x16xf32>
    %198 = math.exp %197 : vector<16x16xf32>
    %cst_103 = arith.constant dense<0.000000e+00> : vector<16xf32>
    %199 = vector.multi_reduction <add>, %198, %cst_103 [1] : vector<16x16xf32> to vector<16xf32>
    %200 = vector.shape_cast %199 : vector<16xf32> to vector<16x1xf32>
    %201 = tpu.reciprocal %200 {approx = true} : vector<16x1xf32> -> vector<16x1xf32>
    %202 = vector.broadcast %201 : vector<16x1xf32> to vector<16x16xf32>
    %203 = arith.mulf %198, %202 : vector<16x16xf32>
    %cst_104 = arith.constant dense<0.000000e+00> : vector<16x16xf32>
    %204 = tpu.matmul %203, %187, %cst_104 {dimension_numbers = #tpu.dot_dimension_numbers<[1], [0], [0], [1], [0, 0, 1, 1], [], []>} : vector<16x16xf32>, vector<16x16xf32>, vector<16x16xf32> -> vector<16x16xf32>
    %c0_105 = arith.constant 0 : index
    %c112_106 = arith.constant 112 : index
    %205 = vector.load %arg15[%c0_105, %c112_106] : memref<32x128xf32, #tpu.memory_space<vmem>>, vector<16x16xf32>
    tpu.vector_store %arg15[%c0_105, %c112_106], %204 {strides = array<i32>} : memref<32x128xf32, #tpu.memory_space<vmem>>, vector<16x16xf32>,
    %c16_107 = arith.constant 16 : index
    %c0_108 = arith.constant 0 : index
    %206 = vector.load %arg14[%c16_107, %c0_108] : memref<32x384xf32, #tpu.memory_space<vmem>>, vector<16x16xf32>
    %c16_109 = arith.constant 16 : index
    %c128_110 = arith.constant 128 : index
    %207 = vector.load %arg14[%c16_109, %c128_110] : memref<32x384xf32, #tpu.memory_space<vmem>>, vector<16x16xf32>
    %c16_111 = arith.constant 16 : index
    %c256_112 = arith.constant 256 : index
    %208 = vector.load %arg14[%c16_111, %c256_112] : memref<32x384xf32, #tpu.memory_space<vmem>>, vector<16x16xf32>
    %209 = tpu.transpose %207, [1, 0] : vector<16x16xf32> -> vector<16x16xf32>
    %cst_113 = arith.constant dense<0.000000e+00> : vector<16x16xf32>
    %210 = tpu.matmul %206, %209, %cst_113 {dimension_numbers = #tpu.dot_dimension_numbers<[1], [0], [0], [1], [0, 0, 1, 1], [], []>} : vector<16x16xf32>, vector<16x16xf32>, vector<16x16xf32> -> vector<16x16xf32>
    %cst_114 = arith.constant 2.500000e-01 : f32
    %211 = vector.broadcast %cst_114 : f32 to vector<16x16xf32>
    %212 = arith.mulf %210, %211 : vector<16x16xf32>
    %cst_115 = arith.constant -1.000000e+30 : f32
    %213 = vector.broadcast %cst_115 : f32 to vector<16x16xf32>
    %214 = arith.select %37, %212, %213 : vector<16x16xi1>, vector<16x16xf32>
    %cst_116 = arith.constant dense<0xFF800000> : vector<16xf32>
    %215 = vector.multi_reduction <maximumf>, %214, %cst_116 [1] : vector<16x16xf32> to vector<16xf32>
    %216 = vector.shape_cast %215 : vector<16xf32> to vector<16x1xf32>
    %217 = vector.broadcast %216 : vector<16x1xf32> to vector<16x16xf32>
    %218 = arith.subf %214, %217 : vector<16x16xf32>
    %219 = math.exp %218 : vector<16x16xf32>
    %cst_117 = arith.constant dense<0.000000e+00> : vector<16xf32>
    %220 = vector.multi_reduction <add>, %219, %cst_117 [1] : vector<16x16xf32> to vector<16xf32>
    %221 = vector.shape_cast %220 : vector<16xf32> to vector<16x1xf32>
    %222 = tpu.reciprocal %221 {approx = true} : vector<16x1xf32> -> vector<16x1xf32>
    %223 = vector.broadcast %222 : vector<16x1xf32> to vector<16x16xf32>
    %224 = arith.mulf %219, %223 : vector<16x16xf32>
    %cst_118 = arith.constant dense<0.000000e+00> : vector<16x16xf32>
    %225 = tpu.matmul %224, %208, %cst_118 {dimension_numbers = #tpu.dot_dimension_numbers<[1], [0], [0], [1], [0, 0, 1, 1], [], []>} : vector<16x16xf32>, vector<16x16xf32>, vector<16x16xf32> -> vector<16x16xf32>
    %c16_119 = arith.constant 16 : index
    %c0_120 = arith.constant 0 : index
    %226 = vector.load %arg15[%c16_119, %c0_120] : memref<32x128xf32, #tpu.memory_space<vmem>>, vector<16x16xf32>
    tpu.vector_store %arg15[%c16_119, %c0_120], %225 {strides = array<i32>} : memref<32x128xf32, #tpu.memory_space<vmem>>, vector<16x16xf32>,
    %c16_121 = arith.constant 16 : index
    %c16_122 = arith.constant 16 : index
    %227 = vector.load %arg14[%c16_121, %c16_122] : memref<32x384xf32, #tpu.memory_space<vmem>>, vector<16x16xf32>
    %c16_123 = arith.constant 16 : index
    %c144_124 = arith.constant 144 : index
    %228 = vector.load %arg14[%c16_123, %c144_124] : memref<32x384xf32, #tpu.memory_space<vmem>>, vector<16x16xf32>
    %c16_125 = arith.constant 16 : index
    %c272_126 = arith.constant 272 : index
    %229 = vector.load %arg14[%c16_125, %c272_126] : memref<32x384xf32, #tpu.memory_space<vmem>>, vector<16x16xf32>
    %230 = tpu.transpose %228, [1, 0] : vector<16x16xf32> -> vector<16x16xf32>
    %cst_127 = arith.constant dense<0.000000e+00> : vector<16x16xf32>
    %231 = tpu.matmul %227, %230, %cst_127 {dimension_numbers = #tpu.dot_dimension_numbers<[1], [0], [0], [1], [0, 0, 1, 1], [], []>} : vector<16x16xf32>, vector<16x16xf32>, vector<16x16xf32> -> vector<16x16xf32>
    %cst_128 = arith.constant 2.500000e-01 : f32
    %232 = vector.broadcast %cst_128 : f32 to vector<16x16xf32>
    %233 = arith.mulf %231, %232 : vector<16x16xf32>
    %cst_129 = arith.constant -1.000000e+30 : f32
    %234 = vector.broadcast %cst_129 : f32 to vector<16x16xf32>
    %235 = arith.select %37, %233, %234 : vector<16x16xi1>, vector<16x16xf32>
    %cst_130 = arith.constant dense<0xFF800000> : vector<16xf32>
    %236 = vector.multi_reduction <maximumf>, %235, %cst_130 [1] : vector<16x16xf32> to vector<16xf32>
    %237 = vector.shape_cast %236 : vector<16xf32> to vector<16x1xf32>
    %238 = vector.broadcast %237 : vector<16x1xf32> to vector<16x16xf32>
    %239 = arith.subf %235, %238 : vector<16x16xf32>
    %240 = math.exp %239 : vector<16x16xf32>
    %cst_131 = arith.constant dense<0.000000e+00> : vector<16xf32>
    %241 = vector.multi_reduction <add>, %240, %cst_131 [1] : vector<16x16xf32> to vector<16xf32>
    %242 = vector.shape_cast %241 : vector<16xf32> to vector<16x1xf32>
    %243 = tpu.reciprocal %242 {approx = true} : vector<16x1xf32> -> vector<16x1xf32>
    %244 = vector.broadcast %243 : vector<16x1xf32> to vector<16x16xf32>
    %245 = arith.mulf %240, %244 : vector<16x16xf32>
    %cst_132 = arith.constant dense<0.000000e+00> : vector<16x16xf32>
    %246 = tpu.matmul %245, %229, %cst_132 {dimension_numbers = #tpu.dot_dimension_numbers<[1], [0], [0], [1], [0, 0, 1, 1], [], []>} : vector<16x16xf32>, vector<16x16xf32>, vector<16x16xf32> -> vector<16x16xf32>
    %c16_133 = arith.constant 16 : index
    %c16_134 = arith.constant 16 : index
    %247 = vector.load %arg15[%c16_133, %c16_134] : memref<32x128xf32, #tpu.memory_space<vmem>>, vector<16x16xf32>
    tpu.vector_store %arg15[%c16_133, %c16_134], %246 {strides = array<i32>} : memref<32x128xf32, #tpu.memory_space<vmem>>, vector<16x16xf32>,
    %c16_135 = arith.constant 16 : index
    %c32_136 = arith.constant 32 : index
    %248 = vector.load %arg14[%c16_135, %c32_136] : memref<32x384xf32, #tpu.memory_space<vmem>>, vector<16x16xf32>
    %c16_137 = arith.constant 16 : index
    %c160_138 = arith.constant 160 : index
    %249 = vector.load %arg14[%c16_137, %c160_138] : memref<32x384xf32, #tpu.memory_space<vmem>>, vector<16x16xf32>
    %c16_139 = arith.constant 16 : index
    %c288_140 = arith.constant 288 : index
    %250 = vector.load %arg14[%c16_139, %c288_140] : memref<32x384xf32, #tpu.memory_space<vmem>>, vector<16x16xf32>
    %251 = tpu.transpose %249, [1, 0] : vector<16x16xf32> -> vector<16x16xf32>
    %cst_141 = arith.constant dense<0.000000e+00> : vector<16x16xf32>
    %252 = tpu.matmul %248, %251, %cst_141 {dimension_numbers = #tpu.dot_dimension_numbers<[1], [0], [0], [1], [0, 0, 1, 1], [], []>} : vector<16x16xf32>, vector<16x16xf32>, vector<16x16xf32> -> vector<16x16xf32>
    %cst_142 = arith.constant 2.500000e-01 : f32
    %253 = vector.broadcast %cst_142 : f32 to vector<16x16xf32>
    %254 = arith.mulf %252, %253 : vector<16x16xf32>
    %cst_143 = arith.constant -1.000000e+30 : f32
    %255 = vector.broadcast %cst_143 : f32 to vector<16x16xf32>
    %256 = arith.select %37, %254, %255 : vector<16x16xi1>, vector<16x16xf32>
    %cst_144 = arith.constant dense<0xFF800000> : vector<16xf32>
    %257 = vector.multi_reduction <maximumf>, %256, %cst_144 [1] : vector<16x16xf32> to vector<16xf32>
    %258 = vector.shape_cast %257 : vector<16xf32> to vector<16x1xf32>
    %259 = vector.broadcast %258 : vector<16x1xf32> to vector<16x16xf32>
    %260 = arith.subf %256, %259 : vector<16x16xf32>
    %261 = math.exp %260 : vector<16x16xf32>
    %cst_145 = arith.constant dense<0.000000e+00> : vector<16xf32>
    %262 = vector.multi_reduction <add>, %261, %cst_145 [1] : vector<16x16xf32> to vector<16xf32>
    %263 = vector.shape_cast %262 : vector<16xf32> to vector<16x1xf32>
    %264 = tpu.reciprocal %263 {approx = true} : vector<16x1xf32> -> vector<16x1xf32>
    %265 = vector.broadcast %264 : vector<16x1xf32> to vector<16x16xf32>
    %266 = arith.mulf %261, %265 : vector<16x16xf32>
    %cst_146 = arith.constant dense<0.000000e+00> : vector<16x16xf32>
    %267 = tpu.matmul %266, %250, %cst_146 {dimension_numbers = #tpu.dot_dimension_numbers<[1], [0], [0], [1], [0, 0, 1, 1], [], []>} : vector<16x16xf32>, vector<16x16xf32>, vector<16x16xf32> -> vector<16x16xf32>
    %c16_147 = arith.constant 16 : index
    %c32_148 = arith.constant 32 : index
    %268 = vector.load %arg15[%c16_147, %c32_148] : memref<32x128xf32, #tpu.memory_space<vmem>>, vector<16x16xf32>
    tpu.vector_store %arg15[%c16_147, %c32_148], %267 {strides = array<i32>} : memref<32x128xf32, #tpu.memory_space<vmem>>, vector<16x16xf32>,
    %c16_149 = arith.constant 16 : index
    %c48_150 = arith.constant 48 : index
    %269 = vector.load %arg14[%c16_149, %c48_150] : memref<32x384xf32, #tpu.memory_space<vmem>>, vector<16x16xf32>
    %c16_151 = arith.constant 16 : index
    %c176_152 = arith.constant 176 : index
    %270 = vector.load %arg14[%c16_151, %c176_152] : memref<32x384xf32, #tpu.memory_space<vmem>>, vector<16x16xf32>
    %c16_153 = arith.constant 16 : index
    %c304_154 = arith.constant 304 : index
    %271 = vector.load %arg14[%c16_153, %c304_154] : memref<32x384xf32, #tpu.memory_space<vmem>>, vector<16x16xf32>
    %272 = tpu.transpose %270, [1, 0] : vector<16x16xf32> -> vector<16x16xf32>
    %cst_155 = arith.constant dense<0.000000e+00> : vector<16x16xf32>
    %273 = tpu.matmul %269, %272, %cst_155 {dimension_numbers = #tpu.dot_dimension_numbers<[1], [0], [0], [1], [0, 0, 1, 1], [], []>} : vector<16x16xf32>, vector<16x16xf32>, vector<16x16xf32> -> vector<16x16xf32>
    %cst_156 = arith.constant 2.500000e-01 : f32
    %274 = vector.broadcast %cst_156 : f32 to vector<16x16xf32>
    %275 = arith.mulf %273, %274 : vector<16x16xf32>
    %cst_157 = arith.constant -1.000000e+30 : f32
    %276 = vector.broadcast %cst_157 : f32 to vector<16x16xf32>
    %277 = arith.select %37, %275, %276 : vector<16x16xi1>, vector<16x16xf32>
    %cst_158 = arith.constant dense<0xFF800000> : vector<16xf32>
    %278 = vector.multi_reduction <maximumf>, %277, %cst_158 [1] : vector<16x16xf32> to vector<16xf32>
    %279 = vector.shape_cast %278 : vector<16xf32> to vector<16x1xf32>
    %280 = vector.broadcast %279 : vector<16x1xf32> to vector<16x16xf32>
    %281 = arith.subf %277, %280 : vector<16x16xf32>
    %282 = math.exp %281 : vector<16x16xf32>
    %cst_159 = arith.constant dense<0.000000e+00> : vector<16xf32>
    %283 = vector.multi_reduction <add>, %282, %cst_159 [1] : vector<16x16xf32> to vector<16xf32>
    %284 = vector.shape_cast %283 : vector<16xf32> to vector<16x1xf32>
    %285 = tpu.reciprocal %284 {approx = true} : vector<16x1xf32> -> vector<16x1xf32>
    %286 = vector.broadcast %285 : vector<16x1xf32> to vector<16x16xf32>
    %287 = arith.mulf %282, %286 : vector<16x16xf32>
    %cst_160 = arith.constant dense<0.000000e+00> : vector<16x16xf32>
    %288 = tpu.matmul %287, %271, %cst_160 {dimension_numbers = #tpu.dot_dimension_numbers<[1], [0], [0], [1], [0, 0, 1, 1], [], []>} : vector<16x16xf32>, vector<16x16xf32>, vector<16x16xf32> -> vector<16x16xf32>
    %c16_161 = arith.constant 16 : index
    %c48_162 = arith.constant 48 : index
    %289 = vector.load %arg15[%c16_161, %c48_162] : memref<32x128xf32, #tpu.memory_space<vmem>>, vector<16x16xf32>
    tpu.vector_store %arg15[%c16_161, %c48_162], %288 {strides = array<i32>} : memref<32x128xf32, #tpu.memory_space<vmem>>, vector<16x16xf32>,
    %c16_163 = arith.constant 16 : index
    %c64_164 = arith.constant 64 : index
    %290 = vector.load %arg14[%c16_163, %c64_164] : memref<32x384xf32, #tpu.memory_space<vmem>>, vector<16x16xf32>
    %c16_165 = arith.constant 16 : index
    %c192_166 = arith.constant 192 : index
    %291 = vector.load %arg14[%c16_165, %c192_166] : memref<32x384xf32, #tpu.memory_space<vmem>>, vector<16x16xf32>
    %c16_167 = arith.constant 16 : index
    %c320_168 = arith.constant 320 : index
    %292 = vector.load %arg14[%c16_167, %c320_168] : memref<32x384xf32, #tpu.memory_space<vmem>>, vector<16x16xf32>
    %293 = tpu.transpose %291, [1, 0] : vector<16x16xf32> -> vector<16x16xf32>
    %cst_169 = arith.constant dense<0.000000e+00> : vector<16x16xf32>
    %294 = tpu.matmul %290, %293, %cst_169 {dimension_numbers = #tpu.dot_dimension_numbers<[1], [0], [0], [1], [0, 0, 1, 1], [], []>} : vector<16x16xf32>, vector<16x16xf32>, vector<16x16xf32> -> vector<16x16xf32>
    %cst_170 = arith.constant 2.500000e-01 : f32
    %295 = vector.broadcast %cst_170 : f32 to vector<16x16xf32>
    %296 = arith.mulf %294, %295 : vector<16x16xf32>
    %cst_171 = arith.constant -1.000000e+30 : f32
    %297 = vector.broadcast %cst_171 : f32 to vector<16x16xf32>
    %298 = arith.select %37, %296, %297 : vector<16x16xi1>, vector<16x16xf32>
    %cst_172 = arith.constant dense<0xFF800000> : vector<16xf32>
    %299 = vector.multi_reduction <maximumf>, %298, %cst_172 [1] : vector<16x16xf32> to vector<16xf32>
    %300 = vector.shape_cast %299 : vector<16xf32> to vector<16x1xf32>
    %301 = vector.broadcast %300 : vector<16x1xf32> to vector<16x16xf32>
    %302 = arith.subf %298, %301 : vector<16x16xf32>
    %303 = math.exp %302 : vector<16x16xf32>
    %cst_173 = arith.constant dense<0.000000e+00> : vector<16xf32>
    %304 = vector.multi_reduction <add>, %303, %cst_173 [1] : vector<16x16xf32> to vector<16xf32>
    %305 = vector.shape_cast %304 : vector<16xf32> to vector<16x1xf32>
    %306 = tpu.reciprocal %305 {approx = true} : vector<16x1xf32> -> vector<16x1xf32>
    %307 = vector.broadcast %306 : vector<16x1xf32> to vector<16x16xf32>
    %308 = arith.mulf %303, %307 : vector<16x16xf32>
    %cst_174 = arith.constant dense<0.000000e+00> : vector<16x16xf32>
    %309 = tpu.matmul %308, %292, %cst_174 {dimension_numbers = #tpu.dot_dimension_numbers<[1], [0], [0], [1], [0, 0, 1, 1], [], []>} : vector<16x16xf32>, vector<16x16xf32>, vector<16x16xf32> -> vector<16x16xf32>
    %c16_175 = arith.constant 16 : index
    %c64_176 = arith.constant 64 : index
    %310 = vector.load %arg15[%c16_175, %c64_176] : memref<32x128xf32, #tpu.memory_space<vmem>>, vector<16x16xf32>
    tpu.vector_store %arg15[%c16_175, %c64_176], %309 {strides = array<i32>} : memref<32x128xf32, #tpu.memory_space<vmem>>, vector<16x16xf32>,
    %c16_177 = arith.constant 16 : index
    %c80_178 = arith.constant 80 : index
    %311 = vector.load %arg14[%c16_177, %c80_178] : memref<32x384xf32, #tpu.memory_space<vmem>>, vector<16x16xf32>
    %c16_179 = arith.constant 16 : index
    %c208_180 = arith.constant 208 : index
    %312 = vector.load %arg14[%c16_179, %c208_180] : memref<32x384xf32, #tpu.memory_space<vmem>>, vector<16x16xf32>
    %c16_181 = arith.constant 16 : index
    %c336_182 = arith.constant 336 : index
    %313 = vector.load %arg14[%c16_181, %c336_182] : memref<32x384xf32, #tpu.memory_space<vmem>>, vector<16x16xf32>
    %314 = tpu.transpose %312, [1, 0] : vector<16x16xf32> -> vector<16x16xf32>
    %cst_183 = arith.constant dense<0.000000e+00> : vector<16x16xf32>
    %315 = tpu.matmul %311, %314, %cst_183 {dimension_numbers = #tpu.dot_dimension_numbers<[1], [0], [0], [1], [0, 0, 1, 1], [], []>} : vector<16x16xf32>, vector<16x16xf32>, vector<16x16xf32> -> vector<16x16xf32>
    %cst_184 = arith.constant 2.500000e-01 : f32
    %316 = vector.broadcast %cst_184 : f32 to vector<16x16xf32>
    %317 = arith.mulf %315, %316 : vector<16x16xf32>
    %cst_185 = arith.constant -1.000000e+30 : f32
    %318 = vector.broadcast %cst_185 : f32 to vector<16x16xf32>
    %319 = arith.select %37, %317, %318 : vector<16x16xi1>, vector<16x16xf32>
    %cst_186 = arith.constant dense<0xFF800000> : vector<16xf32>
    %320 = vector.multi_reduction <maximumf>, %319, %cst_186 [1] : vector<16x16xf32> to vector<16xf32>
    %321 = vector.shape_cast %320 : vector<16xf32> to vector<16x1xf32>
    %322 = vector.broadcast %321 : vector<16x1xf32> to vector<16x16xf32>
    %323 = arith.subf %319, %322 : vector<16x16xf32>
    %324 = math.exp %323 : vector<16x16xf32>
    %cst_187 = arith.constant dense<0.000000e+00> : vector<16xf32>
    %325 = vector.multi_reduction <add>, %324, %cst_187 [1] : vector<16x16xf32> to vector<16xf32>
    %326 = vector.shape_cast %325 : vector<16xf32> to vector<16x1xf32>
    %327 = tpu.reciprocal %326 {approx = true} : vector<16x1xf32> -> vector<16x1xf32>
    %328 = vector.broadcast %327 : vector<16x1xf32> to vector<16x16xf32>
    %329 = arith.mulf %324, %328 : vector<16x16xf32>
    %cst_188 = arith.constant dense<0.000000e+00> : vector<16x16xf32>
    %330 = tpu.matmul %329, %313, %cst_188 {dimension_numbers = #tpu.dot_dimension_numbers<[1], [0], [0], [1], [0, 0, 1, 1], [], []>} : vector<16x16xf32>, vector<16x16xf32>, vector<16x16xf32> -> vector<16x16xf32>
    %c16_189 = arith.constant 16 : index
    %c80_190 = arith.constant 80 : index
    %331 = vector.load %arg15[%c16_189, %c80_190] : memref<32x128xf32, #tpu.memory_space<vmem>>, vector<16x16xf32>
    tpu.vector_store %arg15[%c16_189, %c80_190], %330 {strides = array<i32>} : memref<32x128xf32, #tpu.memory_space<vmem>>, vector<16x16xf32>,
    %c16_191 = arith.constant 16 : index
    %c96_192 = arith.constant 96 : index
    %332 = vector.load %arg14[%c16_191, %c96_192] : memref<32x384xf32, #tpu.memory_space<vmem>>, vector<16x16xf32>
    %c16_193 = arith.constant 16 : index
    %c224_194 = arith.constant 224 : index
    %333 = vector.load %arg14[%c16_193, %c224_194] : memref<32x384xf32, #tpu.memory_space<vmem>>, vector<16x16xf32>
    %c16_195 = arith.constant 16 : index
    %c352_196 = arith.constant 352 : index
    %334 = vector.load %arg14[%c16_195, %c352_196] : memref<32x384xf32, #tpu.memory_space<vmem>>, vector<16x16xf32>
    %335 = tpu.transpose %333, [1, 0] : vector<16x16xf32> -> vector<16x16xf32>
    %cst_197 = arith.constant dense<0.000000e+00> : vector<16x16xf32>
    %336 = tpu.matmul %332, %335, %cst_197 {dimension_numbers = #tpu.dot_dimension_numbers<[1], [0], [0], [1], [0, 0, 1, 1], [], []>} : vector<16x16xf32>, vector<16x16xf32>, vector<16x16xf32> -> vector<16x16xf32>
    %cst_198 = arith.constant 2.500000e-01 : f32
    %337 = vector.broadcast %cst_198 : f32 to vector<16x16xf32>
    %338 = arith.mulf %336, %337 : vector<16x16xf32>
    %cst_199 = arith.constant -1.000000e+30 : f32
    %339 = vector.broadcast %cst_199 : f32 to vector<16x16xf32>
    %340 = arith.select %37, %338, %339 : vector<16x16xi1>, vector<16x16xf32>
    %cst_200 = arith.constant dense<0xFF800000> : vector<16xf32>
    %341 = vector.multi_reduction <maximumf>, %340, %cst_200 [1] : vector<16x16xf32> to vector<16xf32>
    %342 = vector.shape_cast %341 : vector<16xf32> to vector<16x1xf32>
    %343 = vector.broadcast %342 : vector<16x1xf32> to vector<16x16xf32>
    %344 = arith.subf %340, %343 : vector<16x16xf32>
    %345 = math.exp %344 : vector<16x16xf32>
    %cst_201 = arith.constant dense<0.000000e+00> : vector<16xf32>
    %346 = vector.multi_reduction <add>, %345, %cst_201 [1] : vector<16x16xf32> to vector<16xf32>
    %347 = vector.shape_cast %346 : vector<16xf32> to vector<16x1xf32>
    %348 = tpu.reciprocal %347 {approx = true} : vector<16x1xf32> -> vector<16x1xf32>
    %349 = vector.broadcast %348 : vector<16x1xf32> to vector<16x16xf32>
    %350 = arith.mulf %345, %349 : vector<16x16xf32>
    %cst_202 = arith.constant dense<0.000000e+00> : vector<16x16xf32>
    %351 = tpu.matmul %350, %334, %cst_202 {dimension_numbers = #tpu.dot_dimension_numbers<[1], [0], [0], [1], [0, 0, 1, 1], [], []>} : vector<16x16xf32>, vector<16x16xf32>, vector<16x16xf32> -> vector<16x16xf32>
    %c16_203 = arith.constant 16 : index
    %c96_204 = arith.constant 96 : index
    %352 = vector.load %arg15[%c16_203, %c96_204] : memref<32x128xf32, #tpu.memory_space<vmem>>, vector<16x16xf32>
    tpu.vector_store %arg15[%c16_203, %c96_204], %351 {strides = array<i32>} : memref<32x128xf32, #tpu.memory_space<vmem>>, vector<16x16xf32>,
    %c16_205 = arith.constant 16 : index
    %c112_206 = arith.constant 112 : index
    %353 = vector.load %arg14[%c16_205, %c112_206] : memref<32x384xf32, #tpu.memory_space<vmem>>, vector<16x16xf32>
    %c16_207 = arith.constant 16 : index
    %c240_208 = arith.constant 240 : index
    %354 = vector.load %arg14[%c16_207, %c240_208] : memref<32x384xf32, #tpu.memory_space<vmem>>, vector<16x16xf32>
    %c16_209 = arith.constant 16 : index
    %c368_210 = arith.constant 368 : index
    %355 = vector.load %arg14[%c16_209, %c368_210] : memref<32x384xf32, #tpu.memory_space<vmem>>, vector<16x16xf32>
    %356 = tpu.transpose %354, [1, 0] : vector<16x16xf32> -> vector<16x16xf32>
    %cst_211 = arith.constant dense<0.000000e+00> : vector<16x16xf32>
    %357 = tpu.matmul %353, %356, %cst_211 {dimension_numbers = #tpu.dot_dimension_numbers<[1], [0], [0], [1], [0, 0, 1, 1], [], []>} : vector<16x16xf32>, vector<16x16xf32>, vector<16x16xf32> -> vector<16x16xf32>
    %cst_212 = arith.constant 2.500000e-01 : f32
    %358 = vector.broadcast %cst_212 : f32 to vector<16x16xf32>
    %359 = arith.mulf %357, %358 : vector<16x16xf32>
    %cst_213 = arith.constant -1.000000e+30 : f32
    %360 = vector.broadcast %cst_213 : f32 to vector<16x16xf32>
    %361 = arith.select %37, %359, %360 : vector<16x16xi1>, vector<16x16xf32>
    %cst_214 = arith.constant dense<0xFF800000> : vector<16xf32>
    %362 = vector.multi_reduction <maximumf>, %361, %cst_214 [1] : vector<16x16xf32> to vector<16xf32>
    %363 = vector.shape_cast %362 : vector<16xf32> to vector<16x1xf32>
    %364 = vector.broadcast %363 : vector<16x1xf32> to vector<16x16xf32>
    %365 = arith.subf %361, %364 : vector<16x16xf32>
    %366 = math.exp %365 : vector<16x16xf32>
    %cst_215 = arith.constant dense<0.000000e+00> : vector<16xf32>
    %367 = vector.multi_reduction <add>, %366, %cst_215 [1] : vector<16x16xf32> to vector<16xf32>
    %368 = vector.shape_cast %367 : vector<16xf32> to vector<16x1xf32>
    %369 = tpu.reciprocal %368 {approx = true} : vector<16x1xf32> -> vector<16x1xf32>
    %370 = vector.broadcast %369 : vector<16x1xf32> to vector<16x16xf32>
    %371 = arith.mulf %366, %370 : vector<16x16xf32>
    %cst_216 = arith.constant dense<0.000000e+00> : vector<16x16xf32>
    %372 = tpu.matmul %371, %355, %cst_216 {dimension_numbers = #tpu.dot_dimension_numbers<[1], [0], [0], [1], [0, 0, 1, 1], [], []>} : vector<16x16xf32>, vector<16x16xf32>, vector<16x16xf32> -> vector<16x16xf32>
    %c16_217 = arith.constant 16 : index
    %c112_218 = arith.constant 112 : index
    %373 = vector.load %arg15[%c16_217, %c112_218] : memref<32x128xf32, #tpu.memory_space<vmem>>, vector<16x16xf32>
    tpu.vector_store %arg15[%c16_217, %c112_218], %372 {strides = array<i32>} : memref<32x128xf32, #tpu.memory_space<vmem>>, vector<16x16xf32>,
    %c0_219 = arith.constant 0 : index
    %c0_220 = arith.constant 0 : index
    %374 = vector.load %arg15[%c0_219, %c0_220] : memref<32x128xf32, #tpu.memory_space<vmem>>, vector<32x128xf32>
    %c0_221 = arith.constant 0 : index
    %c0_222 = arith.constant 0 : index
    %c0_223 = arith.constant 0 : index
    %375 = vector.load %arg5[%c0_221, %c0_222, %c0_223] : memref<1x128x128xbf16, #tpu.memory_space<vmem>>, vector<1x128x128xbf16>
    %376 = vector.shape_cast %375 : vector<1x128x128xbf16> to vector<128x128xbf16>
    %377 = arith.extf %376 : vector<128x128xbf16> to vector<128x128xf32>
    %cst_224 = arith.constant dense<0.000000e+00> : vector<32x128xf32>
    %378 = tpu.matmul %374, %377, %cst_224 {dimension_numbers = #tpu.dot_dimension_numbers<[1], [0], [0], [1], [0, 0, 1, 1], [], []>} : vector<32x128xf32>, vector<128x128xf32>, vector<32x128xf32> -> vector<32x128xf32>
    %c0_225 = arith.constant 0 : index
    %c0_226 = arith.constant 0 : index
    %c0_227 = arith.constant 0 : index
    %379 = vector.load %arg6[%c0_225, %c0_226, %c0_227] : memref<1x1x128xf32, #tpu.memory_space<vmem>>, vector<1x1x128xf32>
    %380 = vector.shape_cast %379 : vector<1x1x128xf32> to vector<1x128xf32>
    %381 = vector.broadcast %380 : vector<1x128xf32> to vector<32x128xf32>
    %382 = arith.addf %378, %381 : vector<32x128xf32>
    %383 = arith.addf %3, %382 : vector<32x128xf32>
    %c0_228 = arith.constant 0 : index
    %c0_229 = arith.constant 0 : index
    %c0_230 = arith.constant 0 : index
    %384 = vector.load %arg7[%c0_228, %c0_229, %c0_230] : memref<1x1x128xf32, #tpu.memory_space<vmem>>, vector<1x1x128xf32>
    %385 = vector.shape_cast %384 : vector<1x1x128xf32> to vector<1x128xf32>
    %c0_231 = arith.constant 0 : index
    %c0_232 = arith.constant 0 : index
    %c0_233 = arith.constant 0 : index
    %386 = vector.load %arg8[%c0_231, %c0_232, %c0_233] : memref<1x1x128xf32, #tpu.memory_space<vmem>>, vector<1x1x128xf32>
    %387 = vector.shape_cast %386 : vector<1x1x128xf32> to vector<1x128xf32>
    %cst_234 = arith.constant dense<0.000000e+00> : vector<32xf32>
    %388 = vector.multi_reduction <add>, %383, %cst_234 [1] : vector<32x128xf32> to vector<32xf32>
    %389 = vector.shape_cast %388 : vector<32xf32> to vector<32x1xf32>
    %cst_235 = arith.constant 1.280000e+02 : f32
    %390 = vector.broadcast %cst_235 : f32 to vector<32x1xf32>
    %391 = arith.divf %389, %390 : vector<32x1xf32>
    %392 = vector.broadcast %391 : vector<32x1xf32> to vector<32x128xf32>
    %393 = arith.subf %383, %392 : vector<32x128xf32>
    %394 = arith.mulf %393, %393 : vector<32x128xf32>
    %cst_236 = arith.constant dense<0.000000e+00> : vector<32xf32>
    %395 = vector.multi_reduction <add>, %394, %cst_236 [1] : vector<32x128xf32> to vector<32xf32>
    %396 = vector.shape_cast %395 : vector<32xf32> to vector<32x1xf32>
    %cst_237 = arith.constant 1.280000e+02 : f32
    %397 = vector.broadcast %cst_237 : f32 to vector<32x1xf32>
    %398 = arith.divf %396, %397 : vector<32x1xf32>
    %399 = vector.broadcast %391 : vector<32x1xf32> to vector<32x128xf32>
    %400 = arith.subf %383, %399 : vector<32x128xf32>
    %cst_238 = arith.constant 9.99999974E-6 : f32
    %401 = vector.broadcast %cst_238 : f32 to vector<32x1xf32>
    %402 = arith.addf %398, %401 : vector<32x1xf32>
    %403 = math.rsqrt %402 : vector<32x1xf32>
    %404 = vector.broadcast %403 : vector<32x1xf32> to vector<32x128xf32>
    %405 = arith.mulf %400, %404 : vector<32x128xf32>
    %406 = vector.broadcast %385 : vector<1x128xf32> to vector<32x128xf32>
    %407 = arith.mulf %405, %406 : vector<32x128xf32>
    %408 = vector.broadcast %387 : vector<1x128xf32> to vector<32x128xf32>
    %409 = arith.addf %407, %408 : vector<32x128xf32>
    %c0_239 = arith.constant 0 : index
    %c0_240 = arith.constant 0 : index
    %c0_241 = arith.constant 0 : index
    %410 = vector.load %arg9[%c0_239, %c0_240, %c0_241] : memref<1x128x512xbf16, #tpu.memory_space<vmem>>, vector<1x128x512xbf16>
    %411 = vector.shape_cast %410 : vector<1x128x512xbf16> to vector<128x512xbf16>
    %412 = arith.extf %411 : vector<128x512xbf16> to vector<128x512xf32>
    %cst_242 = arith.constant dense<0.000000e+00> : vector<32x512xf32>
    %413 = tpu.matmul %409, %412, %cst_242 {dimension_numbers = #tpu.dot_dimension_numbers<[1], [0], [0], [1], [0, 0, 1, 1], [], []>} : vector<32x128xf32>, vector<128x512xf32>, vector<32x512xf32> -> vector<32x512xf32>
    %c0_243 = arith.constant 0 : index
    %c0_244 = arith.constant 0 : index
    %c0_245 = arith.constant 0 : index
    %414 = vector.load %arg10[%c0_243, %c0_244, %c0_245] : memref<1x1x512xf32, #tpu.memory_space<vmem>>, vector<1x1x512xf32>
    %415 = vector.shape_cast %414 : vector<1x1x512xf32> to vector<1x512xf32>
    %416 = vector.broadcast %415 : vector<1x512xf32> to vector<32x512xf32>
    %417 = arith.addf %413, %416 : vector<32x512xf32>
    %cst_246 = arith.constant 0.000000e+00 : f32
    %418 = vector.broadcast %cst_246 : f32 to vector<32x512xf32>
    %419 = arith.maximumf %417, %418 : vector<32x512xf32>
    %c0_247 = arith.constant 0 : index
    %c0_248 = arith.constant 0 : index
    %c0_249 = arith.constant 0 : index
    %420 = vector.load %arg11[%c0_247, %c0_248, %c0_249] : memref<1x512x128xbf16, #tpu.memory_space<vmem>>, vector<1x512x128xbf16>
    %421 = vector.shape_cast %420 : vector<1x512x128xbf16> to vector<512x128xbf16>
    %422 = arith.extf %421 : vector<512x128xbf16> to vector<512x128xf32>
    %cst_250 = arith.constant dense<0.000000e+00> : vector<32x128xf32>
    %423 = tpu.matmul %419, %422, %cst_250 {dimension_numbers = #tpu.dot_dimension_numbers<[1], [0], [0], [1], [0, 0, 1, 1], [], []>} : vector<32x512xf32>, vector<512x128xf32>, vector<32x128xf32> -> vector<32x128xf32>
    %c0_251 = arith.constant 0 : index
    %c0_252 = arith.constant 0 : index
    %c0_253 = arith.constant 0 : index
    %424 = vector.load %arg12[%c0_251, %c0_252, %c0_253] : memref<1x1x128xf32, #tpu.memory_space<vmem>>, vector<1x1x128xf32>
    %425 = vector.shape_cast %424 : vector<1x1x128xf32> to vector<1x128xf32>
    %426 = vector.broadcast %425 : vector<1x128xf32> to vector<32x128xf32>
    %427 = arith.addf %423, %426 : vector<32x128xf32>
    %428 = arith.addf %383, %427 : vector<32x128xf32>
    %c0_254 = arith.constant 0 : index
    %c0_255 = arith.constant 0 : index
    %429 = vector.load %arg13[%c0_254, %c0_255] : memref<32x128xf32, #tpu.memory_space<vmem>>, vector<32x128xf32>
    tpu.vector_store %arg13[%c0_254, %c0_255], %428 {strides = array<i32>} : memref<32x128xf32, #tpu.memory_space<vmem>>, vector<32x128xf32>,
    return
  }
  func.func @transform_0(%arg0: i32) -> (i32, i32) {
    %c0_i32 = arith.constant 0 : i32
    %c0_i32_0 = arith.constant 0 : i32
    %c0_i32_1 = arith.constant 0 : i32
    return %c0_i32, %c0_i32_0 : i32, i32
  }
  func.func @transform_1(%arg0: i32) -> (i32, i32, i32) {
    %c0_i32 = arith.constant 0 : i32
    %c0_i32_0 = arith.constant 0 : i32
    %c0_i32_1 = arith.constant 0 : i32
    return %arg0, %c0_i32, %c0_i32_0 : i32, i32, i32
  }
  func.func @transform_2(%arg0: i32) -> (i32, i32, i32) {
    %c0_i32 = arith.constant 0 : i32
    %c0_i32_0 = arith.constant 0 : i32
    %c0_i32_1 = arith.constant 0 : i32
    return %arg0, %c0_i32, %c0_i32_0 : i32, i32, i32
  }
  func.func @transform_3(%arg0: i32) -> (i32, i32, i32) {
    %c0_i32 = arith.constant 0 : i32
    %c0_i32_0 = arith.constant 0 : i32
    %c0_i32_1 = arith.constant 0 : i32
    return %arg0, %c0_i32, %c0_i32_0 : i32, i32, i32
  }
  func.func @transform_4(%arg0: i32) -> (i32, i32, i32) {
    %c0_i32 = arith.constant 0 : i32
    %c0_i32_0 = arith.constant 0 : i32
    %c0_i32_1 = arith.constant 0 : i32
    return %arg0, %c0_i32, %c0_i32_0 : i32, i32, i32
  }
  func.func @transform_5(%arg0: i32) -> (i32, i32, i32) {
    %c0_i32 = arith.constant 0 : i32
    %c0_i32_0 = arith.constant 0 : i32
    %c0_i32_1 = arith.constant 0 : i32
    return %arg0, %c0_i32, %c0_i32_0 : i32, i32, i32
  }
  func.func @transform_6(%arg0: i32) -> (i32, i32, i32) {
    %c0_i32 = arith.constant 0 : i32
    %c0_i32_0 = arith.constant 0 : i32
    %c0_i32_1 = arith.constant 0 : i32
    return %arg0, %c0_i32, %c0_i32_0 : i32, i32, i32
  }
  func.func @transform_7(%arg0: i32) -> (i32, i32, i32) {
    %c0_i32 = arith.constant 0 : i32
    %c0_i32_0 = arith.constant 0 : i32
    %c0_i32_1 = arith.constant 0 : i32
    return %arg0, %c0_i32, %c0_i32_0 : i32, i32, i32
  }
  func.func @transform_8(%arg0: i32) -> (i32, i32, i32) {
    %c0_i32 = arith.constant 0 : i32
    %c0_i32_0 = arith.constant 0 : i32
    %c0_i32_1 = arith.constant 0 : i32
    return %arg0, %c0_i32, %c0_i32_0 : i32, i32, i32
  }
  func.func @transform_9(%arg0: i32) -> (i32, i32, i32) {
    %c0_i32 = arith.constant 0 : i32
    %c0_i32_0 = arith.constant 0 : i32
    %c0_i32_1 = arith.constant 0 : i32
    return %arg0, %c0_i32, %c0_i32_0 : i32, i32, i32
  }
  func.func @transform_10(%arg0: i32) -> (i32, i32, i32) {
    %c0_i32 = arith.constant 0 : i32
    %c0_i32_0 = arith.constant 0 : i32
    %c0_i32_1 = arith.constant 0 : i32
    return %arg0, %c0_i32, %c0_i32_0 : i32, i32, i32
  }
  func.func @transform_11(%arg0: i32) -> (i32, i32, i32) {
    %c0_i32 = arith.constant 0 : i32
    %c0_i32_0 = arith.constant 0 : i32
    %c0_i32_1 = arith.constant 0 : i32
    return %arg0, %c0_i32, %c0_i32_0 : i32, i32, i32
  }
  func.func @transform_12(%arg0: i32) -> (i32, i32) {
    %c0_i32 = arith.constant 0 : i32
    %c0_i32_0 = arith.constant 0 : i32
    %c0_i32_1 = arith.constant 0 : i32
    return %c0_i32, %c0_i32_0 : i32, i32
  }
}

</mosaic_0001>

<llo_original>
// kernel: tpu_custom_call.1
$region0: #{tpu_custom_call.1}
  #allocation0 [shape = 'u32[]', space=smem, size = 0x4, offset = 0x4, fixed_abs, tag = 'smem constant byte address 0x4 - core index']
  #allocation1 [shape = 'u32[144,128]{1,0:T(1,128)}', space=vmem, size = 0x12000, scoped, tag = 'internal scratch']
  #allocation2 [shape = 'f32[32,384]{1,0:T(8,128)}', space=vmem, size = 0xc000, scoped, tag = 'scratch operand']
  #allocation3 [shape = 'f32[32,128]{1,0:T(8,128)}', space=vmem, size = 0x4000, scoped, tag = 'scratch operand']
  %s0 = inlined_call_operand.hbm [shape: f32[32,128], index: 0, kind: input, shape index: {}]
  %s1 = inlined_call_operand.hbm [shape: f32[8,1,128], index: 1, kind: input, shape index: {}]
  %s2 = inlined_call_operand.hbm [shape: f32[8,1,128], index: 2, kind: input, shape index: {}]
  %s3 = inlined_call_operand.hbm [shape: bf16[8,128,384], index: 3, kind: input, shape index: {}]
  %s4 = inlined_call_operand.hbm [shape: bf16[8,128,128], index: 4, kind: input, shape index: {}]
  %s5 = inlined_call_operand.vmem [shape: f32[8,1,128], index: 5, kind: input, shape index: {}]
  %s6 = inlined_call_operand.hbm [shape: f32[8,1,128], index: 6, kind: input, shape index: {}]
  %s7 = inlined_call_operand.hbm [shape: f32[8,1,128], index: 7, kind: input, shape index: {}]
  %s8 = inlined_call_operand.hbm [shape: bf16[8,128,512], index: 8, kind: input, shape index: {}]
  %s9 = inlined_call_operand.hbm [shape: f32[8,1,512], index: 9, kind: input, shape index: {}]
  %s10 = inlined_call_operand.hbm [shape: bf16[8,512,128], index: 10, kind: input, shape index: {}]
  %s11 = inlined_call_operand.vmem [shape: f32[8,1,128], index: 11, kind: input, shape index: {}]
  %s12 = inlined_call_operand.hbm [shape: f32[32,128], index: 12, kind: output, shape index: {}]
  %s13 = sld [smem:[#allocation0]]
  $region125: #{tpu_custom_call.1} parent=0
    _
  %s15 = ssub.s32 1, %s13
  %s16 = scalar_select 0, %s15, %s13
  $region1: #{tpu_custom_call.1} parent=0
    #allocation4 [shape = 'u8[16384]{0}', space=vmem, size = 0x4000, scoped, tag = 'input window, operand 0, single buffered']
    #allocation5 [shape = 's32[2]{0}', space=sflag, size = 0x8, scoped, tag = 'scoped memory for tpu_custom_call.1']
    #allocation6 [shape = 's32[2]{0}', space=sflag, size = 0x8, scoped, tag = 'scoped memory for tpu_custom_call.1']
    #allocation7 [shape = 'u8[1024]{0}', space=vmem, size = 0x400, scoped, tag = 'input window, operand 1']
    #allocation8 [shape = 's32[2]{0}', space=sflag, size = 0x8, scoped, tag = 'scoped memory for tpu_custom_call.1']
    #allocation9 [shape = 'u8[1024]{0}', space=vmem, size = 0x400, scoped, tag = 'input window, operand 2']
    #allocation10 [shape = 'u8[196608]{0}', space=vmem, size = 0x30000, scoped, tag = 'input window, operand 3']
    #allocation11 [shape = 's32[2]{0}', space=sflag, size = 0x8, scoped, tag = 'scoped memory for tpu_custom_call.1']
    #allocation12 [shape = 'u8[65536]{0}', space=vmem, size = 0x10000, scoped, tag = 'input window, operand 4']
    #allocation13 [shape = 'u8[1024]{0}', space=vmem, size = 0x400, scoped, tag = 'input window, operand 6']
    #allocation14 [shape = 's32[2]{0}', space=sflag, size = 0x8, scoped, tag = 'scoped memory for tpu_custom_call.1']
    #allocation15 [shape = 'u8[1024]{0}', space=vmem, size = 0x400, scoped, tag = 'input window, operand 7']
    #allocation16 [shape = 'u8[262144]{0}', space=vmem, size = 0x40000, scoped, tag = 'input window, operand 8']
    #allocation17 [shape = 's32[2]{0}', space=sflag, size = 0x8, scoped, tag = 'scoped memory for tpu_custom_call.1']
    #allocation18 [shape = 'u8[4096]{0}', space=vmem, size = 0x1000, scoped, tag = 'input window, operand 9']
    #allocation19 [shape = 'u8[262144]{0}', space=vmem, size = 0x40000, scoped, tag = 'input window, operand 10']
    #allocation20 [shape = 's32[2]{0}', space=sflag, size = 0x8, scoped, tag = 'scoped memory for tpu_custom_call.1']
    #allocation21 [shape = 'u8[16384]{0}', space=vmem, size = 0x4000, scoped, tag = 'output window, operand 0, single buffered']
    %17 = vsyncpa [#allocation5], 0
    %18 = vsyncpa [#allocation8], 0
    %s19 = scalar_lea.sflag [#allocation8], 1
    %20 = vsyncpa %s19, 0
    %21 = vsyncpa [#allocation11], 0
    %s22 = scalar_lea.sflag [#allocation11], 1
    %23 = vsyncpa %s22, 0
    %24 = vsyncpa [#allocation14], 0
    %s25 = scalar_lea.sflag [#allocation14], 1
    %26 = vsyncpa %s25, 0
    %27 = vsyncpa [#allocation17], 0
    %s28 = scalar_lea.sflag [#allocation17], 1
    %29 = vsyncpa %s28, 0
    %30 = vsyncpa [#allocation20], 0
    %s31 = scalar_lea.sflag [#allocation20], 1
    %32 = vsyncpa %s31, 0
    %33 = vsyncpa [#allocation6], 0
    loop: start=0, step=1, limit=10
    $region2: #{tpu_custom_call.1} parent=1 // loop_pre_header
      _
    $region3: #{tpu_custom_call.1} parent=1 // loop_header
      %s35 = sphi 0, %s39
      %p36 = scmp.ge.s32.totalorder %s35, 10
      %s43 = sphi 0, %s43
      %s45 = sphi 0, %s43
      %s46 = sphi 0, %s45
      %s60 = sphi 0, %s46
      %s66 = sphi 0, %s68
      %s69 = sphi 0, %s66
      %s70 = sphi 0, %s69
      %s86 = sphi 0, %s70
      %s92 = sphi 0, %s94
      %s95 = sphi 0, %s92
      %s96 = sphi 0, %s95
      %s112 = sphi 0, %s96
      %s118 = sphi 0, %s120
      %s121 = sphi 0, %s118
      %s122 = sphi 0, %s121
      %s138 = sphi 0, %s122
      %s144 = sphi 0, %s146
      %s147 = sphi 0, %s144
      %s148 = sphi 0, %s147
      %s164 = sphi 0, %s148
      %s170 = sphi 0, %s172
      %s173 = sphi 0, %s170
      %s174 = sphi 0, %s173
      %s190 = sphi 0, %s174
      %s196 = sphi 0, %s198
      %s199 = sphi 0, %s196
      %s200 = sphi 0, %s199
      %s216 = sphi 0, %s200
      %s222 = sphi 0, %s224
      %s225 = sphi 0, %s222
      %s226 = sphi 0, %s225
      %s242 = sphi 0, %s226
      %s248 = sphi 0, %s250
      %s251 = sphi 0, %s248
      %s252 = sphi 0, %s251
      %s268 = sphi 0, %s252
      %s274 = sphi 0, %s276
      %s277 = sphi 0, %s274
      %s278 = sphi 0, %s277
      %s294 = sphi 0, %s278
      %s300 = sphi 0, %s302
      %s303 = sphi 0, %s300
      %s304 = sphi 0, %s303
      %s320 = sphi 0, %s304
      %s326 = sphi 0, %s328
      %s329 = sphi 0, %s326
      %s330 = sphi 0, %s329
      %s346 = sphi 0, %s330
      %s350 = sphi 0, %s350
      %s352 = sphi 0, %s350
      %s353 = sphi 0, %s352
      %s367 = sphi 0, %s353
    $region4: #{tpu_custom_call.1} parent=1 // loop_header_branch
      %38 = sbr.rel (%p36) target = $region8
    $region5: #{tpu_custom_call.1} parent=1 // loop_body
      %s40 = ssub.s32 %s35, 1
      %s41 = ssub.s32 %s35, 2
      %s42 = sadd.s32 %s35, 1
      %s44 = sadd.s32 %s43, 1
      %p47 = scmp.eq.s32.totalorder %s35, 7
      %p48 = scmp.ne.s32.totalorder %s43, %s45
      %p49 = scmp.eq.s32.totalorder %s35, 0
      %p50 = por %p48, %p49
      %p51 = scmp.ne.s32.totalorder %s43, %s45
      %p52 = scmp.eq.s32.totalorder %s40, 7
      %p53 = por %p51, %p52
      %p54 = scmp.ne.s32.totalorder %s45, %s46
      %p55 = scmp.eq.s32.totalorder %s40, 0
      %p56 = por %p54, %p55
      %p57 = scmp.ne.s32.totalorder %s45, %s46
      %p58 = scmp.eq.s32.totalorder %s41, 7
      %p59 = por %p57, %p58
      %p61 = scmp.ne.s32.totalorder %s46, %s60
      %p62 = scmp.eq.s32.totalorder %s41, 0
      %p63 = por %p61, %p62
      %s64 = ssub.s32 %s35, %s42
      %p65 = scmp.eq.s32.totalorder %s64, 0
      %s67 = sadd.s32 %s66, 1
      %s68 = scalar_select %p65, %s66, %s67
      %p71 = pneg %p65
      %p72 = scmp.eq.s32.totalorder %s35, 7
      %p73 = por %p71, %p72
      %p74 = scmp.ne.s32.totalorder %s66, %s69
      %p75 = scmp.eq.s32.totalorder %s35, 0
      %p76 = por %p74, %p75
      %p77 = scmp.ne.s32.totalorder %s66, %s69
      %p78 = scmp.eq.s32.totalorder %s40, 7
      %p79 = por %p77, %p78
      %p80 = scmp.ne.s32.totalorder %s69, %s70
      %p81 = scmp.eq.s32.totalorder %s40, 0
      %p82 = por %p80, %p81
      %p83 = scmp.ne.s32.totalorder %s69, %s70
      %p84 = scmp.eq.s32.totalorder %s41, 7
      %p85 = por %p83, %p84
      %p87 = scmp.ne.s32.totalorder %s70, %s86
      %p88 = scmp.eq.s32.totalorder %s41, 0
      %p89 = por %p87, %p88
      %s90 = ssub.s32 %s35, %s42
      %p91 = scmp.eq.s32.totalorder %s90, 0
      %s93 = sadd.s32 %s92, 1
      %s94 = scalar_select %p91, %s92, %s93
      %p97 = pneg %p91
      %p98 = scmp.eq.s32.totalorder %s35, 7
      %p99 = por %p97, %p98
      %p100 = scmp.ne.s32.totalorder %s92, %s95
      %p101 = scmp.eq.s32.totalorder %s35, 0
      %p102 = por %p100, %p101
      %p103 = scmp.ne.s32.totalorder %s92, %s95
      %p104 = scmp.eq.s32.totalorder %s40, 7
      %p105 = por %p103, %p104
      %p106 = scmp.ne.s32.totalorder %s95, %s96
      %p107 = scmp.eq.s32.totalorder %s40, 0
      %p108 = por %p106, %p107
      %p109 = scmp.ne.s32.totalorder %s95, %s96
      %p110 = scmp.eq.s32.totalorder %s41, 7
      %p111 = por %p109, %p110
      %p113 = scmp.ne.s32.totalorder %s96, %s112
      %p114 = scmp.eq.s32.totalorder %s41, 0
      %p115 = por %p113, %p114
      %s116 = ssub.s32 %s35, %s42
      %p117 = scmp.eq.s32.totalorder %s116, 0
      %s119 = sadd.s32 %s118, 1
      %s120 = scalar_select %p117, %s118, %s119
      %p123 = pneg %p117
      %p124 = scmp.eq.s32.totalorder %s35, 7
      %p125 = por %p123, %p124
      %p126 = scmp.ne.s32.totalorder %s118, %s121
      %p127 = scmp.eq.s32.totalorder %s35, 0
      %p128 = por %p126, %p127
      %p129 = scmp.ne.s32.totalorder %s118, %s121
      %p130 = scmp.eq.s32.totalorder %s40, 7
      %p131 = por %p129, %p130
      %p132 = scmp.ne.s32.totalorder %s121, %s122
      %p133 = scmp.eq.s32.totalorder %s40, 0
      %p134 = por %p132, %p133
      %p135 = scmp.ne.s32.totalorder %s121, %s122
      %p136 = scmp.eq.s32.totalorder %s41, 7
      %p137 = por %p135, %p136
      %p139 = scmp.ne.s32.totalorder %s122, %s138
      %p140 = scmp.eq.s32.totalorder %s41, 0
      %p141 = por %p139, %p140
      %s142 = ssub.s32 %s35, %s42
      %p143 = scmp.eq.s32.totalorder %s142, 0
      %s145 = sadd.s32 %s144, 1
      %s146 = scalar_select %p143, %s144, %s145
      %p149 = pneg %p143
      %p150 = scmp.eq.s32.totalorder %s35, 7
      %p151 = por %p149, %p150
      %p152 = scmp.ne.s32.totalorder %s144, %s147
      %p153 = scmp.eq.s32.totalorder %s35, 0
      %p154 = por %p152, %p153
      %p155 = scmp.ne.s32.totalorder %s144, %s147
      %p156 = scmp.eq.s32.totalorder %s40, 7
      %p157 = por %p155, %p156
      %p158 = scmp.ne.s32.totalorder %s147, %s148
      %p159 = scmp.eq.s32.totalorder %s40, 0
      %p160 = por %p158, %p159
      %p161 = scmp.ne.s32.totalorder %s147, %s148
      %p162 = scmp.eq.s32.totalorder %s41, 7
      %p163 = por %p161, %p162
      %p165 = scmp.ne.s32.totalorder %s148, %s164
      %p166 = scmp.eq.s32.totalorder %s41, 0
      %p167 = por %p165, %p166
      %s168 = ssub.s32 %s35, %s42
      %p169 = scmp.eq.s32.totalorder %s168, 0
      %s171 = sadd.s32 %s170, 1
      %s172 = scalar_select %p169, %s170, %s171
      %p175 = pneg %p169
      %p176 = scmp.eq.s32.totalorder %s35, 7
      %p177 = por %p175, %p176
      %p178 = scmp.ne.s32.totalorder %s170, %s173
      %p179 = scmp.eq.s32.totalorder %s35, 0
      %p180 = por %p178, %p179
      %p181 = scmp.ne.s32.totalorder %s170, %s173
      %p182 = scmp.eq.s32.totalorder %s40, 7
      %p183 = por %p181, %p182
      %p184 = scmp.ne.s32.totalorder %s173, %s174
      %p185 = scmp.eq.s32.totalorder %s40, 0
      %p186 = por %p184, %p185
      %p187 = scmp.ne.s32.totalorder %s173, %s174
      %p188 = scmp.eq.s32.totalorder %s41, 7
      %p189 = por %p187, %p188
      %p191 = scmp.ne.s32.totalorder %s174, %s190
      %p192 = scmp.eq.s32.totalorder %s41, 0
      %p193 = por %p191, %p192
      %s194 = ssub.s32 %s35, %s42
      %p195 = scmp.eq.s32.totalorder %s194, 0
      %s197 = sadd.s32 %s196, 1
      %s198 = scalar_select %p195, %s196, %s197
      %p201 = pneg %p195
      %p202 = scmp.eq.s32.totalorder %s35, 7
      %p203 = por %p201, %p202
      %p204 = scmp.ne.s32.totalorder %s196, %s199
      %p205 = scmp.eq.s32.totalorder %s35, 0
      %p206 = por %p204, %p205
      %p207 = scmp.ne.s32.totalorder %s196, %s199
      %p208 = scmp.eq.s32.totalorder %s40, 7
      %p209 = por %p207, %p208
      %p210 = scmp.ne.s32.totalorder %s199, %s200
      %p211 = scmp.eq.s32.totalorder %s40, 0
      %p212 = por %p210, %p211
      %p213 = scmp.ne.s32.totalorder %s199, %s200
      %p214 = scmp.eq.s32.totalorder %s41, 7
      %p215 = por %p213, %p214
      %p217 = scmp.ne.s32.totalorder %s200, %s216
      %p218 = scmp.eq.s32.totalorder %s41, 0
      %p219 = por %p217, %p218
      %s220 = ssub.s32 %s35, %s42
      %p221 = scmp.eq.s32.totalorder %s220, 0
      %s223 = sadd.s32 %s222, 1
      %s224 = scalar_select %p221, %s222, %s223
      %p227 = pneg %p221
      %p228 = scmp.eq.s32.totalorder %s35, 7
      %p229 = por %p227, %p228
      %p230 = scmp.ne.s32.totalorder %s222, %s225
      %p231 = scmp.eq.s32.totalorder %s35, 0
      %p232 = por %p230, %p231
      %p233 = scmp.ne.s32.totalorder %s222, %s225
      %p234 = scmp.eq.s32.totalorder %s40, 7
      %p235 = por %p233, %p234
      %p236 = scmp.ne.s32.totalorder %s225, %s226
      %p237 = scmp.eq.s32.totalorder %s40, 0
      %p238 = por %p236, %p237
      %p239 = scmp.ne.s32.totalorder %s225, %s226
      %p240 = scmp.eq.s32.totalorder %s41, 7
      %p241 = por %p239, %p240
      %p243 = scmp.ne.s32.totalorder %s226, %s242
      %p244 = scmp.eq.s32.totalorder %s41, 0
      %p245 = por %p243, %p244
      %s246 = ssub.s32 %s35, %s42
      %p247 = scmp.eq.s32.totalorder %s246, 0
      %s249 = sadd.s32 %s248, 1
      %s250 = scalar_select %p247, %s248, %s249
      %p253 = pneg %p247
      %p254 = scmp.eq.s32.totalorder %s35, 7
      %p255 = por %p253, %p254
      %p256 = scmp.ne.s32.totalorder %s248, %s251
      %p257 = scmp.eq.s32.totalorder %s35, 0
      %p258 = por %p256, %p257
      %p259 = scmp.ne.s32.totalorder %s248, %s251
      %p260 = scmp.eq.s32.totalorder %s40, 7
      %p261 = por %p259, %p260
      %p262 = scmp.ne.s32.totalorder %s251, %s252
      %p263 = scmp.eq.s32.totalorder %s40, 0
      %p264 = por %p262, %p263
      %p265 = scmp.ne.s32.totalorder %s251, %s252
      %p266 = scmp.eq.s32.totalorder %s41, 7
      %p267 = por %p265, %p266
      %p269 = scmp.ne.s32.totalorder %s252, %s268
      %p270 = scmp.eq.s32.totalorder %s41, 0
      %p271 = por %p269, %p270
      %s272 = ssub.s32 %s35, %s42
      %p273 = scmp.eq.s32.totalorder %s272, 0
      %s275 = sadd.s32 %s274, 1
      %s276 = scalar_select %p273, %s274, %s275
      %p279 = pneg %p273
      %p280 = scmp.eq.s32.totalorder %s35, 7
      %p281 = por %p279, %p280
      %p282 = scmp.ne.s32.totalorder %s274, %s277
      %p283 = scmp.eq.s32.totalorder %s35, 0
      %p284 = por %p282, %p283
      %p285 = scmp.ne.s32.totalorder %s274, %s277
      %p286 = scmp.eq.s32.totalorder %s40, 7
      %p287 = por %p285, %p286
      %p288 = scmp.ne.s32.totalorder %s277, %s278
      %p289 = scmp.eq.s32.totalorder %s40, 0
      %p290 = por %p288, %p289
      %p291 = scmp.ne.s32.totalorder %s277, %s278
      %p292 = scmp.eq.s32.totalorder %s41, 7
      %p293 = por %p291, %p292
      %p295 = scmp.ne.s32.totalorder %s278, %s294
      %p296 = scmp.eq.s32.totalorder %s41, 0
      %p297 = por %p295, %p296
      %s298 = ssub.s32 %s35, %s42
      %p299 = scmp.eq.s32.totalorder %s298, 0
      %s301 = sadd.s32 %s300, 1
      %s302 = scalar_select %p299, %s300, %s301
      %p305 = pneg %p299
      %p306 = scmp.eq.s32.totalorder %s35, 7
      %p307 = por %p305, %p306
      %p308 = scmp.ne.s32.totalorder %s300, %s303
      %p309 = scmp.eq.s32.totalorder %s35, 0
      %p310 = por %p308, %p309
      %p311 = scmp.ne.s32.totalorder %s300, %s303
      %p312 = scmp.eq.s32.totalorder %s40, 7
      %p313 = por %p311, %p312
      %p314 = scmp.ne.s32.totalorder %s303, %s304
      %p315 = scmp.eq.s32.totalorder %s40, 0
      %p316 = por %p314, %p315
      %p317 = scmp.ne.s32.totalorder %s303, %s304
      %p318 = scmp.eq.s32.totalorder %s41, 7
      %p319 = por %p317, %p318
      %p321 = scmp.ne.s32.totalorder %s304, %s320
      %p322 = scmp.eq.s32.totalorder %s41, 0
      %p323 = por %p321, %p322
      %s324 = ssub.s32 %s35, %s42
      %p325 = scmp.eq.s32.totalorder %s324, 0
      %s327 = sadd.s32 %s326, 1
      %s328 = scalar_select %p325, %s326, %s327
      %p331 = pneg %p325
      %p332 = scmp.eq.s32.totalorder %s35, 7
      %p333 = por %p331, %p332
      %p334 = scmp.ne.s32.totalorder %s326, %s329
      %p335 = scmp.eq.s32.totalorder %s35, 0
      %p336 = por %p334, %p335
      %p337 = scmp.ne.s32.totalorder %s326, %s329
      %p338 = scmp.eq.s32.totalorder %s40, 7
      %p339 = por %p337, %p338
      %p340 = scmp.ne.s32.totalorder %s329, %s330
      %p341 = scmp.eq.s32.totalorder %s40, 0
      %p342 = por %p340, %p341
      %p343 = scmp.ne.s32.totalorder %s329, %s330
      %p344 = scmp.eq.s32.totalorder %s41, 7
      %p345 = por %p343, %p344
      %p347 = scmp.ne.s32.totalorder %s330, %s346
      %p348 = scmp.eq.s32.totalorder %s41, 0
      %p349 = por %p347, %p348
      %s351 = sadd.s32 %s350, 1
      %p354 = scmp.eq.s32.totalorder %s35, 7
      %p355 = scmp.ne.s32.totalorder %s350, %s352
      %p356 = scmp.eq.s32.totalorder %s35, 0
      %p357 = por %p355, %p356
      %p358 = scmp.ne.s32.totalorder %s350, %s352
      %p359 = scmp.eq.s32.totalorder %s40, 7
      %p360 = por %p358, %p359
      %p361 = scmp.ne.s32.totalorder %s352, %s353
      %p362 = scmp.eq.s32.totalorder %s40, 0
      %p363 = por %p361, %p362
      %p364 = scmp.ne.s32.totalorder %s352, %s353
      %p365 = scmp.eq.s32.totalorder %s41, 7
      %p366 = por %p364, %p365
      %p368 = scmp.ne.s32.totalorder %s353, %s367
      %p369 = scmp.eq.s32.totalorder %s41, 0
      %p370 = por %p368, %p369
      %p371 = scmp.le.s32.totalorder 1, %s35
      %p372 = scmp.lt.s32.totalorder %s35, 9
      %p373 = pnand %p371, %p372
      %p374 = pneg %p373
      // Predicated region
      $region9: #{tpu_custom_call.1} parent=5 // pred_check
        _
      $region10: #{tpu_custom_call.1} parent=5 // pred_check_branch
        %376 = sbr.rel (%p373) target = $region12
      $region11: #{tpu_custom_call.1} parent=5 // pred_region
        %s377 = ssub.s32 %s35, 1
        // Predicated region
        $region13: #{tpu_custom_call.1} parent=11 // pred_check
          %p378 = pneg %p56
        $region14: #{tpu_custom_call.1} parent=11 // pred_check_branch
          %380 = sbr.rel (%p378) target = $region16
        $region15: #{tpu_custom_call.1} parent=11 // pred_region
          %s382 = ssub.s32 512, 512
          %383 = vsyncadd [#allocation5], %s382
          %s384 = sshll.u32 [#allocation4], 4
          %s385 = int_to_ptr.vmem [resolvable:$true] %s384
          %390 = dma.hbm_to_vmem [thread:$0]  %s0, 512, %s385, [#allocation5], 128, 128, 8
        $region16: #{tpu_custom_call.1} parent=11 // pred_fallthru
          _
      $region12: #{tpu_custom_call.1} parent=5 // pred_fallthru
        _
      %p391 = scmp.lt.s32.totalorder %s35, 8
      // Predicated region
      $region17: #{tpu_custom_call.1} parent=5 // pred_check
        %p392 = pneg %p391
      $region18: #{tpu_custom_call.1} parent=5 // pred_check_branch
        %394 = sbr.rel (%p392) target = $region20
      $region19: #{tpu_custom_call.1} parent=5 // pred_region
        // Predicated region
        $region21: #{tpu_custom_call.1} parent=19 // pred_check
          %p395 = pneg %p76
        $region22: #{tpu_custom_call.1} parent=19 // pred_check_branch
          %397 = sbr.rel (%p395) target = $region24
        $region23: #{tpu_custom_call.1} parent=19 // pred_region
          %s398 = sand.u32 %s35, 1
          %s399 = scalar_lea.sflag [#allocation8], %s398
          %s400 = sand.u32 %s66, 1
          %s401 = scalar_lea.vmem [#allocation7], %s400
          %s403 = ssub.s32 16, 16
          %404 = vsyncadd %s399, %s403
          %s405 = smul.addr %s35, 16
          %s406 = scalar_lea.hbm %s1, %s405
          %s408 = sshll.u32 %s401, 4
          %s409 = int_to_ptr.vmem [resolvable:$true] %s408
          %411 = dma.hbm_to_vmem [thread:$0]  %s406, 16, %s409, %s399
        $region24: #{tpu_custom_call.1} parent=19 // pred_fallthru
          _
        // Predicated region
        $region25: #{tpu_custom_call.1} parent=19 // pred_check
          %p412 = pneg %p102
        $region26: #{tpu_custom_call.1} parent=19 // pred_check_branch
          %414 = sbr.rel (%p412) target = $region28
        $region27: #{tpu_custom_call.1} parent=19 // pred_region
          %s415 = sand.u32 %s35, 1
          %s416 = scalar_lea.sflag [#allocation8], %s415
          %s417 = sand.u32 %s92, 1
          %s418 = scalar_lea.vmem [#allocation9], %s417
          %s420 = ssub.s32 16, 16
          %421 = vsyncadd %s416, %s420
          %s422 = smul.addr %s35, 16
          %s423 = scalar_lea.hbm %s2, %s422
          %s425 = sshll.u32 %s418, 4
          %s426 = int_to_ptr.vmem [resolvable:$true] %s425
          %428 = dma.hbm_to_vmem [thread:$0]  %s423, 16, %s426, %s416
        $region28: #{tpu_custom_call.1} parent=19 // pred_fallthru
          _
        // Predicated region
        $region29: #{tpu_custom_call.1} parent=19 // pred_check
          %p429 = pneg %p128
        $region30: #{tpu_custom_call.1} parent=19 // pred_check_branch
          %431 = sbr.rel (%p429) target = $region32
        $region31: #{tpu_custom_call.1} parent=19 // pred_region
          %s432 = sand.u32 %s35, 1
          %s433 = scalar_lea.sflag [#allocation11], %s432
          %s434 = sand.u32 %s118, 1
          %s435 = smul.addr %s434, 192
          %s436 = scalar_lea.vmem [#allocation10], %s435
          %s438 = ssub.s32 3072, 3072
          %439 = vsyncadd %s433, %s438
          %s440 = smul.addr %s35, 48
          %s441 = smul.addr %s440, 64
          %s442 = scalar_lea.hbm %s3, %s441
          %s443 = sshll.u32 %s436, 4
          %s444 = int_to_ptr.vmem [resolvable:$true] %s443
          %449 = dma.hbm_to_vmem [thread:$0]  %s442, 3072, %s444, %s433, 192, 192, 12
        $region32: #{tpu_custom_call.1} parent=19 // pred_fallthru
          _
        // Predicated region
        $region33: #{tpu_custom_call.1} parent=19 // pred_check
          %p450 = pneg %p154
        $region34: #{tpu_custom_call.1} parent=19 // pred_check_branch
          %452 = sbr.rel (%p450) target = $region36
        $region35: #{tpu_custom_call.1} parent=19 // pred_region
          %s453 = sand.u32 %s35, 1
          %s454 = scalar_lea.sflag [#allocation11], %s453
          %s455 = sand.u32 %s144, 1
          %s456 = smul.addr %s455, 64
          %s457 = scalar_lea.vmem [#allocation12], %s456
          %s459 = ssub.s32 1024, 1024
          %460 = vsyncadd %s454, %s459
          %s461 = smul.addr %s35, 16
          %s462 = smul.addr %s461, 64
          %s463 = scalar_lea.hbm %s4, %s462
          %s464 = sshll.u32 %s457, 4
          %s465 = int_to_ptr.vmem [resolvable:$true] %s464
          %470 = dma.hbm_to_vmem [thread:$0]  %s463, 1024, %s465, %s454, 64, 64, 4
        $region36: #{tpu_custom_call.1} parent=19 // pred_fallthru
          _
        // Predicated region
        $region37: #{tpu_custom_call.1} parent=19 // pred_check
          %p471 = pneg %p180
        $region38: #{tpu_custom_call.1} parent=19 // pred_check_branch
          %473 = sbr.rel (%p471) target = $region40
        $region39: #{tpu_custom_call.1} parent=19 // pred_region
          %p474 = scmp.lt.s32.totalorder %s35, 7
          %s475 = scalar_select %p474, %s35, 7
          %s476 = scalar_lea.vmem %s5, %s475
        $region40: #{tpu_custom_call.1} parent=19 // pred_fallthru
          _
        // Predicated region
        $region41: #{tpu_custom_call.1} parent=19 // pred_check
          %p477 = pneg %p206
        $region42: #{tpu_custom_call.1} parent=19 // pred_check_branch
          %479 = sbr.rel (%p477) target = $region44
        $region43: #{tpu_custom_call.1} parent=19 // pred_region
          %s480 = sand.u32 %s35, 1
          %s481 = scalar_lea.sflag [#allocation14], %s480
          %s482 = sand.u32 %s196, 1
          %s483 = scalar_lea.vmem [#allocation13], %s482
          %s485 = ssub.s32 16, 16
          %486 = vsyncadd %s481, %s485
          %s487 = smul.addr %s35, 16
          %s488 = scalar_lea.hbm %s6, %s487
          %s490 = sshll.u32 %s483, 4
          %s491 = int_to_ptr.vmem [resolvable:$true] %s490
          %493 = dma.hbm_to_vmem [thread:$0]  %s488, 16, %s491, %s481
        $region44: #{tpu_custom_call.1} parent=19 // pred_fallthru
          _
        // Predicated region
        $region45: #{tpu_custom_call.1} parent=19 // pred_check
          %p494 = pneg %p232
        $region46: #{tpu_custom_call.1} parent=19 // pred_check_branch
          %496 = sbr.rel (%p494) target = $region48
        $region47: #{tpu_custom_call.1} parent=19 // pred_region
          %s497 = sand.u32 %s35, 1
          %s498 = scalar_lea.sflag [#allocation14], %s497
          %s499 = sand.u32 %s222, 1
          %s500 = scalar_lea.vmem [#allocation15], %s499
          %s502 = ssub.s32 16, 16
          %503 = vsyncadd %s498, %s502
          %s504 = smul.addr %s35, 16
          %s505 = scalar_lea.hbm %s7, %s504
          %s507 = sshll.u32 %s500, 4
          %s508 = int_to_ptr.vmem [resolvable:$true] %s507
          %510 = dma.hbm_to_vmem [thread:$0]  %s505, 16, %s508, %s498
        $region48: #{tpu_custom_call.1} parent=19 // pred_fallthru
          _
        // Predicated region
        $region49: #{tpu_custom_call.1} parent=19 // pred_check
          %p511 = pneg %p258
        $region50: #{tpu_custom_call.1} parent=19 // pred_check_branch
          %513 = sbr.rel (%p511) target = $region52
        $region51: #{tpu_custom_call.1} parent=19 // pred_region
          %s514 = sand.u32 %s35, 1
          %s515 = scalar_lea.sflag [#allocation17], %s514
          %s516 = sand.u32 %s248, 1
          %s517 = smul.addr %s516, 256
          %s518 = scalar_lea.vmem [#allocation16], %s517
          %s520 = ssub.s32 4096, 4096
          %521 = vsyncadd %s515, %s520
          %s522 = smul.addr %s35, 64
          %s523 = smul.addr %s522, 64
          %s524 = scalar_lea.hbm %s8, %s523
          %s525 = sshll.u32 %s518, 4
          %s526 = int_to_ptr.vmem [resolvable:$true] %s525
          %531 = dma.hbm_to_vmem [thread:$0]  %s524, 4096, %s526, %s515, 256, 256, 16
        $region52: #{tpu_custom_call.1} parent=19 // pred_fallthru
          _
        // Predicated region
        $region53: #{tpu_custom_call.1} parent=19 // pred_check
          %p532 = pneg %p284
        $region54: #{tpu_custom_call.1} parent=19 // pred_check_branch
          %534 = sbr.rel (%p532) target = $region56
        $region55: #{tpu_custom_call.1} parent=19 // pred_region
          %s535 = sand.u32 %s35, 1
          %s536 = scalar_lea.sflag [#allocation17], %s535
          %s537 = sand.u32 %s274, 1
          %s538 = smul.addr %s537, 4
          %s539 = scalar_lea.vmem [#allocation18], %s538
          %s541 = ssub.s32 64, 64
          %542 = vsyncadd %s536, %s541
          %s543 = smul.addr %s35, 4
          %s544 = smul.addr %s543, 16
          %s545 = scalar_lea.hbm %s9, %s544
          %s547 = sshll.u32 %s539, 4
          %s548 = int_to_ptr.vmem [resolvable:$true] %s547
          %550 = dma.hbm_to_vmem [thread:$0]  %s545, 64, %s548, %s536
        $region56: #{tpu_custom_call.1} parent=19 // pred_fallthru
          _
        // Predicated region
        $region57: #{tpu_custom_call.1} parent=19 // pred_check
          %p551 = pneg %p310
        $region58: #{tpu_custom_call.1} parent=19 // pred_check_branch
          %553 = sbr.rel (%p551) target = $region60
        $region59: #{tpu_custom_call.1} parent=19 // pred_region
          %s554 = sand.u32 %s300, 1
          %s555 = scalar_lea.sflag [#allocation20], %s554
          %s556 = sand.u32 %s300, 1
          %s557 = smul.addr %s556, 256
          %s558 = scalar_lea.vmem [#allocation19], %s557
          %s560 = ssub.s32 4096, 4096
          %561 = vsyncadd %s555, %s560
          %s562 = smul.addr %s35, 64
          %s563 = smul.addr %s562, 64
          %s564 = scalar_lea.hbm %s10, %s563
          %s565 = sshll.u32 %s558, 4
          %s566 = int_to_ptr.vmem [resolvable:$true] %s565
          %571 = dma.hbm_to_vmem [thread:$0]  %s564, 4096, %s566, %s555, 64, 64, 4
        $region60: #{tpu_custom_call.1} parent=19 // pred_fallthru
          _
        // Predicated region
        $region61: #{tpu_custom_call.1} parent=19 // pred_check
          %p572 = pneg %p336
        $region62: #{tpu_custom_call.1} parent=19 // pred_check_branch
          %574 = sbr.rel (%p572) target = $region64
        $region63: #{tpu_custom_call.1} parent=19 // pred_region
          %p575 = scmp.lt.s32.totalorder %s35, 7
          %s576 = scalar_select %p575, %s35, 7
          %s577 = scalar_lea.vmem %s11, %s576
        $region64: #{tpu_custom_call.1} parent=19 // pred_fallthru
          _
      $region20: #{tpu_custom_call.1} parent=5 // pred_fallthru
        _
      %p578 = scmp.le.s32.totalorder 1, %s35
      %p579 = scmp.lt.s32.totalorder %s35, 9
      %p580 = pnand %p578, %p579
      %p581 = pneg %p580
      // Predicated region
      $region65: #{tpu_custom_call.1} parent=5 // pred_check
        _
      $region66: #{tpu_custom_call.1} parent=5 // pred_check_branch
        %583 = sbr.rel (%p580) target = $region68
      $region67: #{tpu_custom_call.1} parent=5 // pred_region
        %s584 = ssub.s32 %s35, 1
        // Predicated region
        $region69: #{tpu_custom_call.1} parent=67 // pred_check
          %p585 = pneg %p56
        $region70: #{tpu_custom_call.1} parent=67 // pred_check_branch
          %587 = sbr.rel (%p585) target = $region72
        $region71: #{tpu_custom_call.1} parent=67 // pred_region
          %588 = dma.done [#allocation5], 512
        $region72: #{tpu_custom_call.1} parent=67 // pred_fallthru
          _
        %s589 = sand.u32 %s40, 1
        %s590 = scalar_lea.sflag [#allocation8], %s589
        %s591 = sand.u32 %s69, 1
        %s592 = scalar_lea.vmem [#allocation7], %s591
        // Predicated region
        $region73: #{tpu_custom_call.1} parent=67 // pred_check
          %p593 = pneg %p82
        $region74: #{tpu_custom_call.1} parent=67 // pred_check_branch
          %595 = sbr.rel (%p593) target = $region76
        $region75: #{tpu_custom_call.1} parent=67 // pred_region
          %596 = dma.done %s590, 16
        $region76: #{tpu_custom_call.1} parent=67 // pred_fallthru
          _
        %s597 = sand.u32 %s40, 1
        %s598 = scalar_lea.sflag [#allocation8], %s597
        %s599 = sand.u32 %s95, 1
        %s600 = scalar_lea.vmem [#allocation9], %s599
        // Predicated region
        $region77: #{tpu_custom_call.1} parent=67 // pred_check
          %p601 = pneg %p108
        $region78: #{tpu_custom_call.1} parent=67 // pred_check_branch
          %603 = sbr.rel (%p601) target = $region80
        $region79: #{tpu_custom_call.1} parent=67 // pred_region
          %604 = dma.done %s598, 16
        $region80: #{tpu_custom_call.1} parent=67 // pred_fallthru
          _
        %s605 = sand.u32 %s40, 1
        %s606 = scalar_lea.sflag [#allocation11], %s605
        %s607 = sand.u32 %s121, 1
        %s608 = smul.addr %s607, 192
        %s609 = scalar_lea.vmem [#allocation10], %s608
        // Predicated region
        $region81: #{tpu_custom_call.1} parent=67 // pred_check
          %p610 = pneg %p134
        $region82: #{tpu_custom_call.1} parent=67 // pred_check_branch
          %612 = sbr.rel (%p610) target = $region84
        $region83: #{tpu_custom_call.1} parent=67 // pred_region
          %613 = dma.done %s606, 3072
        $region84: #{tpu_custom_call.1} parent=67 // pred_fallthru
          _
        %s614 = sand.u32 %s40, 1
        %s615 = scalar_lea.sflag [#allocation11], %s614
        %s616 = sand.u32 %s147, 1
        %s617 = smul.addr %s616, 64
        %s618 = scalar_lea.vmem [#allocation12], %s617
        // Predicated region
        $region85: #{tpu_custom_call.1} parent=67 // pred_check
          %p619 = pneg %p160
        $region86: #{tpu_custom_call.1} parent=67 // pred_check_branch
          %621 = sbr.rel (%p619) target = $region88
        $region87: #{tpu_custom_call.1} parent=67 // pred_region
          %622 = dma.done %s615, 1024
        $region88: #{tpu_custom_call.1} parent=67 // pred_fallthru
          _
        %s623 = sand.u32 %s40, 1
        %s624 = scalar_lea.sflag [#allocation14], %s623
        %s625 = sand.u32 %s199, 1
        %s626 = scalar_lea.vmem [#allocation13], %s625
        // Predicated region
        $region89: #{tpu_custom_call.1} parent=67 // pred_check
          %p627 = pneg %p212
        $region90: #{tpu_custom_call.1} parent=67 // pred_check_branch
          %629 = sbr.rel (%p627) target = $region92
        $region91: #{tpu_custom_call.1} parent=67 // pred_region
          %630 = dma.done %s624, 16
        $region92: #{tpu_custom_call.1} parent=67 // pred_fallthru
          _
        %s631 = sand.u32 %s40, 1
        %s632 = scalar_lea.sflag [#allocation14], %s631
        %s633 = sand.u32 %s225, 1
        %s634 = scalar_lea.vmem [#allocation15], %s633
        // Predicated region
        $region93: #{tpu_custom_call.1} parent=67 // pred_check
          %p635 = pneg %p238
        $region94: #{tpu_custom_call.1} parent=67 // pred_check_branch
          %637 = sbr.rel (%p635) target = $region96
        $region95: #{tpu_custom_call.1} parent=67 // pred_region
          %638 = dma.done %s632, 16
        $region96: #{tpu_custom_call.1} parent=67 // pred_fallthru
          _
        %s639 = sand.u32 %s40, 1
        %s640 = scalar_lea.sflag [#allocation17], %s639
        %s641 = sand.u32 %s251, 1
        %s642 = smul.addr %s641, 256
        %s643 = scalar_lea.vmem [#allocation16], %s642
        // Predicated region
        $region97: #{tpu_custom_call.1} parent=67 // pred_check
          %p644 = pneg %p264
        $region98: #{tpu_custom_call.1} parent=67 // pred_check_branch
          %646 = sbr.rel (%p644) target = $region100
        $region99: #{tpu_custom_call.1} parent=67 // pred_region
          %647 = dma.done %s640, 4096
        $region100: #{tpu_custom_call.1} parent=67 // pred_fallthru
          _
        %s648 = sand.u32 %s40, 1
        %s649 = scalar_lea.sflag [#allocation17], %s648
        %s650 = sand.u32 %s277, 1
        %s651 = smul.addr %s650, 4
        %s652 = scalar_lea.vmem [#allocation18], %s651
        // Predicated region
        $region101: #{tpu_custom_call.1} parent=67 // pred_check
          %p653 = pneg %p290
        $region102: #{tpu_custom_call.1} parent=67 // pred_check_branch
          %655 = sbr.rel (%p653) target = $region104
        $region103: #{tpu_custom_call.1} parent=67 // pred_region
          %656 = dma.done %s649, 64
        $region104: #{tpu_custom_call.1} parent=67 // pred_fallthru
          _
        %s657 = sand.u32 %s303, 1
        %s658 = scalar_lea.sflag [#allocation20], %s657
        %s659 = sand.u32 %s303, 1
        %s660 = smul.addr %s659, 256
        %s661 = scalar_lea.vmem [#allocation19], %s660
        // Predicated region
        $region105: #{tpu_custom_call.1} parent=67 // pred_check
          %p662 = pneg %p316
        $region106: #{tpu_custom_call.1} parent=67 // pred_check_branch
          %664 = sbr.rel (%p662) target = $region108
        $region107: #{tpu_custom_call.1} parent=67 // pred_region
          %665 = dma.done %s658, 4096
        $region108: #{tpu_custom_call.1} parent=67 // pred_fallthru
          _
        %p666 = pneg %p56
        %p667 = pneg %p53
        %s668 = sand.u32 %s40, 1
        %s669 = scalar_lea.sflag [#allocation8], %s668
        %s670 = sand.u32 %s69, 1
        %s671 = scalar_lea.vmem [#allocation7], %s670
        %p672 = pneg %p82
        %p673 = pneg %p79
        %s674 = sand.u32 %s40, 1
        %s675 = scalar_lea.sflag [#allocation8], %s674
        %s676 = sand.u32 %s95, 1
        %s677 = scalar_lea.vmem [#allocation9], %s676
        %p678 = pneg %p108
        %p679 = pneg %p105
        %s680 = sand.u32 %s40, 1
        %s681 = scalar_lea.sflag [#allocation11], %s680
        %s682 = sand.u32 %s121, 1
        %s683 = smul.addr %s682, 192
        %s684 = scalar_lea.vmem [#allocation10], %s683
        %p685 = pneg %p134
        %p686 = pneg %p131
        %s687 = sand.u32 %s40, 1
        %s688 = scalar_lea.sflag [#allocation11], %s687
        %s689 = sand.u32 %s147, 1
        %s690 = smul.addr %s689, 64
        %s691 = scalar_lea.vmem [#allocation12], %s690
        %p692 = pneg %p160
        %p693 = pneg %p157
        %p694 = scmp.lt.s32.totalorder %s40, 7
        %s695 = scalar_select %p694, %s40, 7
        %s696 = scalar_lea.vmem %s5, %s695
        %p697 = pneg %p186
        %p698 = pneg %p183
        %s699 = sand.u32 %s40, 1
        %s700 = scalar_lea.sflag [#allocation14], %s699
        %s701 = sand.u32 %s199, 1
        %s702 = scalar_lea.vmem [#allocation13], %s701
        %p703 = pneg %p212
        %p704 = pneg %p209
        %s705 = sand.u32 %s40, 1
        %s706 = scalar_lea.sflag [#allocation14], %s705
        %s707 = sand.u32 %s225, 1
        %s708 = scalar_lea.vmem [#allocation15], %s707
        %p709 = pneg %p238
        %p710 = pneg %p235
        %s711 = sand.u32 %s40, 1
        %s712 = scalar_lea.sflag [#allocation17], %s711
        %s713 = sand.u32 %s251, 1
        %s714 = smul.addr %s713, 256
        %s715 = scalar_lea.vmem [#allocation16], %s714
        %p716 = pneg %p264
        %p717 = pneg %p261
        %s718 = sand.u32 %s40, 1
        %s719 = scalar_lea.sflag [#allocation17], %s718
        %s720 = sand.u32 %s277, 1
        %s721 = smul.addr %s720, 4
        %s722 = scalar_lea.vmem [#allocation18], %s721
        %p723 = pneg %p290
        %p724 = pneg %p287
        %s725 = sand.u32 %s303, 1
        %s726 = scalar_lea.sflag [#allocation20], %s725
        %s727 = sand.u32 %s303, 1
        %s728 = smul.addr %s727, 256
        %s729 = scalar_lea.vmem [#allocation19], %s728
        %p730 = pneg %p316
        %p731 = pneg %p313
        %p732 = scmp.lt.s32.totalorder %s40, 7
        %s733 = scalar_select %p732, %s40, 7
        %s734 = scalar_lea.vmem %s11, %s733
        %p735 = pneg %p342
        %p736 = pneg %p339
        %p737 = pneg %p363
        %p738 = pneg %p360
        %p739 = scmp.lt.s32.totalorder %s40, 7
        %s740 = scalar_select %p739, %s40, 7
        %s741 = scalar_lea.vmem %s5, %s740
        %p742 = scmp.lt.s32.totalorder %s40, 7
        %s743 = scalar_select %p742, %s40, 7
        %s744 = scalar_lea.vmem %s11, %s743
        %p745 = scmp.eq.s32.totalorder %s40, 0
        // Predicated region
        $region109: #{tpu_custom_call.1} parent=67 // pred_check
          %p746 = pneg %p745
        $region110: #{tpu_custom_call.1} parent=67 // pred_check_branch
          %748 = sbr.rel (%p746) target = $region112
        $region111: #{tpu_custom_call.1} parent=67 // pred_region
          %v749 = vld [vmem:[#allocation4] sm:$0xff]
          %v750 = vld [vmem:[#allocation4 + $0x8] sm:$0xff]
          %v751 = vld [vmem:[#allocation4 + $0x10] sm:$0xff]
          %v752 = vld [vmem:[#allocation4 + $0x18] sm:$0xff]
          %753 = vst [vmem:[#allocation21] sm:$0xff] %v749
          %754 = vst [vmem:[#allocation21 + $0x8] sm:$0xff] %v750
          %755 = vst [vmem:[#allocation21 + $0x10] sm:$0xff] %v751
          %756 = vst [vmem:[#allocation21 + $0x18] sm:$0xff] %v752
        $region112: #{tpu_custom_call.1} parent=67 // pred_fallthru
          _
        %v757 = vld [vmem:[#allocation21] sm:$0xff]
        %v758 = vld [vmem:[#allocation21 + $0x8] sm:$0xff]
        %v759 = vld [vmem:[#allocation21 + $0x10] sm:$0xff]
        %v760 = vld [vmem:[#allocation21 + $0x18] sm:$0xff]
        %v761 = vld [vmem:[%s592] sm:$0x1]
        %v762 = vld [vmem:[%s600] sm:$0x1]
        %763 = vadd.xlane.f32.xlu0 %v757
        %v764 = vpop.xlane.xlu0 %763
        %765 = vadd.xlane.f32.xlu0 %v758
        %v766 = vpop.xlane.xlu0 %765
        %767 = vadd.xlane.f32.xlu0 %v759
        %v768 = vpop.xlane.xlu0 %767
        %769 = vadd.xlane.f32.xlu0 %v760
        %v770 = vpop.xlane.xlu0 %769
        %v771 = vrcp.pop 128.0
        %v772 = vmul.f32 %v764, %v771
        %v773 = vmul.f32 %v766, %v771
        %v774 = vmul.f32 %v768, %v771
        %v775 = vmul.f32 %v770, %v771
        %v776 = vsub.f32 %v757, %v772
        %v777 = vsub.f32 %v758, %v773
        %v778 = vsub.f32 %v759, %v774
        %v779 = vsub.f32 %v760, %v775
        %v780 = vmul.f32 %v776, %v776
        %v781 = vmul.f32 %v777, %v777
        %v782 = vmul.f32 %v778, %v778
        %v783 = vmul.f32 %v779, %v779
        %784 = vadd.xlane.f32.xlu0 %v780
        %v785 = vpop.xlane.xlu0 %784
        %786 = vadd.xlane.f32.xlu0 %v781
        %v787 = vpop.xlane.xlu0 %786
        %788 = vadd.xlane.f32.xlu0 %v782
        %v789 = vpop.xlane.xlu0 %788
        %790 = vadd.xlane.f32.xlu0 %v783
        %v791 = vpop.xlane.xlu0 %790
        %v792 = vmul.f32 %v785, %v771
        %v793 = vmul.f32 %v787, %v771
        %v794 = vmul.f32 %v789, %v771
        %v795 = vmul.f32 %v791, %v771
        %v796 = vadd.f32 %v792, 1e-05
        %v797 = vadd.f32 %v793, 1e-05
        %v798 = vadd.f32 %v794, 1e-05
        %v799 = vadd.f32 %v795, 1e-05
        %v800 = vrsqrt.pop %v796
        %v801 = vrsqrt.pop %v797
        %v802 = vrsqrt.pop %v798
        %v803 = vrsqrt.pop %v799
        %v804 = vmul.f32 %v776, %v800
        %v805 = vmul.f32 %v777, %v801
        %v806 = vmul.f32 %v778, %v802
        %v807 = vmul.f32 %v779, %v803
        %v809 = vlaneseq
        %v810 = vshrl.u32 %v809, 7
        %v811 = vsub.s32 0, %v810
        %v812 = vrot.slane %v761, %v811
        %v814 = vmul.f32 %v804, %v812
        %v815 = vmul.f32 %v805, %v812
        %v816 = vmul.f32 %v806, %v812
        %v817 = vmul.f32 %v807, %v812
        %v819 = vlaneseq
        %v820 = vshrl.u32 %v819, 7
        %v821 = vsub.s32 0, %v820
        %v822 = vrot.slane %v762, %v821
        %v824 = vadd.f32 %v814, %v822
        %v825 = vadd.f32 %v815, %v822
        %v826 = vadd.f32 %v816, %v822
        %v827 = vadd.f32 %v817, %v822
        %v828 = vld [vmem:[%s609] sm:$0xff]
        %v829 = vld [vmem:[%s609 + $0x8] sm:$0xf]
        %v830 = vld [vmem:[%s609 + $0xc] sm:$0xff]
        %v831 = vld [vmem:[%s609 + $0x14] sm:$0xf]
        %v832 = vld [vmem:[%s609 + $0x18] sm:$0xff]
        %v833 = vld [vmem:[%s609 + $0x20] sm:$0xf]
        %v834 = vld [vmem:[%s609 + $0x24] sm:$0xff]
        %v835 = vld [vmem:[%s609 + $0x2c] sm:$0xf]
        %v836 = vld [vmem:[%s609 + $0x30] sm:$0xff]
        %v837 = vld [vmem:[%s609 + $0x38] sm:$0xf]
        %v838 = vld [vmem:[%s609 + $0x3c] sm:$0xff]
        %v839 = vld [vmem:[%s609 + $0x44] sm:$0xf]
        %v840 = vld [vmem:[%s609 + $0x48] sm:$0xff]
        %v841 = vld [vmem:[%s609 + $0x50] sm:$0xf]
        %v842 = vld [vmem:[%s609 + $0x54] sm:$0xff]
        %v843 = vld [vmem:[%s609 + $0x5c] sm:$0xf]
        %v844 = vld [vmem:[%s609 + $0x60] sm:$0xff]
        %v845 = vld [vmem:[%s609 + $0x68] sm:$0xf]
        %v846 = vld [vmem:[%s609 + $0x6c] sm:$0xff]
        %v847 = vld [vmem:[%s609 + $0x74] sm:$0xf]
        %v848 = vld [vmem:[%s609 + $0x78] sm:$0xff]
        %v849 = vld [vmem:[%s609 + $0x80] sm:$0xf]
        %v850 = vld [vmem:[%s609 + $0x84] sm:$0xff]
        %v851 = vld [vmem:[%s609 + $0x8c] sm:$0xf]
        %v852 = vld [vmem:[%s609 + $0x90] sm:$0xff]
        %v853 = vld [vmem:[%s609 + $0x98] sm:$0xf]
        %v854 = vld [vmem:[%s609 + $0x9c] sm:$0xff]
        %v855 = vld [vmem:[%s609 + $0xa4] sm:$0xf]
        %v856 = vld [vmem:[%s609 + $0xa8] sm:$0xff]
        %v857 = vld [vmem:[%s609 + $0xb0] sm:$0xf]
        %v858 = vld [vmem:[%s609 + $0xb4] sm:$0xff]
        %v859 = vld [vmem:[%s609 + $0xbc] sm:$0xf]
        %v860 = vunpack.c.l.bf16 %v828
        %v861 = vunpack.c.h.bf16 %v828
        %v862 = vunpack.c.l.bf16 %v829
        %v863 = vunpack.c.l.bf16 %v830
        %v864 = vunpack.c.h.bf16 %v830
        %v865 = vunpack.c.l.bf16 %v831
        %v866 = vunpack.c.l.bf16 %v832
        %v867 = vunpack.c.h.bf16 %v832
        %v868 = vunpack.c.l.bf16 %v833
        %v869 = vunpack.c.l.bf16 %v834
        %v870 = vunpack.c.h.bf16 %v834
        %v871 = vunpack.c.l.bf16 %v835
        %v872 = vunpack.c.l.bf16 %v836
        %v873 = vunpack.c.h.bf16 %v836
        %v874 = vunpack.c.l.bf16 %v837
        %v875 = vunpack.c.l.bf16 %v838
        %v876 = vunpack.c.h.bf16 %v838
        %v877 = vunpack.c.l.bf16 %v839
        %v878 = vunpack.c.l.bf16 %v840
        %v879 = vunpack.c.h.bf16 %v840
        %v880 = vunpack.c.l.bf16 %v841
        %v881 = vunpack.c.l.bf16 %v842
        %v882 = vunpack.c.h.bf16 %v842
        %v883 = vunpack.c.l.bf16 %v843
        %v884 = vunpack.c.l.bf16 %v844
        %v885 = vunpack.c.h.bf16 %v844
        %v886 = vunpack.c.l.bf16 %v845
        %v887 = vunpack.c.l.bf16 %v846
        %v888 = vunpack.c.h.bf16 %v846
        %v889 = vunpack.c.l.bf16 %v847
        %v890 = vunpack.c.l.bf16 %v848
        %v891 = vunpack.c.h.bf16 %v848
        %v892 = vunpack.c.l.bf16 %v849
        %v893 = vunpack.c.l.bf16 %v850
        %v894 = vunpack.c.h.bf16 %v850
        %v895 = vunpack.c.l.bf16 %v851
        %v896 = vunpack.c.l.bf16 %v852
        %v897 = vunpack.c.h.bf16 %v852
        %v898 = vunpack.c.l.bf16 %v853
        %v899 = vunpack.c.l.bf16 %v854
        %v900 = vunpack.c.h.bf16 %v854
        %v901 = vunpack.c.l.bf16 %v855
        %v902 = vunpack.c.l.bf16 %v856
        %v903 = vunpack.c.h.bf16 %v856
        %v904 = vunpack.c.l.bf16 %v857
        %v905 = vunpack.c.l.bf16 %v858
        %v906 = vunpack.c.h.bf16 %v858
        %v907 = vunpack.c.l.bf16 %v859
        %908 = vmatprep.subr.mxu0 %v906
        %909 = vmatpush1.msra.mxu0 %v905
        %910 = vmatprep.subr.mxu0 %v903
        %911 = vmatpush1.msra.mxu0 %v902
        %912 = vmatprep.subr.mxu0 %v900
        %913 = vmatpush1.msra.mxu0 %v899
        %914 = vmatprep.subr.mxu0 %v897
        %915 = vmatpush1.msra.mxu0 %v896
        %916 = vmatprep.subr.mxu0 %v894
        %917 = vmatpush1.msra.mxu0 %v893
        %918 = vmatprep.subr.mxu0 %v891
        %919 = vmatpush1.msra.mxu0 %v890
        %920 = vmatprep.subr.mxu0 %v888
        %921 = vmatpush1.msra.mxu0 %v887
        %922 = vmatprep.subr.mxu0 %v885
        %923 = vmatpush1.msra.mxu0 %v884
        %924 = vmatprep.subr.mxu0 %v882
        %925 = vmatpush1.msra.mxu0 %v881
        %926 = vmatprep.subr.mxu0 %v879
        %927 = vmatpush1.msra.mxu0 %v878
        %928 = vmatprep.subr.mxu0 %v876
        %929 = vmatpush1.msra.mxu0 %v875
        %930 = vmatprep.subr.mxu0 %v873
        %931 = vmatpush1.msra.mxu0 %v872
        %932 = vmatprep.subr.mxu0 %v870
        %933 = vmatpush1.msra.mxu0 %v869
        %934 = vmatprep.subr.mxu0 %v867
        %935 = vmatpush1.msra.mxu0 %v866
        %936 = vmatprep.subr.mxu0 %v864
        %937 = vmatpush1.msra.mxu0 %v863
        %938 = vmatprep.subr.mxu0 %v861
        %939 = vmatpush1.msra.mxu0 %v860
        %940 = vmatprep.subr.mxu0 0.0
        %941 = vmatpush2.msra.mxu0 0.0
        %942 = vmatprep.subr.mxu0 0.0
        %943 = vmatpush2.msra.mxu0 0.0
        %944 = vmatprep.subr.mxu0 0.0
        %945 = vmatpush2.msra.mxu0 0.0
        %946 = vmatprep.subr.mxu0 0.0
        %947 = vmatpush2.msra.mxu0 0.0
        %948 = vmatprep.subr.mxu0 0.0
        %949 = vmatpush2.msra.mxu0 0.0
        %950 = vmatprep.subr.mxu0 0.0
        %951 = vmatpush2.msra.mxu0 0.0
        %952 = vmatprep.subr.mxu0 0.0
        %953 = vmatpush2.msra.mxu0 0.0
        %954 = vmatprep.subr.mxu0 0.0
        %955 = vmatpush2.msra.mxu0 0.0
        %956 = vmatprep.subr.mxu0 0.0
        %957 = vmatpush2.msra.mxu0 0.0
        %958 = vmatprep.subr.mxu0 0.0
        %959 = vmatpush2.msra.mxu0 0.0
        %960 = vmatprep.subr.mxu0 0.0
        %961 = vmatpush2.msra.mxu0 0.0
        %962 = vmatprep.subr.mxu0 0.0
        %963 = vmatpush2.msra.mxu0 0.0
        %964 = vmatprep.subr.mxu0 0.0
        %965 = vmatpush2.msra.mxu0 0.0
        %966 = vmatprep.subr.mxu0 0.0
        %967 = vmatpush2.msra.mxu0 0.0
        %968 = vmatprep.subr.mxu0 0.0
        %969 = vmatpush2.msra.mxu0 0.0
        %970 = vmatprep.subr.mxu0 0.0
        %971 = vmatpush2.msra.mxu0 0.0
        %972 = vmatprep.mubr.f32.mxu0 0.0
        %973 = vmatmul.mubr.f32.gmra.mxu0 %v824
        %v974 = vpop.f32.mrf.mxu0
        %v975 = vadd.f32 0.0, %v974
        %v976 = vpop.f32.mrf.mxu0
        %v977 = vadd.f32 0.0, %v976
        %978 = vmatprep.mubr.f32.mxu0 0.0
        %979 = vmatmul.mubr.f32.gmra.mxu0 %v825
        %v980 = vpop.f32.mrf.mxu0
        %v981 = vadd.f32 0.0, %v980
        %v982 = vpop.f32.mrf.mxu0
        %v983 = vadd.f32 0.0, %v982
        %984 = vmatprep.mubr.f32.mxu0 0.0
        %985 = vmatmul.mubr.f32.gmra.mxu0 %v826
        %v986 = vpop.f32.mrf.mxu0
        %v987 = vadd.f32 0.0, %v986
        %v988 = vpop.f32.mrf.mxu0
        %v989 = vadd.f32 0.0, %v988
        %990 = vmatprep.mubr.f32.mxu0 0.0
        %991 = vmatmul.mubr.f32.gmra.mxu0 %v827
        %v992 = vpop.f32.mrf.mxu0
        %v993 = vadd.f32 0.0, %v992
        %v994 = vpop.f32.mrf.mxu0
        %v995 = vadd.f32 0.0, %v994
        %996 = vdwg.mxu0
        %997 = vmatprep.subr.mxu0 0.0
        %998 = vmatpush1.msra.mxu0 %v907
        %999 = vmatprep.subr.mxu0 0.0
        %1000 = vmatpush1.msra.mxu0 %v904
        %1001 = vmatprep.subr.mxu0 0.0
        %1002 = vmatpush1.msra.mxu0 %v901
        %1003 = vmatprep.subr.mxu0 0.0
        %1004 = vmatpush1.msra.mxu0 %v898
        %1005 = vmatprep.subr.mxu0 0.0
        %1006 = vmatpush1.msra.mxu0 %v895
        %1007 = vmatprep.subr.mxu0 0.0
        %1008 = vmatpush1.msra.mxu0 %v892
        %1009 = vmatprep.subr.mxu0 0.0
        %1010 = vmatpush1.msra.mxu0 %v889
        %1011 = vmatprep.subr.mxu0 0.0
        %1012 = vmatpush1.msra.mxu0 %v886
        %1013 = vmatprep.subr.mxu0 0.0
        %1014 = vmatpush1.msra.mxu0 %v883
        %1015 = vmatprep.subr.mxu0 0.0
        %1016 = vmatpush1.msra.mxu0 %v880
        %1017 = vmatprep.subr.mxu0 0.0
        %1018 = vmatpush1.msra.mxu0 %v877
        %1019 = vmatprep.subr.mxu0 0.0
        %1020 = vmatpush1.msra.mxu0 %v874
        %1021 = vmatprep.subr.mxu0 0.0
        %1022 = vmatpush1.msra.mxu0 %v871
        %1023 = vmatprep.subr.mxu0 0.0
        %1024 = vmatpush1.msra.mxu0 %v868
        %1025 = vmatprep.subr.mxu0 0.0
        %1026 = vmatpush1.msra.mxu0 %v865
        %1027 = vmatprep.subr.mxu0 0.0
        %1028 = vmatpush1.msra.mxu0 %v862
        %1029 = vmatprep.subr.mxu0 0.0
        %1030 = vmatpush2.msra.mxu0 0.0
        %1031 = vmatprep.subr.mxu0 0.0
        %1032 = vmatpush2.msra.mxu0 0.0
        %1033 = vmatprep.subr.mxu0 0.0
        %1034 = vmatpush2.msra.mxu0 0.0
        %1035 = vmatprep.subr.mxu0 0.0
        %1036 = vmatpush2.msra.mxu0 0.0
        %1037 = vmatprep.subr.mxu0 0.0
        %1038 = vmatpush2.msra.mxu0 0.0
        %1039 = vmatprep.subr.mxu0 0.0
        %1040 = vmatpush2.msra.mxu0 0.0
        %1041 = vmatprep.subr.mxu0 0.0
        %1042 = vmatpush2.msra.mxu0 0.0
        %1043 = vmatprep.subr.mxu0 0.0
        %1044 = vmatpush2.msra.mxu0 0.0
        %1045 = vmatprep.subr.mxu0 0.0
        %1046 = vmatpush2.msra.mxu0 0.0
        %1047 = vmatprep.subr.mxu0 0.0
        %1048 = vmatpush2.msra.mxu0 0.0
        %1049 = vmatprep.subr.mxu0 0.0
        %1050 = vmatpush2.msra.mxu0 0.0
        %1051 = vmatprep.subr.mxu0 0.0
        %1052 = vmatpush2.msra.mxu0 0.0
        %1053 = vmatprep.subr.mxu0 0.0
        %1054 = vmatpush2.msra.mxu0 0.0
        %1055 = vmatprep.subr.mxu0 0.0
        %1056 = vmatpush2.msra.mxu0 0.0
        %1057 = vmatprep.subr.mxu0 0.0
        %1058 = vmatpush2.msra.mxu0 0.0
        %1059 = vmatprep.subr.mxu0 0.0
        %1060 = vmatpush2.msra.mxu0 0.0
        %1061 = vmatprep.mubr.f32.mxu0 0.0
        %1062 = vmatmul.mubr.f32.gmra.mxu0 %v824
        %v1063 = vpop.f32.mrf.mxu0
        %v1064 = vadd.f32 0.0, %v1063
        %v1065 = vpop.f32.mrf.mxu0
        %1066 = vmatprep.mubr.f32.mxu0 0.0
        %1067 = vmatmul.mubr.f32.gmra.mxu0 %v825
        %v1068 = vpop.f32.mrf.mxu0
        %v1069 = vadd.f32 0.0, %v1068
        %v1070 = vpop.f32.mrf.mxu0
        %1071 = vmatprep.mubr.f32.mxu0 0.0
        %1072 = vmatmul.mubr.f32.gmra.mxu0 %v826
        %v1073 = vpop.f32.mrf.mxu0
        %v1074 = vadd.f32 0.0, %v1073
        %v1075 = vpop.f32.mrf.mxu0
        %1076 = vmatprep.mubr.f32.mxu0 0.0
        %1077 = vmatmul.mubr.f32.gmra.mxu0 %v827
        %v1078 = vpop.f32.mrf.mxu0
        %v1079 = vadd.f32 0.0, %v1078
        %v1080 = vpop.f32.mrf.mxu0
        %1081 = vdwg.mxu0
        %1082 = vst [vmem:[#allocation2] sm:$0xff] %v975
        %1083 = vst [vmem:[#allocation2 + $0x8] sm:$0xff] %v977
        %1084 = vst [vmem:[#allocation2 + $0x10] sm:$0xff] %v1064
        %1085 = vst [vmem:[#allocation2 + $0x18] sm:$0xff] %v981
        %1086 = vst [vmem:[#allocation2 + $0x20] sm:$0xff] %v983
        %1087 = vst [vmem:[#allocation2 + $0x28] sm:$0xff] %v1069
        %1088 = vst [vmem:[#allocation2 + $0x30] sm:$0xff] %v987
        %1089 = vst [vmem:[#allocation2 + $0x38] sm:$0xff] %v989
        %1090 = vst [vmem:[#allocation2 + $0x40] sm:$0xff] %v1074
        %1091 = vst [vmem:[#allocation2 + $0x48] sm:$0xff] %v993
        %1092 = vst [vmem:[#allocation2 + $0x50] sm:$0xff] %v995
        %1093 = vst [vmem:[#allocation2 + $0x58] sm:$0xff] %v1079
        %v1094 = vlaneseq
        %v1095 = vshrl.u32 %v1094, 7
        %v1096 = vadd.s32 %v1095, 8
        %v1097 = vlaneseq
        %v1098 = vand.u32 %v1097, 127
        %vm1099 = vcmp.ge.s32.totalorder %v1095, %v1098
        %vm1100 = vcmp.ge.s32.totalorder %v1096, %v1098
        %v1101 = vld [vmem:[#allocation2] sm:$0xff]
        %v1102 = vld [vmem:[#allocation2 + $0x18] sm:$0xff]
        %v1103 = vld [vmem:[#allocation2 + $0x8] sm:$0xff]
        %v1104 = vld [vmem:[#allocation2 + $0x20] sm:$0xff]
        %v1105 = vld [vmem:[#allocation2 + $0x10] sm:$0xff]
        %v1106 = vld [vmem:[#allocation2 + $0x28] sm:$0xff]
        %vm1107 = vcmask 130048
        %v1109 = vsel %vm1107, %v1101, 0
        %v1112 = vsel %vm1107, %v1102, 0
        %v1115 = vsel %vm1107, %v1103, 0
        %v1118 = vsel %vm1107, %v1104, 0
        %1120 = vmatprep.subr.mxu0 0.0
        %1121 = vmatpush1.xpose.msra.mxu0 0.0
        %1122 = vmatprep.subr.mxu0 0.0
        %1123 = vmatpush1.xpose.msra.mxu0 0.0
        %1124 = vmatprep.subr.mxu0 0.0
        %1125 = vmatpush1.xpose.msra.mxu0 0.0
        %1126 = vmatprep.subr.mxu0 0.0
        %1127 = vmatpush1.xpose.msra.mxu0 0.0
        %1128 = vmatprep.subr.mxu0 0.0
        %1129 = vmatpush1.xpose.msra.mxu0 0.0
        %1130 = vmatprep.subr.mxu0 0.0
        %1131 = vmatpush1.xpose.msra.mxu0 0.0
        %1132 = vmatprep.subr.mxu0 0.0
        %1133 = vmatpush1.xpose.msra.mxu0 0.0
        %1134 = vmatprep.subr.mxu0 0.0
        %1135 = vmatpush1.xpose.msra.mxu0 0.0
        %1136 = vmatprep.subr.mxu0 0.0
        %1137 = vmatpush1.xpose.msra.mxu0 0.0
        %1138 = vmatprep.subr.mxu0 0.0
        %1139 = vmatpush1.xpose.msra.mxu0 0.0
        %1140 = vmatprep.subr.mxu0 0.0
        %1141 = vmatpush1.xpose.msra.mxu0 0.0
        %1142 = vmatprep.subr.mxu0 0.0
        %1143 = vmatpush1.xpose.msra.mxu0 0.0
        %1144 = vmatprep.subr.mxu0 0.0
        %1145 = vmatpush1.xpose.msra.mxu0 0.0
        %1146 = vmatprep.subr.mxu0 0.0
        %1147 = vmatpush1.xpose.msra.mxu0 0.0
        %1148 = vmatprep.subr.mxu0 0.0
        %1149 = vmatpush1.xpose.msra.mxu0 %v1118
        %1150 = vmatprep.subr.mxu0 0.0
        %1151 = vmatpush1.xpose.msra.mxu0 %v1115
        %1152 = vmatprep.subr.mxu0 0.0
        %1153 = vmatpush2.xpose.msra.mxu0 0.0
        %1154 = vmatprep.subr.mxu0 0.0
        %1155 = vmatpush2.xpose.msra.mxu0 0.0
        %1156 = vmatprep.subr.mxu0 0.0
        %1157 = vmatpush2.xpose.msra.mxu0 0.0
        %1158 = vmatprep.subr.mxu0 0.0
        %1159 = vmatpush2.xpose.msra.mxu0 0.0
        %1160 = vmatprep.subr.mxu0 0.0
        %1161 = vmatpush2.xpose.msra.mxu0 0.0
        %1162 = vmatprep.subr.mxu0 0.0
        %1163 = vmatpush2.xpose.msra.mxu0 0.0
        %1164 = vmatprep.subr.mxu0 0.0
        %1165 = vmatpush2.xpose.msra.mxu0 0.0
        %1166 = vmatprep.subr.mxu0 0.0
        %1167 = vmatpush2.xpose.msra.mxu0 0.0
        %1168 = vmatprep.subr.mxu0 0.0
        %1169 = vmatpush2.xpose.msra.mxu0 0.0
        %1170 = vmatprep.subr.mxu0 0.0
        %1171 = vmatpush2.xpose.msra.mxu0 0.0
        %1172 = vmatprep.subr.mxu0 0.0
        %1173 = vmatpush2.xpose.msra.mxu0 0.0
        %1174 = vmatprep.subr.mxu0 0.0
        %1175 = vmatpush2.xpose.msra.mxu0 0.0
        %1176 = vmatprep.subr.mxu0 0.0
        %1177 = vmatpush2.xpose.msra.mxu0 0.0
        %1178 = vmatprep.subr.mxu0 0.0
        %1179 = vmatpush2.xpose.msra.mxu0 0.0
        %1180 = vmatprep.subr.mxu0 0.0
        %1181 = vmatpush2.xpose.msra.mxu0 0.0
        %1182 = vmatprep.subr.mxu0 0.0
        %1183 = vmatpush2.xpose.msra.mxu0 0.0
        %1184 = vmatprep.mubr.f32.mxu0 0.0
        %1185 = vmatmul.mubr.f32.gmra.mxu0 %v1109
        %v1186 = vpop.f32.mrf.mxu0
        %v1187 = vadd.f32 0.0, %v1186
        %v1188 = vpop.f32.mrf.mxu0
        %1189 = vmatprep.mubr.f32.mxu0 0.0
        %1190 = vmatmul.mubr.f32.gmra.mxu0 %v1112
        %v1191 = vpop.f32.mrf.mxu0
        %v1192 = vadd.f32 0.0, %v1191
        %v1193 = vpop.f32.mrf.mxu0
        %1194 = vdwg.mxu0
        %v1195 = vmul.f32 %v1187, 0.25
        %v1196 = vmul.f32 %v1192, 0.25
        %v1197 = vsel %vm1099, %v1195, -1e+30
        %v1198 = vsel %vm1100, %v1196, -1e+30
        %v1199 = vsel %vm1107, %v1197, -inf
        %1200 = vmax.xlane.f32.xlu0 %v1199
        %v1201 = vpop.xlane.xlu0 %1200
        %v1202 = vsel %vm1107, %v1198, -inf
        %1203 = vmax.xlane.f32.xlu0 %v1202
        %v1204 = vpop.xlane.xlu0 %1203
        %v1205 = vsub.f32 %v1197, %v1201
        %v1206 = vsub.f32 %v1198, %v1204
        %v1207 = vmul.f32 %v1205, 1.442695
        %v1208 = vpow.pop %v1207
        %v1209 = vmul.f32 %v1206, 1.442695
        %v1210 = vpow.pop %v1209
        %v1211 = vsel %vm1107, %v1208, 0.0
        %1212 = vadd.xlane.f32.xlu0 %v1211
        %v1213 = vpop.xlane.xlu0 %1212
        %v1214 = vsel %vm1107, %v1210, 0.0
        %1215 = vadd.xlane.f32.xlu0 %v1214
        %v1216 = vpop.xlane.xlu0 %1215
        %v1217 = vrcp.pop %v1213
        %v1218 = vrcp.pop %v1216
        %v1219 = vmul.f32 %v1208, %v1217
        %v1220 = vmul.f32 %v1210, %v1218
        %v1222 = vsel %vm1107, %v1219, 0
        %v1225 = vsel %vm1107, %v1220, 0
        %1227 = vmatprep.subr.mxu0 0.0
        %1228 = vmatpush1.msra.mxu0 0.0
        %1229 = vmatprep.subr.mxu0 0.0
        %1230 = vmatpush1.msra.mxu0 0.0
        %1231 = vmatprep.subr.mxu0 0.0
        %1232 = vmatpush1.msra.mxu0 0.0
        %1233 = vmatprep.subr.mxu0 0.0
        %1234 = vmatpush1.msra.mxu0 0.0
        %1235 = vmatprep.subr.mxu0 0.0
        %1236 = vmatpush1.msra.mxu0 0.0
        %1237 = vmatprep.subr.mxu0 0.0
        %1238 = vmatpush1.msra.mxu0 0.0
        %1239 = vmatprep.subr.mxu0 0.0
        %1240 = vmatpush1.msra.mxu0 0.0
        %1241 = vmatprep.subr.mxu0 0.0
        %1242 = vmatpush1.msra.mxu0 0.0
        %1243 = vmatprep.subr.mxu0 0.0
        %1244 = vmatpush1.msra.mxu0 0.0
        %1245 = vmatprep.subr.mxu0 0.0
        %1246 = vmatpush1.msra.mxu0 0.0
        %1247 = vmatprep.subr.mxu0 0.0
        %1248 = vmatpush1.msra.mxu0 0.0
        %1249 = vmatprep.subr.mxu0 0.0
        %1250 = vmatpush1.msra.mxu0 0.0
        %1251 = vmatprep.subr.mxu0 0.0
        %1252 = vmatpush1.msra.mxu0 0.0
        %1253 = vmatprep.subr.mxu0 0.0
        %1254 = vmatpush1.msra.mxu0 0.0
        %1255 = vmatprep.subr.mxu0 0.0
        %1256 = vmatpush1.msra.mxu0 %v1106
        %1257 = vmatprep.subr.mxu0 0.0
        %1258 = vmatpush1.msra.mxu0 %v1105
        %1259 = vmatprep.subr.mxu0 0.0
        %1260 = vmatpush2.msra.mxu0 0.0
        %1261 = vmatprep.subr.mxu0 0.0
        %1262 = vmatpush2.msra.mxu0 0.0
        %1263 = vmatprep.subr.mxu0 0.0
        %1264 = vmatpush2.msra.mxu0 0.0
        %1265 = vmatprep.subr.mxu0 0.0
        %1266 = vmatpush2.msra.mxu0 0.0
        %1267 = vmatprep.subr.mxu0 0.0
        %1268 = vmatpush2.msra.mxu0 0.0
        %1269 = vmatprep.subr.mxu0 0.0
        %1270 = vmatpush2.msra.mxu0 0.0
        %1271 = vmatprep.subr.mxu0 0.0
        %1272 = vmatpush2.msra.mxu0 0.0
        %1273 = vmatprep.subr.mxu0 0.0
        %1274 = vmatpush2.msra.mxu0 0.0
        %1275 = vmatprep.subr.mxu0 0.0
        %1276 = vmatpush2.msra.mxu0 0.0
        %1277 = vmatprep.subr.mxu0 0.0
        %1278 = vmatpush2.msra.mxu0 0.0
        %1279 = vmatprep.subr.mxu0 0.0
        %1280 = vmatpush2.msra.mxu0 0.0
        %1281 = vmatprep.subr.mxu0 0.0
        %1282 = vmatpush2.msra.mxu0 0.0
        %1283 = vmatprep.subr.mxu0 0.0
        %1284 = vmatpush2.msra.mxu0 0.0
        %1285 = vmatprep.subr.mxu0 0.0
        %1286 = vmatpush2.msra.mxu0 0.0
        %1287 = vmatprep.subr.mxu0 0.0
        %1288 = vmatpush2.msra.mxu0 0.0
        %1289 = vmatprep.subr.mxu0 0.0
        %1290 = vmatpush2.msra.mxu0 0.0
        %1291 = vmatprep.mubr.f32.mxu0 0.0
        %1292 = vmatmul.mubr.f32.gmra.mxu0 %v1222
        %v1293 = vpop.f32.mrf.mxu0
        %v1294 = vadd.f32 0.0, %v1293
        %v1295 = vpop.f32.mrf.mxu0
        %1296 = vmatprep.mubr.f32.mxu0 0.0
        %1297 = vmatmul.mubr.f32.gmra.mxu0 %v1225
        %v1298 = vpop.f32.mrf.mxu0
        %v1299 = vadd.f32 0.0, %v1298
        %v1300 = vpop.f32.mrf.mxu0
        %1301 = vdwg.mxu0
        %1302 = vst.msk [vmem:[#allocation3] sm:$0xff] %vm1107, %v1294
        %1303 = vst.msk [vmem:[#allocation3 + $0x8] sm:$0xff] %vm1107, %v1299
        %v1304 = vld [vmem:[#allocation2] sm:$0xff]
        %v1305 = vld [vmem:[#allocation2 + $0x18] sm:$0xff]
        %v1306 = vld [vmem:[#allocation2 + $0x8] sm:$0xff]
        %v1307 = vld [vmem:[#allocation2 + $0x20] sm:$0xff]
        %v1308 = vld [vmem:[#allocation2 + $0x10] sm:$0xff]
        %v1309 = vld [vmem:[#allocation2 + $0x28] sm:$0xff]
        %1312 = vrot.lane.b32.xlu0 %v1304, 112
        %v1313 = vpop.permute.xlu0 %1312
        %1314 = vrot.lane.b32.xlu0 %v1305, 112
        %v1315 = vpop.permute.xlu0 %1314
        %1318 = vrot.lane.b32.xlu0 %v1306, 112
        %v1319 = vpop.permute.xlu0 %1318
        %1320 = vrot.lane.b32.xlu0 %v1307, 112
        %v1321 = vpop.permute.xlu0 %1320
        %v1322 = vsel %vm1107, %v1313, 0
        %v1324 = vsel %vm1107, %v1315, 0
        %v1326 = vsel %vm1107, %v1319, 0
        %v1328 = vsel %vm1107, %v1321, 0
        %1330 = vmatprep.subr.mxu0 0.0
        %1331 = vmatpush1.xpose.msra.mxu0 0.0
        %1332 = vmatprep.subr.mxu0 0.0
        %1333 = vmatpush1.xpose.msra.mxu0 0.0
        %1334 = vmatprep.subr.mxu0 0.0
        %1335 = vmatpush1.xpose.msra.mxu0 0.0
        %1336 = vmatprep.subr.mxu0 0.0
        %1337 = vmatpush1.xpose.msra.mxu0 0.0
        %1338 = vmatprep.subr.mxu0 0.0
        %1339 = vmatpush1.xpose.msra.mxu0 0.0
        %1340 = vmatprep.subr.mxu0 0.0
        %1341 = vmatpush1.xpose.msra.mxu0 0.0
        %1342 = vmatprep.subr.mxu0 0.0
        %1343 = vmatpush1.xpose.msra.mxu0 0.0
        %1344 = vmatprep.subr.mxu0 0.0
        %1345 = vmatpush1.xpose.msra.mxu0 0.0
        %1346 = vmatprep.subr.mxu0 0.0
        %1347 = vmatpush1.xpose.msra.mxu0 0.0
        %1348 = vmatprep.subr.mxu0 0.0
        %1349 = vmatpush1.xpose.msra.mxu0 0.0
        %1350 = vmatprep.subr.mxu0 0.0
        %1351 = vmatpush1.xpose.msra.mxu0 0.0
        %1352 = vmatprep.subr.mxu0 0.0
        %1353 = vmatpush1.xpose.msra.mxu0 0.0
        %1354 = vmatprep.subr.mxu0 0.0
        %1355 = vmatpush1.xpose.msra.mxu0 0.0
        %1356 = vmatprep.subr.mxu0 0.0
        %1357 = vmatpush1.xpose.msra.mxu0 0.0
        %1358 = vmatprep.subr.mxu0 0.0
        %1359 = vmatpush1.xpose.msra.mxu0 %v1328
        %1360 = vmatprep.subr.mxu0 0.0
        %1361 = vmatpush1.xpose.msra.mxu0 %v1326
        %1362 = vmatprep.subr.mxu0 0.0
        %1363 = vmatpush2.xpose.msra.mxu0 0.0
        %1364 = vmatprep.subr.mxu0 0.0
        %1365 = vmatpush2.xpose.msra.mxu0 0.0
        %1366 = vmatprep.subr.mxu0 0.0
        %1367 = vmatpush2.xpose.msra.mxu0 0.0
        %1368 = vmatprep.subr.mxu0 0.0
        %1369 = vmatpush2.xpose.msra.mxu0 0.0
        %1370 = vmatprep.subr.mxu0 0.0
        %1371 = vmatpush2.xpose.msra.mxu0 0.0
        %1372 = vmatprep.subr.mxu0 0.0
        %1373 = vmatpush2.xpose.msra.mxu0 0.0
        %1374 = vmatprep.subr.mxu0 0.0
        %1375 = vmatpush2.xpose.msra.mxu0 0.0
        %1376 = vmatprep.subr.mxu0 0.0
        %1377 = vmatpush2.xpose.msra.mxu0 0.0
        %1378 = vmatprep.subr.mxu0 0.0
        %1379 = vmatpush2.xpose.msra.mxu0 0.0
        %1380 = vmatprep.subr.mxu0 0.0
        %1381 = vmatpush2.xpose.msra.mxu0 0.0
        %1382 = vmatprep.subr.mxu0 0.0
        %1383 = vmatpush2.xpose.msra.mxu0 0.0
        %1384 = vmatprep.subr.mxu0 0.0
        %1385 = vmatpush2.xpose.msra.mxu0 0.0
        %1386 = vmatprep.subr.mxu0 0.0
        %1387 = vmatpush2.xpose.msra.mxu0 0.0
        %1388 = vmatprep.subr.mxu0 0.0
        %1389 = vmatpush2.xpose.msra.mxu0 0.0
        %1390 = vmatprep.subr.mxu0 0.0
        %1391 = vmatpush2.xpose.msra.mxu0 0.0
        %1392 = vmatprep.subr.mxu0 0.0
        %1393 = vmatpush2.xpose.msra.mxu0 0.0
        %1394 = vmatprep.mubr.f32.mxu0 0.0
        %1395 = vmatmul.mubr.f32.gmra.mxu0 %v1322
        %v1396 = vpop.f32.mrf.mxu0
        %v1397 = vadd.f32 0.0, %v1396
        %v1398 = vpop.f32.mrf.mxu0
        %1399 = vmatprep.mubr.f32.mxu0 0.0
        %1400 = vmatmul.mubr.f32.gmra.mxu0 %v1324
        %v1401 = vpop.f32.mrf.mxu0
        %v1402 = vadd.f32 0.0, %v1401
        %v1403 = vpop.f32.mrf.mxu0
        %1404 = vdwg.mxu0
        %v1405 = vmul.f32 %v1397, 0.25
        %v1406 = vmul.f32 %v1402, 0.25
        %v1407 = vsel %vm1099, %v1405, -1e+30
        %v1408 = vsel %vm1100, %v1406, -1e+30
        %v1409 = vsel %vm1107, %v1407, -inf
        %1410 = vmax.xlane.f32.xlu0 %v1409
        %v1411 = vpop.xlane.xlu0 %1410
        %v1412 = vsel %vm1107, %v1408, -inf
        %1413 = vmax.xlane.f32.xlu0 %v1412
        %v1414 = vpop.xlane.xlu0 %1413
        %v1415 = vsub.f32 %v1407, %v1411
        %v1416 = vsub.f32 %v1408, %v1414
        %v1417 = vmul.f32 %v1415, 1.442695
        %v1418 = vpow.pop %v1417
        %v1419 = vmul.f32 %v1416, 1.442695
        %v1420 = vpow.pop %v1419
        %v1421 = vsel %vm1107, %v1418, 0.0
        %1422 = vadd.xlane.f32.xlu0 %v1421
        %v1423 = vpop.xlane.xlu0 %1422
        %v1424 = vsel %vm1107, %v1420, 0.0
        %1425 = vadd.xlane.f32.xlu0 %v1424
        %v1426 = vpop.xlane.xlu0 %1425
        %v1427 = vrcp.pop %v1423
        %v1428 = vrcp.pop %v1426
        %v1429 = vmul.f32 %v1418, %v1427
        %v1430 = vmul.f32 %v1420, %v1428
        %1433 = vrot.lane.b32.xlu0 %v1308, 112
        %v1434 = vpop.permute.xlu0 %1433
        %1435 = vrot.lane.b32.xlu0 %v1309, 112
        %v1436 = vpop.permute.xlu0 %1435
        %v1440 = vsel %vm1107, %v1429, 0
        %v1443 = vsel %vm1107, %v1430, 0
        %1445 = vmatprep.subr.mxu0 0.0
        %1446 = vmatpush1.msra.mxu0 0.0
        %1447 = vmatprep.subr.mxu0 0.0
        %1448 = vmatpush1.msra.mxu0 0.0
        %1449 = vmatprep.subr.mxu0 0.0
        %1450 = vmatpush1.msra.mxu0 0.0
        %1451 = vmatprep.subr.mxu0 0.0
        %1452 = vmatpush1.msra.mxu0 0.0
        %1453 = vmatprep.subr.mxu0 0.0
        %1454 = vmatpush1.msra.mxu0 0.0
        %1455 = vmatprep.subr.mxu0 0.0
        %1456 = vmatpush1.msra.mxu0 0.0
        %1457 = vmatprep.subr.mxu0 0.0
        %1458 = vmatpush1.msra.mxu0 0.0
        %1459 = vmatprep.subr.mxu0 0.0
        %1460 = vmatpush1.msra.mxu0 0.0
        %1461 = vmatprep.subr.mxu0 0.0
        %1462 = vmatpush1.msra.mxu0 0.0
        %1463 = vmatprep.subr.mxu0 0.0
        %1464 = vmatpush1.msra.mxu0 0.0
        %1465 = vmatprep.subr.mxu0 0.0
        %1466 = vmatpush1.msra.mxu0 0.0
        %1467 = vmatprep.subr.mxu0 0.0
        %1468 = vmatpush1.msra.mxu0 0.0
        %1469 = vmatprep.subr.mxu0 0.0
        %1470 = vmatpush1.msra.mxu0 0.0
        %1471 = vmatprep.subr.mxu0 0.0
        %1472 = vmatpush1.msra.mxu0 0.0
        %1473 = vmatprep.subr.mxu0 0.0
        %1474 = vmatpush1.msra.mxu0 %v1436
        %1475 = vmatprep.subr.mxu0 0.0
        %1476 = vmatpush1.msra.mxu0 %v1434
        %1477 = vmatprep.subr.mxu0 0.0
        %1478 = vmatpush2.msra.mxu0 0.0
        %1479 = vmatprep.subr.mxu0 0.0
        %1480 = vmatpush2.msra.mxu0 0.0
        %1481 = vmatprep.subr.mxu0 0.0
        %1482 = vmatpush2.msra.mxu0 0.0
        %1483 = vmatprep.subr.mxu0 0.0
        %1484 = vmatpush2.msra.mxu0 0.0
        %1485 = vmatprep.subr.mxu0 0.0
        %1486 = vmatpush2.msra.mxu0 0.0
        %1487 = vmatprep.subr.mxu0 0.0
        %1488 = vmatpush2.msra.mxu0 0.0
        %1489 = vmatprep.subr.mxu0 0.0
        %1490 = vmatpush2.msra.mxu0 0.0
        %1491 = vmatprep.subr.mxu0 0.0
        %1492 = vmatpush2.msra.mxu0 0.0
        %1493 = vmatprep.subr.mxu0 0.0
        %1494 = vmatpush2.msra.mxu0 0.0
        %1495 = vmatprep.subr.mxu0 0.0
        %1496 = vmatpush2.msra.mxu0 0.0
        %1497 = vmatprep.subr.mxu0 0.0
        %1498 = vmatpush2.msra.mxu0 0.0
        %1499 = vmatprep.subr.mxu0 0.0
        %1500 = vmatpush2.msra.mxu0 0.0
        %1501 = vmatprep.subr.mxu0 0.0
        %1502 = vmatpush2.msra.mxu0 0.0
        %1503 = vmatprep.subr.mxu0 0.0
        %1504 = vmatpush2.msra.mxu0 0.0
        %1505 = vmatprep.subr.mxu0 0.0
        %1506 = vmatpush2.msra.mxu0 0.0
        %1507 = vmatprep.subr.mxu0 0.0
        %1508 = vmatpush2.msra.mxu0 0.0
        %1509 = vmatprep.mubr.f32.mxu0 0.0
        %1510 = vmatmul.mubr.f32.gmra.mxu0 %v1440
        %v1511 = vpop.f32.mrf.mxu0
        %v1512 = vadd.f32 0.0, %v1511
        %v1513 = vpop.f32.mrf.mxu0
        %1514 = vmatprep.mubr.f32.mxu0 0.0
        %1515 = vmatmul.mubr.f32.gmra.mxu0 %v1443
        %v1516 = vpop.f32.mrf.mxu0
        %v1517 = vadd.f32 0.0, %v1516
        %v1518 = vpop.f32.mrf.mxu0
        %1519 = vdwg.mxu0
        %1522 = vrot.lane.b32.xlu0 %v1512, 16
        %v1523 = vpop.permute.xlu0 %1522
        %1524 = vrot.lane.b32.xlu0 %v1517, 16
        %v1525 = vpop.permute.xlu0 %1524
        %vm1528 = vcmask 261248
        %1529 = vst.msk [vmem:[#allocation3] sm:$0xff] %vm1528, %v1523
        %1530 = vst.msk [vmem:[#allocation3 + $0x8] sm:$0xff] %vm1528, %v1525
        %v1531 = vld [vmem:[#allocation2] sm:$0xff]
        %v1532 = vld [vmem:[#allocation2 + $0x18] sm:$0xff]
        %v1533 = vld [vmem:[#allocation2 + $0x8] sm:$0xff]
        %v1534 = vld [vmem:[#allocation2 + $0x20] sm:$0xff]
        %v1535 = vld [vmem:[#allocation2 + $0x10] sm:$0xff]
        %v1536 = vld [vmem:[#allocation2 + $0x28] sm:$0xff]
        %1539 = vrot.lane.b32.xlu0 %v1531, 96
        %v1540 = vpop.permute.xlu0 %1539
        %1541 = vrot.lane.b32.xlu0 %v1532, 96
        %v1542 = vpop.permute.xlu0 %1541
        %1545 = vrot.lane.b32.xlu0 %v1533, 96
        %v1546 = vpop.permute.xlu0 %1545
        %1547 = vrot.lane.b32.xlu0 %v1534, 96
        %v1548 = vpop.permute.xlu0 %1547
        %v1549 = vsel %vm1107, %v1540, 0
        %v1551 = vsel %vm1107, %v1542, 0
        %v1553 = vsel %vm1107, %v1546, 0
        %v1555 = vsel %vm1107, %v1548, 0
        %1557 = vmatprep.subr.mxu0 0.0
        %1558 = vmatpush1.xpose.msra.mxu0 0.0
        %1559 = vmatprep.subr.mxu0 0.0
        %1560 = vmatpush1.xpose.msra.mxu0 0.0
        %1561 = vmatprep.subr.mxu0 0.0
        %1562 = vmatpush1.xpose.msra.mxu0 0.0
        %1563 = vmatprep.subr.mxu0 0.0
        %1564 = vmatpush1.xpose.msra.mxu0 0.0
        %1565 = vmatprep.subr.mxu0 0.0
        %1566 = vmatpush1.xpose.msra.mxu0 0.0
        %1567 = vmatprep.subr.mxu0 0.0
        %1568 = vmatpush1.xpose.msra.mxu0 0.0
        %1569 = vmatprep.subr.mxu0 0.0
        %1570 = vmatpush1.xpose.msra.mxu0 0.0
        %1571 = vmatprep.subr.mxu0 0.0
        %1572 = vmatpush1.xpose.msra.mxu0 0.0
        %1573 = vmatprep.subr.mxu0 0.0
        %1574 = vmatpush1.xpose.msra.mxu0 0.0
        %1575 = vmatprep.subr.mxu0 0.0
        %1576 = vmatpush1.xpose.msra.mxu0 0.0
        %1577 = vmatprep.subr.mxu0 0.0
        %1578 = vmatpush1.xpose.msra.mxu0 0.0
        %1579 = vmatprep.subr.mxu0 0.0
        %1580 = vmatpush1.xpose.msra.mxu0 0.0
        %1581 = vmatprep.subr.mxu0 0.0
        %1582 = vmatpush1.xpose.msra.mxu0 0.0
        %1583 = vmatprep.subr.mxu0 0.0
        %1584 = vmatpush1.xpose.msra.mxu0 0.0
        %1585 = vmatprep.subr.mxu0 0.0
        %1586 = vmatpush1.xpose.msra.mxu0 %v1555
        %1587 = vmatprep.subr.mxu0 0.0
        %1588 = vmatpush1.xpose.msra.mxu0 %v1553
        %1589 = vmatprep.subr.mxu0 0.0
        %1590 = vmatpush2.xpose.msra.mxu0 0.0
        %1591 = vmatprep.subr.mxu0 0.0
        %1592 = vmatpush2.xpose.msra.mxu0 0.0
        %1593 = vmatprep.subr.mxu0 0.0
        %1594 = vmatpush2.xpose.msra.mxu0 0.0
        %1595 = vmatprep.subr.mxu0 0.0
        %1596 = vmatpush2.xpose.msra.mxu0 0.0
        %1597 = vmatprep.subr.mxu0 0.0
        %1598 = vmatpush2.xpose.msra.mxu0 0.0
        %1599 = vmatprep.subr.mxu0 0.0
        %1600 = vmatpush2.xpose.msra.mxu0 0.0
        %1601 = vmatprep.subr.mxu0 0.0
        %1602 = vmatpush2.xpose.msra.mxu0 0.0
        %1603 = vmatprep.subr.mxu0 0.0
        %1604 = vmatpush2.xpose.msra.mxu0 0.0
        %1605 = vmatprep.subr.mxu0 0.0
        %1606 = vmatpush2.xpose.msra.mxu0 0.0
        %1607 = vmatprep.subr.mxu0 0.0
        %1608 = vmatpush2.xpose.msra.mxu0 0.0
        %1609 = vmatprep.subr.mxu0 0.0
        %1610 = vmatpush2.xpose.msra.mxu0 0.0
        %1611 = vmatprep.subr.mxu0 0.0
        %1612 = vmatpush2.xpose.msra.mxu0 0.0
        %1613 = vmatprep.subr.mxu0 0.0
        %1614 = vmatpush2.xpose.msra.mxu0 0.0
        %1615 = vmatprep.subr.mxu0 0.0
        %1616 = vmatpush2.xpose.msra.mxu0 0.0
        %1617 = vmatprep.subr.mxu0 0.0
        %1618 = vmatpush2.xpose.msra.mxu0 0.0
        %1619 = vmatprep.subr.mxu0 0.0
        %1620 = vmatpush2.xpose.msra.mxu0 0.0
        %1621 = vmatprep.mubr.f32.mxu0 0.0
        %1622 = vmatmul.mubr.f32.gmra.mxu0 %v1549
        %v1623 = vpop.f32.mrf.mxu0
        %v1624 = vadd.f32 0.0, %v1623
        %v1625 = vpop.f32.mrf.mxu0
        %1626 = vmatprep.mubr.f32.mxu0 0.0
        %1627 = vmatmul.mubr.f32.gmra.mxu0 %v1551
        %v1628 = vpop.f32.mrf.mxu0
        %v1629 = vadd.f32 0.0, %v1628
        %v1630 = vpop.f32.mrf.mxu0
        %1631 = vdwg.mxu0
        %v1632 = vmul.f32 %v1624, 0.25
        %v1633 = vmul.f32 %v1629, 0.25
        %v1634 = vsel %vm1099, %v1632, -1e+30
        %v1635 = vsel %vm1100, %v1633, -1e+30
        %v1636 = vsel %vm1107, %v1634, -inf
        %1637 = vmax.xlane.f32.xlu0 %v1636
        %v1638 = vpop.xlane.xlu0 %1637
        %v1639 = vsel %vm1107, %v1635, -inf
        %1640 = vmax.xlane.f32.xlu0 %v1639
        %v1641 = vpop.xlane.xlu0 %1640
        %v1642 = vsub.f32 %v1634, %v1638
        %v1643 = vsub.f32 %v1635, %v1641
        %v1644 = vmul.f32 %v1642, 1.442695
        %v1645 = vpow.pop %v1644
        %v1646 = vmul.f32 %v1643, 1.442695
        %v1647 = vpow.pop %v1646
        %v1648 = vsel %vm1107, %v1645, 0.0
        %1649 = vadd.xlane.f32.xlu0 %v1648
        %v1650 = vpop.xlane.xlu0 %1649
        %v1651 = vsel %vm1107, %v1647, 0.0
        %1652 = vadd.xlane.f32.xlu0 %v1651
        %v1653 = vpop.xlane.xlu0 %1652
        %v1654 = vrcp.pop %v1650
        %v1655 = vrcp.pop %v1653
        %v1656 = vmul.f32 %v1645, %v1654
        %v1657 = vmul.f32 %v1647, %v1655
        %1660 = vrot.lane.b32.xlu0 %v1535, 96
        %v1661 = vpop.permute.xlu0 %1660
        %1662 = vrot.lane.b32.xlu0 %v1536, 96
        %v1663 = vpop.permute.xlu0 %1662
        %v1667 = vsel %vm1107, %v1656, 0
        %v1670 = vsel %vm1107, %v1657, 0
        %1672 = vmatprep.subr.mxu0 0.0
        %1673 = vmatpush1.msra.mxu0 0.0
        %1674 = vmatprep.subr.mxu0 0.0
        %1675 = vmatpush1.msra.mxu0 0.0
        %1676 = vmatprep.subr.mxu0 0.0
        %1677 = vmatpush1.msra.mxu0 0.0
        %1678 = vmatprep.subr.mxu0 0.0
        %1679 = vmatpush1.msra.mxu0 0.0
        %1680 = vmatprep.subr.mxu0 0.0
        %1681 = vmatpush1.msra.mxu0 0.0
        %1682 = vmatprep.subr.mxu0 0.0
        %1683 = vmatpush1.msra.mxu0 0.0
        %1684 = vmatprep.subr.mxu0 0.0
        %1685 = vmatpush1.msra.mxu0 0.0
        %1686 = vmatprep.subr.mxu0 0.0
        %1687 = vmatpush1.msra.mxu0 0.0
        %1688 = vmatprep.subr.mxu0 0.0
        %1689 = vmatpush1.msra.mxu0 0.0
        %1690 = vmatprep.subr.mxu0 0.0
        %1691 = vmatpush1.msra.mxu0 0.0
        %1692 = vmatprep.subr.mxu0 0.0
        %1693 = vmatpush1.msra.mxu0 0.0
        %1694 = vmatprep.subr.mxu0 0.0
        %1695 = vmatpush1.msra.mxu0 0.0
        %1696 = vmatprep.subr.mxu0 0.0
        %1697 = vmatpush1.msra.mxu0 0.0
        %1698 = vmatprep.subr.mxu0 0.0
        %1699 = vmatpush1.msra.mxu0 0.0
        %1700 = vmatprep.subr.mxu0 0.0
        %1701 = vmatpush1.msra.mxu0 %v1663
        %1702 = vmatprep.subr.mxu0 0.0
        %1703 = vmatpush1.msra.mxu0 %v1661
        %1704 = vmatprep.subr.mxu0 0.0
        %1705 = vmatpush2.msra.mxu0 0.0
        %1706 = vmatprep.subr.mxu0 0.0
        %1707 = vmatpush2.msra.mxu0 0.0
        %1708 = vmatprep.subr.mxu0 0.0
        %1709 = vmatpush2.msra.mxu0 0.0
        %1710 = vmatprep.subr.mxu0 0.0
        %1711 = vmatpush2.msra.mxu0 0.0
        %1712 = vmatprep.subr.mxu0 0.0
        %1713 = vmatpush2.msra.mxu0 0.0
        %1714 = vmatprep.subr.mxu0 0.0
        %1715 = vmatpush2.msra.mxu0 0.0
        %1716 = vmatprep.subr.mxu0 0.0
        %1717 = vmatpush2.msra.mxu0 0.0
        %1718 = vmatprep.subr.mxu0 0.0
        %1719 = vmatpush2.msra.mxu0 0.0
        %1720 = vmatprep.subr.mxu0 0.0
        %1721 = vmatpush2.msra.mxu0 0.0
        %1722 = vmatprep.subr.mxu0 0.0
        %1723 = vmatpush2.msra.mxu0 0.0
        %1724 = vmatprep.subr.mxu0 0.0
        %1725 = vmatpush2.msra.mxu0 0.0
        %1726 = vmatprep.subr.mxu0 0.0
        %1727 = vmatpush2.msra.mxu0 0.0
        %1728 = vmatprep.subr.mxu0 0.0
        %1729 = vmatpush2.msra.mxu0 0.0
        %1730 = vmatprep.subr.mxu0 0.0
        %1731 = vmatpush2.msra.mxu0 0.0
        %1732 = vmatprep.subr.mxu0 0.0
        %1733 = vmatpush2.msra.mxu0 0.0
        %1734 = vmatprep.subr.mxu0 0.0
        %1735 = vmatpush2.msra.mxu0 0.0
        %1736 = vmatprep.mubr.f32.mxu0 0.0
        %1737 = vmatmul.mubr.f32.gmra.mxu0 %v1667
        %v1738 = vpop.f32.mrf.mxu0
        %v1739 = vadd.f32 0.0, %v1738
        %v1740 = vpop.f32.mrf.mxu0
        %1741 = vmatprep.mubr.f32.mxu0 0.0
        %1742 = vmatmul.mubr.f32.gmra.mxu0 %v1670
        %v1743 = vpop.f32.mrf.mxu0
        %v1744 = vadd.f32 0.0, %v1743
        %v1745 = vpop.f32.mrf.mxu0
        %1746 = vdwg.mxu0
        %1749 = vrot.lane.b32.xlu0 %v1739, 32
        %v1750 = vpop.permute.xlu0 %1749
        %1751 = vrot.lane.b32.xlu0 %v1744, 32
        %v1752 = vpop.permute.xlu0 %1751
        %vm1755 = vcmask 392448
        %1756 = vst.msk [vmem:[#allocation3] sm:$0xff] %vm1755, %v1750
        %1757 = vst.msk [vmem:[#allocation3 + $0x8] sm:$0xff] %vm1755, %v1752
        %v1758 = vld [vmem:[#allocation2] sm:$0xff]
        %v1759 = vld [vmem:[#allocation2 + $0x18] sm:$0xff]
        %v1760 = vld [vmem:[#allocation2 + $0x8] sm:$0xff]
        %v1761 = vld [vmem:[#allocation2 + $0x20] sm:$0xff]
        %v1762 = vld [vmem:[#allocation2 + $0x10] sm:$0xff]
        %v1763 = vld [vmem:[#allocation2 + $0x28] sm:$0xff]
        %1766 = vrot.lane.b32.xlu0 %v1758, 80
        %v1767 = vpop.permute.xlu0 %1766
        %1768 = vrot.lane.b32.xlu0 %v1759, 80
        %v1769 = vpop.permute.xlu0 %1768
        %1772 = vrot.lane.b32.xlu0 %v1760, 80
        %v1773 = vpop.permute.xlu0 %1772
        %1774 = vrot.lane.b32.xlu0 %v1761, 80
        %v1775 = vpop.permute.xlu0 %1774
        %v1776 = vsel %vm1107, %v1767, 0
        %v1778 = vsel %vm1107, %v1769, 0
        %v1780 = vsel %vm1107, %v1773, 0
        %v1782 = vsel %vm1107, %v1775, 0
        %1784 = vmatprep.subr.mxu0 0.0
        %1785 = vmatpush1.xpose.msra.mxu0 0.0
        %1786 = vmatprep.subr.mxu0 0.0
        %1787 = vmatpush1.xpose.msra.mxu0 0.0
        %1788 = vmatprep.subr.mxu0 0.0
        %1789 = vmatpush1.xpose.msra.mxu0 0.0
        %1790 = vmatprep.subr.mxu0 0.0
        %1791 = vmatpush1.xpose.msra.mxu0 0.0
        %1792 = vmatprep.subr.mxu0 0.0
        %1793 = vmatpush1.xpose.msra.mxu0 0.0
        %1794 = vmatprep.subr.mxu0 0.0
        %1795 = vmatpush1.xpose.msra.mxu0 0.0
        %1796 = vmatprep.subr.mxu0 0.0
        %1797 = vmatpush1.xpose.msra.mxu0 0.0
        %1798 = vmatprep.subr.mxu0 0.0
        %1799 = vmatpush1.xpose.msra.mxu0 0.0
        %1800 = vmatprep.subr.mxu0 0.0
        %1801 = vmatpush1.xpose.msra.mxu0 0.0
        %1802 = vmatprep.subr.mxu0 0.0
        %1803 = vmatpush1.xpose.msra.mxu0 0.0
        %1804 = vmatprep.subr.mxu0 0.0
        %1805 = vmatpush1.xpose.msra.mxu0 0.0
        %1806 = vmatprep.subr.mxu0 0.0
        %1807 = vmatpush1.xpose.msra.mxu0 0.0
        %1808 = vmatprep.subr.mxu0 0.0
        %1809 = vmatpush1.xpose.msra.mxu0 0.0
        %1810 = vmatprep.subr.mxu0 0.0
        %1811 = vmatpush1.xpose.msra.mxu0 0.0
        %1812 = vmatprep.subr.mxu0 0.0
        %1813 = vmatpush1.xpose.msra.mxu0 %v1782
        %1814 = vmatprep.subr.mxu0 0.0
        %1815 = vmatpush1.xpose.msra.mxu0 %v1780
        %1816 = vmatprep.subr.mxu0 0.0
        %1817 = vmatpush2.xpose.msra.mxu0 0.0
        %1818 = vmatprep.subr.mxu0 0.0
        %1819 = vmatpush2.xpose.msra.mxu0 0.0
        %1820 = vmatprep.subr.mxu0 0.0
        %1821 = vmatpush2.xpose.msra.mxu0 0.0
        %1822 = vmatprep.subr.mxu0 0.0
        %1823 = vmatpush2.xpose.msra.mxu0 0.0
        %1824 = vmatprep.subr.mxu0 0.0
        %1825 = vmatpush2.xpose.msra.mxu0 0.0
        %1826 = vmatprep.subr.mxu0 0.0
        %1827 = vmatpush2.xpose.msra.mxu0 0.0
        %1828 = vmatprep.subr.mxu0 0.0
        %1829 = vmatpush2.xpose.msra.mxu0 0.0
        %1830 = vmatprep.subr.mxu0 0.0
        %1831 = vmatpush2.xpose.msra.mxu0 0.0
        %1832 = vmatprep.subr.mxu0 0.0
        %1833 = vmatpush2.xpose.msra.mxu0 0.0
        %1834 = vmatprep.subr.mxu0 0.0
        %1835 = vmatpush2.xpose.msra.mxu0 0.0
        %1836 = vmatprep.subr.mxu0 0.0
        %1837 = vmatpush2.xpose.msra.mxu0 0.0
        %1838 = vmatprep.subr.mxu0 0.0
        %1839 = vmatpush2.xpose.msra.mxu0 0.0
        %1840 = vmatprep.subr.mxu0 0.0
        %1841 = vmatpush2.xpose.msra.mxu0 0.0
        %1842 = vmatprep.subr.mxu0 0.0
        %1843 = vmatpush2.xpose.msra.mxu0 0.0
        %1844 = vmatprep.subr.mxu0 0.0
        %1845 = vmatpush2.xpose.msra.mxu0 0.0
        %1846 = vmatprep.subr.mxu0 0.0
        %1847 = vmatpush2.xpose.msra.mxu0 0.0
        %1848 = vmatprep.mubr.f32.mxu0 0.0
        %1849 = vmatmul.mubr.f32.gmra.mxu0 %v1776
        %v1850 = vpop.f32.mrf.mxu0
        %v1851 = vadd.f32 0.0, %v1850
        %v1852 = vpop.f32.mrf.mxu0
        %1853 = vmatprep.mubr.f32.mxu0 0.0
        %1854 = vmatmul.mubr.f32.gmra.mxu0 %v1778
        %v1855 = vpop.f32.mrf.mxu0
        %v1856 = vadd.f32 0.0, %v1855
        %v1857 = vpop.f32.mrf.mxu0
        %1858 = vdwg.mxu0
        %v1859 = vmul.f32 %v1851, 0.25
        %v1860 = vmul.f32 %v1856, 0.25
        %v1861 = vsel %vm1099, %v1859, -1e+30
        %v1862 = vsel %vm1100, %v1860, -1e+30
        %v1863 = vsel %vm1107, %v1861, -inf
        %1864 = vmax.xlane.f32.xlu0 %v1863
        %v1865 = vpop.xlane.xlu0 %1864
        %v1866 = vsel %vm1107, %v1862, -inf
        %1867 = vmax.xlane.f32.xlu0 %v1866
        %v1868 = vpop.xlane.xlu0 %1867
        %v1869 = vsub.f32 %v1861, %v1865
        %v1870 = vsub.f32 %v1862, %v1868
        %v1871 = vmul.f32 %v1869, 1.442695
        %v1872 = vpow.pop %v1871
        %v1873 = vmul.f32 %v1870, 1.442695
        %v1874 = vpow.pop %v1873
        %v1875 = vsel %vm1107, %v1872, 0.0
        %1876 = vadd.xlane.f32.xlu0 %v1875
        %v1877 = vpop.xlane.xlu0 %1876
        %v1878 = vsel %vm1107, %v1874, 0.0
        %1879 = vadd.xlane.f32.xlu0 %v1878
        %v1880 = vpop.xlane.xlu0 %1879
        %v1881 = vrcp.pop %v1877
        %v1882 = vrcp.pop %v1880
        %v1883 = vmul.f32 %v1872, %v1881
        %v1884 = vmul.f32 %v1874, %v1882
        %1887 = vrot.lane.b32.xlu0 %v1762, 80
        %v1888 = vpop.permute.xlu0 %1887
        %1889 = vrot.lane.b32.xlu0 %v1763, 80
        %v1890 = vpop.permute.xlu0 %1889
        %v1894 = vsel %vm1107, %v1883, 0
        %v1897 = vsel %vm1107, %v1884, 0
        %1899 = vmatprep.subr.mxu0 0.0
        %1900 = vmatpush1.msra.mxu0 0.0
        %1901 = vmatprep.subr.mxu0 0.0
        %1902 = vmatpush1.msra.mxu0 0.0
        %1903 = vmatprep.subr.mxu0 0.0
        %1904 = vmatpush1.msra.mxu0 0.0
        %1905 = vmatprep.subr.mxu0 0.0
        %1906 = vmatpush1.msra.mxu0 0.0
        %1907 = vmatprep.subr.mxu0 0.0
        %1908 = vmatpush1.msra.mxu0 0.0
        %1909 = vmatprep.subr.mxu0 0.0
        %1910 = vmatpush1.msra.mxu0 0.0
        %1911 = vmatprep.subr.mxu0 0.0
        %1912 = vmatpush1.msra.mxu0 0.0
        %1913 = vmatprep.subr.mxu0 0.0
        %1914 = vmatpush1.msra.mxu0 0.0
        %1915 = vmatprep.subr.mxu0 0.0
        %1916 = vmatpush1.msra.mxu0 0.0
        %1917 = vmatprep.subr.mxu0 0.0
        %1918 = vmatpush1.msra.mxu0 0.0
        %1919 = vmatprep.subr.mxu0 0.0
        %1920 = vmatpush1.msra.mxu0 0.0
        %1921 = vmatprep.subr.mxu0 0.0
        %1922 = vmatpush1.msra.mxu0 0.0
        %1923 = vmatprep.subr.mxu0 0.0
        %1924 = vmatpush1.msra.mxu0 0.0
        %1925 = vmatprep.subr.mxu0 0.0
        %1926 = vmatpush1.msra.mxu0 0.0
        %1927 = vmatprep.subr.mxu0 0.0
        %1928 = vmatpush1.msra.mxu0 %v1890
        %1929 = vmatprep.subr.mxu0 0.0
        %1930 = vmatpush1.msra.mxu0 %v1888
        %1931 = vmatprep.subr.mxu0 0.0
        %1932 = vmatpush2.msra.mxu0 0.0
        %1933 = vmatprep.subr.mxu0 0.0
        %1934 = vmatpush2.msra.mxu0 0.0
        %1935 = vmatprep.subr.mxu0 0.0
        %1936 = vmatpush2.msra.mxu0 0.0
        %1937 = vmatprep.subr.mxu0 0.0
        %1938 = vmatpush2.msra.mxu0 0.0
        %1939 = vmatprep.subr.mxu0 0.0
        %1940 = vmatpush2.msra.mxu0 0.0
        %1941 = vmatprep.subr.mxu0 0.0
        %1942 = vmatpush2.msra.mxu0 0.0
        %1943 = vmatprep.subr.mxu0 0.0
        %1944 = vmatpush2.msra.mxu0 0.0
        %1945 = vmatprep.subr.mxu0 0.0
        %1946 = vmatpush2.msra.mxu0 0.0
        %1947 = vmatprep.subr.mxu0 0.0
        %1948 = vmatpush2.msra.mxu0 0.0
        %1949 = vmatprep.subr.mxu0 0.0
        %1950 = vmatpush2.msra.mxu0 0.0
        %1951 = vmatprep.subr.mxu0 0.0
        %1952 = vmatpush2.msra.mxu0 0.0
        %1953 = vmatprep.subr.mxu0 0.0
        %1954 = vmatpush2.msra.mxu0 0.0
        %1955 = vmatprep.subr.mxu0 0.0
        %1956 = vmatpush2.msra.mxu0 0.0
        %1957 = vmatprep.subr.mxu0 0.0
        %1958 = vmatpush2.msra.mxu0 0.0
        %1959 = vmatprep.subr.mxu0 0.0
        %1960 = vmatpush2.msra.mxu0 0.0
        %1961 = vmatprep.subr.mxu0 0.0
        %1962 = vmatpush2.msra.mxu0 0.0
        %1963 = vmatprep.mubr.f32.mxu0 0.0
        %1964 = vmatmul.mubr.f32.gmra.mxu0 %v1894
        %v1965 = vpop.f32.mrf.mxu0
        %v1966 = vadd.f32 0.0, %v1965
        %v1967 = vpop.f32.mrf.mxu0
        %1968 = vmatprep.mubr.f32.mxu0 0.0
        %1969 = vmatmul.mubr.f32.gmra.mxu0 %v1897
        %v1970 = vpop.f32.mrf.mxu0
        %v1971 = vadd.f32 0.0, %v1970
        %v1972 = vpop.f32.mrf.mxu0
        %1973 = vdwg.mxu0
        %1976 = vrot.lane.b32.xlu0 %v1966, 48
        %v1977 = vpop.permute.xlu0 %1976
        %1978 = vrot.lane.b32.xlu0 %v1971, 48
        %v1979 = vpop.permute.xlu0 %1978
        %vm1982 = vcmask 523648
        %1983 = vst.msk [vmem:[#allocation3] sm:$0xff] %vm1982, %v1977
        %1984 = vst.msk [vmem:[#allocation3 + $0x8] sm:$0xff] %vm1982, %v1979
        %v1985 = vld [vmem:[#allocation2] sm:$0xff]
        %v1986 = vld [vmem:[#allocation2 + $0x18] sm:$0xff]
        %v1987 = vld [vmem:[#allocation2 + $0x8] sm:$0xff]
        %v1988 = vld [vmem:[#allocation2 + $0x20] sm:$0xff]
        %v1989 = vld [vmem:[#allocation2 + $0x10] sm:$0xff]
        %v1990 = vld [vmem:[#allocation2 + $0x28] sm:$0xff]
        %1993 = vrot.lane.b32.xlu0 %v1985, 64
        %v1994 = vpop.permute.xlu0 %1993
        %1995 = vrot.lane.b32.xlu0 %v1986, 64
        %v1996 = vpop.permute.xlu0 %1995
        %1999 = vrot.lane.b32.xlu0 %v1987, 64
        %v2000 = vpop.permute.xlu0 %1999
        %2001 = vrot.lane.b32.xlu0 %v1988, 64
        %v2002 = vpop.permute.xlu0 %2001
        %v2003 = vsel %vm1107, %v1994, 0
        %v2005 = vsel %vm1107, %v1996, 0
        %v2007 = vsel %vm1107, %v2000, 0
        %v2009 = vsel %vm1107, %v2002, 0
        %2011 = vmatprep.subr.mxu0 0.0
        %2012 = vmatpush1.xpose.msra.mxu0 0.0
        %2013 = vmatprep.subr.mxu0 0.0
        %2014 = vmatpush1.xpose.msra.mxu0 0.0
        %2015 = vmatprep.subr.mxu0 0.0
        %2016 = vmatpush1.xpose.msra.mxu0 0.0
        %2017 = vmatprep.subr.mxu0 0.0
        %2018 = vmatpush1.xpose.msra.mxu0 0.0
        %2019 = vmatprep.subr.mxu0 0.0
        %2020 = vmatpush1.xpose.msra.mxu0 0.0
        %2021 = vmatprep.subr.mxu0 0.0
        %2022 = vmatpush1.xpose.msra.mxu0 0.0
        %2023 = vmatprep.subr.mxu0 0.0
        %2024 = vmatpush1.xpose.msra.mxu0 0.0
        %2025 = vmatprep.subr.mxu0 0.0
        %2026 = vmatpush1.xpose.msra.mxu0 0.0
        %2027 = vmatprep.subr.mxu0 0.0
        %2028 = vmatpush1.xpose.msra.mxu0 0.0
        %2029 = vmatprep.subr.mxu0 0.0
        %2030 = vmatpush1.xpose.msra.mxu0 0.0
        %2031 = vmatprep.subr.mxu0 0.0
        %2032 = vmatpush1.xpose.msra.mxu0 0.0
        %2033 = vmatprep.subr.mxu0 0.0
        %2034 = vmatpush1.xpose.msra.mxu0 0.0
        %2035 = vmatprep.subr.mxu0 0.0
        %2036 = vmatpush1.xpose.msra.mxu0 0.0
        %2037 = vmatprep.subr.mxu0 0.0
        %2038 = vmatpush1.xpose.msra.mxu0 0.0
        %2039 = vmatprep.subr.mxu0 0.0
        %2040 = vmatpush1.xpose.msra.mxu0 %v2009
        %2041 = vmatprep.subr.mxu0 0.0
        %2042 = vmatpush1.xpose.msra.mxu0 %v2007
        %2043 = vmatprep.subr.mxu0 0.0
        %2044 = vmatpush2.xpose.msra.mxu0 0.0
        %2045 = vmatprep.subr.mxu0 0.0
        %2046 = vmatpush2.xpose.msra.mxu0 0.0
        %2047 = vmatprep.subr.mxu0 0.0
        %2048 = vmatpush2.xpose.msra.mxu0 0.0
        %2049 = vmatprep.subr.mxu0 0.0
        %2050 = vmatpush2.xpose.msra.mxu0 0.0
        %2051 = vmatprep.subr.mxu0 0.0
        %2052 = vmatpush2.xpose.msra.mxu0 0.0
        %2053 = vmatprep.subr.mxu0 0.0
        %2054 = vmatpush2.xpose.msra.mxu0 0.0
        %2055 = vmatprep.subr.mxu0 0.0
        %2056 = vmatpush2.xpose.msra.mxu0 0.0
        %2057 = vmatprep.subr.mxu0 0.0
        %2058 = vmatpush2.xpose.msra.mxu0 0.0
        %2059 = vmatprep.subr.mxu0 0.0
        %2060 = vmatpush2.xpose.msra.mxu0 0.0
        %2061 = vmatprep.subr.mxu0 0.0
        %2062 = vmatpush2.xpose.msra.mxu0 0.0
        %2063 = vmatprep.subr.mxu0 0.0
        %2064 = vmatpush2.xpose.msra.mxu0 0.0
        %2065 = vmatprep.subr.mxu0 0.0
        %2066 = vmatpush2.xpose.msra.mxu0 0.0
        %2067 = vmatprep.subr.mxu0 0.0
        %2068 = vmatpush2.xpose.msra.mxu0 0.0
        %2069 = vmatprep.subr.mxu0 0.0
        %2070 = vmatpush2.xpose.msra.mxu0 0.0
        %2071 = vmatprep.subr.mxu0 0.0
        %2072 = vmatpush2.xpose.msra.mxu0 0.0
        %2073 = vmatprep.subr.mxu0 0.0
        %2074 = vmatpush2.xpose.msra.mxu0 0.0
        %2075 = vmatprep.mubr.f32.mxu0 0.0
        %2076 = vmatmul.mubr.f32.gmra.mxu0 %v2003
        %v2077 = vpop.f32.mrf.mxu0
        %v2078 = vadd.f32 0.0, %v2077
        %v2079 = vpop.f32.mrf.mxu0
        %2080 = vmatprep.mubr.f32.mxu0 0.0
        %2081 = vmatmul.mubr.f32.gmra.mxu0 %v2005
        %v2082 = vpop.f32.mrf.mxu0
        %v2083 = vadd.f32 0.0, %v2082
        %v2084 = vpop.f32.mrf.mxu0
        %2085 = vdwg.mxu0
        %v2086 = vmul.f32 %v2078, 0.25
        %v2087 = vmul.f32 %v2083, 0.25
        %v2088 = vsel %vm1099, %v2086, -1e+30
        %v2089 = vsel %vm1100, %v2087, -1e+30
        %v2090 = vsel %vm1107, %v2088, -inf
        %2091 = vmax.xlane.f32.xlu0 %v2090
        %v2092 = vpop.xlane.xlu0 %2091
        %v2093 = vsel %vm1107, %v2089, -inf
        %2094 = vmax.xlane.f32.xlu0 %v2093
        %v2095 = vpop.xlane.xlu0 %2094
        %v2096 = vsub.f32 %v2088, %v2092
        %v2097 = vsub.f32 %v2089, %v2095
        %v2098 = vmul.f32 %v2096, 1.442695
        %v2099 = vpow.pop %v2098
        %v2100 = vmul.f32 %v2097, 1.442695
        %v2101 = vpow.pop %v2100
        %v2102 = vsel %vm1107, %v2099, 0.0
        %2103 = vadd.xlane.f32.xlu0 %v2102
        %v2104 = vpop.xlane.xlu0 %2103
        %v2105 = vsel %vm1107, %v2101, 0.0
        %2106 = vadd.xlane.f32.xlu0 %v2105
        %v2107 = vpop.xlane.xlu0 %2106
        %v2108 = vrcp.pop %v2104
        %v2109 = vrcp.pop %v2107
        %v2110 = vmul.f32 %v2099, %v2108
        %v2111 = vmul.f32 %v2101, %v2109
        %2114 = vrot.lane.b32.xlu0 %v1989, 64
        %v2115 = vpop.permute.xlu0 %2114
        %2116 = vrot.lane.b32.xlu0 %v1990, 64
        %v2117 = vpop.permute.xlu0 %2116
        %v2121 = vsel %vm1107, %v2110, 0
        %v2124 = vsel %vm1107, %v2111, 0
        %2126 = vmatprep.subr.mxu0 0.0
        %2127 = vmatpush1.msra.mxu0 0.0
        %2128 = vmatprep.subr.mxu0 0.0
        %2129 = vmatpush1.msra.mxu0 0.0
        %2130 = vmatprep.subr.mxu0 0.0
        %2131 = vmatpush1.msra.mxu0 0.0
        %2132 = vmatprep.subr.mxu0 0.0
        %2133 = vmatpush1.msra.mxu0 0.0
        %2134 = vmatprep.subr.mxu0 0.0
        %2135 = vmatpush1.msra.mxu0 0.0
        %2136 = vmatprep.subr.mxu0 0.0
        %2137 = vmatpush1.msra.mxu0 0.0
        %2138 = vmatprep.subr.mxu0 0.0
        %2139 = vmatpush1.msra.mxu0 0.0
        %2140 = vmatprep.subr.mxu0 0.0
        %2141 = vmatpush1.msra.mxu0 0.0
        %2142 = vmatprep.subr.mxu0 0.0
        %2143 = vmatpush1.msra.mxu0 0.0
        %2144 = vmatprep.subr.mxu0 0.0
        %2145 = vmatpush1.msra.mxu0 0.0
        %2146 = vmatprep.subr.mxu0 0.0
        %2147 = vmatpush1.msra.mxu0 0.0
        %2148 = vmatprep.subr.mxu0 0.0
        %2149 = vmatpush1.msra.mxu0 0.0
        %2150 = vmatprep.subr.mxu0 0.0
        %2151 = vmatpush1.msra.mxu0 0.0
        %2152 = vmatprep.subr.mxu0 0.0
        %2153 = vmatpush1.msra.mxu0 0.0
        %2154 = vmatprep.subr.mxu0 0.0
        %2155 = vmatpush1.msra.mxu0 %v2117
        %2156 = vmatprep.subr.mxu0 0.0
        %2157 = vmatpush1.msra.mxu0 %v2115
        %2158 = vmatprep.subr.mxu0 0.0
        %2159 = vmatpush2.msra.mxu0 0.0
        %2160 = vmatprep.subr.mxu0 0.0
        %2161 = vmatpush2.msra.mxu0 0.0
        %2162 = vmatprep.subr.mxu0 0.0
        %2163 = vmatpush2.msra.mxu0 0.0
        %2164 = vmatprep.subr.mxu0 0.0
        %2165 = vmatpush2.msra.mxu0 0.0
        %2166 = vmatprep.subr.mxu0 0.0
        %2167 = vmatpush2.msra.mxu0 0.0
        %2168 = vmatprep.subr.mxu0 0.0
        %2169 = vmatpush2.msra.mxu0 0.0
        %2170 = vmatprep.subr.mxu0 0.0
        %2171 = vmatpush2.msra.mxu0 0.0
        %2172 = vmatprep.subr.mxu0 0.0
        %2173 = vmatpush2.msra.mxu0 0.0
        %2174 = vmatprep.subr.mxu0 0.0
        %2175 = vmatpush2.msra.mxu0 0.0
        %2176 = vmatprep.subr.mxu0 0.0
        %2177 = vmatpush2.msra.mxu0 0.0
        %2178 = vmatprep.subr.mxu0 0.0
        %2179 = vmatpush2.msra.mxu0 0.0
        %2180 = vmatprep.subr.mxu0 0.0
        %2181 = vmatpush2.msra.mxu0 0.0
        %2182 = vmatprep.subr.mxu0 0.0
        %2183 = vmatpush2.msra.mxu0 0.0
        %2184 = vmatprep.subr.mxu0 0.0
        %2185 = vmatpush2.msra.mxu0 0.0
        %2186 = vmatprep.subr.mxu0 0.0
        %2187 = vmatpush2.msra.mxu0 0.0
        %2188 = vmatprep.subr.mxu0 0.0
        %2189 = vmatpush2.msra.mxu0 0.0
        %2190 = vmatprep.mubr.f32.mxu0 0.0
        %2191 = vmatmul.mubr.f32.gmra.mxu0 %v2121
        %v2192 = vpop.f32.mrf.mxu0
        %v2193 = vadd.f32 0.0, %v2192
        %v2194 = vpop.f32.mrf.mxu0
        %2195 = vmatprep.mubr.f32.mxu0 0.0
        %2196 = vmatmul.mubr.f32.gmra.mxu0 %v2124
        %v2197 = vpop.f32.mrf.mxu0
        %v2198 = vadd.f32 0.0, %v2197
        %v2199 = vpop.f32.mrf.mxu0
        %2200 = vdwg.mxu0
        %2203 = vrot.lane.b32.xlu0 %v2193, 64
        %v2204 = vpop.permute.xlu0 %2203
        %2205 = vrot.lane.b32.xlu0 %v2198, 64
        %v2206 = vpop.permute.xlu0 %2205
        %vm2209 = vcmask 654848
        %2210 = vst.msk [vmem:[#allocation3] sm:$0xff] %vm2209, %v2204
        %2211 = vst.msk [vmem:[#allocation3 + $0x8] sm:$0xff] %vm2209, %v2206
        %v2212 = vld [vmem:[#allocation2] sm:$0xff]
        %v2213 = vld [vmem:[#allocation2 + $0x18] sm:$0xff]
        %v2214 = vld [vmem:[#allocation2 + $0x8] sm:$0xff]
        %v2215 = vld [vmem:[#allocation2 + $0x20] sm:$0xff]
        %v2216 = vld [vmem:[#allocation2 + $0x10] sm:$0xff]
        %v2217 = vld [vmem:[#allocation2 + $0x28] sm:$0xff]
        %2220 = vrot.lane.b32.xlu0 %v2212, 48
        %v2221 = vpop.permute.xlu0 %2220
        %2222 = vrot.lane.b32.xlu0 %v2213, 48
        %v2223 = vpop.permute.xlu0 %2222
        %2226 = vrot.lane.b32.xlu0 %v2214, 48
        %v2227 = vpop.permute.xlu0 %2226
        %2228 = vrot.lane.b32.xlu0 %v2215, 48
        %v2229 = vpop.permute.xlu0 %2228
        %v2230 = vsel %vm1107, %v2221, 0
        %v2232 = vsel %vm1107, %v2223, 0
        %v2234 = vsel %vm1107, %v2227, 0
        %v2236 = vsel %vm1107, %v2229, 0
        %2238 = vmatprep.subr.mxu0 0.0
        %2239 = vmatpush1.xpose.msra.mxu0 0.0
        %2240 = vmatprep.subr.mxu0 0.0
        %2241 = vmatpush1.xpose.msra.mxu0 0.0
        %2242 = vmatprep.subr.mxu0 0.0
        %2243 = vmatpush1.xpose.msra.mxu0 0.0
        %2244 = vmatprep.subr.mxu0 0.0
        %2245 = vmatpush1.xpose.msra.mxu0 0.0
        %2246 = vmatprep.subr.mxu0 0.0
        %2247 = vmatpush1.xpose.msra.mxu0 0.0
        %2248 = vmatprep.subr.mxu0 0.0
        %2249 = vmatpush1.xpose.msra.mxu0 0.0
        %2250 = vmatprep.subr.mxu0 0.0
        %2251 = vmatpush1.xpose.msra.mxu0 0.0
        %2252 = vmatprep.subr.mxu0 0.0
        %2253 = vmatpush1.xpose.msra.mxu0 0.0
        %2254 = vmatprep.subr.mxu0 0.0
        %2255 = vmatpush1.xpose.msra.mxu0 0.0
        %2256 = vmatprep.subr.mxu0 0.0
        %2257 = vmatpush1.xpose.msra.mxu0 0.0
        %2258 = vmatprep.subr.mxu0 0.0
        %2259 = vmatpush1.xpose.msra.mxu0 0.0
        %2260 = vmatprep.subr.mxu0 0.0
        %2261 = vmatpush1.xpose.msra.mxu0 0.0
        %2262 = vmatprep.subr.mxu0 0.0
        %2263 = vmatpush1.xpose.msra.mxu0 0.0
        %2264 = vmatprep.subr.mxu0 0.0
        %2265 = vmatpush1.xpose.msra.mxu0 0.0
        %2266 = vmatprep.subr.mxu0 0.0
        %2267 = vmatpush1.xpose.msra.mxu0 %v2236
        %2268 = vmatprep.subr.mxu0 0.0
        %2269 = vmatpush1.xpose.msra.mxu0 %v2234
        %2270 = vmatprep.subr.mxu0 0.0
        %2271 = vmatpush2.xpose.msra.mxu0 0.0
        %2272 = vmatprep.subr.mxu0 0.0
        %2273 = vmatpush2.xpose.msra.mxu0 0.0
        %2274 = vmatprep.subr.mxu0 0.0
        %2275 = vmatpush2.xpose.msra.mxu0 0.0
        %2276 = vmatprep.subr.mxu0 0.0
        %2277 = vmatpush2.xpose.msra.mxu0 0.0
        %2278 = vmatprep.subr.mxu0 0.0
        %2279 = vmatpush2.xpose.msra.mxu0 0.0
        %2280 = vmatprep.subr.mxu0 0.0
        %2281 = vmatpush2.xpose.msra.mxu0 0.0
        %2282 = vmatprep.subr.mxu0 0.0
        %2283 = vmatpush2.xpose.msra.mxu0 0.0
        %2284 = vmatprep.subr.mxu0 0.0
        %2285 = vmatpush2.xpose.msra.mxu0 0.0
        %2286 = vmatprep.subr.mxu0 0.0
        %2287 = vmatpush2.xpose.msra.mxu0 0.0
        %2288 = vmatprep.subr.mxu0 0.0
        %2289 = vmatpush2.xpose.msra.mxu0 0.0
        %2290 = vmatprep.subr.mxu0 0.0
        %2291 = vmatpush2.xpose.msra.mxu0 0.0
        %2292 = vmatprep.subr.mxu0 0.0
        %2293 = vmatpush2.xpose.msra.mxu0 0.0
        %2294 = vmatprep.subr.mxu0 0.0
        %2295 = vmatpush2.xpose.msra.mxu0 0.0
        %2296 = vmatprep.subr.mxu0 0.0
        %2297 = vmatpush2.xpose.msra.mxu0 0.0
        %2298 = vmatprep.subr.mxu0 0.0
        %2299 = vmatpush2.xpose.msra.mxu0 0.0
        %2300 = vmatprep.subr.mxu0 0.0
        %2301 = vmatpush2.xpose.msra.mxu0 0.0
        %2302 = vmatprep.mubr.f32.mxu0 0.0
        %2303 = vmatmul.mubr.f32.gmra.mxu0 %v2230
        %v2304 = vpop.f32.mrf.mxu0
        %v2305 = vadd.f32 0.0, %v2304
        %v2306 = vpop.f32.mrf.mxu0
        %2307 = vmatprep.mubr.f32.mxu0 0.0
        %2308 = vmatmul.mubr.f32.gmra.mxu0 %v2232
        %v2309 = vpop.f32.mrf.mxu0
        %v2310 = vadd.f32 0.0, %v2309
        %v2311 = vpop.f32.mrf.mxu0
        %2312 = vdwg.mxu0
        %v2313 = vmul.f32 %v2305, 0.25
        %v2314 = vmul.f32 %v2310, 0.25
        %v2315 = vsel %vm1099, %v2313, -1e+30
        %v2316 = vsel %vm1100, %v2314, -1e+30
        %v2317 = vsel %vm1107, %v2315, -inf
        %2318 = vmax.xlane.f32.xlu0 %v2317
        %v2319 = vpop.xlane.xlu0 %2318
        %v2320 = vsel %vm1107, %v2316, -inf
        %2321 = vmax.xlane.f32.xlu0 %v2320
        %v2322 = vpop.xlane.xlu0 %2321
        %v2323 = vsub.f32 %v2315, %v2319
        %v2324 = vsub.f32 %v2316, %v2322
        %v2325 = vmul.f32 %v2323, 1.442695
        %v2326 = vpow.pop %v2325
        %v2327 = vmul.f32 %v2324, 1.442695
        %v2328 = vpow.pop %v2327
        %v2329 = vsel %vm1107, %v2326, 0.0
        %2330 = vadd.xlane.f32.xlu0 %v2329
        %v2331 = vpop.xlane.xlu0 %2330
        %v2332 = vsel %vm1107, %v2328, 0.0
        %2333 = vadd.xlane.f32.xlu0 %v2332
        %v2334 = vpop.xlane.xlu0 %2333
        %v2335 = vrcp.pop %v2331
        %v2336 = vrcp.pop %v2334
        %v2337 = vmul.f32 %v2326, %v2335
        %v2338 = vmul.f32 %v2328, %v2336
        %2341 = vrot.lane.b32.xlu0 %v2216, 48
        %v2342 = vpop.permute.xlu0 %2341
        %2343 = vrot.lane.b32.xlu0 %v2217, 48
        %v2344 = vpop.permute.xlu0 %2343
        %v2348 = vsel %vm1107, %v2337, 0
        %v2351 = vsel %vm1107, %v2338, 0
        %2353 = vmatprep.subr.mxu0 0.0
        %2354 = vmatpush1.msra.mxu0 0.0
        %2355 = vmatprep.subr.mxu0 0.0
        %2356 = vmatpush1.msra.mxu0 0.0
        %2357 = vmatprep.subr.mxu0 0.0
        %2358 = vmatpush1.msra.mxu0 0.0
        %2359 = vmatprep.subr.mxu0 0.0
        %2360 = vmatpush1.msra.mxu0 0.0
        %2361 = vmatprep.subr.mxu0 0.0
        %2362 = vmatpush1.msra.mxu0 0.0
        %2363 = vmatprep.subr.mxu0 0.0
        %2364 = vmatpush1.msra.mxu0 0.0
        %2365 = vmatprep.subr.mxu0 0.0
        %2366 = vmatpush1.msra.mxu0 0.0
        %2367 = vmatprep.subr.mxu0 0.0
        %2368 = vmatpush1.msra.mxu0 0.0
        %2369 = vmatprep.subr.mxu0 0.0
        %2370 = vmatpush1.msra.mxu0 0.0
        %2371 = vmatprep.subr.mxu0 0.0
        %2372 = vmatpush1.msra.mxu0 0.0
        %2373 = vmatprep.subr.mxu0 0.0
        %2374 = vmatpush1.msra.mxu0 0.0
        %2375 = vmatprep.subr.mxu0 0.0
        %2376 = vmatpush1.msra.mxu0 0.0
        %2377 = vmatprep.subr.mxu0 0.0
        %2378 = vmatpush1.msra.mxu0 0.0
        %2379 = vmatprep.subr.mxu0 0.0
        %2380 = vmatpush1.msra.mxu0 0.0
        %2381 = vmatprep.subr.mxu0 0.0
        %2382 = vmatpush1.msra.mxu0 %v2344
        %2383 = vmatprep.subr.mxu0 0.0
        %2384 = vmatpush1.msra.mxu0 %v2342
        %2385 = vmatprep.subr.mxu0 0.0
        %2386 = vmatpush2.msra.mxu0 0.0
        %2387 = vmatprep.subr.mxu0 0.0
        %2388 = vmatpush2.msra.mxu0 0.0
        %2389 = vmatprep.subr.mxu0 0.0
        %2390 = vmatpush2.msra.mxu0 0.0
        %2391 = vmatprep.subr.mxu0 0.0
        %2392 = vmatpush2.msra.mxu0 0.0
        %2393 = vmatprep.subr.mxu0 0.0
        %2394 = vmatpush2.msra.mxu0 0.0
        %2395 = vmatprep.subr.mxu0 0.0
        %2396 = vmatpush2.msra.mxu0 0.0
        %2397 = vmatprep.subr.mxu0 0.0
        %2398 = vmatpush2.msra.mxu0 0.0
        %2399 = vmatprep.subr.mxu0 0.0
        %2400 = vmatpush2.msra.mxu0 0.0
        %2401 = vmatprep.subr.mxu0 0.0
        %2402 = vmatpush2.msra.mxu0 0.0
        %2403 = vmatprep.subr.mxu0 0.0
        %2404 = vmatpush2.msra.mxu0 0.0
        %2405 = vmatprep.subr.mxu0 0.0
        %2406 = vmatpush2.msra.mxu0 0.0
        %2407 = vmatprep.subr.mxu0 0.0
        %2408 = vmatpush2.msra.mxu0 0.0
        %2409 = vmatprep.subr.mxu0 0.0
        %2410 = vmatpush2.msra.mxu0 0.0
        %2411 = vmatprep.subr.mxu0 0.0
        %2412 = vmatpush2.msra.mxu0 0.0
        %2413 = vmatprep.subr.mxu0 0.0
        %2414 = vmatpush2.msra.mxu0 0.0
        %2415 = vmatprep.subr.mxu0 0.0
        %2416 = vmatpush2.msra.mxu0 0.0
        %2417 = vmatprep.mubr.f32.mxu0 0.0
        %2418 = vmatmul.mubr.f32.gmra.mxu0 %v2348
        %v2419 = vpop.f32.mrf.mxu0
        %v2420 = vadd.f32 0.0, %v2419
        %v2421 = vpop.f32.mrf.mxu0
        %2422 = vmatprep.mubr.f32.mxu0 0.0
        %2423 = vmatmul.mubr.f32.gmra.mxu0 %v2351
        %v2424 = vpop.f32.mrf.mxu0
        %v2425 = vadd.f32 0.0, %v2424
        %v2426 = vpop.f32.mrf.mxu0
        %2427 = vdwg.mxu0
        %2430 = vrot.lane.b32.xlu0 %v2420, 80
        %v2431 = vpop.permute.xlu0 %2430
        %2432 = vrot.lane.b32.xlu0 %v2425, 80
        %v2433 = vpop.permute.xlu0 %2432
        %vm2436 = vcmask 786048
        %2437 = vst.msk [vmem:[#allocation3] sm:$0xff] %vm2436, %v2431
        %2438 = vst.msk [vmem:[#allocation3 + $0x8] sm:$0xff] %vm2436, %v2433
        %v2439 = vld [vmem:[#allocation2] sm:$0xff]
        %v2440 = vld [vmem:[#allocation2 + $0x18] sm:$0xff]
        %v2441 = vld [vmem:[#allocation2 + $0x8] sm:$0xff]
        %v2442 = vld [vmem:[#allocation2 + $0x20] sm:$0xff]
        %v2443 = vld [vmem:[#allocation2 + $0x10] sm:$0xff]
        %v2444 = vld [vmem:[#allocation2 + $0x28] sm:$0xff]
        %2447 = vrot.lane.b32.xlu0 %v2439, 32
        %v2448 = vpop.permute.xlu0 %2447
        %2449 = vrot.lane.b32.xlu0 %v2440, 32
        %v2450 = vpop.permute.xlu0 %2449
        %2453 = vrot.lane.b32.xlu0 %v2441, 32
        %v2454 = vpop.permute.xlu0 %2453
        %2455 = vrot.lane.b32.xlu0 %v2442, 32
        %v2456 = vpop.permute.xlu0 %2455
        %v2457 = vsel %vm1107, %v2448, 0
        %v2459 = vsel %vm1107, %v2450, 0
        %v2461 = vsel %vm1107, %v2454, 0
        %v2463 = vsel %vm1107, %v2456, 0
        %2465 = vmatprep.subr.mxu0 0.0
        %2466 = vmatpush1.xpose.msra.mxu0 0.0
        %2467 = vmatprep.subr.mxu0 0.0
        %2468 = vmatpush1.xpose.msra.mxu0 0.0
        %2469 = vmatprep.subr.mxu0 0.0
        %2470 = vmatpush1.xpose.msra.mxu0 0.0
        %2471 = vmatprep.subr.mxu0 0.0
        %2472 = vmatpush1.xpose.msra.mxu0 0.0
        %2473 = vmatprep.subr.mxu0 0.0
        %2474 = vmatpush1.xpose.msra.mxu0 0.0
        %2475 = vmatprep.subr.mxu0 0.0
        %2476 = vmatpush1.xpose.msra.mxu0 0.0
        %2477 = vmatprep.subr.mxu0 0.0
        %2478 = vmatpush1.xpose.msra.mxu0 0.0
        %2479 = vmatprep.subr.mxu0 0.0
        %2480 = vmatpush1.xpose.msra.mxu0 0.0
        %2481 = vmatprep.subr.mxu0 0.0
        %2482 = vmatpush1.xpose.msra.mxu0 0.0
        %2483 = vmatprep.subr.mxu0 0.0
        %2484 = vmatpush1.xpose.msra.mxu0 0.0
        %2485 = vmatprep.subr.mxu0 0.0
        %2486 = vmatpush1.xpose.msra.mxu0 0.0
        %2487 = vmatprep.subr.mxu0 0.0
        %2488 = vmatpush1.xpose.msra.mxu0 0.0
        %2489 = vmatprep.subr.mxu0 0.0
        %2490 = vmatpush1.xpose.msra.mxu0 0.0
        %2491 = vmatprep.subr.mxu0 0.0
        %2492 = vmatpush1.xpose.msra.mxu0 0.0
        %2493 = vmatprep.subr.mxu0 0.0
        %2494 = vmatpush1.xpose.msra.mxu0 %v2463
        %2495 = vmatprep.subr.mxu0 0.0
        %2496 = vmatpush1.xpose.msra.mxu0 %v2461
        %2497 = vmatprep.subr.mxu0 0.0
        %2498 = vmatpush2.xpose.msra.mxu0 0.0
        %2499 = vmatprep.subr.mxu0 0.0
        %2500 = vmatpush2.xpose.msra.mxu0 0.0
        %2501 = vmatprep.subr.mxu0 0.0
        %2502 = vmatpush2.xpose.msra.mxu0 0.0
        %2503 = vmatprep.subr.mxu0 0.0
        %2504 = vmatpush2.xpose.msra.mxu0 0.0
        %2505 = vmatprep.subr.mxu0 0.0
        %2506 = vmatpush2.xpose.msra.mxu0 0.0
        %2507 = vmatprep.subr.mxu0 0.0
        %2508 = vmatpush2.xpose.msra.mxu0 0.0
        %2509 = vmatprep.subr.mxu0 0.0
        %2510 = vmatpush2.xpose.msra.mxu0 0.0
        %2511 = vmatprep.subr.mxu0 0.0
        %2512 = vmatpush2.xpose.msra.mxu0 0.0
        %2513 = vmatprep.subr.mxu0 0.0
        %2514 = vmatpush2.xpose.msra.mxu0 0.0
        %2515 = vmatprep.subr.mxu0 0.0
        %2516 = vmatpush2.xpose.msra.mxu0 0.0
        %2517 = vmatprep.subr.mxu0 0.0
        %2518 = vmatpush2.xpose.msra.mxu0 0.0
        %2519 = vmatprep.subr.mxu0 0.0
        %2520 = vmatpush2.xpose.msra.mxu0 0.0
        %2521 = vmatprep.subr.mxu0 0.0
        %2522 = vmatpush2.xpose.msra.mxu0 0.0
        %2523 = vmatprep.subr.mxu0 0.0
        %2524 = vmatpush2.xpose.msra.mxu0 0.0
        %2525 = vmatprep.subr.mxu0 0.0
        %2526 = vmatpush2.xpose.msra.mxu0 0.0
        %2527 = vmatprep.subr.mxu0 0.0
        %2528 = vmatpush2.xpose.msra.mxu0 0.0
        %2529 = vmatprep.mubr.f32.mxu0 0.0
        %2530 = vmatmul.mubr.f32.gmra.mxu0 %v2457
        %v2531 = vpop.f32.mrf.mxu0
        %v2532 = vadd.f32 0.0, %v2531
        %v2533 = vpop.f32.mrf.mxu0
        %2534 = vmatprep.mubr.f32.mxu0 0.0
        %2535 = vmatmul.mubr.f32.gmra.mxu0 %v2459
        %v2536 = vpop.f32.mrf.mxu0
        %v2537 = vadd.f32 0.0, %v2536
        %v2538 = vpop.f32.mrf.mxu0
        %2539 = vdwg.mxu0
        %v2540 = vmul.f32 %v2532, 0.25
        %v2541 = vmul.f32 %v2537, 0.25
        %v2542 = vsel %vm1099, %v2540, -1e+30
        %v2543 = vsel %vm1100, %v2541, -1e+30
        %v2544 = vsel %vm1107, %v2542, -inf
        %2545 = vmax.xlane.f32.xlu0 %v2544
        %v2546 = vpop.xlane.xlu0 %2545
        %v2547 = vsel %vm1107, %v2543, -inf
        %2548 = vmax.xlane.f32.xlu0 %v2547
        %v2549 = vpop.xlane.xlu0 %2548
        %v2550 = vsub.f32 %v2542, %v2546
        %v2551 = vsub.f32 %v2543, %v2549
        %v2552 = vmul.f32 %v2550, 1.442695
        %v2553 = vpow.pop %v2552
        %v2554 = vmul.f32 %v2551, 1.442695
        %v2555 = vpow.pop %v2554
        %v2556 = vsel %vm1107, %v2553, 0.0
        %2557 = vadd.xlane.f32.xlu0 %v2556
        %v2558 = vpop.xlane.xlu0 %2557
        %v2559 = vsel %vm1107, %v2555, 0.0
        %2560 = vadd.xlane.f32.xlu0 %v2559
        %v2561 = vpop.xlane.xlu0 %2560
        %v2562 = vrcp.pop %v2558
        %v2563 = vrcp.pop %v2561
        %v2564 = vmul.f32 %v2553, %v2562
        %v2565 = vmul.f32 %v2555, %v2563
        %2568 = vrot.lane.b32.xlu0 %v2443, 32
        %v2569 = vpop.permute.xlu0 %2568
        %2570 = vrot.lane.b32.xlu0 %v2444, 32
        %v2571 = vpop.permute.xlu0 %2570
        %v2575 = vsel %vm1107, %v2564, 0
        %v2578 = vsel %vm1107, %v2565, 0
        %2580 = vmatprep.subr.mxu0 0.0
        %2581 = vmatpush1.msra.mxu0 0.0
        %2582 = vmatprep.subr.mxu0 0.0
        %2583 = vmatpush1.msra.mxu0 0.0
        %2584 = vmatprep.subr.mxu0 0.0
        %2585 = vmatpush1.msra.mxu0 0.0
        %2586 = vmatprep.subr.mxu0 0.0
        %2587 = vmatpush1.msra.mxu0 0.0
        %2588 = vmatprep.subr.mxu0 0.0
        %2589 = vmatpush1.msra.mxu0 0.0
        %2590 = vmatprep.subr.mxu0 0.0
        %2591 = vmatpush1.msra.mxu0 0.0
        %2592 = vmatprep.subr.mxu0 0.0
        %2593 = vmatpush1.msra.mxu0 0.0
        %2594 = vmatprep.subr.mxu0 0.0
        %2595 = vmatpush1.msra.mxu0 0.0
        %2596 = vmatprep.subr.mxu0 0.0
        %2597 = vmatpush1.msra.mxu0 0.0
        %2598 = vmatprep.subr.mxu0 0.0
        %2599 = vmatpush1.msra.mxu0 0.0
        %2600 = vmatprep.subr.mxu0 0.0
        %2601 = vmatpush1.msra.mxu0 0.0
        %2602 = vmatprep.subr.mxu0 0.0
        %2603 = vmatpush1.msra.mxu0 0.0
        %2604 = vmatprep.subr.mxu0 0.0
        %2605 = vmatpush1.msra.mxu0 0.0
        %2606 = vmatprep.subr.mxu0 0.0
        %2607 = vmatpush1.msra.mxu0 0.0
        %2608 = vmatprep.subr.mxu0 0.0
        %2609 = vmatpush1.msra.mxu0 %v2571
        %2610 = vmatprep.subr.mxu0 0.0
        %2611 = vmatpush1.msra.mxu0 %v2569
        %2612 = vmatprep.subr.mxu0 0.0
        %2613 = vmatpush2.msra.mxu0 0.0
        %2614 = vmatprep.subr.mxu0 0.0
        %2615 = vmatpush2.msra.mxu0 0.0
        %2616 = vmatprep.subr.mxu0 0.0
        %2617 = vmatpush2.msra.mxu0 0.0
        %2618 = vmatprep.subr.mxu0 0.0
        %2619 = vmatpush2.msra.mxu0 0.0
        %2620 = vmatprep.subr.mxu0 0.0
        %2621 = vmatpush2.msra.mxu0 0.0
        %2622 = vmatprep.subr.mxu0 0.0
        %2623 = vmatpush2.msra.mxu0 0.0
        %2624 = vmatprep.subr.mxu0 0.0
        %2625 = vmatpush2.msra.mxu0 0.0
        %2626 = vmatprep.subr.mxu0 0.0
        %2627 = vmatpush2.msra.mxu0 0.0
        %2628 = vmatprep.subr.mxu0 0.0
        %2629 = vmatpush2.msra.mxu0 0.0
        %2630 = vmatprep.subr.mxu0 0.0
        %2631 = vmatpush2.msra.mxu0 0.0
        %2632 = vmatprep.subr.mxu0 0.0
        %2633 = vmatpush2.msra.mxu0 0.0
        %2634 = vmatprep.subr.mxu0 0.0
        %2635 = vmatpush2.msra.mxu0 0.0
        %2636 = vmatprep.subr.mxu0 0.0
        %2637 = vmatpush2.msra.mxu0 0.0
        %2638 = vmatprep.subr.mxu0 0.0
        %2639 = vmatpush2.msra.mxu0 0.0
        %2640 = vmatprep.subr.mxu0 0.0
        %2641 = vmatpush2.msra.mxu0 0.0
        %2642 = vmatprep.subr.mxu0 0.0
        %2643 = vmatpush2.msra.mxu0 0.0
        %2644 = vmatprep.mubr.f32.mxu0 0.0
        %2645 = vmatmul.mubr.f32.gmra.mxu0 %v2575
        %v2646 = vpop.f32.mrf.mxu0
        %v2647 = vadd.f32 0.0, %v2646
        %v2648 = vpop.f32.mrf.mxu0
        %2649 = vmatprep.mubr.f32.mxu0 0.0
        %2650 = vmatmul.mubr.f32.gmra.mxu0 %v2578
        %v2651 = vpop.f32.mrf.mxu0
        %v2652 = vadd.f32 0.0, %v2651
        %v2653 = vpop.f32.mrf.mxu0
        %2654 = vdwg.mxu0
        %2657 = vrot.lane.b32.xlu0 %v2647, 96
        %v2658 = vpop.permute.xlu0 %2657
        %2659 = vrot.lane.b32.xlu0 %v2652, 96
        %v2660 = vpop.permute.xlu0 %2659
        %vm2663 = vcmask 917248
        %2664 = vst.msk [vmem:[#allocation3] sm:$0xff] %vm2663, %v2658
        %2665 = vst.msk [vmem:[#allocation3 + $0x8] sm:$0xff] %vm2663, %v2660
        %v2666 = vld [vmem:[#allocation2] sm:$0xff]
        %v2667 = vld [vmem:[#allocation2 + $0x18] sm:$0xff]
        %v2668 = vld [vmem:[#allocation2 + $0x8] sm:$0xff]
        %v2669 = vld [vmem:[#allocation2 + $0x20] sm:$0xff]
        %v2670 = vld [vmem:[#allocation2 + $0x10] sm:$0xff]
        %v2671 = vld [vmem:[#allocation2 + $0x28] sm:$0xff]
        %2674 = vrot.lane.b32.xlu0 %v2666, 16
        %v2675 = vpop.permute.xlu0 %2674
        %2676 = vrot.lane.b32.xlu0 %v2667, 16
        %v2677 = vpop.permute.xlu0 %2676
        %2680 = vrot.lane.b32.xlu0 %v2668, 16
        %v2681 = vpop.permute.xlu0 %2680
        %2682 = vrot.lane.b32.xlu0 %v2669, 16
        %v2683 = vpop.permute.xlu0 %2682
        %v2684 = vsel %vm1107, %v2675, 0
        %v2686 = vsel %vm1107, %v2677, 0
        %v2688 = vsel %vm1107, %v2681, 0
        %v2690 = vsel %vm1107, %v2683, 0
        %2692 = vmatprep.subr.mxu0 0.0
        %2693 = vmatpush1.xpose.msra.mxu0 0.0
        %2694 = vmatprep.subr.mxu0 0.0
        %2695 = vmatpush1.xpose.msra.mxu0 0.0
        %2696 = vmatprep.subr.mxu0 0.0
        %2697 = vmatpush1.xpose.msra.mxu0 0.0
        %2698 = vmatprep.subr.mxu0 0.0
        %2699 = vmatpush1.xpose.msra.mxu0 0.0
        %2700 = vmatprep.subr.mxu0 0.0
        %2701 = vmatpush1.xpose.msra.mxu0 0.0
        %2702 = vmatprep.subr.mxu0 0.0
        %2703 = vmatpush1.xpose.msra.mxu0 0.0
        %2704 = vmatprep.subr.mxu0 0.0
        %2705 = vmatpush1.xpose.msra.mxu0 0.0
        %2706 = vmatprep.subr.mxu0 0.0
        %2707 = vmatpush1.xpose.msra.mxu0 0.0
        %2708 = vmatprep.subr.mxu0 0.0
        %2709 = vmatpush1.xpose.msra.mxu0 0.0
        %2710 = vmatprep.subr.mxu0 0.0
        %2711 = vmatpush1.xpose.msra.mxu0 0.0
        %2712 = vmatprep.subr.mxu0 0.0
        %2713 = vmatpush1.xpose.msra.mxu0 0.0
        %2714 = vmatprep.subr.mxu0 0.0
        %2715 = vmatpush1.xpose.msra.mxu0 0.0
        %2716 = vmatprep.subr.mxu0 0.0
        %2717 = vmatpush1.xpose.msra.mxu0 0.0
        %2718 = vmatprep.subr.mxu0 0.0
        %2719 = vmatpush1.xpose.msra.mxu0 0.0
        %2720 = vmatprep.subr.mxu0 0.0
        %2721 = vmatpush1.xpose.msra.mxu0 %v2690
        %2722 = vmatprep.subr.mxu0 0.0
        %2723 = vmatpush1.xpose.msra.mxu0 %v2688
        %2724 = vmatprep.subr.mxu0 0.0
        %2725 = vmatpush2.xpose.msra.mxu0 0.0
        %2726 = vmatprep.subr.mxu0 0.0
        %2727 = vmatpush2.xpose.msra.mxu0 0.0
        %2728 = vmatprep.subr.mxu0 0.0
        %2729 = vmatpush2.xpose.msra.mxu0 0.0
        %2730 = vmatprep.subr.mxu0 0.0
        %2731 = vmatpush2.xpose.msra.mxu0 0.0
        %2732 = vmatprep.subr.mxu0 0.0
        %2733 = vmatpush2.xpose.msra.mxu0 0.0
        %2734 = vmatprep.subr.mxu0 0.0
        %2735 = vmatpush2.xpose.msra.mxu0 0.0
        %2736 = vmatprep.subr.mxu0 0.0
        %2737 = vmatpush2.xpose.msra.mxu0 0.0
        %2738 = vmatprep.subr.mxu0 0.0
        %2739 = vmatpush2.xpose.msra.mxu0 0.0
        %2740 = vmatprep.subr.mxu0 0.0
        %2741 = vmatpush2.xpose.msra.mxu0 0.0
        %2742 = vmatprep.subr.mxu0 0.0
        %2743 = vmatpush2.xpose.msra.mxu0 0.0
        %2744 = vmatprep.subr.mxu0 0.0
        %2745 = vmatpush2.xpose.msra.mxu0 0.0
        %2746 = vmatprep.subr.mxu0 0.0
        %2747 = vmatpush2.xpose.msra.mxu0 0.0
        %2748 = vmatprep.subr.mxu0 0.0
        %2749 = vmatpush2.xpose.msra.mxu0 0.0
        %2750 = vmatprep.subr.mxu0 0.0
        %2751 = vmatpush2.xpose.msra.mxu0 0.0
        %2752 = vmatprep.subr.mxu0 0.0
        %2753 = vmatpush2.xpose.msra.mxu0 0.0
        %2754 = vmatprep.subr.mxu0 0.0
        %2755 = vmatpush2.xpose.msra.mxu0 0.0
        %2756 = vmatprep.mubr.f32.mxu0 0.0
        %2757 = vmatmul.mubr.f32.gmra.mxu0 %v2684
        %v2758 = vpop.f32.mrf.mxu0
        %v2759 = vadd.f32 0.0, %v2758
        %v2760 = vpop.f32.mrf.mxu0
        %2761 = vmatprep.mubr.f32.mxu0 0.0
        %2762 = vmatmul.mubr.f32.gmra.mxu0 %v2686
        %v2763 = vpop.f32.mrf.mxu0
        %v2764 = vadd.f32 0.0, %v2763
        %v2765 = vpop.f32.mrf.mxu0
        %2766 = vdwg.mxu0
        %v2767 = vmul.f32 %v2759, 0.25
        %v2768 = vmul.f32 %v2764, 0.25
        %v2769 = vsel %vm1099, %v2767, -1e+30
        %v2770 = vsel %vm1100, %v2768, -1e+30
        %v2771 = vsel %vm1107, %v2769, -inf
        %2772 = vmax.xlane.f32.xlu0 %v2771
        %v2773 = vpop.xlane.xlu0 %2772
        %v2774 = vsel %vm1107, %v2770, -inf
        %2775 = vmax.xlane.f32.xlu0 %v2774
        %v2776 = vpop.xlane.xlu0 %2775
        %v2777 = vsub.f32 %v2769, %v2773
        %v2778 = vsub.f32 %v2770, %v2776
        %v2779 = vmul.f32 %v2777, 1.442695
        %v2780 = vpow.pop %v2779
        %v2781 = vmul.f32 %v2778, 1.442695
        %v2782 = vpow.pop %v2781
        %v2783 = vsel %vm1107, %v2780, 0.0
        %2784 = vadd.xlane.f32.xlu0 %v2783
        %v2785 = vpop.xlane.xlu0 %2784
        %v2786 = vsel %vm1107, %v2782, 0.0
        %2787 = vadd.xlane.f32.xlu0 %v2786
        %v2788 = vpop.xlane.xlu0 %2787
        %v2789 = vrcp.pop %v2785
        %v2790 = vrcp.pop %v2788
        %v2791 = vmul.f32 %v2780, %v2789
        %v2792 = vmul.f32 %v2782, %v2790
        %2795 = vrot.lane.b32.xlu0 %v2670, 16
        %v2796 = vpop.permute.xlu0 %2795
        %2797 = vrot.lane.b32.xlu0 %v2671, 16
        %v2798 = vpop.permute.xlu0 %2797
        %v2802 = vsel %vm1107, %v2791, 0
        %v2805 = vsel %vm1107, %v2792, 0
        %2807 = vmatprep.subr.mxu0 0.0
        %2808 = vmatpush1.msra.mxu0 0.0
        %2809 = vmatprep.subr.mxu0 0.0
        %2810 = vmatpush1.msra.mxu0 0.0
        %2811 = vmatprep.subr.mxu0 0.0
        %2812 = vmatpush1.msra.mxu0 0.0
        %2813 = vmatprep.subr.mxu0 0.0
        %2814 = vmatpush1.msra.mxu0 0.0
        %2815 = vmatprep.subr.mxu0 0.0
        %2816 = vmatpush1.msra.mxu0 0.0
        %2817 = vmatprep.subr.mxu0 0.0
        %2818 = vmatpush1.msra.mxu0 0.0
        %2819 = vmatprep.subr.mxu0 0.0
        %2820 = vmatpush1.msra.mxu0 0.0
        %2821 = vmatprep.subr.mxu0 0.0
        %2822 = vmatpush1.msra.mxu0 0.0
        %2823 = vmatprep.subr.mxu0 0.0
        %2824 = vmatpush1.msra.mxu0 0.0
        %2825 = vmatprep.subr.mxu0 0.0
        %2826 = vmatpush1.msra.mxu0 0.0
        %2827 = vmatprep.subr.mxu0 0.0
        %2828 = vmatpush1.msra.mxu0 0.0
        %2829 = vmatprep.subr.mxu0 0.0
        %2830 = vmatpush1.msra.mxu0 0.0
        %2831 = vmatprep.subr.mxu0 0.0
        %2832 = vmatpush1.msra.mxu0 0.0
        %2833 = vmatprep.subr.mxu0 0.0
        %2834 = vmatpush1.msra.mxu0 0.0
        %2835 = vmatprep.subr.mxu0 0.0
        %2836 = vmatpush1.msra.mxu0 %v2798
        %2837 = vmatprep.subr.mxu0 0.0
        %2838 = vmatpush1.msra.mxu0 %v2796
        %2839 = vmatprep.subr.mxu0 0.0
        %2840 = vmatpush2.msra.mxu0 0.0
        %2841 = vmatprep.subr.mxu0 0.0
        %2842 = vmatpush2.msra.mxu0 0.0
        %2843 = vmatprep.subr.mxu0 0.0
        %2844 = vmatpush2.msra.mxu0 0.0
        %2845 = vmatprep.subr.mxu0 0.0
        %2846 = vmatpush2.msra.mxu0 0.0
        %2847 = vmatprep.subr.mxu0 0.0
        %2848 = vmatpush2.msra.mxu0 0.0
        %2849 = vmatprep.subr.mxu0 0.0
        %2850 = vmatpush2.msra.mxu0 0.0
        %2851 = vmatprep.subr.mxu0 0.0
        %2852 = vmatpush2.msra.mxu0 0.0
        %2853 = vmatprep.subr.mxu0 0.0
        %2854 = vmatpush2.msra.mxu0 0.0
        %2855 = vmatprep.subr.mxu0 0.0
        %2856 = vmatpush2.msra.mxu0 0.0
        %2857 = vmatprep.subr.mxu0 0.0
        %2858 = vmatpush2.msra.mxu0 0.0
        %2859 = vmatprep.subr.mxu0 0.0
        %2860 = vmatpush2.msra.mxu0 0.0
        %2861 = vmatprep.subr.mxu0 0.0
        %2862 = vmatpush2.msra.mxu0 0.0
        %2863 = vmatprep.subr.mxu0 0.0
        %2864 = vmatpush2.msra.mxu0 0.0
        %2865 = vmatprep.subr.mxu0 0.0
        %2866 = vmatpush2.msra.mxu0 0.0
        %2867 = vmatprep.subr.mxu0 0.0
        %2868 = vmatpush2.msra.mxu0 0.0
        %2869 = vmatprep.subr.mxu0 0.0
        %2870 = vmatpush2.msra.mxu0 0.0
        %2871 = vmatprep.mubr.f32.mxu0 0.0
        %2872 = vmatmul.mubr.f32.gmra.mxu0 %v2802
        %v2873 = vpop.f32.mrf.mxu0
        %v2874 = vadd.f32 0.0, %v2873
        %v2875 = vpop.f32.mrf.mxu0
        %2876 = vmatprep.mubr.f32.mxu0 0.0
        %2877 = vmatmul.mubr.f32.gmra.mxu0 %v2805
        %v2878 = vpop.f32.mrf.mxu0
        %v2879 = vadd.f32 0.0, %v2878
        %v2880 = vpop.f32.mrf.mxu0
        %2881 = vdwg.mxu0
        %2884 = vrot.lane.b32.xlu0 %v2874, 112
        %v2885 = vpop.permute.xlu0 %2884
        %2886 = vrot.lane.b32.xlu0 %v2879, 112
        %v2887 = vpop.permute.xlu0 %2886
        %vm2890 = vcmask 1048448
        %2891 = vst.msk [vmem:[#allocation3] sm:$0xff] %vm2890, %v2885
        %2892 = vst.msk [vmem:[#allocation3 + $0x8] sm:$0xff] %vm2890, %v2887
        %v2893 = vld [vmem:[#allocation2 + $0x30] sm:$0xff]
        %v2894 = vld [vmem:[#allocation2 + $0x48] sm:$0xff]
        %v2895 = vld [vmem:[#allocation2 + $0x38] sm:$0xff]
        %v2896 = vld [vmem:[#allocation2 + $0x50] sm:$0xff]
        %v2897 = vld [vmem:[#allocation2 + $0x40] sm:$0xff]
        %v2898 = vld [vmem:[#allocation2 + $0x58] sm:$0xff]
        %v2900 = vsel %vm1107, %v2893, 0
        %v2903 = vsel %vm1107, %v2894, 0
        %v2906 = vsel %vm1107, %v2895, 0
        %v2909 = vsel %vm1107, %v2896, 0
        %2911 = vmatprep.subr.mxu0 0.0
        %2912 = vmatpush1.xpose.msra.mxu0 0.0
        %2913 = vmatprep.subr.mxu0 0.0
        %2914 = vmatpush1.xpose.msra.mxu0 0.0
        %2915 = vmatprep.subr.mxu0 0.0
        %2916 = vmatpush1.xpose.msra.mxu0 0.0
        %2917 = vmatprep.subr.mxu0 0.0
        %2918 = vmatpush1.xpose.msra.mxu0 0.0
        %2919 = vmatprep.subr.mxu0 0.0
        %2920 = vmatpush1.xpose.msra.mxu0 0.0
        %2921 = vmatprep.subr.mxu0 0.0
        %2922 = vmatpush1.xpose.msra.mxu0 0.0
        %2923 = vmatprep.subr.mxu0 0.0
        %2924 = vmatpush1.xpose.msra.mxu0 0.0
        %2925 = vmatprep.subr.mxu0 0.0
        %2926 = vmatpush1.xpose.msra.mxu0 0.0
        %2927 = vmatprep.subr.mxu0 0.0
        %2928 = vmatpush1.xpose.msra.mxu0 0.0
        %2929 = vmatprep.subr.mxu0 0.0
        %2930 = vmatpush1.xpose.msra.mxu0 0.0
        %2931 = vmatprep.subr.mxu0 0.0
        %2932 = vmatpush1.xpose.msra.mxu0 0.0
        %2933 = vmatprep.subr.mxu0 0.0
        %2934 = vmatpush1.xpose.msra.mxu0 0.0
        %2935 = vmatprep.subr.mxu0 0.0
        %2936 = vmatpush1.xpose.msra.mxu0 0.0
        %2937 = vmatprep.subr.mxu0 0.0
        %2938 = vmatpush1.xpose.msra.mxu0 0.0
        %2939 = vmatprep.subr.mxu0 0.0
        %2940 = vmatpush1.xpose.msra.mxu0 %v2909
        %2941 = vmatprep.subr.mxu0 0.0
        %2942 = vmatpush1.xpose.msra.mxu0 %v2906
        %2943 = vmatprep.subr.mxu0 0.0
        %2944 = vmatpush2.xpose.msra.mxu0 0.0
        %2945 = vmatprep.subr.mxu0 0.0
        %2946 = vmatpush2.xpose.msra.mxu0 0.0
        %2947 = vmatprep.subr.mxu0 0.0
        %2948 = vmatpush2.xpose.msra.mxu0 0.0
        %2949 = vmatprep.subr.mxu0 0.0
        %2950 = vmatpush2.xpose.msra.mxu0 0.0
        %2951 = vmatprep.subr.mxu0 0.0
        %2952 = vmatpush2.xpose.msra.mxu0 0.0
        %2953 = vmatprep.subr.mxu0 0.0
        %2954 = vmatpush2.xpose.msra.mxu0 0.0
        %2955 = vmatprep.subr.mxu0 0.0
        %2956 = vmatpush2.xpose.msra.mxu0 0.0
        %2957 = vmatprep.subr.mxu0 0.0
        %2958 = vmatpush2.xpose.msra.mxu0 0.0
        %2959 = vmatprep.subr.mxu0 0.0
        %2960 = vmatpush2.xpose.msra.mxu0 0.0
        %2961 = vmatprep.subr.mxu0 0.0
        %2962 = vmatpush2.xpose.msra.mxu0 0.0
        %2963 = vmatprep.subr.mxu0 0.0
        %2964 = vmatpush2.xpose.msra.mxu0 0.0
        %2965 = vmatprep.subr.mxu0 0.0
        %2966 = vmatpush2.xpose.msra.mxu0 0.0
        %2967 = vmatprep.subr.mxu0 0.0
        %2968 = vmatpush2.xpose.msra.mxu0 0.0
        %2969 = vmatprep.subr.mxu0 0.0
        %2970 = vmatpush2.xpose.msra.mxu0 0.0
        %2971 = vmatprep.subr.mxu0 0.0
        %2972 = vmatpush2.xpose.msra.mxu0 0.0
        %2973 = vmatprep.subr.mxu0 0.0
        %2974 = vmatpush2.xpose.msra.mxu0 0.0
        %2975 = vmatprep.mubr.f32.mxu0 0.0
        %2976 = vmatmul.mubr.f32.gmra.mxu0 %v2900
        %v2977 = vpop.f32.mrf.mxu0
        %v2978 = vadd.f32 0.0, %v2977
        %v2979 = vpop.f32.mrf.mxu0
        %2980 = vmatprep.mubr.f32.mxu0 0.0
        %2981 = vmatmul.mubr.f32.gmra.mxu0 %v2903
        %v2982 = vpop.f32.mrf.mxu0
        %v2983 = vadd.f32 0.0, %v2982
        %v2984 = vpop.f32.mrf.mxu0
        %2985 = vdwg.mxu0
        %v2986 = vmul.f32 %v2978, 0.25
        %v2987 = vmul.f32 %v2983, 0.25
        %v2988 = vsel %vm1099, %v2986, -1e+30
        %v2989 = vsel %vm1100, %v2987, -1e+30
        %v2990 = vsel %vm1107, %v2988, -inf
        %2991 = vmax.xlane.f32.xlu0 %v2990
        %v2992 = vpop.xlane.xlu0 %2991
        %v2993 = vsel %vm1107, %v2989, -inf
        %2994 = vmax.xlane.f32.xlu0 %v2993
        %v2995 = vpop.xlane.xlu0 %2994
        %v2996 = vsub.f32 %v2988, %v2992
        %v2997 = vsub.f32 %v2989, %v2995
        %v2998 = vmul.f32 %v2996, 1.442695
        %v2999 = vpow.pop %v2998
        %v3000 = vmul.f32 %v2997, 1.442695
        %v3001 = vpow.pop %v3000
        %v3002 = vsel %vm1107, %v2999, 0.0
        %3003 = vadd.xlane.f32.xlu0 %v3002
        %v3004 = vpop.xlane.xlu0 %3003
        %v3005 = vsel %vm1107, %v3001, 0.0
        %3006 = vadd.xlane.f32.xlu0 %v3005
        %v3007 = vpop.xlane.xlu0 %3006
        %v3008 = vrcp.pop %v3004
        %v3009 = vrcp.pop %v3007
        %v3010 = vmul.f32 %v2999, %v3008
        %v3011 = vmul.f32 %v3001, %v3009
        %v3013 = vsel %vm1107, %v3010, 0
        %v3016 = vsel %vm1107, %v3011, 0
        %3018 = vmatprep.subr.mxu0 0.0
        %3019 = vmatpush1.msra.mxu0 0.0
        %3020 = vmatprep.subr.mxu0 0.0
        %3021 = vmatpush1.msra.mxu0 0.0
        %3022 = vmatprep.subr.mxu0 0.0
        %3023 = vmatpush1.msra.mxu0 0.0
        %3024 = vmatprep.subr.mxu0 0.0
        %3025 = vmatpush1.msra.mxu0 0.0
        %3026 = vmatprep.subr.mxu0 0.0
        %3027 = vmatpush1.msra.mxu0 0.0
        %3028 = vmatprep.subr.mxu0 0.0
        %3029 = vmatpush1.msra.mxu0 0.0
        %3030 = vmatprep.subr.mxu0 0.0
        %3031 = vmatpush1.msra.mxu0 0.0
        %3032 = vmatprep.subr.mxu0 0.0
        %3033 = vmatpush1.msra.mxu0 0.0
        %3034 = vmatprep.subr.mxu0 0.0
        %3035 = vmatpush1.msra.mxu0 0.0
        %3036 = vmatprep.subr.mxu0 0.0
        %3037 = vmatpush1.msra.mxu0 0.0
        %3038 = vmatprep.subr.mxu0 0.0
        %3039 = vmatpush1.msra.mxu0 0.0
        %3040 = vmatprep.subr.mxu0 0.0
        %3041 = vmatpush1.msra.mxu0 0.0
        %3042 = vmatprep.subr.mxu0 0.0
        %3043 = vmatpush1.msra.mxu0 0.0
        %3044 = vmatprep.subr.mxu0 0.0
        %3045 = vmatpush1.msra.mxu0 0.0
        %3046 = vmatprep.subr.mxu0 0.0
        %3047 = vmatpush1.msra.mxu0 %v2898
        %3048 = vmatprep.subr.mxu0 0.0
        %3049 = vmatpush1.msra.mxu0 %v2897
        %3050 = vmatprep.subr.mxu0 0.0
        %3051 = vmatpush2.msra.mxu0 0.0
        %3052 = vmatprep.subr.mxu0 0.0
        %3053 = vmatpush2.msra.mxu0 0.0
        %3054 = vmatprep.subr.mxu0 0.0
        %3055 = vmatpush2.msra.mxu0 0.0
        %3056 = vmatprep.subr.mxu0 0.0
        %3057 = vmatpush2.msra.mxu0 0.0
        %3058 = vmatprep.subr.mxu0 0.0
        %3059 = vmatpush2.msra.mxu0 0.0
        %3060 = vmatprep.subr.mxu0 0.0
        %3061 = vmatpush2.msra.mxu0 0.0
        %3062 = vmatprep.subr.mxu0 0.0
        %3063 = vmatpush2.msra.mxu0 0.0
        %3064 = vmatprep.subr.mxu0 0.0
        %3065 = vmatpush2.msra.mxu0 0.0
        %3066 = vmatprep.subr.mxu0 0.0
        %3067 = vmatpush2.msra.mxu0 0.0
        %3068 = vmatprep.subr.mxu0 0.0
        %3069 = vmatpush2.msra.mxu0 0.0
        %3070 = vmatprep.subr.mxu0 0.0
        %3071 = vmatpush2.msra.mxu0 0.0
        %3072 = vmatprep.subr.mxu0 0.0
        %3073 = vmatpush2.msra.mxu0 0.0
        %3074 = vmatprep.subr.mxu0 0.0
        %3075 = vmatpush2.msra.mxu0 0.0
        %3076 = vmatprep.subr.mxu0 0.0
        %3077 = vmatpush2.msra.mxu0 0.0
        %3078 = vmatprep.subr.mxu0 0.0
        %3079 = vmatpush2.msra.mxu0 0.0
        %3080 = vmatprep.subr.mxu0 0.0
        %3081 = vmatpush2.msra.mxu0 0.0
        %3082 = vmatprep.mubr.f32.mxu0 0.0
        %3083 = vmatmul.mubr.f32.gmra.mxu0 %v3013
        %v3084 = vpop.f32.mrf.mxu0
        %v3085 = vadd.f32 0.0, %v3084
        %v3086 = vpop.f32.mrf.mxu0
        %3087 = vmatprep.mubr.f32.mxu0 0.0
        %3088 = vmatmul.mubr.f32.gmra.mxu0 %v3016
        %v3089 = vpop.f32.mrf.mxu0
        %v3090 = vadd.f32 0.0, %v3089
        %v3091 = vpop.f32.mrf.mxu0
        %3092 = vdwg.mxu0
        %3093 = vst.msk [vmem:[#allocation3 + $0x10] sm:$0xff] %vm1107, %v3085
        %3094 = vst.msk [vmem:[#allocation3 + $0x18] sm:$0xff] %vm1107, %v3090
        %v3095 = vld [vmem:[#allocation2 + $0x30] sm:$0xff]
        %v3096 = vld [vmem:[#allocation2 + $0x48] sm:$0xff]
        %v3097 = vld [vmem:[#allocation2 + $0x38] sm:$0xff]
        %v3098 = vld [vmem:[#allocation2 + $0x50] sm:$0xff]
        %v3099 = vld [vmem:[#allocation2 + $0x40] sm:$0xff]
        %v3100 = vld [vmem:[#allocation2 + $0x58] sm:$0xff]
        %3103 = vrot.lane.b32.xlu0 %v3095, 112
        %v3104 = vpop.permute.xlu0 %3103
        %3105 = vrot.lane.b32.xlu0 %v3096, 112
        %v3106 = vpop.permute.xlu0 %3105
        %3109 = vrot.lane.b32.xlu0 %v3097, 112
        %v3110 = vpop.permute.xlu0 %3109
        %3111 = vrot.lane.b32.xlu0 %v3098, 112
        %v3112 = vpop.permute.xlu0 %3111
        %v3113 = vsel %vm1107, %v3104, 0
        %v3115 = vsel %vm1107, %v3106, 0
        %v3117 = vsel %vm1107, %v3110, 0
        %v3119 = vsel %vm1107, %v3112, 0
        %3121 = vmatprep.subr.mxu0 0.0
        %3122 = vmatpush1.xpose.msra.mxu0 0.0
        %3123 = vmatprep.subr.mxu0 0.0
        %3124 = vmatpush1.xpose.msra.mxu0 0.0
        %3125 = vmatprep.subr.mxu0 0.0
        %3126 = vmatpush1.xpose.msra.mxu0 0.0
        %3127 = vmatprep.subr.mxu0 0.0
        %3128 = vmatpush1.xpose.msra.mxu0 0.0
        %3129 = vmatprep.subr.mxu0 0.0
        %3130 = vmatpush1.xpose.msra.mxu0 0.0
        %3131 = vmatprep.subr.mxu0 0.0
        %3132 = vmatpush1.xpose.msra.mxu0 0.0
        %3133 = vmatprep.subr.mxu0 0.0
        %3134 = vmatpush1.xpose.msra.mxu0 0.0
        %3135 = vmatprep.subr.mxu0 0.0
        %3136 = vmatpush1.xpose.msra.mxu0 0.0
        %3137 = vmatprep.subr.mxu0 0.0
        %3138 = vmatpush1.xpose.msra.mxu0 0.0
        %3139 = vmatprep.subr.mxu0 0.0
        %3140 = vmatpush1.xpose.msra.mxu0 0.0
        %3141 = vmatprep.subr.mxu0 0.0
        %3142 = vmatpush1.xpose.msra.mxu0 0.0
        %3143 = vmatprep.subr.mxu0 0.0
        %3144 = vmatpush1.xpose.msra.mxu0 0.0
        %3145 = vmatprep.subr.mxu0 0.0
        %3146 = vmatpush1.xpose.msra.mxu0 0.0
        %3147 = vmatprep.subr.mxu0 0.0
        %3148 = vmatpush1.xpose.msra.mxu0 0.0
        %3149 = vmatprep.subr.mxu0 0.0
        %3150 = vmatpush1.xpose.msra.mxu0 %v3119
        %3151 = vmatprep.subr.mxu0 0.0
        %3152 = vmatpush1.xpose.msra.mxu0 %v3117
        %3153 = vmatprep.subr.mxu0 0.0
        %3154 = vmatpush2.xpose.msra.mxu0 0.0
        %3155 = vmatprep.subr.mxu0 0.0
        %3156 = vmatpush2.xpose.msra.mxu0 0.0
        %3157 = vmatprep.subr.mxu0 0.0
        %3158 = vmatpush2.xpose.msra.mxu0 0.0
        %3159 = vmatprep.subr.mxu0 0.0
        %3160 = vmatpush2.xpose.msra.mxu0 0.0
        %3161 = vmatprep.subr.mxu0 0.0
        %3162 = vmatpush2.xpose.msra.mxu0 0.0
        %3163 = vmatprep.subr.mxu0 0.0
        %3164 = vmatpush2.xpose.msra.mxu0 0.0
        %3165 = vmatprep.subr.mxu0 0.0
        %3166 = vmatpush2.xpose.msra.mxu0 0.0
        %3167 = vmatprep.subr.mxu0 0.0
        %3168 = vmatpush2.xpose.msra.mxu0 0.0
        %3169 = vmatprep.subr.mxu0 0.0
        %3170 = vmatpush2.xpose.msra.mxu0 0.0
        %3171 = vmatprep.subr.mxu0 0.0
        %3172 = vmatpush2.xpose.msra.mxu0 0.0
        %3173 = vmatprep.subr.mxu0 0.0
        %3174 = vmatpush2.xpose.msra.mxu0 0.0
        %3175 = vmatprep.subr.mxu0 0.0
        %3176 = vmatpush2.xpose.msra.mxu0 0.0
        %3177 = vmatprep.subr.mxu0 0.0
        %3178 = vmatpush2.xpose.msra.mxu0 0.0
        %3179 = vmatprep.subr.mxu0 0.0
        %3180 = vmatpush2.xpose.msra.mxu0 0.0
        %3181 = vmatprep.subr.mxu0 0.0
        %3182 = vmatpush2.xpose.msra.mxu0 0.0
        %3183 = vmatprep.subr.mxu0 0.0
        %3184 = vmatpush2.xpose.msra.mxu0 0.0
        %3185 = vmatprep.mubr.f32.mxu0 0.0
        %3186 = vmatmul.mubr.f32.gmra.mxu0 %v3113
        %v3187 = vpop.f32.mrf.mxu0
        %v3188 = vadd.f32 0.0, %v3187
        %v3189 = vpop.f32.mrf.mxu0
        %3190 = vmatprep.mubr.f32.mxu0 0.0
        %3191 = vmatmul.mubr.f32.gmra.mxu0 %v3115
        %v3192 = vpop.f32.mrf.mxu0
        %v3193 = vadd.f32 0.0, %v3192
        %v3194 = vpop.f32.mrf.mxu0
        %3195 = vdwg.mxu0
        %v3196 = vmul.f32 %v3188, 0.25
        %v3197 = vmul.f32 %v3193, 0.25
        %v3198 = vsel %vm1099, %v3196, -1e+30
        %v3199 = vsel %vm1100, %v3197, -1e+30
        %v3200 = vsel %vm1107, %v3198, -inf
        %3201 = vmax.xlane.f32.xlu0 %v3200
        %v3202 = vpop.xlane.xlu0 %3201
        %v3203 = vsel %vm1107, %v3199, -inf
        %3204 = vmax.xlane.f32.xlu0 %v3203
        %v3205 = vpop.xlane.xlu0 %3204
        %v3206 = vsub.f32 %v3198, %v3202
        %v3207 = vsub.f32 %v3199, %v3205
        %v3208 = vmul.f32 %v3206, 1.442695
        %v3209 = vpow.pop %v3208
        %v3210 = vmul.f32 %v3207, 1.442695
        %v3211 = vpow.pop %v3210
        %v3212 = vsel %vm1107, %v3209, 0.0
        %3213 = vadd.xlane.f32.xlu0 %v3212
        %v3214 = vpop.xlane.xlu0 %3213
        %v3215 = vsel %vm1107, %v3211, 0.0
        %3216 = vadd.xlane.f32.xlu0 %v3215
        %v3217 = vpop.xlane.xlu0 %3216
        %v3218 = vrcp.pop %v3214
        %v3219 = vrcp.pop %v3217
        %v3220 = vmul.f32 %v3209, %v3218
        %v3221 = vmul.f32 %v3211, %v3219
        %3224 = vrot.lane.b32.xlu0 %v3099, 112
        %v3225 = vpop.permute.xlu0 %3224
        %3226 = vrot.lane.b32.xlu0 %v3100, 112
        %v3227 = vpop.permute.xlu0 %3226
        %v3231 = vsel %vm1107, %v3220, 0
        %v3234 = vsel %vm1107, %v3221, 0
        %3236 = vmatprep.subr.mxu0 0.0
        %3237 = vmatpush1.msra.mxu0 0.0
        %3238 = vmatprep.subr.mxu0 0.0
        %3239 = vmatpush1.msra.mxu0 0.0
        %3240 = vmatprep.subr.mxu0 0.0
        %3241 = vmatpush1.msra.mxu0 0.0
        %3242 = vmatprep.subr.mxu0 0.0
        %3243 = vmatpush1.msra.mxu0 0.0
        %3244 = vmatprep.subr.mxu0 0.0
        %3245 = vmatpush1.msra.mxu0 0.0
        %3246 = vmatprep.subr.mxu0 0.0
        %3247 = vmatpush1.msra.mxu0 0.0
        %3248 = vmatprep.subr.mxu0 0.0
        %3249 = vmatpush1.msra.mxu0 0.0
        %3250 = vmatprep.subr.mxu0 0.0
        %3251 = vmatpush1.msra.mxu0 0.0
        %3252 = vmatprep.subr.mxu0 0.0
        %3253 = vmatpush1.msra.mxu0 0.0
        %3254 = vmatprep.subr.mxu0 0.0
        %3255 = vmatpush1.msra.mxu0 0.0
        %3256 = vmatprep.subr.mxu0 0.0
        %3257 = vmatpush1.msra.mxu0 0.0
        %3258 = vmatprep.subr.mxu0 0.0
        %3259 = vmatpush1.msra.mxu0 0.0
        %3260 = vmatprep.subr.mxu0 0.0
        %3261 = vmatpush1.msra.mxu0 0.0
        %3262 = vmatprep.subr.mxu0 0.0
        %3263 = vmatpush1.msra.mxu0 0.0
        %3264 = vmatprep.subr.mxu0 0.0
        %3265 = vmatpush1.msra.mxu0 %v3227
        %3266 = vmatprep.subr.mxu0 0.0
        %3267 = vmatpush1.msra.mxu0 %v3225
        %3268 = vmatprep.subr.mxu0 0.0
        %3269 = vmatpush2.msra.mxu0 0.0
        %3270 = vmatprep.subr.mxu0 0.0
        %3271 = vmatpush2.msra.mxu0 0.0
        %3272 = vmatprep.subr.mxu0 0.0
        %3273 = vmatpush2.msra.mxu0 0.0
        %3274 = vmatprep.subr.mxu0 0.0
        %3275 = vmatpush2.msra.mxu0 0.0
        %3276 = vmatprep.subr.mxu0 0.0
        %3277 = vmatpush2.msra.mxu0 0.0
        %3278 = vmatprep.subr.mxu0 0.0
        %3279 = vmatpush2.msra.mxu0 0.0
        %3280 = vmatprep.subr.mxu0 0.0
        %3281 = vmatpush2.msra.mxu0 0.0
        %3282 = vmatprep.subr.mxu0 0.0
        %3283 = vmatpush2.msra.mxu0 0.0
        %3284 = vmatprep.subr.mxu0 0.0
        %3285 = vmatpush2.msra.mxu0 0.0
        %3286 = vmatprep.subr.mxu0 0.0
        %3287 = vmatpush2.msra.mxu0 0.0
        %3288 = vmatprep.subr.mxu0 0.0
        %3289 = vmatpush2.msra.mxu0 0.0
        %3290 = vmatprep.subr.mxu0 0.0
        %3291 = vmatpush2.msra.mxu0 0.0
        %3292 = vmatprep.subr.mxu0 0.0
        %3293 = vmatpush2.msra.mxu0 0.0
        %3294 = vmatprep.subr.mxu0 0.0
        %3295 = vmatpush2.msra.mxu0 0.0
        %3296 = vmatprep.subr.mxu0 0.0
        %3297 = vmatpush2.msra.mxu0 0.0
        %3298 = vmatprep.subr.mxu0 0.0
        %3299 = vmatpush2.msra.mxu0 0.0
        %3300 = vmatprep.mubr.f32.mxu0 0.0
        %3301 = vmatmul.mubr.f32.gmra.mxu0 %v3231
        %v3302 = vpop.f32.mrf.mxu0
        %v3303 = vadd.f32 0.0, %v3302
        %v3304 = vpop.f32.mrf.mxu0
        %3305 = vmatprep.mubr.f32.mxu0 0.0
        %3306 = vmatmul.mubr.f32.gmra.mxu0 %v3234
        %v3307 = vpop.f32.mrf.mxu0
        %v3308 = vadd.f32 0.0, %v3307
        %v3309 = vpop.f32.mrf.mxu0
        %3310 = vdwg.mxu0
        %3313 = vrot.lane.b32.xlu0 %v3303, 16
        %v3314 = vpop.permute.xlu0 %3313
        %3315 = vrot.lane.b32.xlu0 %v3308, 16
        %v3316 = vpop.permute.xlu0 %3315
        %3319 = vst.msk [vmem:[#allocation3 + $0x10] sm:$0xff] %vm1528, %v3314
        %3320 = vst.msk [vmem:[#allocation3 + $0x18] sm:$0xff] %vm1528, %v3316
        %v3321 = vld [vmem:[#allocation2 + $0x30] sm:$0xff]
        %v3322 = vld [vmem:[#allocation2 + $0x48] sm:$0xff]
        %v3323 = vld [vmem:[#allocation2 + $0x38] sm:$0xff]
        %v3324 = vld [vmem:[#allocation2 + $0x50] sm:$0xff]
        %v3325 = vld [vmem:[#allocation2 + $0x40] sm:$0xff]
        %v3326 = vld [vmem:[#allocation2 + $0x58] sm:$0xff]
        %3329 = vrot.lane.b32.xlu0 %v3321, 96
        %v3330 = vpop.permute.xlu0 %3329
        %3331 = vrot.lane.b32.xlu0 %v3322, 96
        %v3332 = vpop.permute.xlu0 %3331
        %3335 = vrot.lane.b32.xlu0 %v3323, 96
        %v3336 = vpop.permute.xlu0 %3335
        %3337 = vrot.lane.b32.xlu0 %v3324, 96
        %v3338 = vpop.permute.xlu0 %3337
        %v3339 = vsel %vm1107, %v3330, 0
        %v3341 = vsel %vm1107, %v3332, 0
        %v3343 = vsel %vm1107, %v3336, 0
        %v3345 = vsel %vm1107, %v3338, 0
        %3347 = vmatprep.subr.mxu0 0.0
        %3348 = vmatpush1.xpose.msra.mxu0 0.0
        %3349 = vmatprep.subr.mxu0 0.0
        %3350 = vmatpush1.xpose.msra.mxu0 0.0
        %3351 = vmatprep.subr.mxu0 0.0
        %3352 = vmatpush1.xpose.msra.mxu0 0.0
        %3353 = vmatprep.subr.mxu0 0.0
        %3354 = vmatpush1.xpose.msra.mxu0 0.0
        %3355 = vmatprep.subr.mxu0 0.0
        %3356 = vmatpush1.xpose.msra.mxu0 0.0
        %3357 = vmatprep.subr.mxu0 0.0
        %3358 = vmatpush1.xpose.msra.mxu0 0.0
        %3359 = vmatprep.subr.mxu0 0.0
        %3360 = vmatpush1.xpose.msra.mxu0 0.0
        %3361 = vmatprep.subr.mxu0 0.0
        %3362 = vmatpush1.xpose.msra.mxu0 0.0
        %3363 = vmatprep.subr.mxu0 0.0
        %3364 = vmatpush1.xpose.msra.mxu0 0.0
        %3365 = vmatprep.subr.mxu0 0.0
        %3366 = vmatpush1.xpose.msra.mxu0 0.0
        %3367 = vmatprep.subr.mxu0 0.0
        %3368 = vmatpush1.xpose.msra.mxu0 0.0
        %3369 = vmatprep.subr.mxu0 0.0
        %3370 = vmatpush1.xpose.msra.mxu0 0.0
        %3371 = vmatprep.subr.mxu0 0.0
        %3372 = vmatpush1.xpose.msra.mxu0 0.0
        %3373 = vmatprep.subr.mxu0 0.0
        %3374 = vmatpush1.xpose.msra.mxu0 0.0
        %3375 = vmatprep.subr.mxu0 0.0
        %3376 = vmatpush1.xpose.msra.mxu0 %v3345
        %3377 = vmatprep.subr.mxu0 0.0
        %3378 = vmatpush1.xpose.msra.mxu0 %v3343
        %3379 = vmatprep.subr.mxu0 0.0
        %3380 = vmatpush2.xpose.msra.mxu0 0.0
        %3381 = vmatprep.subr.mxu0 0.0
        %3382 = vmatpush2.xpose.msra.mxu0 0.0
        %3383 = vmatprep.subr.mxu0 0.0
        %3384 = vmatpush2.xpose.msra.mxu0 0.0
        %3385 = vmatprep.subr.mxu0 0.0
        %3386 = vmatpush2.xpose.msra.mxu0 0.0
        %3387 = vmatprep.subr.mxu0 0.0
        %3388 = vmatpush2.xpose.msra.mxu0 0.0
        %3389 = vmatprep.subr.mxu0 0.0
        %3390 = vmatpush2.xpose.msra.mxu0 0.0
        %3391 = vmatprep.subr.mxu0 0.0
        %3392 = vmatpush2.xpose.msra.mxu0 0.0
        %3393 = vmatprep.subr.mxu0 0.0
        %3394 = vmatpush2.xpose.msra.mxu0 0.0
        %3395 = vmatprep.subr.mxu0 0.0
        %3396 = vmatpush2.xpose.msra.mxu0 0.0
        %3397 = vmatprep.subr.mxu0 0.0
        %3398 = vmatpush2.xpose.msra.mxu0 0.0
        %3399 = vmatprep.subr.mxu0 0.0
        %3400 = vmatpush2.xpose.msra.mxu0 0.0
        %3401 = vmatprep.subr.mxu0 0.0
        %3402 = vmatpush2.xpose.msra.mxu0 0.0
        %3403 = vmatprep.subr.mxu0 0.0
        %3404 = vmatpush2.xpose.msra.mxu0 0.0
        %3405 = vmatprep.subr.mxu0 0.0
        %3406 = vmatpush2.xpose.msra.mxu0 0.0
        %3407 = vmatprep.subr.mxu0 0.0
        %3408 = vmatpush2.xpose.msra.mxu0 0.0
        %3409 = vmatprep.subr.mxu0 0.0
        %3410 = vmatpush2.xpose.msra.mxu0 0.0
        %3411 = vmatprep.mubr.f32.mxu0 0.0
        %3412 = vmatmul.mubr.f32.gmra.mxu0 %v3339
        %v3413 = vpop.f32.mrf.mxu0
        %v3414 = vadd.f32 0.0, %v3413
        %v3415 = vpop.f32.mrf.mxu0
        %3416 = vmatprep.mubr.f32.mxu0 0.0
        %3417 = vmatmul.mubr.f32.gmra.mxu0 %v3341
        %v3418 = vpop.f32.mrf.mxu0
        %v3419 = vadd.f32 0.0, %v3418
        %v3420 = vpop.f32.mrf.mxu0
        %3421 = vdwg.mxu0
        %v3422 = vmul.f32 %v3414, 0.25
        %v3423 = vmul.f32 %v3419, 0.25
        %v3424 = vsel %vm1099, %v3422, -1e+30
        %v3425 = vsel %vm1100, %v3423, -1e+30
        %v3426 = vsel %vm1107, %v3424, -inf
        %3427 = vmax.xlane.f32.xlu0 %v3426
        %v3428 = vpop.xlane.xlu0 %3427
        %v3429 = vsel %vm1107, %v3425, -inf
        %3430 = vmax.xlane.f32.xlu0 %v3429
        %v3431 = vpop.xlane.xlu0 %3430
        %v3432 = vsub.f32 %v3424, %v3428
        %v3433 = vsub.f32 %v3425, %v3431
        %v3434 = vmul.f32 %v3432, 1.442695
        %v3435 = vpow.pop %v3434
        %v3436 = vmul.f32 %v3433, 1.442695
        %v3437 = vpow.pop %v3436
        %v3438 = vsel %vm1107, %v3435, 0.0
        %3439 = vadd.xlane.f32.xlu0 %v3438
        %v3440 = vpop.xlane.xlu0 %3439
        %v3441 = vsel %vm1107, %v3437, 0.0
        %3442 = vadd.xlane.f32.xlu0 %v3441
        %v3443 = vpop.xlane.xlu0 %3442
        %v3444 = vrcp.pop %v3440
        %v3445 = vrcp.pop %v3443
        %v3446 = vmul.f32 %v3435, %v3444
        %v3447 = vmul.f32 %v3437, %v3445
        %3450 = vrot.lane.b32.xlu0 %v3325, 96
        %v3451 = vpop.permute.xlu0 %3450
        %3452 = vrot.lane.b32.xlu0 %v3326, 96
        %v3453 = vpop.permute.xlu0 %3452
        %v3457 = vsel %vm1107, %v3446, 0
        %v3460 = vsel %vm1107, %v3447, 0
        %3462 = vmatprep.subr.mxu0 0.0
        %3463 = vmatpush1.msra.mxu0 0.0
        %3464 = vmatprep.subr.mxu0 0.0
        %3465 = vmatpush1.msra.mxu0 0.0
        %3466 = vmatprep.subr.mxu0 0.0
        %3467 = vmatpush1.msra.mxu0 0.0
        %3468 = vmatprep.subr.mxu0 0.0
        %3469 = vmatpush1.msra.mxu0 0.0
        %3470 = vmatprep.subr.mxu0 0.0
        %3471 = vmatpush1.msra.mxu0 0.0
        %3472 = vmatprep.subr.mxu0 0.0
        %3473 = vmatpush1.msra.mxu0 0.0
        %3474 = vmatprep.subr.mxu0 0.0
        %3475 = vmatpush1.msra.mxu0 0.0
        %3476 = vmatprep.subr.mxu0 0.0
        %3477 = vmatpush1.msra.mxu0 0.0
        %3478 = vmatprep.subr.mxu0 0.0
        %3479 = vmatpush1.msra.mxu0 0.0
        %3480 = vmatprep.subr.mxu0 0.0
        %3481 = vmatpush1.msra.mxu0 0.0
        %3482 = vmatprep.subr.mxu0 0.0
        %3483 = vmatpush1.msra.mxu0 0.0
        %3484 = vmatprep.subr.mxu0 0.0
        %3485 = vmatpush1.msra.mxu0 0.0
        %3486 = vmatprep.subr.mxu0 0.0
        %3487 = vmatpush1.msra.mxu0 0.0
        %3488 = vmatprep.subr.mxu0 0.0
        %3489 = vmatpush1.msra.mxu0 0.0
        %3490 = vmatprep.subr.mxu0 0.0
        %3491 = vmatpush1.msra.mxu0 %v3453
        %3492 = vmatprep.subr.mxu0 0.0
        %3493 = vmatpush1.msra.mxu0 %v3451
        %3494 = vmatprep.subr.mxu0 0.0
        %3495 = vmatpush2.msra.mxu0 0.0
        %3496 = vmatprep.subr.mxu0 0.0
        %3497 = vmatpush2.msra.mxu0 0.0
        %3498 = vmatprep.subr.mxu0 0.0
        %3499 = vmatpush2.msra.mxu0 0.0
        %3500 = vmatprep.subr.mxu0 0.0
        %3501 = vmatpush2.msra.mxu0 0.0
        %3502 = vmatprep.subr.mxu0 0.0
        %3503 = vmatpush2.msra.mxu0 0.0
        %3504 = vmatprep.subr.mxu0 0.0
        %3505 = vmatpush2.msra.mxu0 0.0
        %3506 = vmatprep.subr.mxu0 0.0
        %3507 = vmatpush2.msra.mxu0 0.0
        %3508 = vmatprep.subr.mxu0 0.0
        %3509 = vmatpush2.msra.mxu0 0.0
        %3510 = vmatprep.subr.mxu0 0.0
        %3511 = vmatpush2.msra.mxu0 0.0
        %3512 = vmatprep.subr.mxu0 0.0
        %3513 = vmatpush2.msra.mxu0 0.0
        %3514 = vmatprep.subr.mxu0 0.0
        %3515 = vmatpush2.msra.mxu0 0.0
        %3516 = vmatprep.subr.mxu0 0.0
        %3517 = vmatpush2.msra.mxu0 0.0
        %3518 = vmatprep.subr.mxu0 0.0
        %3519 = vmatpush2.msra.mxu0 0.0
        %3520 = vmatprep.subr.mxu0 0.0
        %3521 = vmatpush2.msra.mxu0 0.0
        %3522 = vmatprep.subr.mxu0 0.0
        %3523 = vmatpush2.msra.mxu0 0.0
        %3524 = vmatprep.subr.mxu0 0.0
        %3525 = vmatpush2.msra.mxu0 0.0
        %3526 = vmatprep.mubr.f32.mxu0 0.0
        %3527 = vmatmul.mubr.f32.gmra.mxu0 %v3457
        %v3528 = vpop.f32.mrf.mxu0
        %v3529 = vadd.f32 0.0, %v3528
        %v3530 = vpop.f32.mrf.mxu0
        %3531 = vmatprep.mubr.f32.mxu0 0.0
        %3532 = vmatmul.mubr.f32.gmra.mxu0 %v3460
        %v3533 = vpop.f32.mrf.mxu0
        %v3534 = vadd.f32 0.0, %v3533
        %v3535 = vpop.f32.mrf.mxu0
        %3536 = vdwg.mxu0
        %3539 = vrot.lane.b32.xlu0 %v3529, 32
        %v3540 = vpop.permute.xlu0 %3539
        %3541 = vrot.lane.b32.xlu0 %v3534, 32
        %v3542 = vpop.permute.xlu0 %3541
        %3545 = vst.msk [vmem:[#allocation3 + $0x10] sm:$0xff] %vm1755, %v3540
        %3546 = vst.msk [vmem:[#allocation3 + $0x18] sm:$0xff] %vm1755, %v3542
        %v3547 = vld [vmem:[#allocation2 + $0x30] sm:$0xff]
        %v3548 = vld [vmem:[#allocation2 + $0x48] sm:$0xff]
        %v3549 = vld [vmem:[#allocation2 + $0x38] sm:$0xff]
        %v3550 = vld [vmem:[#allocation2 + $0x50] sm:$0xff]
        %v3551 = vld [vmem:[#allocation2 + $0x40] sm:$0xff]
        %v3552 = vld [vmem:[#allocation2 + $0x58] sm:$0xff]
        %3555 = vrot.lane.b32.xlu0 %v3547, 80
        %v3556 = vpop.permute.xlu0 %3555
        %3557 = vrot.lane.b32.xlu0 %v3548, 80
        %v3558 = vpop.permute.xlu0 %3557
        %3561 = vrot.lane.b32.xlu0 %v3549, 80
        %v3562 = vpop.permute.xlu0 %3561
        %3563 = vrot.lane.b32.xlu0 %v3550, 80
        %v3564 = vpop.permute.xlu0 %3563
        %v3565 = vsel %vm1107, %v3556, 0
        %v3567 = vsel %vm1107, %v3558, 0
        %v3569 = vsel %vm1107, %v3562, 0
        %v3571 = vsel %vm1107, %v3564, 0
        %3573 = vmatprep.subr.mxu0 0.0
        %3574 = vmatpush1.xpose.msra.mxu0 0.0
        %3575 = vmatprep.subr.mxu0 0.0
        %3576 = vmatpush1.xpose.msra.mxu0 0.0
        %3577 = vmatprep.subr.mxu0 0.0
        %3578 = vmatpush1.xpose.msra.mxu0 0.0
        %3579 = vmatprep.subr.mxu0 0.0
        %3580 = vmatpush1.xpose.msra.mxu0 0.0
        %3581 = vmatprep.subr.mxu0 0.0
        %3582 = vmatpush1.xpose.msra.mxu0 0.0
        %3583 = vmatprep.subr.mxu0 0.0
        %3584 = vmatpush1.xpose.msra.mxu0 0.0
        %3585 = vmatprep.subr.mxu0 0.0
        %3586 = vmatpush1.xpose.msra.mxu0 0.0
        %3587 = vmatprep.subr.mxu0 0.0
        %3588 = vmatpush1.xpose.msra.mxu0 0.0
        %3589 = vmatprep.subr.mxu0 0.0
        %3590 = vmatpush1.xpose.msra.mxu0 0.0
        %3591 = vmatprep.subr.mxu0 0.0
        %3592 = vmatpush1.xpose.msra.mxu0 0.0
        %3593 = vmatprep.subr.mxu0 0.0
        %3594 = vmatpush1.xpose.msra.mxu0 0.0
        %3595 = vmatprep.subr.mxu0 0.0
        %3596 = vmatpush1.xpose.msra.mxu0 0.0
        %3597 = vmatprep.subr.mxu0 0.0
        %3598 = vmatpush1.xpose.msra.mxu0 0.0
        %3599 = vmatprep.subr.mxu0 0.0
        %3600 = vmatpush1.xpose.msra.mxu0 0.0
        %3601 = vmatprep.subr.mxu0 0.0
        %3602 = vmatpush1.xpose.msra.mxu0 %v3571
        %3603 = vmatprep.subr.mxu0 0.0
        %3604 = vmatpush1.xpose.msra.mxu0 %v3569
        %3605 = vmatprep.subr.mxu0 0.0
        %3606 = vmatpush2.xpose.msra.mxu0 0.0
        %3607 = vmatprep.subr.mxu0 0.0
        %3608 = vmatpush2.xpose.msra.mxu0 0.0
        %3609 = vmatprep.subr.mxu0 0.0
        %3610 = vmatpush2.xpose.msra.mxu0 0.0
        %3611 = vmatprep.subr.mxu0 0.0
        %3612 = vmatpush2.xpose.msra.mxu0 0.0
        %3613 = vmatprep.subr.mxu0 0.0
        %3614 = vmatpush2.xpose.msra.mxu0 0.0
        %3615 = vmatprep.subr.mxu0 0.0
        %3616 = vmatpush2.xpose.msra.mxu0 0.0
        %3617 = vmatprep.subr.mxu0 0.0
        %3618 = vmatpush2.xpose.msra.mxu0 0.0
        %3619 = vmatprep.subr.mxu0 0.0
        %3620 = vmatpush2.xpose.msra.mxu0 0.0
        %3621 = vmatprep.subr.mxu0 0.0
        %3622 = vmatpush2.xpose.msra.mxu0 0.0
        %3623 = vmatprep.subr.mxu0 0.0
        %3624 = vmatpush2.xpose.msra.mxu0 0.0
        %3625 = vmatprep.subr.mxu0 0.0
        %3626 = vmatpush2.xpose.msra.mxu0 0.0
        %3627 = vmatprep.subr.mxu0 0.0
        %3628 = vmatpush2.xpose.msra.mxu0 0.0
        %3629 = vmatprep.subr.mxu0 0.0
        %3630 = vmatpush2.xpose.msra.mxu0 0.0
        %3631 = vmatprep.subr.mxu0 0.0
        %3632 = vmatpush2.xpose.msra.mxu0 0.0
        %3633 = vmatprep.subr.mxu0 0.0
        %3634 = vmatpush2.xpose.msra.mxu0 0.0
        %3635 = vmatprep.subr.mxu0 0.0
        %3636 = vmatpush2.xpose.msra.mxu0 0.0
        %3637 = vmatprep.mubr.f32.mxu0 0.0
        %3638 = vmatmul.mubr.f32.gmra.mxu0 %v3565
        %v3639 = vpop.f32.mrf.mxu0
        %v3640 = vadd.f32 0.0, %v3639
        %v3641 = vpop.f32.mrf.mxu0
        %3642 = vmatprep.mubr.f32.mxu0 0.0
        %3643 = vmatmul.mubr.f32.gmra.mxu0 %v3567
        %v3644 = vpop.f32.mrf.mxu0
        %v3645 = vadd.f32 0.0, %v3644
        %v3646 = vpop.f32.mrf.mxu0
        %3647 = vdwg.mxu0
        %v3648 = vmul.f32 %v3640, 0.25
        %v3649 = vmul.f32 %v3645, 0.25
        %v3650 = vsel %vm1099, %v3648, -1e+30
        %v3651 = vsel %vm1100, %v3649, -1e+30
        %v3652 = vsel %vm1107, %v3650, -inf
        %3653 = vmax.xlane.f32.xlu0 %v3652
        %v3654 = vpop.xlane.xlu0 %3653
        %v3655 = vsel %vm1107, %v3651, -inf
        %3656 = vmax.xlane.f32.xlu0 %v3655
        %v3657 = vpop.xlane.xlu0 %3656
        %v3658 = vsub.f32 %v3650, %v3654
        %v3659 = vsub.f32 %v3651, %v3657
        %v3660 = vmul.f32 %v3658, 1.442695
        %v3661 = vpow.pop %v3660
        %v3662 = vmul.f32 %v3659, 1.442695
        %v3663 = vpow.pop %v3662
        %v3664 = vsel %vm1107, %v3661, 0.0
        %3665 = vadd.xlane.f32.xlu0 %v3664
        %v3666 = vpop.xlane.xlu0 %3665
        %v3667 = vsel %vm1107, %v3663, 0.0
        %3668 = vadd.xlane.f32.xlu0 %v3667
        %v3669 = vpop.xlane.xlu0 %3668
        %v3670 = vrcp.pop %v3666
        %v3671 = vrcp.pop %v3669
        %v3672 = vmul.f32 %v3661, %v3670
        %v3673 = vmul.f32 %v3663, %v3671
        %3676 = vrot.lane.b32.xlu0 %v3551, 80
        %v3677 = vpop.permute.xlu0 %3676
        %3678 = vrot.lane.b32.xlu0 %v3552, 80
        %v3679 = vpop.permute.xlu0 %3678
        %v3683 = vsel %vm1107, %v3672, 0
        %v3686 = vsel %vm1107, %v3673, 0
        %3688 = vmatprep.subr.mxu0 0.0
        %3689 = vmatpush1.msra.mxu0 0.0
        %3690 = vmatprep.subr.mxu0 0.0
        %3691 = vmatpush1.msra.mxu0 0.0
        %3692 = vmatprep.subr.mxu0 0.0
        %3693 = vmatpush1.msra.mxu0 0.0
        %3694 = vmatprep.subr.mxu0 0.0
        %3695 = vmatpush1.msra.mxu0 0.0
        %3696 = vmatprep.subr.mxu0 0.0
        %3697 = vmatpush1.msra.mxu0 0.0
        %3698 = vmatprep.subr.mxu0 0.0
        %3699 = vmatpush1.msra.mxu0 0.0
        %3700 = vmatprep.subr.mxu0 0.0
        %3701 = vmatpush1.msra.mxu0 0.0
        %3702 = vmatprep.subr.mxu0 0.0
        %3703 = vmatpush1.msra.mxu0 0.0
        %3704 = vmatprep.subr.mxu0 0.0
        %3705 = vmatpush1.msra.mxu0 0.0
        %3706 = vmatprep.subr.mxu0 0.0
        %3707 = vmatpush1.msra.mxu0 0.0
        %3708 = vmatprep.subr.mxu0 0.0
        %3709 = vmatpush1.msra.mxu0 0.0
        %3710 = vmatprep.subr.mxu0 0.0
        %3711 = vmatpush1.msra.mxu0 0.0
        %3712 = vmatprep.subr.mxu0 0.0
        %3713 = vmatpush1.msra.mxu0 0.0
        %3714 = vmatprep.subr.mxu0 0.0
        %3715 = vmatpush1.msra.mxu0 0.0
        %3716 = vmatprep.subr.mxu0 0.0
        %3717 = vmatpush1.msra.mxu0 %v3679
        %3718 = vmatprep.subr.mxu0 0.0
        %3719 = vmatpush1.msra.mxu0 %v3677
        %3720 = vmatprep.subr.mxu0 0.0
        %3721 = vmatpush2.msra.mxu0 0.0
        %3722 = vmatprep.subr.mxu0 0.0
        %3723 = vmatpush2.msra.mxu0 0.0
        %3724 = vmatprep.subr.mxu0 0.0
        %3725 = vmatpush2.msra.mxu0 0.0
        %3726 = vmatprep.subr.mxu0 0.0
        %3727 = vmatpush2.msra.mxu0 0.0
        %3728 = vmatprep.subr.mxu0 0.0
        %3729 = vmatpush2.msra.mxu0 0.0
        %3730 = vmatprep.subr.mxu0 0.0
        %3731 = vmatpush2.msra.mxu0 0.0
        %3732 = vmatprep.subr.mxu0 0.0
        %3733 = vmatpush2.msra.mxu0 0.0
        %3734 = vmatprep.subr.mxu0 0.0
        %3735 = vmatpush2.msra.mxu0 0.0
        %3736 = vmatprep.subr.mxu0 0.0
        %3737 = vmatpush2.msra.mxu0 0.0
        %3738 = vmatprep.subr.mxu0 0.0
        %3739 = vmatpush2.msra.mxu0 0.0
        %3740 = vmatprep.subr.mxu0 0.0
        %3741 = vmatpush2.msra.mxu0 0.0
        %3742 = vmatprep.subr.mxu0 0.0
        %3743 = vmatpush2.msra.mxu0 0.0
        %3744 = vmatprep.subr.mxu0 0.0
        %3745 = vmatpush2.msra.mxu0 0.0
        %3746 = vmatprep.subr.mxu0 0.0
        %3747 = vmatpush2.msra.mxu0 0.0
        %3748 = vmatprep.subr.mxu0 0.0
        %3749 = vmatpush2.msra.mxu0 0.0
        %3750 = vmatprep.subr.mxu0 0.0
        %3751 = vmatpush2.msra.mxu0 0.0
        %3752 = vmatprep.mubr.f32.mxu0 0.0
        %3753 = vmatmul.mubr.f32.gmra.mxu0 %v3683
        %v3754 = vpop.f32.mrf.mxu0
        %v3755 = vadd.f32 0.0, %v3754
        %v3756 = vpop.f32.mrf.mxu0
        %3757 = vmatprep.mubr.f32.mxu0 0.0
        %3758 = vmatmul.mubr.f32.gmra.mxu0 %v3686
        %v3759 = vpop.f32.mrf.mxu0
        %v3760 = vadd.f32 0.0, %v3759
        %v3761 = vpop.f32.mrf.mxu0
        %3762 = vdwg.mxu0
        %3765 = vrot.lane.b32.xlu0 %v3755, 48
        %v3766 = vpop.permute.xlu0 %3765
        %3767 = vrot.lane.b32.xlu0 %v3760, 48
        %v3768 = vpop.permute.xlu0 %3767
        %3771 = vst.msk [vmem:[#allocation3 + $0x10] sm:$0xff] %vm1982, %v3766
        %3772 = vst.msk [vmem:[#allocation3 + $0x18] sm:$0xff] %vm1982, %v3768
        %v3773 = vld [vmem:[#allocation2 + $0x30] sm:$0xff]
        %v3774 = vld [vmem:[#allocation2 + $0x48] sm:$0xff]
        %v3775 = vld [vmem:[#allocation2 + $0x38] sm:$0xff]
        %v3776 = vld [vmem:[#allocation2 + $0x50] sm:$0xff]
        %v3777 = vld [vmem:[#allocation2 + $0x40] sm:$0xff]
        %v3778 = vld [vmem:[#allocation2 + $0x58] sm:$0xff]
        %3781 = vrot.lane.b32.xlu0 %v3773, 64
        %v3782 = vpop.permute.xlu0 %3781
        %3783 = vrot.lane.b32.xlu0 %v3774, 64
        %v3784 = vpop.permute.xlu0 %3783
        %3787 = vrot.lane.b32.xlu0 %v3775, 64
        %v3788 = vpop.permute.xlu0 %3787
        %3789 = vrot.lane.b32.xlu0 %v3776, 64
        %v3790 = vpop.permute.xlu0 %3789
        %v3791 = vsel %vm1107, %v3782, 0
        %v3793 = vsel %vm1107, %v3784, 0
        %v3795 = vsel %vm1107, %v3788, 0
        %v3797 = vsel %vm1107, %v3790, 0
        %3799 = vmatprep.subr.mxu0 0.0
        %3800 = vmatpush1.xpose.msra.mxu0 0.0
        %3801 = vmatprep.subr.mxu0 0.0
        %3802 = vmatpush1.xpose.msra.mxu0 0.0
        %3803 = vmatprep.subr.mxu0 0.0
        %3804 = vmatpush1.xpose.msra.mxu0 0.0
        %3805 = vmatprep.subr.mxu0 0.0
        %3806 = vmatpush1.xpose.msra.mxu0 0.0
        %3807 = vmatprep.subr.mxu0 0.0
        %3808 = vmatpush1.xpose.msra.mxu0 0.0
        %3809 = vmatprep.subr.mxu0 0.0
        %3810 = vmatpush1.xpose.msra.mxu0 0.0
        %3811 = vmatprep.subr.mxu0 0.0
        %3812 = vmatpush1.xpose.msra.mxu0 0.0
        %3813 = vmatprep.subr.mxu0 0.0
        %3814 = vmatpush1.xpose.msra.mxu0 0.0
        %3815 = vmatprep.subr.mxu0 0.0
        %3816 = vmatpush1.xpose.msra.mxu0 0.0
        %3817 = vmatprep.subr.mxu0 0.0
        %3818 = vmatpush1.xpose.msra.mxu0 0.0
        %3819 = vmatprep.subr.mxu0 0.0
        %3820 = vmatpush1.xpose.msra.mxu0 0.0
        %3821 = vmatprep.subr.mxu0 0.0
        %3822 = vmatpush1.xpose.msra.mxu0 0.0
        %3823 = vmatprep.subr.mxu0 0.0
        %3824 = vmatpush1.xpose.msra.mxu0 0.0
        %3825 = vmatprep.subr.mxu0 0.0
        %3826 = vmatpush1.xpose.msra.mxu0 0.0
        %3827 = vmatprep.subr.mxu0 0.0
        %3828 = vmatpush1.xpose.msra.mxu0 %v3797
        %3829 = vmatprep.subr.mxu0 0.0
        %3830 = vmatpush1.xpose.msra.mxu0 %v3795
        %3831 = vmatprep.subr.mxu0 0.0
        %3832 = vmatpush2.xpose.msra.mxu0 0.0
        %3833 = vmatprep.subr.mxu0 0.0
        %3834 = vmatpush2.xpose.msra.mxu0 0.0
        %3835 = vmatprep.subr.mxu0 0.0
        %3836 = vmatpush2.xpose.msra.mxu0 0.0
        %3837 = vmatprep.subr.mxu0 0.0
        %3838 = vmatpush2.xpose.msra.mxu0 0.0
        %3839 = vmatprep.subr.mxu0 0.0
        %3840 = vmatpush2.xpose.msra.mxu0 0.0
        %3841 = vmatprep.subr.mxu0 0.0
        %3842 = vmatpush2.xpose.msra.mxu0 0.0
        %3843 = vmatprep.subr.mxu0 0.0
        %3844 = vmatpush2.xpose.msra.mxu0 0.0
        %3845 = vmatprep.subr.mxu0 0.0
        %3846 = vmatpush2.xpose.msra.mxu0 0.0
        %3847 = vmatprep.subr.mxu0 0.0
        %3848 = vmatpush2.xpose.msra.mxu0 0.0
        %3849 = vmatprep.subr.mxu0 0.0
        %3850 = vmatpush2.xpose.msra.mxu0 0.0
        %3851 = vmatprep.subr.mxu0 0.0
        %3852 = vmatpush2.xpose.msra.mxu0 0.0
        %3853 = vmatprep.subr.mxu0 0.0
        %3854 = vmatpush2.xpose.msra.mxu0 0.0
        %3855 = vmatprep.subr.mxu0 0.0
        %3856 = vmatpush2.xpose.msra.mxu0 0.0
        %3857 = vmatprep.subr.mxu0 0.0
        %3858 = vmatpush2.xpose.msra.mxu0 0.0
        %3859 = vmatprep.subr.mxu0 0.0
        %3860 = vmatpush2.xpose.msra.mxu0 0.0
        %3861 = vmatprep.subr.mxu0 0.0
        %3862 = vmatpush2.xpose.msra.mxu0 0.0
        %3863 = vmatprep.mubr.f32.mxu0 0.0
        %3864 = vmatmul.mubr.f32.gmra.mxu0 %v3791
        %v3865 = vpop.f32.mrf.mxu0
        %v3866 = vadd.f32 0.0, %v3865
        %v3867 = vpop.f32.mrf.mxu0
        %3868 = vmatprep.mubr.f32.mxu0 0.0
        %3869 = vmatmul.mubr.f32.gmra.mxu0 %v3793
        %v3870 = vpop.f32.mrf.mxu0
        %v3871 = vadd.f32 0.0, %v3870
        %v3872 = vpop.f32.mrf.mxu0
        %3873 = vdwg.mxu0
        %v3874 = vmul.f32 %v3866, 0.25
        %v3875 = vmul.f32 %v3871, 0.25
        %v3876 = vsel %vm1099, %v3874, -1e+30
        %v3877 = vsel %vm1100, %v3875, -1e+30
        %v3878 = vsel %vm1107, %v3876, -inf
        %3879 = vmax.xlane.f32.xlu0 %v3878
        %v3880 = vpop.xlane.xlu0 %3879
        %v3881 = vsel %vm1107, %v3877, -inf
        %3882 = vmax.xlane.f32.xlu0 %v3881
        %v3883 = vpop.xlane.xlu0 %3882
        %v3884 = vsub.f32 %v3876, %v3880
        %v3885 = vsub.f32 %v3877, %v3883
        %v3886 = vmul.f32 %v3884, 1.442695
        %v3887 = vpow.pop %v3886
        %v3888 = vmul.f32 %v3885, 1.442695
        %v3889 = vpow.pop %v3888
        %v3890 = vsel %vm1107, %v3887, 0.0
        %3891 = vadd.xlane.f32.xlu0 %v3890
        %v3892 = vpop.xlane.xlu0 %3891
        %v3893 = vsel %vm1107, %v3889, 0.0
        %3894 = vadd.xlane.f32.xlu0 %v3893
        %v3895 = vpop.xlane.xlu0 %3894
        %v3896 = vrcp.pop %v3892
        %v3897 = vrcp.pop %v3895
        %v3898 = vmul.f32 %v3887, %v3896
        %v3899 = vmul.f32 %v3889, %v3897
        %3902 = vrot.lane.b32.xlu0 %v3777, 64
        %v3903 = vpop.permute.xlu0 %3902
        %3904 = vrot.lane.b32.xlu0 %v3778, 64
        %v3905 = vpop.permute.xlu0 %3904
        %v3909 = vsel %vm1107, %v3898, 0
        %v3912 = vsel %vm1107, %v3899, 0
        %3914 = vmatprep.subr.mxu0 0.0
        %3915 = vmatpush1.msra.mxu0 0.0
        %3916 = vmatprep.subr.mxu0 0.0
        %3917 = vmatpush1.msra.mxu0 0.0
        %3918 = vmatprep.subr.mxu0 0.0
        %3919 = vmatpush1.msra.mxu0 0.0
        %3920 = vmatprep.subr.mxu0 0.0
        %3921 = vmatpush1.msra.mxu0 0.0
        %3922 = vmatprep.subr.mxu0 0.0
        %3923 = vmatpush1.msra.mxu0 0.0
        %3924 = vmatprep.subr.mxu0 0.0
        %3925 = vmatpush1.msra.mxu0 0.0
        %3926 = vmatprep.subr.mxu0 0.0
        %3927 = vmatpush1.msra.mxu0 0.0
        %3928 = vmatprep.subr.mxu0 0.0
        %3929 = vmatpush1.msra.mxu0 0.0
        %3930 = vmatprep.subr.mxu0 0.0
        %3931 = vmatpush1.msra.mxu0 0.0
        %3932 = vmatprep.subr.mxu0 0.0
        %3933 = vmatpush1.msra.mxu0 0.0
        %3934 = vmatprep.subr.mxu0 0.0
        %3935 = vmatpush1.msra.mxu0 0.0
        %3936 = vmatprep.subr.mxu0 0.0
        %3937 = vmatpush1.msra.mxu0 0.0
        %3938 = vmatprep.subr.mxu0 0.0
        %3939 = vmatpush1.msra.mxu0 0.0
        %3940 = vmatprep.subr.mxu0 0.0
        %3941 = vmatpush1.msra.mxu0 0.0
        %3942 = vmatprep.subr.mxu0 0.0
        %3943 = vmatpush1.msra.mxu0 %v3905
        %3944 = vmatprep.subr.mxu0 0.0
        %3945 = vmatpush1.msra.mxu0 %v3903
        %3946 = vmatprep.subr.mxu0 0.0
        %3947 = vmatpush2.msra.mxu0 0.0
        %3948 = vmatprep.subr.mxu0 0.0
        %3949 = vmatpush2.msra.mxu0 0.0
        %3950 = vmatprep.subr.mxu0 0.0
        %3951 = vmatpush2.msra.mxu0 0.0
        %3952 = vmatprep.subr.mxu0 0.0
        %3953 = vmatpush2.msra.mxu0 0.0
        %3954 = vmatprep.subr.mxu0 0.0
        %3955 = vmatpush2.msra.mxu0 0.0
        %3956 = vmatprep.subr.mxu0 0.0
        %3957 = vmatpush2.msra.mxu0 0.0
        %3958 = vmatprep.subr.mxu0 0.0
        %3959 = vmatpush2.msra.mxu0 0.0
        %3960 = vmatprep.subr.mxu0 0.0
        %3961 = vmatpush2.msra.mxu0 0.0
        %3962 = vmatprep.subr.mxu0 0.0
        %3963 = vmatpush2.msra.mxu0 0.0
        %3964 = vmatprep.subr.mxu0 0.0
        %3965 = vmatpush2.msra.mxu0 0.0
        %3966 = vmatprep.subr.mxu0 0.0
        %3967 = vmatpush2.msra.mxu0 0.0
        %3968 = vmatprep.subr.mxu0 0.0
        %3969 = vmatpush2.msra.mxu0 0.0
        %3970 = vmatprep.subr.mxu0 0.0
        %3971 = vmatpush2.msra.mxu0 0.0
        %3972 = vmatprep.subr.mxu0 0.0
        %3973 = vmatpush2.msra.mxu0 0.0
        %3974 = vmatprep.subr.mxu0 0.0
        %3975 = vmatpush2.msra.mxu0 0.0
        %3976 = vmatprep.subr.mxu0 0.0
        %3977 = vmatpush2.msra.mxu0 0.0
        %3978 = vmatprep.mubr.f32.mxu0 0.0
        %3979 = vmatmul.mubr.f32.gmra.mxu0 %v3909
        %v3980 = vpop.f32.mrf.mxu0
        %v3981 = vadd.f32 0.0, %v3980
        %v3982 = vpop.f32.mrf.mxu0
        %3983 = vmatprep.mubr.f32.mxu0 0.0
        %3984 = vmatmul.mubr.f32.gmra.mxu0 %v3912
        %v3985 = vpop.f32.mrf.mxu0
        %v3986 = vadd.f32 0.0, %v3985
        %v3987 = vpop.f32.mrf.mxu0
        %3988 = vdwg.mxu0
        %3991 = vrot.lane.b32.xlu0 %v3981, 64
        %v3992 = vpop.permute.xlu0 %3991
        %3993 = vrot.lane.b32.xlu0 %v3986, 64
        %v3994 = vpop.permute.xlu0 %3993
        %3997 = vst.msk [vmem:[#allocation3 + $0x10] sm:$0xff] %vm2209, %v3992
        %3998 = vst.msk [vmem:[#allocation3 + $0x18] sm:$0xff] %vm2209, %v3994
        %v3999 = vld [vmem:[#allocation2 + $0x30] sm:$0xff]
        %v4000 = vld [vmem:[#allocation2 + $0x48] sm:$0xff]
        %v4001 = vld [vmem:[#allocation2 + $0x38] sm:$0xff]
        %v4002 = vld [vmem:[#allocation2 + $0x50] sm:$0xff]
        %v4003 = vld [vmem:[#allocation2 + $0x40] sm:$0xff]
        %v4004 = vld [vmem:[#allocation2 + $0x58] sm:$0xff]
        %4007 = vrot.lane.b32.xlu0 %v3999, 48
        %v4008 = vpop.permute.xlu0 %4007
        %4009 = vrot.lane.b32.xlu0 %v4000, 48
        %v4010 = vpop.permute.xlu0 %4009
        %4013 = vrot.lane.b32.xlu0 %v4001, 48
        %v4014 = vpop.permute.xlu0 %4013
        %4015 = vrot.lane.b32.xlu0 %v4002, 48
        %v4016 = vpop.permute.xlu0 %4015
        %v4017 = vsel %vm1107, %v4008, 0
        %v4019 = vsel %vm1107, %v4010, 0
        %v4021 = vsel %vm1107, %v4014, 0
        %v4023 = vsel %vm1107, %v4016, 0
        %4025 = vmatprep.subr.mxu0 0.0
        %4026 = vmatpush1.xpose.msra.mxu0 0.0
        %4027 = vmatprep.subr.mxu0 0.0
        %4028 = vmatpush1.xpose.msra.mxu0 0.0
        %4029 = vmatprep.subr.mxu0 0.0
        %4030 = vmatpush1.xpose.msra.mxu0 0.0
        %4031 = vmatprep.subr.mxu0 0.0
        %4032 = vmatpush1.xpose.msra.mxu0 0.0
        %4033 = vmatprep.subr.mxu0 0.0
        %4034 = vmatpush1.xpose.msra.mxu0 0.0
        %4035 = vmatprep.subr.mxu0 0.0
        %4036 = vmatpush1.xpose.msra.mxu0 0.0
        %4037 = vmatprep.subr.mxu0 0.0
        %4038 = vmatpush1.xpose.msra.mxu0 0.0
        %4039 = vmatprep.subr.mxu0 0.0
        %4040 = vmatpush1.xpose.msra.mxu0 0.0
        %4041 = vmatprep.subr.mxu0 0.0
        %4042 = vmatpush1.xpose.msra.mxu0 0.0
        %4043 = vmatprep.subr.mxu0 0.0
        %4044 = vmatpush1.xpose.msra.mxu0 0.0
        %4045 = vmatprep.subr.mxu0 0.0
        %4046 = vmatpush1.xpose.msra.mxu0 0.0
        %4047 = vmatprep.subr.mxu0 0.0
        %4048 = vmatpush1.xpose.msra.mxu0 0.0
        %4049 = vmatprep.subr.mxu0 0.0
        %4050 = vmatpush1.xpose.msra.mxu0 0.0
        %4051 = vmatprep.subr.mxu0 0.0
        %4052 = vmatpush1.xpose.msra.mxu0 0.0
        %4053 = vmatprep.subr.mxu0 0.0
        %4054 = vmatpush1.xpose.msra.mxu0 %v4023
        %4055 = vmatprep.subr.mxu0 0.0
        %4056 = vmatpush1.xpose.msra.mxu0 %v4021
        %4057 = vmatprep.subr.mxu0 0.0
        %4058 = vmatpush2.xpose.msra.mxu0 0.0
        %4059 = vmatprep.subr.mxu0 0.0
        %4060 = vmatpush2.xpose.msra.mxu0 0.0
        %4061 = vmatprep.subr.mxu0 0.0
        %4062 = vmatpush2.xpose.msra.mxu0 0.0
        %4063 = vmatprep.subr.mxu0 0.0
        %4064 = vmatpush2.xpose.msra.mxu0 0.0
        %4065 = vmatprep.subr.mxu0 0.0
        %4066 = vmatpush2.xpose.msra.mxu0 0.0
        %4067 = vmatprep.subr.mxu0 0.0
        %4068 = vmatpush2.xpose.msra.mxu0 0.0
        %4069 = vmatprep.subr.mxu0 0.0
        %4070 = vmatpush2.xpose.msra.mxu0 0.0
        %4071 = vmatprep.subr.mxu0 0.0
        %4072 = vmatpush2.xpose.msra.mxu0 0.0
        %4073 = vmatprep.subr.mxu0 0.0
        %4074 = vmatpush2.xpose.msra.mxu0 0.0
        %4075 = vmatprep.subr.mxu0 0.0
        %4076 = vmatpush2.xpose.msra.mxu0 0.0
        %4077 = vmatprep.subr.mxu0 0.0
        %4078 = vmatpush2.xpose.msra.mxu0 0.0
        %4079 = vmatprep.subr.mxu0 0.0
        %4080 = vmatpush2.xpose.msra.mxu0 0.0
        %4081 = vmatprep.subr.mxu0 0.0
        %4082 = vmatpush2.xpose.msra.mxu0 0.0
        %4083 = vmatprep.subr.mxu0 0.0
        %4084 = vmatpush2.xpose.msra.mxu0 0.0
        %4085 = vmatprep.subr.mxu0 0.0
        %4086 = vmatpush2.xpose.msra.mxu0 0.0
        %4087 = vmatprep.subr.mxu0 0.0
        %4088 = vmatpush2.xpose.msra.mxu0 0.0
        %4089 = vmatprep.mubr.f32.mxu0 0.0
        %4090 = vmatmul.mubr.f32.gmra.mxu0 %v4017
        %v4091 = vpop.f32.mrf.mxu0
        %v4092 = vadd.f32 0.0, %v4091
        %v4093 = vpop.f32.mrf.mxu0
        %4094 = vmatprep.mubr.f32.mxu0 0.0
        %4095 = vmatmul.mubr.f32.gmra.mxu0 %v4019
        %v4096 = vpop.f32.mrf.mxu0
        %v4097 = vadd.f32 0.0, %v4096
        %v4098 = vpop.f32.mrf.mxu0
        %4099 = vdwg.mxu0
        %v4100 = vmul.f32 %v4092, 0.25
        %v4101 = vmul.f32 %v4097, 0.25
        %v4102 = vsel %vm1099, %v4100, -1e+30
        %v4103 = vsel %vm1100, %v4101, -1e+30
        %v4104 = vsel %vm1107, %v4102, -inf
        %4105 = vmax.xlane.f32.xlu0 %v4104
        %v4106 = vpop.xlane.xlu0 %4105
        %v4107 = vsel %vm1107, %v4103, -inf
        %4108 = vmax.xlane.f32.xlu0 %v4107
        %v4109 = vpop.xlane.xlu0 %4108
        %v4110 = vsub.f32 %v4102, %v4106
        %v4111 = vsub.f32 %v4103, %v4109
        %v4112 = vmul.f32 %v4110, 1.442695
        %v4113 = vpow.pop %v4112
        %v4114 = vmul.f32 %v4111, 1.442695
        %v4115 = vpow.pop %v4114
        %v4116 = vsel %vm1107, %v4113, 0.0
        %4117 = vadd.xlane.f32.xlu0 %v4116
        %v4118 = vpop.xlane.xlu0 %4117
        %v4119 = vsel %vm1107, %v4115, 0.0
        %4120 = vadd.xlane.f32.xlu0 %v4119
        %v4121 = vpop.xlane.xlu0 %4120
        %v4122 = vrcp.pop %v4118
        %v4123 = vrcp.pop %v4121
        %v4124 = vmul.f32 %v4113, %v4122
        %v4125 = vmul.f32 %v4115, %v4123
        %4128 = vrot.lane.b32.xlu0 %v4003, 48
        %v4129 = vpop.permute.xlu0 %4128
        %4130 = vrot.lane.b32.xlu0 %v4004, 48
        %v4131 = vpop.permute.xlu0 %4130
        %v4135 = vsel %vm1107, %v4124, 0
        %v4138 = vsel %vm1107, %v4125, 0
        %4140 = vmatprep.subr.mxu0 0.0
        %4141 = vmatpush1.msra.mxu0 0.0
        %4142 = vmatprep.subr.mxu0 0.0
        %4143 = vmatpush1.msra.mxu0 0.0
        %4144 = vmatprep.subr.mxu0 0.0
        %4145 = vmatpush1.msra.mxu0 0.0
        %4146 = vmatprep.subr.mxu0 0.0
        %4147 = vmatpush1.msra.mxu0 0.0
        %4148 = vmatprep.subr.mxu0 0.0
        %4149 = vmatpush1.msra.mxu0 0.0
        %4150 = vmatprep.subr.mxu0 0.0
        %4151 = vmatpush1.msra.mxu0 0.0
        %4152 = vmatprep.subr.mxu0 0.0
        %4153 = vmatpush1.msra.mxu0 0.0
        %4154 = vmatprep.subr.mxu0 0.0
        %4155 = vmatpush1.msra.mxu0 0.0
        %4156 = vmatprep.subr.mxu0 0.0
        %4157 = vmatpush1.msra.mxu0 0.0
        %4158 = vmatprep.subr.mxu0 0.0
        %4159 = vmatpush1.msra.mxu0 0.0
        %4160 = vmatprep.subr.mxu0 0.0
        %4161 = vmatpush1.msra.mxu0 0.0
        %4162 = vmatprep.subr.mxu0 0.0
        %4163 = vmatpush1.msra.mxu0 0.0
        %4164 = vmatprep.subr.mxu0 0.0
        %4165 = vmatpush1.msra.mxu0 0.0
        %4166 = vmatprep.subr.mxu0 0.0
        %4167 = vmatpush1.msra.mxu0 0.0
        %4168 = vmatprep.subr.mxu0 0.0
        %4169 = vmatpush1.msra.mxu0 %v4131
        %4170 = vmatprep.subr.mxu0 0.0
        %4171 = vmatpush1.msra.mxu0 %v4129
        %4172 = vmatprep.subr.mxu0 0.0
        %4173 = vmatpush2.msra.mxu0 0.0
        %4174 = vmatprep.subr.mxu0 0.0
        %4175 = vmatpush2.msra.mxu0 0.0
        %4176 = vmatprep.subr.mxu0 0.0
        %4177 = vmatpush2.msra.mxu0 0.0
        %4178 = vmatprep.subr.mxu0 0.0
        %4179 = vmatpush2.msra.mxu0 0.0
        %4180 = vmatprep.subr.mxu0 0.0
        %4181 = vmatpush2.msra.mxu0 0.0
        %4182 = vmatprep.subr.mxu0 0.0
        %4183 = vmatpush2.msra.mxu0 0.0
        %4184 = vmatprep.subr.mxu0 0.0
        %4185 = vmatpush2.msra.mxu0 0.0
        %4186 = vmatprep.subr.mxu0 0.0
        %4187 = vmatpush2.msra.mxu0 0.0
        %4188 = vmatprep.subr.mxu0 0.0
        %4189 = vmatpush2.msra.mxu0 0.0
        %4190 = vmatprep.subr.mxu0 0.0
        %4191 = vmatpush2.msra.mxu0 0.0
        %4192 = vmatprep.subr.mxu0 0.0
        %4193 = vmatpush2.msra.mxu0 0.0
        %4194 = vmatprep.subr.mxu0 0.0
        %4195 = vmatpush2.msra.mxu0 0.0
        %4196 = vmatprep.subr.mxu0 0.0
        %4197 = vmatpush2.msra.mxu0 0.0
        %4198 = vmatprep.subr.mxu0 0.0
        %4199 = vmatpush2.msra.mxu0 0.0
        %4200 = vmatprep.subr.mxu0 0.0
        %4201 = vmatpush2.msra.mxu0 0.0
        %4202 = vmatprep.subr.mxu0 0.0
        %4203 = vmatpush2.msra.mxu0 0.0
        %4204 = vmatprep.mubr.f32.mxu0 0.0
        %4205 = vmatmul.mubr.f32.gmra.mxu0 %v4135
        %v4206 = vpop.f32.mrf.mxu0
        %v4207 = vadd.f32 0.0, %v4206
        %v4208 = vpop.f32.mrf.mxu0
        %4209 = vmatprep.mubr.f32.mxu0 0.0
        %4210 = vmatmul.mubr.f32.gmra.mxu0 %v4138
        %v4211 = vpop.f32.mrf.mxu0
        %v4212 = vadd.f32 0.0, %v4211
        %v4213 = vpop.f32.mrf.mxu0
        %4214 = vdwg.mxu0
        %4217 = vrot.lane.b32.xlu0 %v4207, 80
        %v4218 = vpop.permute.xlu0 %4217
        %4219 = vrot.lane.b32.xlu0 %v4212, 80
        %v4220 = vpop.permute.xlu0 %4219
        %4223 = vst.msk [vmem:[#allocation3 + $0x10] sm:$0xff] %vm2436, %v4218
        %4224 = vst.msk [vmem:[#allocation3 + $0x18] sm:$0xff] %vm2436, %v4220
        %v4225 = vld [vmem:[#allocation2 + $0x30] sm:$0xff]
        %v4226 = vld [vmem:[#allocation2 + $0x48] sm:$0xff]
        %v4227 = vld [vmem:[#allocation2 + $0x38] sm:$0xff]
        %v4228 = vld [vmem:[#allocation2 + $0x50] sm:$0xff]
        %v4229 = vld [vmem:[#allocation2 + $0x40] sm:$0xff]
        %v4230 = vld [vmem:[#allocation2 + $0x58] sm:$0xff]
        %4233 = vrot.lane.b32.xlu0 %v4225, 32
        %v4234 = vpop.permute.xlu0 %4233
        %4235 = vrot.lane.b32.xlu0 %v4226, 32
        %v4236 = vpop.permute.xlu0 %4235
        %4239 = vrot.lane.b32.xlu0 %v4227, 32
        %v4240 = vpop.permute.xlu0 %4239
        %4241 = vrot.lane.b32.xlu0 %v4228, 32
        %v4242 = vpop.permute.xlu0 %4241
        %v4243 = vsel %vm1107, %v4234, 0
        %v4245 = vsel %vm1107, %v4236, 0
        %v4247 = vsel %vm1107, %v4240, 0
        %v4249 = vsel %vm1107, %v4242, 0
        %4251 = vmatprep.subr.mxu0 0.0
        %4252 = vmatpush1.xpose.msra.mxu0 0.0
        %4253 = vmatprep.subr.mxu0 0.0
        %4254 = vmatpush1.xpose.msra.mxu0 0.0
        %4255 = vmatprep.subr.mxu0 0.0
        %4256 = vmatpush1.xpose.msra.mxu0 0.0
        %4257 = vmatprep.subr.mxu0 0.0
        %4258 = vmatpush1.xpose.msra.mxu0 0.0
        %4259 = vmatprep.subr.mxu0 0.0
        %4260 = vmatpush1.xpose.msra.mxu0 0.0
        %4261 = vmatprep.subr.mxu0 0.0
        %4262 = vmatpush1.xpose.msra.mxu0 0.0
        %4263 = vmatprep.subr.mxu0 0.0
        %4264 = vmatpush1.xpose.msra.mxu0 0.0
        %4265 = vmatprep.subr.mxu0 0.0
        %4266 = vmatpush1.xpose.msra.mxu0 0.0
        %4267 = vmatprep.subr.mxu0 0.0
        %4268 = vmatpush1.xpose.msra.mxu0 0.0
        %4269 = vmatprep.subr.mxu0 0.0
        %4270 = vmatpush1.xpose.msra.mxu0 0.0
        %4271 = vmatprep.subr.mxu0 0.0
        %4272 = vmatpush1.xpose.msra.mxu0 0.0
        %4273 = vmatprep.subr.mxu0 0.0
        %4274 = vmatpush1.xpose.msra.mxu0 0.0
        %4275 = vmatprep.subr.mxu0 0.0
        %4276 = vmatpush1.xpose.msra.mxu0 0.0
        %4277 = vmatprep.subr.mxu0 0.0
        %4278 = vmatpush1.xpose.msra.mxu0 0.0
        %4279 = vmatprep.subr.mxu0 0.0
        %4280 = vmatpush1.xpose.msra.mxu0 %v4249
        %4281 = vmatprep.subr.mxu0 0.0
        %4282 = vmatpush1.xpose.msra.mxu0 %v4247
        %4283 = vmatprep.subr.mxu0 0.0
        %4284 = vmatpush2.xpose.msra.mxu0 0.0
        %4285 = vmatprep.subr.mxu0 0.0
        %4286 = vmatpush2.xpose.msra.mxu0 0.0
        %4287 = vmatprep.subr.mxu0 0.0
        %4288 = vmatpush2.xpose.msra.mxu0 0.0
        %4289 = vmatprep.subr.mxu0 0.0
        %4290 = vmatpush2.xpose.msra.mxu0 0.0
        %4291 = vmatprep.subr.mxu0 0.0
        %4292 = vmatpush2.xpose.msra.mxu0 0.0
        %4293 = vmatprep.subr.mxu0 0.0
        %4294 = vmatpush2.xpose.msra.mxu0 0.0
        %4295 = vmatprep.subr.mxu0 0.0
        %4296 = vmatpush2.xpose.msra.mxu0 0.0
        %4297 = vmatprep.subr.mxu0 0.0
        %4298 = vmatpush2.xpose.msra.mxu0 0.0
        %4299 = vmatprep.subr.mxu0 0.0
        %4300 = vmatpush2.xpose.msra.mxu0 0.0
        %4301 = vmatprep.subr.mxu0 0.0
        %4302 = vmatpush2.xpose.msra.mxu0 0.0
        %4303 = vmatprep.subr.mxu0 0.0
        %4304 = vmatpush2.xpose.msra.mxu0 0.0
        %4305 = vmatprep.subr.mxu0 0.0
        %4306 = vmatpush2.xpose.msra.mxu0 0.0
        %4307 = vmatprep.subr.mxu0 0.0
        %4308 = vmatpush2.xpose.msra.mxu0 0.0
        %4309 = vmatprep.subr.mxu0 0.0
        %4310 = vmatpush2.xpose.msra.mxu0 0.0
        %4311 = vmatprep.subr.mxu0 0.0
        %4312 = vmatpush2.xpose.msra.mxu0 0.0
        %4313 = vmatprep.subr.mxu0 0.0
        %4314 = vmatpush2.xpose.msra.mxu0 0.0
        %4315 = vmatprep.mubr.f32.mxu0 0.0
        %4316 = vmatmul.mubr.f32.gmra.mxu0 %v4243
        %v4317 = vpop.f32.mrf.mxu0
        %v4318 = vadd.f32 0.0, %v4317
        %v4319 = vpop.f32.mrf.mxu0
        %4320 = vmatprep.mubr.f32.mxu0 0.0
        %4321 = vmatmul.mubr.f32.gmra.mxu0 %v4245
        %v4322 = vpop.f32.mrf.mxu0
        %v4323 = vadd.f32 0.0, %v4322
        %v4324 = vpop.f32.mrf.mxu0
        %4325 = vdwg.mxu0
        %v4326 = vmul.f32 %v4318, 0.25
        %v4327 = vmul.f32 %v4323, 0.25
        %v4328 = vsel %vm1099, %v4326, -1e+30
        %v4329 = vsel %vm1100, %v4327, -1e+30
        %v4330 = vsel %vm1107, %v4328, -inf
        %4331 = vmax.xlane.f32.xlu0 %v4330
        %v4332 = vpop.xlane.xlu0 %4331
        %v4333 = vsel %vm1107, %v4329, -inf
        %4334 = vmax.xlane.f32.xlu0 %v4333
        %v4335 = vpop.xlane.xlu0 %4334
        %v4336 = vsub.f32 %v4328, %v4332
        %v4337 = vsub.f32 %v4329, %v4335
        %v4338 = vmul.f32 %v4336, 1.442695
        %v4339 = vpow.pop %v4338
        %v4340 = vmul.f32 %v4337, 1.442695
        %v4341 = vpow.pop %v4340
        %v4342 = vsel %vm1107, %v4339, 0.0
        %4343 = vadd.xlane.f32.xlu0 %v4342
        %v4344 = vpop.xlane.xlu0 %4343
        %v4345 = vsel %vm1107, %v4341, 0.0
        %4346 = vadd.xlane.f32.xlu0 %v4345
        %v4347 = vpop.xlane.xlu0 %4346
        %v4348 = vrcp.pop %v4344
        %v4349 = vrcp.pop %v4347
        %v4350 = vmul.f32 %v4339, %v4348
        %v4351 = vmul.f32 %v4341, %v4349
        %4354 = vrot.lane.b32.xlu0 %v4229, 32
        %v4355 = vpop.permute.xlu0 %4354
        %4356 = vrot.lane.b32.xlu0 %v4230, 32
        %v4357 = vpop.permute.xlu0 %4356
        %v4361 = vsel %vm1107, %v4350, 0
        %v4364 = vsel %vm1107, %v4351, 0
        %4366 = vmatprep.subr.mxu0 0.0
        %4367 = vmatpush1.msra.mxu0 0.0
        %4368 = vmatprep.subr.mxu0 0.0
        %4369 = vmatpush1.msra.mxu0 0.0
        %4370 = vmatprep.subr.mxu0 0.0
        %4371 = vmatpush1.msra.mxu0 0.0
        %4372 = vmatprep.subr.mxu0 0.0
        %4373 = vmatpush1.msra.mxu0 0.0
        %4374 = vmatprep.subr.mxu0 0.0
        %4375 = vmatpush1.msra.mxu0 0.0
        %4376 = vmatprep.subr.mxu0 0.0
        %4377 = vmatpush1.msra.mxu0 0.0
        %4378 = vmatprep.subr.mxu0 0.0
        %4379 = vmatpush1.msra.mxu0 0.0
        %4380 = vmatprep.subr.mxu0 0.0
        %4381 = vmatpush1.msra.mxu0 0.0
        %4382 = vmatprep.subr.mxu0 0.0
        %4383 = vmatpush1.msra.mxu0 0.0
        %4384 = vmatprep.subr.mxu0 0.0
        %4385 = vmatpush1.msra.mxu0 0.0
        %4386 = vmatprep.subr.mxu0 0.0
        %4387 = vmatpush1.msra.mxu0 0.0
        %4388 = vmatprep.subr.mxu0 0.0
        %4389 = vmatpush1.msra.mxu0 0.0
        %4390 = vmatprep.subr.mxu0 0.0
        %4391 = vmatpush1.msra.mxu0 0.0
        %4392 = vmatprep.subr.mxu0 0.0
        %4393 = vmatpush1.msra.mxu0 0.0
        %4394 = vmatprep.subr.mxu0 0.0
        %4395 = vmatpush1.msra.mxu0 %v4357
        %4396 = vmatprep.subr.mxu0 0.0
        %4397 = vmatpush1.msra.mxu0 %v4355
        %4398 = vmatprep.subr.mxu0 0.0
        %4399 = vmatpush2.msra.mxu0 0.0
        %4400 = vmatprep.subr.mxu0 0.0
        %4401 = vmatpush2.msra.mxu0 0.0
        %4402 = vmatprep.subr.mxu0 0.0
        %4403 = vmatpush2.msra.mxu0 0.0
        %4404 = vmatprep.subr.mxu0 0.0
        %4405 = vmatpush2.msra.mxu0 0.0
        %4406 = vmatprep.subr.mxu0 0.0
        %4407 = vmatpush2.msra.mxu0 0.0
        %4408 = vmatprep.subr.mxu0 0.0
        %4409 = vmatpush2.msra.mxu0 0.0
        %4410 = vmatprep.subr.mxu0 0.0
        %4411 = vmatpush2.msra.mxu0 0.0
        %4412 = vmatprep.subr.mxu0 0.0
        %4413 = vmatpush2.msra.mxu0 0.0
        %4414 = vmatprep.subr.mxu0 0.0
        %4415 = vmatpush2.msra.mxu0 0.0
        %4416 = vmatprep.subr.mxu0 0.0
        %4417 = vmatpush2.msra.mxu0 0.0
        %4418 = vmatprep.subr.mxu0 0.0
        %4419 = vmatpush2.msra.mxu0 0.0
        %4420 = vmatprep.subr.mxu0 0.0
        %4421 = vmatpush2.msra.mxu0 0.0
        %4422 = vmatprep.subr.mxu0 0.0
        %4423 = vmatpush2.msra.mxu0 0.0
        %4424 = vmatprep.subr.mxu0 0.0
        %4425 = vmatpush2.msra.mxu0 0.0
        %4426 = vmatprep.subr.mxu0 0.0
        %4427 = vmatpush2.msra.mxu0 0.0
        %4428 = vmatprep.subr.mxu0 0.0
        %4429 = vmatpush2.msra.mxu0 0.0
        %4430 = vmatprep.mubr.f32.mxu0 0.0
        %4431 = vmatmul.mubr.f32.gmra.mxu0 %v4361
        %v4432 = vpop.f32.mrf.mxu0
        %v4433 = vadd.f32 0.0, %v4432
        %v4434 = vpop.f32.mrf.mxu0
        %4435 = vmatprep.mubr.f32.mxu0 0.0
        %4436 = vmatmul.mubr.f32.gmra.mxu0 %v4364
        %v4437 = vpop.f32.mrf.mxu0
        %v4438 = vadd.f32 0.0, %v4437
        %v4439 = vpop.f32.mrf.mxu0
        %4440 = vdwg.mxu0
        %4443 = vrot.lane.b32.xlu0 %v4433, 96
        %v4444 = vpop.permute.xlu0 %4443
        %4445 = vrot.lane.b32.xlu0 %v4438, 96
        %v4446 = vpop.permute.xlu0 %4445
        %4449 = vst.msk [vmem:[#allocation3 + $0x10] sm:$0xff] %vm2663, %v4444
        %4450 = vst.msk [vmem:[#allocation3 + $0x18] sm:$0xff] %vm2663, %v4446
        %v4451 = vld [vmem:[#allocation2 + $0x30] sm:$0xff]
        %v4452 = vld [vmem:[#allocation2 + $0x48] sm:$0xff]
        %v4453 = vld [vmem:[#allocation2 + $0x38] sm:$0xff]
        %v4454 = vld [vmem:[#allocation2 + $0x50] sm:$0xff]
        %v4455 = vld [vmem:[#allocation2 + $0x40] sm:$0xff]
        %v4456 = vld [vmem:[#allocation2 + $0x58] sm:$0xff]
        %4459 = vrot.lane.b32.xlu0 %v4451, 16
        %v4460 = vpop.permute.xlu0 %4459
        %4461 = vrot.lane.b32.xlu0 %v4452, 16
        %v4462 = vpop.permute.xlu0 %4461
        %4465 = vrot.lane.b32.xlu0 %v4453, 16
        %v4466 = vpop.permute.xlu0 %4465
        %4467 = vrot.lane.b32.xlu0 %v4454, 16
        %v4468 = vpop.permute.xlu0 %4467
        %v4469 = vsel %vm1107, %v4460, 0
        %v4471 = vsel %vm1107, %v4462, 0
        %v4473 = vsel %vm1107, %v4466, 0
        %v4475 = vsel %vm1107, %v4468, 0
        %4477 = vmatprep.subr.mxu0 0.0
        %4478 = vmatpush1.xpose.msra.mxu0 0.0
        %4479 = vmatprep.subr.mxu0 0.0
        %4480 = vmatpush1.xpose.msra.mxu0 0.0
        %4481 = vmatprep.subr.mxu0 0.0
        %4482 = vmatpush1.xpose.msra.mxu0 0.0
        %4483 = vmatprep.subr.mxu0 0.0
        %4484 = vmatpush1.xpose.msra.mxu0 0.0
        %4485 = vmatprep.subr.mxu0 0.0
        %4486 = vmatpush1.xpose.msra.mxu0 0.0
        %4487 = vmatprep.subr.mxu0 0.0
        %4488 = vmatpush1.xpose.msra.mxu0 0.0
        %4489 = vmatprep.subr.mxu0 0.0
        %4490 = vmatpush1.xpose.msra.mxu0 0.0
        %4491 = vmatprep.subr.mxu0 0.0
        %4492 = vmatpush1.xpose.msra.mxu0 0.0
        %4493 = vmatprep.subr.mxu0 0.0
        %4494 = vmatpush1.xpose.msra.mxu0 0.0
        %4495 = vmatprep.subr.mxu0 0.0
        %4496 = vmatpush1.xpose.msra.mxu0 0.0
        %4497 = vmatprep.subr.mxu0 0.0
        %4498 = vmatpush1.xpose.msra.mxu0 0.0
        %4499 = vmatprep.subr.mxu0 0.0
        %4500 = vmatpush1.xpose.msra.mxu0 0.0
        %4501 = vmatprep.subr.mxu0 0.0
        %4502 = vmatpush1.xpose.msra.mxu0 0.0
        %4503 = vmatprep.subr.mxu0 0.0
        %4504 = vmatpush1.xpose.msra.mxu0 0.0
        %4505 = vmatprep.subr.mxu0 0.0
        %4506 = vmatpush1.xpose.msra.mxu0 %v4475
        %4507 = vmatprep.subr.mxu0 0.0
        %4508 = vmatpush1.xpose.msra.mxu0 %v4473
        %4509 = vmatprep.subr.mxu0 0.0
        %4510 = vmatpush2.xpose.msra.mxu0 0.0
        %4511 = vmatprep.subr.mxu0 0.0
        %4512 = vmatpush2.xpose.msra.mxu0 0.0
        %4513 = vmatprep.subr.mxu0 0.0
        %4514 = vmatpush2.xpose.msra.mxu0 0.0
        %4515 = vmatprep.subr.mxu0 0.0
        %4516 = vmatpush2.xpose.msra.mxu0 0.0
        %4517 = vmatprep.subr.mxu0 0.0
        %4518 = vmatpush2.xpose.msra.mxu0 0.0
        %4519 = vmatprep.subr.mxu0 0.0
        %4520 = vmatpush2.xpose.msra.mxu0 0.0
        %4521 = vmatprep.subr.mxu0 0.0
        %4522 = vmatpush2.xpose.msra.mxu0 0.0
        %4523 = vmatprep.subr.mxu0 0.0
        %4524 = vmatpush2.xpose.msra.mxu0 0.0
        %4525 = vmatprep.subr.mxu0 0.0
        %4526 = vmatpush2.xpose.msra.mxu0 0.0
        %4527 = vmatprep.subr.mxu0 0.0
        %4528 = vmatpush2.xpose.msra.mxu0 0.0
        %4529 = vmatprep.subr.mxu0 0.0
        %4530 = vmatpush2.xpose.msra.mxu0 0.0
        %4531 = vmatprep.subr.mxu0 0.0
        %4532 = vmatpush2.xpose.msra.mxu0 0.0
        %4533 = vmatprep.subr.mxu0 0.0
        %4534 = vmatpush2.xpose.msra.mxu0 0.0
        %4535 = vmatprep.subr.mxu0 0.0
        %4536 = vmatpush2.xpose.msra.mxu0 0.0
        %4537 = vmatprep.subr.mxu0 0.0
        %4538 = vmatpush2.xpose.msra.mxu0 0.0
        %4539 = vmatprep.subr.mxu0 0.0
        %4540 = vmatpush2.xpose.msra.mxu0 0.0
        %4541 = vmatprep.mubr.f32.mxu0 0.0
        %4542 = vmatmul.mubr.f32.gmra.mxu0 %v4469
        %v4543 = vpop.f32.mrf.mxu0
        %v4544 = vadd.f32 0.0, %v4543
        %v4545 = vpop.f32.mrf.mxu0
        %4546 = vmatprep.mubr.f32.mxu0 0.0
        %4547 = vmatmul.mubr.f32.gmra.mxu0 %v4471
        %v4548 = vpop.f32.mrf.mxu0
        %v4549 = vadd.f32 0.0, %v4548
        %v4550 = vpop.f32.mrf.mxu0
        %4551 = vdwg.mxu0
        %v4552 = vmul.f32 %v4544, 0.25
        %v4553 = vmul.f32 %v4549, 0.25
        %v4554 = vsel %vm1099, %v4552, -1e+30
        %v4555 = vsel %vm1100, %v4553, -1e+30
        %v4556 = vsel %vm1107, %v4554, -inf
        %4557 = vmax.xlane.f32.xlu0 %v4556
        %v4558 = vpop.xlane.xlu0 %4557
        %v4559 = vsel %vm1107, %v4555, -inf
        %4560 = vmax.xlane.f32.xlu0 %v4559
        %v4561 = vpop.xlane.xlu0 %4560
        %v4562 = vsub.f32 %v4554, %v4558
        %v4563 = vsub.f32 %v4555, %v4561
        %v4564 = vmul.f32 %v4562, 1.442695
        %v4565 = vpow.pop %v4564
        %v4566 = vmul.f32 %v4563, 1.442695
        %v4567 = vpow.pop %v4566
        %v4568 = vsel %vm1107, %v4565, 0.0
        %4569 = vadd.xlane.f32.xlu0 %v4568
        %v4570 = vpop.xlane.xlu0 %4569
        %v4571 = vsel %vm1107, %v4567, 0.0
        %4572 = vadd.xlane.f32.xlu0 %v4571
        %v4573 = vpop.xlane.xlu0 %4572
        %v4574 = vrcp.pop %v4570
        %v4575 = vrcp.pop %v4573
        %v4576 = vmul.f32 %v4565, %v4574
        %v4577 = vmul.f32 %v4567, %v4575
        %4580 = vrot.lane.b32.xlu0 %v4455, 16
        %v4581 = vpop.permute.xlu0 %4580
        %4582 = vrot.lane.b32.xlu0 %v4456, 16
        %v4583 = vpop.permute.xlu0 %4582
        %v4587 = vsel %vm1107, %v4576, 0
        %v4590 = vsel %vm1107, %v4577, 0
        %4592 = vmatprep.subr.mxu0 0.0
        %4593 = vmatpush1.msra.mxu0 0.0
        %4594 = vmatprep.subr.mxu0 0.0
        %4595 = vmatpush1.msra.mxu0 0.0
        %4596 = vmatprep.subr.mxu0 0.0
        %4597 = vmatpush1.msra.mxu0 0.0
        %4598 = vmatprep.subr.mxu0 0.0
        %4599 = vmatpush1.msra.mxu0 0.0
        %4600 = vmatprep.subr.mxu0 0.0
        %4601 = vmatpush1.msra.mxu0 0.0
        %4602 = vmatprep.subr.mxu0 0.0
        %4603 = vmatpush1.msra.mxu0 0.0
        %4604 = vmatprep.subr.mxu0 0.0
        %4605 = vmatpush1.msra.mxu0 0.0
        %4606 = vmatprep.subr.mxu0 0.0
        %4607 = vmatpush1.msra.mxu0 0.0
        %4608 = vmatprep.subr.mxu0 0.0
        %4609 = vmatpush1.msra.mxu0 0.0
        %4610 = vmatprep.subr.mxu0 0.0
        %4611 = vmatpush1.msra.mxu0 0.0
        %4612 = vmatprep.subr.mxu0 0.0
        %4613 = vmatpush1.msra.mxu0 0.0
        %4614 = vmatprep.subr.mxu0 0.0
        %4615 = vmatpush1.msra.mxu0 0.0
        %4616 = vmatprep.subr.mxu0 0.0
        %4617 = vmatpush1.msra.mxu0 0.0
        %4618 = vmatprep.subr.mxu0 0.0
        %4619 = vmatpush1.msra.mxu0 0.0
        %4620 = vmatprep.subr.mxu0 0.0
        %4621 = vmatpush1.msra.mxu0 %v4583
        %4622 = vmatprep.subr.mxu0 0.0
        %4623 = vmatpush1.msra.mxu0 %v4581
        %4624 = vmatprep.subr.mxu0 0.0
        %4625 = vmatpush2.msra.mxu0 0.0
        %4626 = vmatprep.subr.mxu0 0.0
        %4627 = vmatpush2.msra.mxu0 0.0
        %4628 = vmatprep.subr.mxu0 0.0
        %4629 = vmatpush2.msra.mxu0 0.0
        %4630 = vmatprep.subr.mxu0 0.0
        %4631 = vmatpush2.msra.mxu0 0.0
        %4632 = vmatprep.subr.mxu0 0.0
        %4633 = vmatpush2.msra.mxu0 0.0
        %4634 = vmatprep.subr.mxu0 0.0
        %4635 = vmatpush2.msra.mxu0 0.0
        %4636 = vmatprep.subr.mxu0 0.0
        %4637 = vmatpush2.msra.mxu0 0.0
        %4638 = vmatprep.subr.mxu0 0.0
        %4639 = vmatpush2.msra.mxu0 0.0
        %4640 = vmatprep.subr.mxu0 0.0
        %4641 = vmatpush2.msra.mxu0 0.0
        %4642 = vmatprep.subr.mxu0 0.0
        %4643 = vmatpush2.msra.mxu0 0.0
        %4644 = vmatprep.subr.mxu0 0.0
        %4645 = vmatpush2.msra.mxu0 0.0
        %4646 = vmatprep.subr.mxu0 0.0
        %4647 = vmatpush2.msra.mxu0 0.0
        %4648 = vmatprep.subr.mxu0 0.0
        %4649 = vmatpush2.msra.mxu0 0.0
        %4650 = vmatprep.subr.mxu0 0.0
        %4651 = vmatpush2.msra.mxu0 0.0
        %4652 = vmatprep.subr.mxu0 0.0
        %4653 = vmatpush2.msra.mxu0 0.0
        %4654 = vmatprep.subr.mxu0 0.0
        %4655 = vmatpush2.msra.mxu0 0.0
        %4656 = vmatprep.mubr.f32.mxu0 0.0
        %4657 = vmatmul.mubr.f32.gmra.mxu0 %v4587
        %v4658 = vpop.f32.mrf.mxu0
        %v4659 = vadd.f32 0.0, %v4658
        %v4660 = vpop.f32.mrf.mxu0
        %4661 = vmatprep.mubr.f32.mxu0 0.0
        %4662 = vmatmul.mubr.f32.gmra.mxu0 %v4590
        %v4663 = vpop.f32.mrf.mxu0
        %v4664 = vadd.f32 0.0, %v4663
        %v4665 = vpop.f32.mrf.mxu0
        %4666 = vdwg.mxu0
        %4669 = vrot.lane.b32.xlu0 %v4659, 112
        %v4670 = vpop.permute.xlu0 %4669
        %4671 = vrot.lane.b32.xlu0 %v4664, 112
        %v4672 = vpop.permute.xlu0 %4671
        %4675 = vst.msk [vmem:[#allocation3 + $0x10] sm:$0xff] %vm2890, %v4670
        %4676 = vst.msk [vmem:[#allocation3 + $0x18] sm:$0xff] %vm2890, %v4672
        %v4677 = vld [vmem:[#allocation3] sm:$0xff]
        %v4678 = vld [vmem:[#allocation3 + $0x8] sm:$0xff]
        %v4679 = vld [vmem:[#allocation3 + $0x10] sm:$0xff]
        %v4680 = vld [vmem:[#allocation3 + $0x18] sm:$0xff]
        %v4681 = vld [vmem:[%s618] sm:$0xf]
        %v4682 = vld [vmem:[%s618 + $0x4] sm:$0xf]
        %v4683 = vld [vmem:[%s618 + $0x8] sm:$0xf]
        %v4684 = vld [vmem:[%s618 + $0xc] sm:$0xf]
        %v4685 = vld [vmem:[%s618 + $0x10] sm:$0xf]
        %v4686 = vld [vmem:[%s618 + $0x14] sm:$0xf]
        %v4687 = vld [vmem:[%s618 + $0x18] sm:$0xf]
        %v4688 = vld [vmem:[%s618 + $0x1c] sm:$0xf]
        %v4689 = vld [vmem:[%s618 + $0x20] sm:$0xf]
        %v4690 = vld [vmem:[%s618 + $0x24] sm:$0xf]
        %v4691 = vld [vmem:[%s618 + $0x28] sm:$0xf]
        %v4692 = vld [vmem:[%s618 + $0x2c] sm:$0xf]
        %v4693 = vld [vmem:[%s618 + $0x30] sm:$0xf]
        %v4694 = vld [vmem:[%s618 + $0x34] sm:$0xf]
        %v4695 = vld [vmem:[%s618 + $0x38] sm:$0xf]
        %v4696 = vld [vmem:[%s618 + $0x3c] sm:$0xf]
        %v4697 = vunpack.c.l.bf16 %v4681
        %v4698 = vunpack.c.l.bf16 %v4682
        %v4699 = vunpack.c.l.bf16 %v4683
        %v4700 = vunpack.c.l.bf16 %v4684
        %v4701 = vunpack.c.l.bf16 %v4685
        %v4702 = vunpack.c.l.bf16 %v4686
        %v4703 = vunpack.c.l.bf16 %v4687
        %v4704 = vunpack.c.l.bf16 %v4688
        %v4705 = vunpack.c.l.bf16 %v4689
        %v4706 = vunpack.c.l.bf16 %v4690
        %v4707 = vunpack.c.l.bf16 %v4691
        %v4708 = vunpack.c.l.bf16 %v4692
        %v4709 = vunpack.c.l.bf16 %v4693
        %v4710 = vunpack.c.l.bf16 %v4694
        %v4711 = vunpack.c.l.bf16 %v4695
        %v4712 = vunpack.c.l.bf16 %v4696
        %v4713 = vld [vmem:[%s741] sm:$0x1]
        %v4715 = vlaneseq
        %v4716 = vshrl.u32 %v4715, 7
        %v4717 = vsub.s32 0, %v4716
        %v4718 = vrot.slane %v4713, %v4717
        %4720 = vmatprep.subr.mxu0 0.0
        %4721 = vmatpush1.msra.mxu0 %v4712
        %4722 = vmatprep.subr.mxu0 0.0
        %4723 = vmatpush1.msra.mxu0 %v4711
        %4724 = vmatprep.subr.mxu0 0.0
        %4725 = vmatpush1.msra.mxu0 %v4710
        %4726 = vmatprep.subr.mxu0 0.0
        %4727 = vmatpush1.msra.mxu0 %v4709
        %4728 = vmatprep.subr.mxu0 0.0
        %4729 = vmatpush1.msra.mxu0 %v4708
        %4730 = vmatprep.subr.mxu0 0.0
        %4731 = vmatpush1.msra.mxu0 %v4707
        %4732 = vmatprep.subr.mxu0 0.0
        %4733 = vmatpush1.msra.mxu0 %v4706
        %4734 = vmatprep.subr.mxu0 0.0
        %4735 = vmatpush1.msra.mxu0 %v4705
        %4736 = vmatprep.subr.mxu0 0.0
        %4737 = vmatpush1.msra.mxu0 %v4704
        %4738 = vmatprep.subr.mxu0 0.0
        %4739 = vmatpush1.msra.mxu0 %v4703
        %4740 = vmatprep.subr.mxu0 0.0
        %4741 = vmatpush1.msra.mxu0 %v4702
        %4742 = vmatprep.subr.mxu0 0.0
        %4743 = vmatpush1.msra.mxu0 %v4701
        %4744 = vmatprep.subr.mxu0 0.0
        %4745 = vmatpush1.msra.mxu0 %v4700
        %4746 = vmatprep.subr.mxu0 0.0
        %4747 = vmatpush1.msra.mxu0 %v4699
        %4748 = vmatprep.subr.mxu0 0.0
        %4749 = vmatpush1.msra.mxu0 %v4698
        %4750 = vmatprep.subr.mxu0 0.0
        %4751 = vmatpush1.msra.mxu0 %v4697
        %4752 = vmatprep.subr.mxu0 0.0
        %4753 = vmatpush2.msra.mxu0 0.0
        %4754 = vmatprep.subr.mxu0 0.0
        %4755 = vmatpush2.msra.mxu0 0.0
        %4756 = vmatprep.subr.mxu0 0.0
        %4757 = vmatpush2.msra.mxu0 0.0
        %4758 = vmatprep.subr.mxu0 0.0
        %4759 = vmatpush2.msra.mxu0 0.0
        %4760 = vmatprep.subr.mxu0 0.0
        %4761 = vmatpush2.msra.mxu0 0.0
        %4762 = vmatprep.subr.mxu0 0.0
        %4763 = vmatpush2.msra.mxu0 0.0
        %4764 = vmatprep.subr.mxu0 0.0
        %4765 = vmatpush2.msra.mxu0 0.0
        %4766 = vmatprep.subr.mxu0 0.0
        %4767 = vmatpush2.msra.mxu0 0.0
        %4768 = vmatprep.subr.mxu0 0.0
        %4769 = vmatpush2.msra.mxu0 0.0
        %4770 = vmatprep.subr.mxu0 0.0
        %4771 = vmatpush2.msra.mxu0 0.0
        %4772 = vmatprep.subr.mxu0 0.0
        %4773 = vmatpush2.msra.mxu0 0.0
        %4774 = vmatprep.subr.mxu0 0.0
        %4775 = vmatpush2.msra.mxu0 0.0
        %4776 = vmatprep.subr.mxu0 0.0
        %4777 = vmatpush2.msra.mxu0 0.0
        %4778 = vmatprep.subr.mxu0 0.0
        %4779 = vmatpush2.msra.mxu0 0.0
        %4780 = vmatprep.subr.mxu0 0.0
        %4781 = vmatpush2.msra.mxu0 0.0
        %4782 = vmatprep.subr.mxu0 0.0
        %4783 = vmatpush2.msra.mxu0 0.0
        %4784 = vmatprep.mubr.f32.mxu0 0.0
        %4785 = vmatmul.mubr.f32.gmra.mxu0 %v4677
        %v4786 = vpop.f32.mrf.mxu0
        %v4787 = vadd.f32 %v4718, %v4786
        %v4788 = vpop.f32.mrf.mxu0
        %4789 = vmatprep.mubr.f32.mxu0 0.0
        %4790 = vmatmul.mubr.f32.gmra.mxu0 %v4678
        %v4791 = vpop.f32.mrf.mxu0
        %v4792 = vadd.f32 %v4718, %v4791
        %v4793 = vpop.f32.mrf.mxu0
        %4794 = vmatprep.mubr.f32.mxu0 0.0
        %4795 = vmatmul.mubr.f32.gmra.mxu0 %v4679
        %v4796 = vpop.f32.mrf.mxu0
        %v4797 = vadd.f32 %v4718, %v4796
        %v4798 = vpop.f32.mrf.mxu0
        %4799 = vmatprep.mubr.f32.mxu0 0.0
        %4800 = vmatmul.mubr.f32.gmra.mxu0 %v4680
        %v4801 = vpop.f32.mrf.mxu0
        %v4802 = vadd.f32 %v4718, %v4801
        %v4803 = vpop.f32.mrf.mxu0
        %4804 = vdwg.mxu0
        %v4805 = vadd.f32 %v757, %v4787
        %v4806 = vadd.f32 %v758, %v4792
        %v4807 = vadd.f32 %v759, %v4797
        %v4808 = vadd.f32 %v760, %v4802
        %v4809 = vld [vmem:[%s626] sm:$0x1]
        %v4810 = vld [vmem:[%s634] sm:$0x1]
        %4811 = vadd.xlane.f32.xlu0 %v4805
        %v4812 = vpop.xlane.xlu0 %4811
        %4813 = vadd.xlane.f32.xlu0 %v4806
        %v4814 = vpop.xlane.xlu0 %4813
        %4815 = vadd.xlane.f32.xlu0 %v4807
        %v4816 = vpop.xlane.xlu0 %4815
        %4817 = vadd.xlane.f32.xlu0 %v4808
        %v4818 = vpop.xlane.xlu0 %4817
        %v4819 = vmul.f32 %v4812, %v771
        %v4820 = vmul.f32 %v4814, %v771
        %v4821 = vmul.f32 %v4816, %v771
        %v4822 = vmul.f32 %v4818, %v771
        %v4823 = vsub.f32 %v4805, %v4819
        %v4824 = vsub.f32 %v4806, %v4820
        %v4825 = vsub.f32 %v4807, %v4821
        %v4826 = vsub.f32 %v4808, %v4822
        %v4827 = vmul.f32 %v4823, %v4823
        %v4828 = vmul.f32 %v4824, %v4824
        %v4829 = vmul.f32 %v4825, %v4825
        %v4830 = vmul.f32 %v4826, %v4826
        %4831 = vadd.xlane.f32.xlu0 %v4827
        %v4832 = vpop.xlane.xlu0 %4831
        %4833 = vadd.xlane.f32.xlu0 %v4828
        %v4834 = vpop.xlane.xlu0 %4833
        %4835 = vadd.xlane.f32.xlu0 %v4829
        %v4836 = vpop.xlane.xlu0 %4835
        %4837 = vadd.xlane.f32.xlu0 %v4830
        %v4838 = vpop.xlane.xlu0 %4837
        %v4839 = vmul.f32 %v4832, %v771
        %v4840 = vmul.f32 %v4834, %v771
        %v4841 = vmul.f32 %v4836, %v771
        %v4842 = vmul.f32 %v4838, %v771
        %v4843 = vadd.f32 %v4839, 1e-05
        %v4844 = vadd.f32 %v4840, 1e-05
        %v4845 = vadd.f32 %v4841, 1e-05
        %v4846 = vadd.f32 %v4842, 1e-05
        %v4847 = vrsqrt.pop %v4843
        %v4848 = vrsqrt.pop %v4844
        %v4849 = vrsqrt.pop %v4845
        %v4850 = vrsqrt.pop %v4846
        %v4851 = vmul.f32 %v4823, %v4847
        %v4852 = vmul.f32 %v4824, %v4848
        %v4853 = vmul.f32 %v4825, %v4849
        %v4854 = vmul.f32 %v4826, %v4850
        %v4856 = vlaneseq
        %v4857 = vshrl.u32 %v4856, 7
        %v4858 = vsub.s32 0, %v4857
        %v4859 = vrot.slane %v4809, %v4858
        %v4861 = vmul.f32 %v4851, %v4859
        %v4862 = vmul.f32 %v4852, %v4859
        %v4863 = vmul.f32 %v4853, %v4859
        %v4864 = vmul.f32 %v4854, %v4859
        %v4866 = vlaneseq
        %v4867 = vshrl.u32 %v4866, 7
        %v4868 = vsub.s32 0, %v4867
        %v4869 = vrot.slane %v4810, %v4868
        %v4871 = vadd.f32 %v4861, %v4869
        %v4872 = vadd.f32 %v4862, %v4869
        %v4873 = vadd.f32 %v4863, %v4869
        %v4874 = vadd.f32 %v4864, %v4869
        %v4875 = vld [vmem:[%s643] sm:$0xff]
        %v4876 = vld [vmem:[%s643 + $0x8] sm:$0xff]
        %v4877 = vld [vmem:[%s643 + $0x10] sm:$0xff]
        %v4878 = vld [vmem:[%s643 + $0x18] sm:$0xff]
        %v4879 = vld [vmem:[%s643 + $0x20] sm:$0xff]
        %v4880 = vld [vmem:[%s643 + $0x28] sm:$0xff]
        %v4881 = vld [vmem:[%s643 + $0x30] sm:$0xff]
        %v4882 = vld [vmem:[%s643 + $0x38] sm:$0xff]
        %v4883 = vld [vmem:[%s643 + $0x40] sm:$0xff]
        %v4884 = vld [vmem:[%s643 + $0x48] sm:$0xff]
        %v4885 = vld [vmem:[%s643 + $0x50] sm:$0xff]
        %v4886 = vld [vmem:[%s643 + $0x58] sm:$0xff]
        %v4887 = vld [vmem:[%s643 + $0x60] sm:$0xff]
        %v4888 = vld [vmem:[%s643 + $0x68] sm:$0xff]
        %v4889 = vld [vmem:[%s643 + $0x70] sm:$0xff]
        %v4890 = vld [vmem:[%s643 + $0x78] sm:$0xff]
        %v4891 = vld [vmem:[%s643 + $0x80] sm:$0xff]
        %v4892 = vld [vmem:[%s643 + $0x88] sm:$0xff]
        %v4893 = vld [vmem:[%s643 + $0x90] sm:$0xff]
        %v4894 = vld [vmem:[%s643 + $0x98] sm:$0xff]
        %v4895 = vld [vmem:[%s643 + $0xa0] sm:$0xff]
        %v4896 = vld [vmem:[%s643 + $0xa8] sm:$0xff]
        %v4897 = vld [vmem:[%s643 + $0xb0] sm:$0xff]
        %v4898 = vld [vmem:[%s643 + $0xb8] sm:$0xff]
        %v4899 = vld [vmem:[%s643 + $0xc0] sm:$0xff]
        %v4900 = vld [vmem:[%s643 + $0xc8] sm:$0xff]
        %v4901 = vld [vmem:[%s643 + $0xd0] sm:$0xff]
        %v4902 = vld [vmem:[%s643 + $0xd8] sm:$0xff]
        %v4903 = vld [vmem:[%s643 + $0xe0] sm:$0xff]
        %v4904 = vld [vmem:[%s643 + $0xe8] sm:$0xff]
        %v4905 = vld [vmem:[%s643 + $0xf0] sm:$0xff]
        %v4906 = vld [vmem:[%s643 + $0xf8] sm:$0xff]
        %v4907 = vunpack.c.l.bf16 %v4875
        %v4908 = vunpack.c.h.bf16 %v4875
        %v4909 = vunpack.c.l.bf16 %v4876
        %v4910 = vunpack.c.h.bf16 %v4876
        %v4911 = vunpack.c.l.bf16 %v4877
        %v4912 = vunpack.c.h.bf16 %v4877
        %v4913 = vunpack.c.l.bf16 %v4878
        %v4914 = vunpack.c.h.bf16 %v4878
        %v4915 = vunpack.c.l.bf16 %v4879
        %v4916 = vunpack.c.h.bf16 %v4879
        %v4917 = vunpack.c.l.bf16 %v4880
        %v4918 = vunpack.c.h.bf16 %v4880
        %v4919 = vunpack.c.l.bf16 %v4881
        %v4920 = vunpack.c.h.bf16 %v4881
        %v4921 = vunpack.c.l.bf16 %v4882
        %v4922 = vunpack.c.h.bf16 %v4882
        %v4923 = vunpack.c.l.bf16 %v4883
        %v4924 = vunpack.c.h.bf16 %v4883
        %v4925 = vunpack.c.l.bf16 %v4884
        %v4926 = vunpack.c.h.bf16 %v4884
        %v4927 = vunpack.c.l.bf16 %v4885
        %v4928 = vunpack.c.h.bf16 %v4885
        %v4929 = vunpack.c.l.bf16 %v4886
        %v4930 = vunpack.c.h.bf16 %v4886
        %v4931 = vunpack.c.l.bf16 %v4887
        %v4932 = vunpack.c.h.bf16 %v4887
        %v4933 = vunpack.c.l.bf16 %v4888
        %v4934 = vunpack.c.h.bf16 %v4888
        %v4935 = vunpack.c.l.bf16 %v4889
        %v4936 = vunpack.c.h.bf16 %v4889
        %v4937 = vunpack.c.l.bf16 %v4890
        %v4938 = vunpack.c.h.bf16 %v4890
        %v4939 = vunpack.c.l.bf16 %v4891
        %v4940 = vunpack.c.h.bf16 %v4891
        %v4941 = vunpack.c.l.bf16 %v4892
        %v4942 = vunpack.c.h.bf16 %v4892
        %v4943 = vunpack.c.l.bf16 %v4893
        %v4944 = vunpack.c.h.bf16 %v4893
        %v4945 = vunpack.c.l.bf16 %v4894
        %v4946 = vunpack.c.h.bf16 %v4894
        %v4947 = vunpack.c.l.bf16 %v4895
        %v4948 = vunpack.c.h.bf16 %v4895
        %v4949 = vunpack.c.l.bf16 %v4896
        %v4950 = vunpack.c.h.bf16 %v4896
        %v4951 = vunpack.c.l.bf16 %v4897
        %v4952 = vunpack.c.h.bf16 %v4897
        %v4953 = vunpack.c.l.bf16 %v4898
        %v4954 = vunpack.c.h.bf16 %v4898
        %v4955 = vunpack.c.l.bf16 %v4899
        %v4956 = vunpack.c.h.bf16 %v4899
        %v4957 = vunpack.c.l.bf16 %v4900
        %v4958 = vunpack.c.h.bf16 %v4900
        %v4959 = vunpack.c.l.bf16 %v4901
        %v4960 = vunpack.c.h.bf16 %v4901
        %v4961 = vunpack.c.l.bf16 %v4902
        %v4962 = vunpack.c.h.bf16 %v4902
        %v4963 = vunpack.c.l.bf16 %v4903
        %v4964 = vunpack.c.h.bf16 %v4903
        %v4965 = vunpack.c.l.bf16 %v4904
        %v4966 = vunpack.c.h.bf16 %v4904
        %v4967 = vunpack.c.l.bf16 %v4905
        %v4968 = vunpack.c.h.bf16 %v4905
        %v4969 = vunpack.c.l.bf16 %v4906
        %v4970 = vunpack.c.h.bf16 %v4906
        %v4971 = vld [vmem:[%s652] sm:$0xf]
        %v4973 = vlaneseq
        %v4974 = vshrl.u32 %v4973, 7
        %v4975 = vsub.s32 0, %v4974
        %v4976 = vrot.slane %v4971, %v4975
        %v4977 = vlaneseq
        %v4978 = vshrl.u32 %v4977, 7
        %v4979 = vsub.s32 1, %v4978
        %v4980 = vrot.slane %v4971, %v4979
        %v4981 = vlaneseq
        %v4982 = vshrl.u32 %v4981, 7
        %v4983 = vsub.s32 2, %v4982
        %v4984 = vrot.slane %v4971, %v4983
        %v4985 = vlaneseq
        %v4986 = vshrl.u32 %v4985, 7
        %v4987 = vsub.s32 3, %v4986
        %v4988 = vrot.slane %v4971, %v4987
        %4993 = vmatprep.subr.mxu0 %v4968
        %4994 = vmatpush1.msra.mxu0 %v4967
        %4995 = vmatprep.subr.mxu0 %v4964
        %4996 = vmatpush1.msra.mxu0 %v4963
        %4997 = vmatprep.subr.mxu0 %v4960
        %4998 = vmatpush1.msra.mxu0 %v4959
        %4999 = vmatprep.subr.mxu0 %v4956
        %5000 = vmatpush1.msra.mxu0 %v4955
        %5001 = vmatprep.subr.mxu0 %v4952
        %5002 = vmatpush1.msra.mxu0 %v4951
        %5003 = vmatprep.subr.mxu0 %v4948
        %5004 = vmatpush1.msra.mxu0 %v4947
        %5005 = vmatprep.subr.mxu0 %v4944
        %5006 = vmatpush1.msra.mxu0 %v4943
        %5007 = vmatprep.subr.mxu0 %v4940
        %5008 = vmatpush1.msra.mxu0 %v4939
        %5009 = vmatprep.subr.mxu0 %v4936
        %5010 = vmatpush1.msra.mxu0 %v4935
        %5011 = vmatprep.subr.mxu0 %v4932
        %5012 = vmatpush1.msra.mxu0 %v4931
        %5013 = vmatprep.subr.mxu0 %v4928
        %5014 = vmatpush1.msra.mxu0 %v4927
        %5015 = vmatprep.subr.mxu0 %v4924
        %5016 = vmatpush1.msra.mxu0 %v4923
        %5017 = vmatprep.subr.mxu0 %v4920
        %5018 = vmatpush1.msra.mxu0 %v4919
        %5019 = vmatprep.subr.mxu0 %v4916
        %5020 = vmatpush1.msra.mxu0 %v4915
        %5021 = vmatprep.subr.mxu0 %v4912
        %5022 = vmatpush1.msra.mxu0 %v4911
        %5023 = vmatprep.subr.mxu0 %v4908
        %5024 = vmatpush1.msra.mxu0 %v4907
        %5025 = vmatprep.subr.mxu0 0.0
        %5026 = vmatpush2.msra.mxu0 0.0
        %5027 = vmatprep.subr.mxu0 0.0
        %5028 = vmatpush2.msra.mxu0 0.0
        %5029 = vmatprep.subr.mxu0 0.0
        %5030 = vmatpush2.msra.mxu0 0.0
        %5031 = vmatprep.subr.mxu0 0.0
        %5032 = vmatpush2.msra.mxu0 0.0
        %5033 = vmatprep.subr.mxu0 0.0
        %5034 = vmatpush2.msra.mxu0 0.0
        %5035 = vmatprep.subr.mxu0 0.0
        %5036 = vmatpush2.msra.mxu0 0.0
        %5037 = vmatprep.subr.mxu0 0.0
        %5038 = vmatpush2.msra.mxu0 0.0
        %5039 = vmatprep.subr.mxu0 0.0
        %5040 = vmatpush2.msra.mxu0 0.0
        %5041 = vmatprep.subr.mxu0 0.0
        %5042 = vmatpush2.msra.mxu0 0.0
        %5043 = vmatprep.subr.mxu0 0.0
        %5044 = vmatpush2.msra.mxu0 0.0
        %5045 = vmatprep.subr.mxu0 0.0
        %5046 = vmatpush2.msra.mxu0 0.0
        %5047 = vmatprep.subr.mxu0 0.0
        %5048 = vmatpush2.msra.mxu0 0.0
        %5049 = vmatprep.subr.mxu0 0.0
        %5050 = vmatpush2.msra.mxu0 0.0
        %5051 = vmatprep.subr.mxu0 0.0
        %5052 = vmatpush2.msra.mxu0 0.0
        %5053 = vmatprep.subr.mxu0 0.0
        %5054 = vmatpush2.msra.mxu0 0.0
        %5055 = vmatprep.subr.mxu0 0.0
        %5056 = vmatpush2.msra.mxu0 0.0
        %5057 = vmatprep.mubr.f32.mxu0 0.0
        %5058 = vmatmul.mubr.f32.gmra.mxu0 %v4871
        %v5059 = vpop.f32.mrf.mxu0
        %v5060 = vadd.f32 %v4976, %v5059
        %v5061 = vpop.f32.mrf.mxu0
        %v5062 = vadd.f32 %v4980, %v5061
        %5063 = vmatprep.mubr.f32.mxu0 0.0
        %5064 = vmatmul.mubr.f32.gmra.mxu0 %v4872
        %v5065 = vpop.f32.mrf.mxu0
        %v5066 = vadd.f32 %v4976, %v5065
        %v5067 = vpop.f32.mrf.mxu0
        %v5068 = vadd.f32 %v4980, %v5067
        %5069 = vmatprep.mubr.f32.mxu0 0.0
        %5070 = vmatmul.mubr.f32.gmra.mxu0 %v4873
        %v5071 = vpop.f32.mrf.mxu0
        %v5072 = vadd.f32 %v4976, %v5071
        %v5073 = vpop.f32.mrf.mxu0
        %v5074 = vadd.f32 %v4980, %v5073
        %5075 = vmatprep.mubr.f32.mxu0 0.0
        %5076 = vmatmul.mubr.f32.gmra.mxu0 %v4874
        %v5077 = vpop.f32.mrf.mxu0
        %v5078 = vadd.f32 %v4976, %v5077
        %v5079 = vpop.f32.mrf.mxu0
        %v5080 = vadd.f32 %v4980, %v5079
        %5081 = vdwg.mxu0
        %5082 = vmatprep.subr.mxu0 %v4970
        %5083 = vmatpush1.msra.mxu0 %v4969
        %5084 = vmatprep.subr.mxu0 %v4966
        %5085 = vmatpush1.msra.mxu0 %v4965
        %5086 = vmatprep.subr.mxu0 %v4962
        %5087 = vmatpush1.msra.mxu0 %v4961
        %5088 = vmatprep.subr.mxu0 %v4958
        %5089 = vmatpush1.msra.mxu0 %v4957
        %5090 = vmatprep.subr.mxu0 %v4954
        %5091 = vmatpush1.msra.mxu0 %v4953
        %5092 = vmatprep.subr.mxu0 %v4950
        %5093 = vmatpush1.msra.mxu0 %v4949
        %5094 = vmatprep.subr.mxu0 %v4946
        %5095 = vmatpush1.msra.mxu0 %v4945
        %5096 = vmatprep.subr.mxu0 %v4942
        %5097 = vmatpush1.msra.mxu0 %v4941
        %5098 = vmatprep.subr.mxu0 %v4938
        %5099 = vmatpush1.msra.mxu0 %v4937
        %5100 = vmatprep.subr.mxu0 %v4934
        %5101 = vmatpush1.msra.mxu0 %v4933
        %5102 = vmatprep.subr.mxu0 %v4930
        %5103 = vmatpush1.msra.mxu0 %v4929
        %5104 = vmatprep.subr.mxu0 %v4926
        %5105 = vmatpush1.msra.mxu0 %v4925
        %5106 = vmatprep.subr.mxu0 %v4922
        %5107 = vmatpush1.msra.mxu0 %v4921
        %5108 = vmatprep.subr.mxu0 %v4918
        %5109 = vmatpush1.msra.mxu0 %v4917
        %5110 = vmatprep.subr.mxu0 %v4914
        %5111 = vmatpush1.msra.mxu0 %v4913
        %5112 = vmatprep.subr.mxu0 %v4910
        %5113 = vmatpush1.msra.mxu0 %v4909
        %5114 = vmatprep.subr.mxu0 0.0
        %5115 = vmatpush2.msra.mxu0 0.0
        %5116 = vmatprep.subr.mxu0 0.0
        %5117 = vmatpush2.msra.mxu0 0.0
        %5118 = vmatprep.subr.mxu0 0.0
        %5119 = vmatpush2.msra.mxu0 0.0
        %5120 = vmatprep.subr.mxu0 0.0
        %5121 = vmatpush2.msra.mxu0 0.0
        %5122 = vmatprep.subr.mxu0 0.0
        %5123 = vmatpush2.msra.mxu0 0.0
        %5124 = vmatprep.subr.mxu0 0.0
        %5125 = vmatpush2.msra.mxu0 0.0
        %5126 = vmatprep.subr.mxu0 0.0
        %5127 = vmatpush2.msra.mxu0 0.0
        %5128 = vmatprep.subr.mxu0 0.0
        %5129 = vmatpush2.msra.mxu0 0.0
        %5130 = vmatprep.subr.mxu0 0.0
        %5131 = vmatpush2.msra.mxu0 0.0
        %5132 = vmatprep.subr.mxu0 0.0
        %5133 = vmatpush2.msra.mxu0 0.0
        %5134 = vmatprep.subr.mxu0 0.0
        %5135 = vmatpush2.msra.mxu0 0.0
        %5136 = vmatprep.subr.mxu0 0.0
        %5137 = vmatpush2.msra.mxu0 0.0
        %5138 = vmatprep.subr.mxu0 0.0
        %5139 = vmatpush2.msra.mxu0 0.0
        %5140 = vmatprep.subr.mxu0 0.0
        %5141 = vmatpush2.msra.mxu0 0.0
        %5142 = vmatprep.subr.mxu0 0.0
        %5143 = vmatpush2.msra.mxu0 0.0
        %5144 = vmatprep.subr.mxu0 0.0
        %5145 = vmatpush2.msra.mxu0 0.0
        %5146 = vmatprep.mubr.f32.mxu0 0.0
        %5147 = vmatmul.mubr.f32.gmra.mxu0 %v4871
        %v5148 = vpop.f32.mrf.mxu0
        %v5149 = vadd.f32 %v4984, %v5148
        %v5150 = vpop.f32.mrf.mxu0
        %v5151 = vadd.f32 %v4988, %v5150
        %5152 = vmatprep.mubr.f32.mxu0 0.0
        %5153 = vmatmul.mubr.f32.gmra.mxu0 %v4872
        %v5154 = vpop.f32.mrf.mxu0
        %v5155 = vadd.f32 %v4984, %v5154
        %v5156 = vpop.f32.mrf.mxu0
        %v5157 = vadd.f32 %v4988, %v5156
        %5158 = vmatprep.mubr.f32.mxu0 0.0
        %5159 = vmatmul.mubr.f32.gmra.mxu0 %v4873
        %v5160 = vpop.f32.mrf.mxu0
        %v5161 = vadd.f32 %v4984, %v5160
        %v5162 = vpop.f32.mrf.mxu0
        %v5163 = vadd.f32 %v4988, %v5162
        %5164 = vmatprep.mubr.f32.mxu0 0.0
        %5165 = vmatmul.mubr.f32.gmra.mxu0 %v4874
        %v5166 = vpop.f32.mrf.mxu0
        %v5167 = vadd.f32 %v4984, %v5166
        %v5168 = vpop.f32.mrf.mxu0
        %v5169 = vadd.f32 %v4988, %v5168
        %5170 = vdwg.mxu0
        %v5171 = vmax.f32 %v5060, 0.0
        %v5172 = vmax.f32 %v5062, 0.0
        %v5173 = vmax.f32 %v5149, 0.0
        %v5174 = vmax.f32 %v5151, 0.0
        %v5175 = vmax.f32 %v5066, 0.0
        %v5176 = vmax.f32 %v5068, 0.0
        %v5177 = vmax.f32 %v5155, 0.0
        %v5178 = vmax.f32 %v5157, 0.0
        %v5179 = vmax.f32 %v5072, 0.0
        %v5180 = vmax.f32 %v5074, 0.0
        %v5181 = vmax.f32 %v5161, 0.0
        %v5182 = vmax.f32 %v5163, 0.0
        %v5183 = vmax.f32 %v5078, 0.0
        %v5184 = vmax.f32 %v5080, 0.0
        %v5185 = vmax.f32 %v5167, 0.0
        %v5186 = vmax.f32 %v5169, 0.0
        %v5187 = vld [vmem:[%s661] sm:$0xf]
        %v5188 = vld [vmem:[%s661 + $0x4] sm:$0xf]
        %v5189 = vld [vmem:[%s661 + $0x8] sm:$0xf]
        %v5190 = vld [vmem:[%s661 + $0xc] sm:$0xf]
        %v5191 = vld [vmem:[%s661 + $0x10] sm:$0xf]
        %v5192 = vld [vmem:[%s661 + $0x14] sm:$0xf]
        %v5193 = vld [vmem:[%s661 + $0x18] sm:$0xf]
        %v5194 = vld [vmem:[%s661 + $0x1c] sm:$0xf]
        %v5195 = vld [vmem:[%s661 + $0x20] sm:$0xf]
        %v5196 = vld [vmem:[%s661 + $0x24] sm:$0xf]
        %v5197 = vld [vmem:[%s661 + $0x28] sm:$0xf]
        %v5198 = vld [vmem:[%s661 + $0x2c] sm:$0xf]
        %v5199 = vld [vmem:[%s661 + $0x30] sm:$0xf]
        %v5200 = vld [vmem:[%s661 + $0x34] sm:$0xf]
        %v5201 = vld [vmem:[%s661 + $0x38] sm:$0xf]
        %v5202 = vld [vmem:[%s661 + $0x3c] sm:$0xf]
        %v5203 = vld [vmem:[%s661 + $0x40] sm:$0xf]
        %v5204 = vld [vmem:[%s661 + $0x44] sm:$0xf]
        %v5205 = vld [vmem:[%s661 + $0x48] sm:$0xf]
        %v5206 = vld [vmem:[%s661 + $0x4c] sm:$0xf]
        %v5207 = vld [vmem:[%s661 + $0x50] sm:$0xf]
        %v5208 = vld [vmem:[%s661 + $0x54] sm:$0xf]
        %v5209 = vld [vmem:[%s661 + $0x58] sm:$0xf]
        %v5210 = vld [vmem:[%s661 + $0x5c] sm:$0xf]
        %v5211 = vld [vmem:[%s661 + $0x60] sm:$0xf]
        %v5212 = vld [vmem:[%s661 + $0x64] sm:$0xf]
        %v5213 = vld [vmem:[%s661 + $0x68] sm:$0xf]
        %v5214 = vld [vmem:[%s661 + $0x6c] sm:$0xf]
        %v5215 = vld [vmem:[%s661 + $0x70] sm:$0xf]
        %v5216 = vld [vmem:[%s661 + $0x74] sm:$0xf]
        %v5217 = vld [vmem:[%s661 + $0x78] sm:$0xf]
        %v5218 = vld [vmem:[%s661 + $0x7c] sm:$0xf]
        %v5219 = vld [vmem:[%s661 + $0x80] sm:$0xf]
        %v5220 = vld [vmem:[%s661 + $0x84] sm:$0xf]
        %v5221 = vld [vmem:[%s661 + $0x88] sm:$0xf]
        %v5222 = vld [vmem:[%s661 + $0x8c] sm:$0xf]
        %v5223 = vld [vmem:[%s661 + $0x90] sm:$0xf]
        %v5224 = vld [vmem:[%s661 + $0x94] sm:$0xf]
        %v5225 = vld [vmem:[%s661 + $0x98] sm:$0xf]
        %v5226 = vld [vmem:[%s661 + $0x9c] sm:$0xf]
        %v5227 = vld [vmem:[%s661 + $0xa0] sm:$0xf]
        %v5228 = vld [vmem:[%s661 + $0xa4] sm:$0xf]
        %v5229 = vld [vmem:[%s661 + $0xa8] sm:$0xf]
        %v5230 = vld [vmem:[%s661 + $0xac] sm:$0xf]
        %v5231 = vld [vmem:[%s661 + $0xb0] sm:$0xf]
        %v5232 = vld [vmem:[%s661 + $0xb4] sm:$0xf]
        %v5233 = vld [vmem:[%s661 + $0xb8] sm:$0xf]
        %v5234 = vld [vmem:[%s661 + $0xbc] sm:$0xf]
        %v5235 = vld [vmem:[%s661 + $0xc0] sm:$0xf]
        %v5236 = vld [vmem:[%s661 + $0xc4] sm:$0xf]
        %v5237 = vld [vmem:[%s661 + $0xc8] sm:$0xf]
        %v5238 = vld [vmem:[%s661 + $0xcc] sm:$0xf]
        %v5239 = vld [vmem:[%s661 + $0xd0] sm:$0xf]
        %v5240 = vld [vmem:[%s661 + $0xd4] sm:$0xf]
        %v5241 = vld [vmem:[%s661 + $0xd8] sm:$0xf]
        %v5242 = vld [vmem:[%s661 + $0xdc] sm:$0xf]
        %v5243 = vld [vmem:[%s661 + $0xe0] sm:$0xf]
        %v5244 = vld [vmem:[%s661 + $0xe4] sm:$0xf]
        %v5245 = vld [vmem:[%s661 + $0xe8] sm:$0xf]
        %v5246 = vld [vmem:[%s661 + $0xec] sm:$0xf]
        %v5247 = vld [vmem:[%s661 + $0xf0] sm:$0xf]
        %v5248 = vld [vmem:[%s661 + $0xf4] sm:$0xf]
        %v5249 = vld [vmem:[%s661 + $0xf8] sm:$0xf]
        %v5250 = vld [vmem:[%s661 + $0xfc] sm:$0xf]
        %v5251 = vunpack.c.l.bf16 %v5187
        %v5252 = vunpack.c.l.bf16 %v5188
        %v5253 = vunpack.c.l.bf16 %v5189
        %v5254 = vunpack.c.l.bf16 %v5190
        %v5255 = vunpack.c.l.bf16 %v5191
        %v5256 = vunpack.c.l.bf16 %v5192
        %v5257 = vunpack.c.l.bf16 %v5193
        %v5258 = vunpack.c.l.bf16 %v5194
        %v5259 = vunpack.c.l.bf16 %v5195
        %v5260 = vunpack.c.l.bf16 %v5196
        %v5261 = vunpack.c.l.bf16 %v5197
        %v5262 = vunpack.c.l.bf16 %v5198
        %v5263 = vunpack.c.l.bf16 %v5199
        %v5264 = vunpack.c.l.bf16 %v5200
        %v5265 = vunpack.c.l.bf16 %v5201
        %v5266 = vunpack.c.l.bf16 %v5202
        %v5267 = vunpack.c.l.bf16 %v5203
        %v5268 = vunpack.c.l.bf16 %v5204
        %v5269 = vunpack.c.l.bf16 %v5205
        %v5270 = vunpack.c.l.bf16 %v5206
        %v5271 = vunpack.c.l.bf16 %v5207
        %v5272 = vunpack.c.l.bf16 %v5208
        %v5273 = vunpack.c.l.bf16 %v5209
        %v5274 = vunpack.c.l.bf16 %v5210
        %v5275 = vunpack.c.l.bf16 %v5211
        %v5276 = vunpack.c.l.bf16 %v5212
        %v5277 = vunpack.c.l.bf16 %v5213
        %v5278 = vunpack.c.l.bf16 %v5214
        %v5279 = vunpack.c.l.bf16 %v5215
        %v5280 = vunpack.c.l.bf16 %v5216
        %v5281 = vunpack.c.l.bf16 %v5217
        %v5282 = vunpack.c.l.bf16 %v5218
        %v5283 = vunpack.c.l.bf16 %v5219
        %v5284 = vunpack.c.l.bf16 %v5220
        %v5285 = vunpack.c.l.bf16 %v5221
        %v5286 = vunpack.c.l.bf16 %v5222
        %v5287 = vunpack.c.l.bf16 %v5223
        %v5288 = vunpack.c.l.bf16 %v5224
        %v5289 = vunpack.c.l.bf16 %v5225
        %v5290 = vunpack.c.l.bf16 %v5226
        %v5291 = vunpack.c.l.bf16 %v5227
        %v5292 = vunpack.c.l.bf16 %v5228
        %v5293 = vunpack.c.l.bf16 %v5229
        %v5294 = vunpack.c.l.bf16 %v5230
        %v5295 = vunpack.c.l.bf16 %v5231
        %v5296 = vunpack.c.l.bf16 %v5232
        %v5297 = vunpack.c.l.bf16 %v5233
        %v5298 = vunpack.c.l.bf16 %v5234
        %v5299 = vunpack.c.l.bf16 %v5235
        %v5300 = vunpack.c.l.bf16 %v5236
        %v5301 = vunpack.c.l.bf16 %v5237
        %v5302 = vunpack.c.l.bf16 %v5238
        %v5303 = vunpack.c.l.bf16 %v5239
        %v5304 = vunpack.c.l.bf16 %v5240
        %v5305 = vunpack.c.l.bf16 %v5241
        %v5306 = vunpack.c.l.bf16 %v5242
        %v5307 = vunpack.c.l.bf16 %v5243
        %v5308 = vunpack.c.l.bf16 %v5244
        %v5309 = vunpack.c.l.bf16 %v5245
        %v5310 = vunpack.c.l.bf16 %v5246
        %v5311 = vunpack.c.l.bf16 %v5247
        %v5312 = vunpack.c.l.bf16 %v5248
        %v5313 = vunpack.c.l.bf16 %v5249
        %v5314 = vunpack.c.l.bf16 %v5250
        %v5315 = vld [vmem:[%s744] sm:$0x1]
        %v5317 = vlaneseq
        %v5318 = vshrl.u32 %v5317, 7
        %v5319 = vsub.s32 0, %v5318
        %v5320 = vrot.slane %v5315, %v5319
        %5322 = vmatprep.subr.mxu0 0.0
        %5323 = vmatpush1.msra.mxu0 %v5266
        %5324 = vmatprep.subr.mxu0 0.0
        %5325 = vmatpush1.msra.mxu0 %v5265
        %5326 = vmatprep.subr.mxu0 0.0
        %5327 = vmatpush1.msra.mxu0 %v5264
        %5328 = vmatprep.subr.mxu0 0.0
        %5329 = vmatpush1.msra.mxu0 %v5263
        %5330 = vmatprep.subr.mxu0 0.0
        %5331 = vmatpush1.msra.mxu0 %v5262
        %5332 = vmatprep.subr.mxu0 0.0
        %5333 = vmatpush1.msra.mxu0 %v5261
        %5334 = vmatprep.subr.mxu0 0.0
        %5335 = vmatpush1.msra.mxu0 %v5260
        %5336 = vmatprep.subr.mxu0 0.0
        %5337 = vmatpush1.msra.mxu0 %v5259
        %5338 = vmatprep.subr.mxu0 0.0
        %5339 = vmatpush1.msra.mxu0 %v5258
        %5340 = vmatprep.subr.mxu0 0.0
        %5341 = vmatpush1.msra.mxu0 %v5257
        %5342 = vmatprep.subr.mxu0 0.0
        %5343 = vmatpush1.msra.mxu0 %v5256
        %5344 = vmatprep.subr.mxu0 0.0
        %5345 = vmatpush1.msra.mxu0 %v5255
        %5346 = vmatprep.subr.mxu0 0.0
        %5347 = vmatpush1.msra.mxu0 %v5254
        %5348 = vmatprep.subr.mxu0 0.0
        %5349 = vmatpush1.msra.mxu0 %v5253
        %5350 = vmatprep.subr.mxu0 0.0
        %5351 = vmatpush1.msra.mxu0 %v5252
        %5352 = vmatprep.subr.mxu0 0.0
        %5353 = vmatpush1.msra.mxu0 %v5251
        %5354 = vmatprep.subr.mxu0 0.0
        %5355 = vmatpush2.msra.mxu0 %v5282
        %5356 = vmatprep.subr.mxu0 0.0
        %5357 = vmatpush2.msra.mxu0 %v5281
        %5358 = vmatprep.subr.mxu0 0.0
        %5359 = vmatpush2.msra.mxu0 %v5280
        %5360 = vmatprep.subr.mxu0 0.0
        %5361 = vmatpush2.msra.mxu0 %v5279
        %5362 = vmatprep.subr.mxu0 0.0
        %5363 = vmatpush2.msra.mxu0 %v5278
        %5364 = vmatprep.subr.mxu0 0.0
        %5365 = vmatpush2.msra.mxu0 %v5277
        %5366 = vmatprep.subr.mxu0 0.0
        %5367 = vmatpush2.msra.mxu0 %v5276
        %5368 = vmatprep.subr.mxu0 0.0
        %5369 = vmatpush2.msra.mxu0 %v5275
        %5370 = vmatprep.subr.mxu0 0.0
        %5371 = vmatpush2.msra.mxu0 %v5274
        %5372 = vmatprep.subr.mxu0 0.0
        %5373 = vmatpush2.msra.mxu0 %v5273
        %5374 = vmatprep.subr.mxu0 0.0
        %5375 = vmatpush2.msra.mxu0 %v5272
        %5376 = vmatprep.subr.mxu0 0.0
        %5377 = vmatpush2.msra.mxu0 %v5271
        %5378 = vmatprep.subr.mxu0 0.0
        %5379 = vmatpush2.msra.mxu0 %v5270
        %5380 = vmatprep.subr.mxu0 0.0
        %5381 = vmatpush2.msra.mxu0 %v5269
        %5382 = vmatprep.subr.mxu0 0.0
        %5383 = vmatpush2.msra.mxu0 %v5268
        %5384 = vmatprep.subr.mxu0 0.0
        %5385 = vmatpush2.msra.mxu0 %v5267
        %5386 = vmatprep.mubr.f32.mxu0 %v5172
        %5387 = vmatmul.mubr.f32.gmra.mxu0 %v5171
        %v5388 = vpop.f32.mrf.mxu0
        %v5389 = vadd.f32 %v5320, %v5388
        %v5390 = vpop.f32.mrf.mxu0
        %5391 = vmatprep.mubr.f32.mxu0 %v5176
        %5392 = vmatmul.mubr.f32.gmra.mxu0 %v5175
        %v5393 = vpop.f32.mrf.mxu0
        %v5394 = vadd.f32 %v5320, %v5393
        %v5395 = vpop.f32.mrf.mxu0
        %5396 = vmatprep.mubr.f32.mxu0 %v5180
        %5397 = vmatmul.mubr.f32.gmra.mxu0 %v5179
        %v5398 = vpop.f32.mrf.mxu0
        %v5399 = vadd.f32 %v5320, %v5398
        %v5400 = vpop.f32.mrf.mxu0
        %5401 = vmatprep.mubr.f32.mxu0 %v5184
        %5402 = vmatmul.mubr.f32.gmra.mxu0 %v5183
        %v5403 = vpop.f32.mrf.mxu0
        %v5404 = vadd.f32 %v5320, %v5403
        %v5405 = vpop.f32.mrf.mxu0
        %5406 = vdwg.mxu0
        %5407 = vmatprep.subr.mxu0 0.0
        %5408 = vmatpush1.msra.mxu0 %v5298
        %5409 = vmatprep.subr.mxu0 0.0
        %5410 = vmatpush1.msra.mxu0 %v5297
        %5411 = vmatprep.subr.mxu0 0.0
        %5412 = vmatpush1.msra.mxu0 %v5296
        %5413 = vmatprep.subr.mxu0 0.0
        %5414 = vmatpush1.msra.mxu0 %v5295
        %5415 = vmatprep.subr.mxu0 0.0
        %5416 = vmatpush1.msra.mxu0 %v5294
        %5417 = vmatprep.subr.mxu0 0.0
        %5418 = vmatpush1.msra.mxu0 %v5293
        %5419 = vmatprep.subr.mxu0 0.0
        %5420 = vmatpush1.msra.mxu0 %v5292
        %5421 = vmatprep.subr.mxu0 0.0
        %5422 = vmatpush1.msra.mxu0 %v5291
        %5423 = vmatprep.subr.mxu0 0.0
        %5424 = vmatpush1.msra.mxu0 %v5290
        %5425 = vmatprep.subr.mxu0 0.0
        %5426 = vmatpush1.msra.mxu0 %v5289
        %5427 = vmatprep.subr.mxu0 0.0
        %5428 = vmatpush1.msra.mxu0 %v5288
        %5429 = vmatprep.subr.mxu0 0.0
        %5430 = vmatpush1.msra.mxu0 %v5287
        %5431 = vmatprep.subr.mxu0 0.0
        %5432 = vmatpush1.msra.mxu0 %v5286
        %5433 = vmatprep.subr.mxu0 0.0
        %5434 = vmatpush1.msra.mxu0 %v5285
        %5435 = vmatprep.subr.mxu0 0.0
        %5436 = vmatpush1.msra.mxu0 %v5284
        %5437 = vmatprep.subr.mxu0 0.0
        %5438 = vmatpush1.msra.mxu0 %v5283
        %5439 = vmatprep.subr.mxu0 0.0
        %5440 = vmatpush2.msra.mxu0 %v5314
        %5441 = vmatprep.subr.mxu0 0.0
        %5442 = vmatpush2.msra.mxu0 %v5313
        %5443 = vmatprep.subr.mxu0 0.0
        %5444 = vmatpush2.msra.mxu0 %v5312
        %5445 = vmatprep.subr.mxu0 0.0
        %5446 = vmatpush2.msra.mxu0 %v5311
        %5447 = vmatprep.subr.mxu0 0.0
        %5448 = vmatpush2.msra.mxu0 %v5310
        %5449 = vmatprep.subr.mxu0 0.0
        %5450 = vmatpush2.msra.mxu0 %v5309
        %5451 = vmatprep.subr.mxu0 0.0
        %5452 = vmatpush2.msra.mxu0 %v5308
        %5453 = vmatprep.subr.mxu0 0.0
        %5454 = vmatpush2.msra.mxu0 %v5307
        %5455 = vmatprep.subr.mxu0 0.0
        %5456 = vmatpush2.msra.mxu0 %v5306
        %5457 = vmatprep.subr.mxu0 0.0
        %5458 = vmatpush2.msra.mxu0 %v5305
        %5459 = vmatprep.subr.mxu0 0.0
        %5460 = vmatpush2.msra.mxu0 %v5304
        %5461 = vmatprep.subr.mxu0 0.0
        %5462 = vmatpush2.msra.mxu0 %v5303
        %5463 = vmatprep.subr.mxu0 0.0
        %5464 = vmatpush2.msra.mxu0 %v5302
        %5465 = vmatprep.subr.mxu0 0.0
        %5466 = vmatpush2.msra.mxu0 %v5301
        %5467 = vmatprep.subr.mxu0 0.0
        %5468 = vmatpush2.msra.mxu0 %v5300
        %5469 = vmatprep.subr.mxu0 0.0
        %5470 = vmatpush2.msra.mxu0 %v5299
        %5471 = vmatprep.mubr.f32.mxu0 %v5174
        %5472 = vmatmul.mubr.f32.gmra.mxu0 %v5173
        %v5473 = vpop.f32.mrf.mxu0
        %v5474 = vadd.f32 %v5389, %v5473
        %v5475 = vpop.f32.mrf.mxu0
        %5476 = vmatprep.mubr.f32.mxu0 %v5178
        %5477 = vmatmul.mubr.f32.gmra.mxu0 %v5177
        %v5478 = vpop.f32.mrf.mxu0
        %v5479 = vadd.f32 %v5394, %v5478
        %v5480 = vpop.f32.mrf.mxu0
        %5481 = vmatprep.mubr.f32.mxu0 %v5182
        %5482 = vmatmul.mubr.f32.gmra.mxu0 %v5181
        %v5483 = vpop.f32.mrf.mxu0
        %v5484 = vadd.f32 %v5399, %v5483
        %v5485 = vpop.f32.mrf.mxu0
        %5486 = vmatprep.mubr.f32.mxu0 %v5186
        %5487 = vmatmul.mubr.f32.gmra.mxu0 %v5185
        %v5488 = vpop.f32.mrf.mxu0
        %v5489 = vadd.f32 %v5404, %v5488
        %v5490 = vpop.f32.mrf.mxu0
        %5491 = vdwg.mxu0
        %v5492 = vadd.f32 %v4805, %v5474
        %v5493 = vadd.f32 %v4806, %v5479
        %v5494 = vadd.f32 %v4807, %v5484
        %v5495 = vadd.f32 %v4808, %v5489
        %5496 = vst [vmem:[#allocation21] sm:$0xff] %v5492
        %5497 = vst [vmem:[#allocation21 + $0x8] sm:$0xff] %v5493
        %5498 = vst [vmem:[#allocation21 + $0x10] sm:$0xff] %v5494
        %5499 = vst [vmem:[#allocation21 + $0x18] sm:$0xff] %v5495
        // Predicated region
        $region113: #{tpu_custom_call.1} parent=67 // pred_check
          %p5500 = pneg %p360
        $region114: #{tpu_custom_call.1} parent=67 // pred_check_branch
          %5502 = sbr.rel (%p5500) target = $region116
        $region115: #{tpu_custom_call.1} parent=67 // pred_region
          %s5504 = ssub.s32 512, 512
          %5505 = vsyncadd [#allocation6], %s5504
          %s5506 = sshll.u32 [#allocation21], 4
          %s5507 = int_to_ptr.vmem [resolvable:$true] %s5506
          %5512 = dma.vmem_to_hbm [thread:$0]  %s5507, 512, %s12, [#allocation6], 128, 128, 8
        $region116: #{tpu_custom_call.1} parent=67 // pred_fallthru
          _
        // Predicated region
        $region117: #{tpu_custom_call.1} parent=67 // pred_check
          %p5513 = pneg %p360
        $region118: #{tpu_custom_call.1} parent=67 // pred_check_branch
          %5515 = sbr.rel (%p5513) target = $region120
        $region119: #{tpu_custom_call.1} parent=67 // pred_region
          %5516 = dma.done [#allocation6], 512
        $region120: #{tpu_custom_call.1} parent=67 // pred_fallthru
          _
      $region68: #{tpu_custom_call.1} parent=5 // pred_fallthru
        _
      %p5517 = scmp.le.s32.totalorder 2, %s35
      // Predicated region
      $region121: #{tpu_custom_call.1} parent=5 // pred_check
        %p5518 = pneg %p5517
      $region122: #{tpu_custom_call.1} parent=5 // pred_check_branch
        %5520 = sbr.rel (%p5518) target = $region124
      $region123: #{tpu_custom_call.1} parent=5 // pred_region
        %s5521 = ssub.s32 %s35, 2
      $region124: #{tpu_custom_call.1} parent=5 // pred_fallthru
        _
    $region6: #{tpu_custom_call.1} parent=1 // loop_footer
      %s39 = sadd.s32 1, %s35
    $region7: #{tpu_custom_call.1} parent=1 // loop_footer_branch
      %34 = sbr.rel target = $region3
    $region8: #{tpu_custom_call.1} parent=1 // loop_exit
      _
    %5522 = vsyncpa [#allocation5], 1
    %s5523 = scalar_lea.sflag [#allocation5], 1
    %5524 = vsyncpa %s5523, 1
    %5525 = vsyncpa [#allocation8], 1
    %s5526 = scalar_lea.sflag [#allocation8], 1
    %5527 = vsyncpa %s5526, 1
    %5528 = vsyncpa [#allocation11], 1
    %s5529 = scalar_lea.sflag [#allocation11], 1
    %5530 = vsyncpa %s5529, 1
    %5531 = vsyncpa [#allocation14], 1
    %s5532 = scalar_lea.sflag [#allocation14], 1
    %5533 = vsyncpa %s5532, 1
    %5534 = vsyncpa [#allocation17], 1
    %s5535 = scalar_lea.sflag [#allocation17], 1
    %5536 = vsyncpa %s5535, 1
    %5537 = vsyncpa [#allocation20], 1
    %s5538 = scalar_lea.sflag [#allocation20], 1
    %5539 = vsyncpa %s5538, 1
    %5540 = vsyncpa [#allocation6], 1
    %s5541 = scalar_lea.sflag [#allocation6], 1
    %5542 = vsyncpa %s5541, 1

</llo_original>
